<compile_context>
chip_gen: v7x
topology: tpu7x:2x2x1
jax: 0.10.0
libtpu: 0.0.40
codegen_flags: <defaults>
</compile_context>

<pallas_src>
import math
from functools import partial

import jax
import jax.numpy as jnp
from jax.experimental import pallas as pl
from jax.experimental.pallas import tpu as pltpu


# ----------------------------- BlockSpec helpers -----------------------------

def _spec_batch(shape):
    """Per-batch-element block (leading batch dim squeezed); grid = (B, NL)."""
    n = len(shape)

    def imap(b, l):
        return (b,) + (0,) * (n - 1)

    return pl.BlockSpec((None,) + tuple(shape[1:]), imap)


def _spec_layer(shape):
    """Per-layer block of a layer-stacked weight (leading layer dim squeezed)."""
    n = len(shape)

    def imap(b, l):
        return (l,) + (0,) * (n - 1)

    return pl.BlockSpec((None,) + tuple(shape[1:]), imap)


def _spec_shared_sq0(shape):
    """Whole array, leading size-1 dim squeezed, same block for every grid point."""
    n = len(shape)

    def imap(b, l):
        return (0,) * n

    return pl.BlockSpec((None,) + tuple(shape[1:]), imap)


def _spec_shared(shape):
    """Whole array, same block for every grid point."""
    n = len(shape)

    def imap(b, l):
        return (0,) * n

    return pl.BlockSpec(tuple(shape), imap)


# ----------------------------- in-kernel helpers -----------------------------

def _layernorm(x, g, b, eps=1e-5):
    mu = jnp.mean(x, axis=-1, keepdims=True)
    var = jnp.mean((x - mu) ** 2, axis=-1, keepdims=True)
    return (x - mu) * jax.lax.rsqrt(var + eps) * g + b


def _proj_heads(x16, w, b):
    """x16: [L, D] bf16; w: [G, D, Dh] bf16; b: [G, 1, Dh] f32  ->  [G, L, Dh] f32."""
    G = w.shape[0]
    xb = jnp.broadcast_to(x16[None], (G,) + x16.shape)
    y = jax.lax.dot_general(xb, w, (((2,), (1,)), ((0,), (0,))),
                            preferred_element_type=jnp.float32)
    return y + b


def _mha_heads(q, k, v, mask):
    """Head-batched attention.  q/k/v: [G, L, Dh] f32 (scale folded into Q weights).

    Single-batch-dim dot_generals only; softmax in f32 with exact divide."""
    s = jax.lax.dot_general(q.astype(jnp.bfloat16), k.astype(jnp.bfloat16),
                            (((2,), (2,)), ((0,), (0,))),
                            preferred_element_type=jnp.float32)     # [G, Lq, Lk]
    if mask is not None:
        s = s + mask                                                # [Lq, Lk] bcast
    s = s - jnp.max(s, axis=-1, keepdims=True)
    p = jnp.exp(s)
    p = p / jnp.sum(p, axis=-1, keepdims=True)
    return jax.lax.dot_general(p.astype(jnp.bfloat16), v.astype(jnp.bfloat16),
                               (((2,), (1,)), ((0,), (0,))),
                               preferred_element_type=jnp.float32)  # [G, Lq, Dh]


def _out_proj(a, wo, bo):
    """a: [H, L, Dh] f32; wo: [H, Dh, D] bf16; bo: [1, D] f32  ->  [L, D] f32."""
    t = jax.lax.dot_general(a.astype(jnp.bfloat16), wo,
                            (((2,), (1,)), ((0,), (0,))),
                            preferred_element_type=jnp.float32)     # [H, L, D]
    return jnp.sum(t, axis=0) + bo


def _ffn(h, w1, b1, w2, b2):
    ff = jnp.dot(h.astype(jnp.bfloat16), w1,
                 preferred_element_type=jnp.float32) + b1
    ff = jnp.maximum(ff, 0.0)
    return jnp.dot(ff.astype(jnp.bfloat16), w2,
                   preferred_element_type=jnp.float32) + b2


# ------------------------------- fused kernels -------------------------------

def _enc_stack_kernel(emb_ref, pe_ref,
                      wqkvh_ref, bqkvh_ref, woh_ref, bo_ref,
                      w1_ref, b1_ref, w2_ref, b2_ref,
                      ln1g_ref, ln1b_ref, ln2g_ref, ln2b_ref,
                      fng_ref, fnb_ref,
                      out_ref, x_sc, *, num_heads, emb_scale):
    layer = pl.program_id(1)
    n_layers = pl.num_programs(1)
    H = num_heads

    # fold embedding scale + positional encoding into the first layer step
    @pl.when(layer == 0)
    def _():
        x_sc[...] = emb_ref[...] * emb_scale + pe_ref[...]

    x = x_sc[...]                                   # [Ls, D] f32 (layer input)
    x16 = x.astype(jnp.bfloat16)

    # --- self-attention (head-batched QKV, no mask) ---
    qkv = _proj_heads(x16, wqkvh_ref[...], bqkvh_ref[...])          # [3H, Ls, Dh]
    a = _mha_heads(qkv[:H], qkv[H:2 * H], qkv[2 * H:], None)        # [H, Ls, Dh]
    a = _out_proj(a, woh_ref[...], bo_ref[...])                     # [Ls, D]
    h1 = _layernorm(x + a, ln1g_ref[...], ln1b_ref[...])

    # --- FFN (intermediate never leaves VMEM) ---
    ff = _ffn(h1, w1_ref[...], b1_ref[...], w2_ref[...], b2_ref[...])
    h2 = _layernorm(h1 + ff, ln2g_ref[...], ln2b_ref[...])
    x_sc[...] = h2

    # fold encoder-final LayerNorm into the last layer step
    @pl.when(layer == n_layers - 1)
    def _():
        out_ref[...] = _layernorm(h2, fng_ref[...], fnb_ref[...])


def _dec_stack_kernel(emb_ref, pe_ref, mem_ref,
                      sa_wqkvh_ref, sa_bqkvh_ref, sa_woh_ref, sa_bo_ref,
                      ca_wqh_ref, ca_bqh_ref, ca_wkvh_ref, ca_bkvh_ref,
                      ca_woh_ref, ca_bo_ref,
                      w1_ref, b1_ref, w2_ref, b2_ref,
                      ln1g_ref, ln1b_ref, ln2g_ref, ln2b_ref,
                      ln3g_ref, ln3b_ref,
                      fng_ref, fnb_ref, fcw_ref, fcb_ref,
                      out_ref, y_sc, *, num_heads, emb_scale):
    layer = pl.program_id(1)
    n_layers = pl.num_programs(1)
    Lt, _ = emb_ref.shape
    H = num_heads

    @pl.when(layer == 0)
    def _():
        y_sc[...] = emb_ref[...] * emb_scale + pe_ref[...]

    y = y_sc[...]                                   # [Lt, D] f32
    y16 = y.astype(jnp.bfloat16)

    # causal mask built in-kernel (no per-layer HBM mask DMA)
    row = jax.lax.broadcasted_iota(jnp.int32, (Lt, Lt), 0)
    col = jax.lax.broadcasted_iota(jnp.int32, (Lt, Lt), 1)
    causal = jnp.where(col > row, -1e9, 0.0).astype(jnp.float32)

    # --- causal self-attention ---
    qkv = _proj_heads(y16, sa_wqkvh_ref[...], sa_bqkvh_ref[...])    # [3H, Lt, Dh]
    a = _mha_heads(qkv[:H], qkv[H:2 * H], qkv[2 * H:], causal)
    a = _out_proj(a, sa_woh_ref[...], sa_bo_ref[...])
    h1 = _layernorm(y + a, ln1g_ref[...], ln1b_ref[...])

    # --- cross-attention over encoder memory (resident in VMEM, no mask) ---
    mem16 = mem_ref[...].astype(jnp.bfloat16)
    q = _proj_heads(h1.astype(jnp.bfloat16), ca_wqh_ref[...], ca_bqh_ref[...])
    kv = _proj_heads(mem16, ca_wkvh_ref[...], ca_bkvh_ref[...])     # [2H, Ls, Dh]
    a = _mha_heads(q, kv[:H], kv[H:], None)
    a = _out_proj(a, ca_woh_ref[...], ca_bo_ref[...])
    h2 = _layernorm(h1 + a, ln2g_ref[...], ln2b_ref[...])

    # --- FFN ---
    ff = _ffn(h2, w1_ref[...], b1_ref[...], w2_ref[...], b2_ref[...])
    h3 = _layernorm(h2 + ff, ln3g_ref[...], ln3b_ref[...])
    y_sc[...] = h3

    # fold decoder-final LayerNorm + (128-lane padded) vocab projection into last step
    @pl.when(layer == n_layers - 1)
    def _():
        yf = _layernorm(h3, fng_ref[...], fnb_ref[...])
        out_ref[...] = (jnp.dot(yf.astype(jnp.bfloat16), fcw_ref[...],
                                preferred_element_type=jnp.float32) + fcb_ref[...])


# --------------------------------- wrappers -----------------------------------

_COMPILER_PARAMS = pltpu.CompilerParams(
    dimension_semantics=("parallel", "arbitrary"))   # batch || across cores, layers serial


def _encode_stack(emb, pe, w, fng, fnb, *, num_heads, emb_scale, num_layers):
    B, Ls, D = emb.shape
    layer_names = ("wqkvh", "bqkvh", "woh", "bo", "w1", "b1", "w2", "b2",
                   "ln1g", "ln1b", "ln2g", "ln2b")
    args = [emb, pe] + [w[k] for k in layer_names] + [fng, fnb]
    specs = ([_spec_batch(emb.shape), _spec_shared_sq0(pe.shape)]
             + [_spec_layer(w[k].shape) for k in layer_names]
             + [_spec_shared(fng.shape), _spec_shared(fnb.shape)])
    return pl.pallas_call(
        partial(_enc_stack_kernel, num_heads=num_heads, emb_scale=emb_scale),
        out_shape=jax.ShapeDtypeStruct((B, Ls, D), jnp.float32),
        grid=(B, num_layers),
        in_specs=specs,
        out_specs=_spec_batch((B, Ls, D)),
        scratch_shapes=[pltpu.VMEM((Ls, D), jnp.float32)],
        compiler_params=_COMPILER_PARAMS,
    )(*args)


def _decode_stack(emb, pe, memory, w, fng, fnb, fcw, fcb,
                  *, num_heads, emb_scale, num_layers):
    B, Lt, D = emb.shape
    Vpad = fcw.shape[1]
    layer_names = ("sa_wqkvh", "sa_bqkvh", "sa_woh", "sa_bo",
                   "ca_wqh", "ca_bqh", "ca_wkvh", "ca_bkvh", "ca_woh", "ca_bo",
                   "w1", "b1", "w2", "b2",
                   "ln1g", "ln1b", "ln2g", "ln2b", "ln3g", "ln3b")
    args = [emb, pe, memory] + [w[k] for k in layer_names] + [fng, fnb, fcw, fcb]
    specs = ([_spec_batch(emb.shape), _spec_shared_sq0(pe.shape),
              _spec_batch(memory.shape)]
             + [_spec_layer(w[k].shape) for k in layer_names]
             + [_spec_shared(fng.shape), _spec_shared(fnb.shape),
                _spec_shared(fcw.shape), _spec_shared(fcb.shape)])

    def out_imap(b, l):
        return (b, 0)

    return pl.pallas_call(
        partial(_dec_stack_kernel, num_heads=num_heads, emb_scale=emb_scale),
        out_shape=jax.ShapeDtypeStruct((B * Lt, Vpad), jnp.float32),
        grid=(B, num_layers),
        in_specs=specs,
        out_specs=pl.BlockSpec((Lt, Vpad), out_imap),   # lane-dense output slab
        scratch_shapes=[pltpu.VMEM((Lt, D), jnp.float32)],
        compiler_params=_COMPILER_PARAMS,
    )(*args)


# ------------------------------ model (glue) ----------------------------------

def sinusoidal_pe(max_len, d_model):
    position = jnp.arange(max_len, dtype=jnp.float32)[:, None]
    div_term = jnp.exp(
        jnp.arange(0, d_model, 2, dtype=jnp.float32) * (-math.log(10000.0) / d_model))
    pe = jnp.zeros((max_len, d_model), jnp.float32)
    pe = pe.at[:, 0::2].set(jnp.sin(position * div_term))
    pe = pe.at[:, 1::2].set(jnp.cos(position * div_term))
    return pe[None]  # [1, max_len, d_model]


def prepare_params(params, cfg):
    """One-time weight prep: per-head stacking, layer stacking, scale folding,
    bf16 casting, vocab padding.  Done once outside the forward pass."""
    D, H, V = cfg["embed_dim"], cfg["num_heads"], cfg["vocab_size"]
    Dh = D // H
    qscale = 1.0 / math.sqrt(Dh)          # attention scale folded into Q weights

    def heads_cols(wcol, bcol, scale=1.0):
        wh = (wcol * scale).reshape(D, H, Dh).transpose(1, 0, 2)   # [H, D, Dh]
        bh = (bcol * scale).reshape(H, 1, Dh)                      # [H, 1, Dh]
        return wh, bh

    def prep_self_attn(p):
        wq, wk, wv = p["wqkv"][:, :D], p["wqkv"][:, D:2 * D], p["wqkv"][:, 2 * D:]
        bq, bk, bv = p["bqkv"][:D], p["bqkv"][D:2 * D], p["bqkv"][2 * D:]
        wqh, bqh = heads_cols(wq, bq, qscale)
        wkh, bkh = heads_cols(wk, bk)
        wvh, bvh = heads_cols(wv, bv)
        return (jnp.concatenate([wqh, wkh, wvh], axis=0),   # [3H, D, Dh]
                jnp.concatenate([bqh, bkh, bvh], axis=0),   # [3H, 1, Dh]
                p["wo"].reshape(H, Dh, D),                  # [H, Dh, D]
                p["bo"].reshape(1, D))

    def prep_cross_attn(p):
        wqh, bqh = heads_cols(p["wq"], p["bq"], qscale)
        wk, wv = p["wkv"][:, :D], p["wkv"][:, D:]
        bk, bv = p["bkv"][:D], p["bkv"][D:]
        wkh, bkh = heads_cols(wk, bk)
        wvh, bvh = heads_cols(wv, bv)
        return (wqh, bqh,
                jnp.concatenate([wkh, wvh], axis=0),        # [2H, D, Dh]
                jnp.concatenate([bkh, bvh], axis=0),        # [2H, 1, Dh]
                p["wo"].reshape(H, Dh, D),
                p["bo"].reshape(1, D))

    def enc_pieces(lp):
        wqkvh, bqkvh, woh, bo = prep_self_attn(lp["self_attn"])
        F = lp["ff_w1"].shape[1]
        return (wqkvh, bqkvh, woh, bo,
                lp["ff_w1"], lp["ff_b1"].reshape(1, F),
                lp["ff_w2"], lp["ff_b2"].reshape(1, D),
                lp["ln1_g"].reshape(1, D), lp["ln1_b"].reshape(1, D),
                lp["ln2_g"].reshape(1, D), lp["ln2_b"].reshape(1, D))

    def dec_pieces(lp):
        sa = prep_self_attn(lp["self_attn"])
        ca = prep_cross_attn(lp["cross_attn"])
        F = lp["ff_w1"].shape[1]
        return sa + ca + (
            lp["ff_w1"], lp["ff_b1"].reshape(1, F),
            lp["ff_w2"], lp["ff_b2"].reshape(1, D),
            lp["ln1_g"].reshape(1, D), lp["ln1_b"].reshape(1, D),
            lp["ln2_g"].reshape(1, D), lp["ln2_b"].reshape(1, D),
            lp["ln3_g"].reshape(1, D), lp["ln3_b"].reshape(1, D))

    def stack(pieces, names, bf16_names):
        out = {}
        for i, name in enumerate(names):
            arr = jnp.stack([p[i] for p in pieces], axis=0)
            if name in bf16_names:
                arr = arr.astype(jnp.bfloat16)
            out[name] = arr
        return out

    enc_names = ("wqkvh", "bqkvh", "woh", "bo", "w1", "b1", "w2", "b2",
                 "ln1g", "ln1b", "ln2g", "ln2b")
    dec_names = ("sa_wqkvh", "sa_bqkvh", "sa_woh", "sa_bo",
                 "ca_wqh", "ca_bqh", "ca_wkvh", "ca_bkvh", "ca_woh", "ca_bo",
                 "w1", "b1", "w2", "b2",
                 "ln1g", "ln1b", "ln2g", "ln2b", "ln3g", "ln3b")
    enc_bf16 = {"wqkvh", "woh", "w1", "w2"}
    dec_bf16 = {"sa_wqkvh", "sa_woh", "ca_wqh", "ca_wkvh", "ca_woh", "w1", "w2"}

    enc = stack([enc_pieces(lp) for lp in params["enc_layers"]], enc_names, enc_bf16)
    dec = stack([dec_pieces(lp) for lp in params["dec_layers"]], dec_names, dec_bf16)

    Vpad = max(128, ((V + 127) // 128) * 128)   # lane-dense padded vocab projection
    fcw = jnp.zeros((D, Vpad), jnp.float32).at[:, :V].set(params["fc_out_w"])
    fcb = jnp.zeros((1, Vpad), jnp.float32).at[0, :V].set(params["fc_out_b"])

    return dict(
        embedding=params["embedding"], pe=params["pe"],
        enc=enc, dec=dec,
        enc_norm_g=params["enc_norm_g"].reshape(1, D),
        enc_norm_b=params["enc_norm_b"].reshape(1, D),
        dec_norm_g=params["dec_norm_g"].reshape(1, D),
        dec_norm_b=params["dec_norm_b"].reshape(1, D),
        fc_w=fcw.astype(jnp.bfloat16), fc_b=fcb,
    )


def transformer_seq2seq_forward(prepped, cfg, src, tgt):
    D, H, V, NL = (cfg["embed_dim"], cfg["num_heads"],
                   cfg["vocab_size"], cfg["num_layers"])
    emb_scale = math.sqrt(float(D))
    B, Ls = src.shape
    Lt = tgt.shape[1]

    src_emb = jnp.take(prepped["embedding"], src, axis=0)   # glue: embedding gather
    tgt_emb = jnp.take(prepped["embedding"], tgt, axis=0)
    pe_s = prepped["pe"][:, :Ls]
    pe_t = prepped["pe"][:, :Lt]

    memory = _encode_stack(
        src_emb, pe_s, prepped["enc"], prepped["enc_norm_g"], prepped["enc_norm_b"],
        num_heads=H, emb_scale=emb_scale, num_layers=NL)

    logits_pad = _decode_stack(
        tgt_emb, pe_t, memory, prepped["dec"],
        prepped["dec_norm_g"], prepped["dec_norm_b"],
        prepped["fc_w"], prepped["fc_b"],
        num_heads=H, emb_scale=emb_scale, num_layers=NL)

    return logits_pad[:, :V].reshape(B, Lt, V)


# ----------------------------- deterministic init ------------------------------

def init_params(key, cfg):
    D, F, V = cfg["embed_dim"], cfg["ff_dim"], cfg["vocab_size"]
    keys = iter(jax.random.split(key, 512))

    def w(shape, s=0.05):
        return jax.random.normal(next(keys), shape, jnp.float32) * s

    def self_attn_p():
        return dict(wqkv=w((D, 3 * D)), bqkv=jnp.zeros((3 * D,), jnp.float32),
                    wo=w((D, D)), bo=jnp.zeros((D,), jnp.float32))

    def cross_attn_p():
        return dict(wq=w((D, D)), bq=jnp.zeros((D,), jnp.float32),
                    wkv=w((D, 2 * D)), bkv=jnp.zeros((2 * D,), jnp.float32),
                    wo=w((D, D)), bo=jnp.zeros((D,), jnp.float32))

    def enc_layer_p():
        return dict(
            self_attn=self_attn_p(),
            ff_w1=w((D, F)), ff_b1=jnp.zeros((F,), jnp.float32),
            ff_w2=w((F, D)), ff_b2=jnp.zeros((D,), jnp.float32),
            ln1_g=jnp.ones((D,), jnp.float32), ln1_b=jnp.zeros((D,), jnp.float32),
            ln2_g=jnp.ones((D,), jnp.float32), ln2_b=jnp.zeros((D,), jnp.float32))

    def dec_layer_p():
        p = enc_layer_p()
        p["cross_attn"] = cross_attn_p()
        p["ln3_g"] = jnp.ones((D,), jnp.float32)
        p["ln3_b"] = jnp.zeros((D,), jnp.float32)
        return p

    return dict(
        embedding=w((V, D), s=1.0),
        pe=sinusoidal_pe(cfg["max_len"], D),
        enc_layers=[enc_layer_p() for _ in range(cfg["num_layers"])],
        dec_layers=[dec_layer_p() for _ in range(cfg["num_layers"])],
        enc_norm_g=jnp.ones((D,), jnp.float32), enc_norm_b=jnp.zeros((D,), jnp.float32),
        dec_norm_g=jnp.ones((D,), jnp.float32), dec_norm_b=jnp.zeros((D,), jnp.float32),
        fc_out_w=w((D, V)), fc_out_b=jnp.zeros((V,), jnp.float32))


# ------------------------------------ main -------------------------------------

if __name__ == "__main__":
    cfg = dict(
        sos_token=1, eos_token=2,
        vocab_size=50, embed_dim=32, num_heads=4, num_layers=2,
        ff_dim=64, dropout=0.0, max_len=64,
    )

    key = jax.random.PRNGKey(0)
    kp, ks, kt = jax.random.split(key, 3)
    params = init_params(kp, cfg)
    prepped = prepare_params(params, cfg)   # one-time weight stacking / padding

    B, Ls, Lt = 2, 8, 8
    src = jax.random.randint(ks, (B, Ls), 0, cfg["vocab_size"], dtype=jnp.int32)
    tgt = jax.random.randint(kt, (B, Lt), 0, cfg["vocab_size"], dtype=jnp.int32)

    fwd = jax.jit(lambda s, t: transformer_seq2seq_forward(prepped, cfg, s, t))
    logits = jax.block_until_ready(fwd(src, tgt))

    assert logits.shape == (B, Lt, cfg["vocab_size"])
    assert logits.dtype == jnp.float32
    assert bool(jnp.all(jnp.isfinite(logits)))
    print("KERNEL_OK")
</pallas_src>

<mosaic_0001>
module attributes {stable_mosaic.version = 11 : i64} {
  func.func @_enc_stack_kernel(%arg0: i32, %arg1: i32, %arg2: memref<1x8x32xf32, #tpu.memory_space<vmem>>, %arg3: memref<1x8x32xf32, #tpu.memory_space<vmem>>, %arg4: memref<1x12x32x8xbf16, #tpu.memory_space<vmem>>, %arg5: memref<1x12x1x8xf32, #tpu.memory_space<vmem>>, %arg6: memref<1x4x8x32xbf16, #tpu.memory_space<vmem>>, %arg7: memref<1x1x32xf32, #tpu.memory_space<vmem>>, %arg8: memref<1x32x64xbf16, #tpu.memory_space<vmem>>, %arg9: memref<1x1x64xf32, #tpu.memory_space<vmem>>, %arg10: memref<1x64x32xbf16, #tpu.memory_space<vmem>>, %arg11: memref<1x1x32xf32, #tpu.memory_space<vmem>>, %arg12: memref<1x1x32xf32, #tpu.memory_space<vmem>>, %arg13: memref<1x1x32xf32, #tpu.memory_space<vmem>>, %arg14: memref<1x1x32xf32, #tpu.memory_space<vmem>>, %arg15: memref<1x1x32xf32, #tpu.memory_space<vmem>>, %arg16: memref<1x32xf32, #tpu.memory_space<vmem>>, %arg17: memref<1x32xf32, #tpu.memory_space<vmem>>, %arg18: memref<1x8x32xf32, #tpu.memory_space<vmem>>, %arg19: memref<8x32xf32, #tpu.memory_space<vmem>>) attributes {dimension_semantics = [#tpu.dimension_semantics<parallel>, #tpu.dimension_semantics<arbitrary>], iteration_bounds = array<i64: 2, 2>, scalar_prefetch = 0 : i64, scratch_operands = 1 : i64, tpu.core_type = #tpu.core_type<tc>, window_params = [{transform_indices = @transform_0, window_bounds = array<i64: 1, 8, 32>}, {pipeline_mode = #tpu.pipeline_mode<synchronous>, transform_indices = @transform_1, window_bounds = array<i64: 1, 8, 32>}, {transform_indices = @transform_2, window_bounds = array<i64: 1, 12, 32, 8>}, {transform_indices = @transform_3, window_bounds = array<i64: 1, 12, 1, 8>}, {transform_indices = @transform_4, window_bounds = array<i64: 1, 4, 8, 32>}, {transform_indices = @transform_5, window_bounds = array<i64: 1, 1, 32>}, {transform_indices = @transform_6, window_bounds = array<i64: 1, 32, 64>}, {transform_indices = @transform_7, window_bounds = array<i64: 1, 1, 64>}, {transform_indices = @transform_8, window_bounds = array<i64: 1, 64, 32>}, {transform_indices = @transform_9, window_bounds = array<i64: 1, 1, 32>}, {transform_indices = @transform_10, window_bounds = array<i64: 1, 1, 32>}, {transform_indices = @transform_11, window_bounds = array<i64: 1, 1, 32>}, {transform_indices = @transform_12, window_bounds = array<i64: 1, 1, 32>}, {transform_indices = @transform_13, window_bounds = array<i64: 1, 1, 32>}, {pipeline_mode = #tpu.pipeline_mode<synchronous>, transform_indices = @transform_14, window_bounds = array<i64: 1, 32>}, {pipeline_mode = #tpu.pipeline_mode<synchronous>, transform_indices = @transform_15, window_bounds = array<i64: 1, 32>}, {transform_indices = @transform_16, window_bounds = array<i64: 1, 8, 32>}]} {
    %c0_i32 = arith.constant 0 : i32
    %0 = arith.cmpi eq, %arg1, %c0_i32 : i32
    %1 = arith.extui %0 : i1 to i32
    %c0_i32_0 = arith.constant 0 : i32
    %2 = arith.cmpi ne, %1, %c0_i32_0 : i32
    scf.if %2 {
      %c0_63 = arith.constant 0 : index
      %c0_64 = arith.constant 0 : index
      %c0_65 = arith.constant 0 : index
      %118 = vector.load %arg2[%c0_63, %c0_64, %c0_65] : memref<1x8x32xf32, #tpu.memory_space<vmem>>, vector<1x8x32xf32>
      %119 = vector.shape_cast %118 : vector<1x8x32xf32> to vector<8x32xf32>
      %cst_66 = arith.constant 5.65685415 : f32
      %120 = vector.broadcast %cst_66 : f32 to vector<8x32xf32>
      %121 = arith.mulf %119, %120 : vector<8x32xf32>
      %c0_67 = arith.constant 0 : index
      %c0_68 = arith.constant 0 : index
      %c0_69 = arith.constant 0 : index
      %122 = vector.load %arg3[%c0_67, %c0_68, %c0_69] : memref<1x8x32xf32, #tpu.memory_space<vmem>>, vector<1x8x32xf32>
      %123 = vector.shape_cast %122 : vector<1x8x32xf32> to vector<8x32xf32>
      %124 = arith.addf %121, %123 : vector<8x32xf32>
      %c0_70 = arith.constant 0 : index
      %c0_71 = arith.constant 0 : index
      %125 = vector.load %arg19[%c0_70, %c0_71] : memref<8x32xf32, #tpu.memory_space<vmem>>, vector<8x32xf32>
      tpu.vector_store %arg19[%c0_70, %c0_71], %124 {strides = array<i32>} : memref<8x32xf32, #tpu.memory_space<vmem>>, vector<8x32xf32>,
    } else {
    }
    %c0 = arith.constant 0 : index
    %c0_1 = arith.constant 0 : index
    %3 = vector.load %arg19[%c0, %c0_1] : memref<8x32xf32, #tpu.memory_space<vmem>>, vector<8x32xf32>
    %4 = arith.truncf %3 : vector<8x32xf32> to vector<8x32xbf16>
    %c0_2 = arith.constant 0 : index
    %c0_3 = arith.constant 0 : index
    %c0_4 = arith.constant 0 : index
    %c0_5 = arith.constant 0 : index
    %5 = vector.load %arg4[%c0_2, %c0_3, %c0_4, %c0_5] : memref<1x12x32x8xbf16, #tpu.memory_space<vmem>>, vector<1x12x32x8xbf16>
    %6 = vector.shape_cast %5 : vector<1x12x32x8xbf16> to vector<12x32x8xbf16>
    %c0_6 = arith.constant 0 : index
    %c0_7 = arith.constant 0 : index
    %c0_8 = arith.constant 0 : index
    %c0_9 = arith.constant 0 : index
    %7 = vector.load %arg5[%c0_6, %c0_7, %c0_8, %c0_9] : memref<1x12x1x8xf32, #tpu.memory_space<vmem>>, vector<1x12x1x8xf32>
    %8 = vector.shape_cast %7 : vector<1x12x1x8xf32> to vector<12x1x8xf32>
    %9 = vector.shape_cast %4 : vector<8x32xbf16> to vector<1x8x32xbf16>
    %10 = vector.shape_cast %9 : vector<1x8x32xbf16> to vector<1x8x32xbf16>
    %11 = vector.broadcast %10 : vector<1x8x32xbf16> to vector<12x8x32xbf16>
    %cst = arith.constant dense<0.000000e+00> : vector<12x8x8xf32>
    %12 = tpu.matmul %11, %6, %cst {dimension_numbers = #tpu.dot_dimension_numbers<[2], [1], [1], [2], [0, 0, 0, 1, 1, 2], [0], [0]>} : vector<12x8x32xbf16>, vector<12x32x8xbf16>, vector<12x8x8xf32> -> vector<12x8x8xf32>
    %13 = vector.broadcast %8 : vector<12x1x8xf32> to vector<12x8x8xf32>
    %14 = arith.addf %12, %13 : vector<12x8x8xf32>
    %15 = vector.extract_strided_slice %14 {offsets = [0, 0, 0], sizes = [4, 8, 8], strides = [1, 1, 1]} : vector<12x8x8xf32> to vector<4x8x8xf32>
    %16 = vector.extract_strided_slice %14 {offsets = [4, 0, 0], sizes = [4, 8, 8], strides = [1, 1, 1]} : vector<12x8x8xf32> to vector<4x8x8xf32>
    %17 = vector.extract_strided_slice %14 {offsets = [8, 0, 0], sizes = [4, 8, 8], strides = [1, 1, 1]} : vector<12x8x8xf32> to vector<4x8x8xf32>
    %18 = arith.truncf %15 : vector<4x8x8xf32> to vector<4x8x8xbf16>
    %19 = arith.truncf %16 : vector<4x8x8xf32> to vector<4x8x8xbf16>
    %cst_10 = arith.constant dense<0.000000e+00> : vector<4x8x8xf32>
    %20 = tpu.matmul %18, %19, %cst_10 {dimension_numbers = #tpu.dot_dimension_numbers<[2], [2], [1], [1], [0, 0, 0, 1, 1, 1], [0], [0]>} : vector<4x8x8xbf16>, vector<4x8x8xbf16>, vector<4x8x8xf32> -> vector<4x8x8xf32>
    %cst_11 = arith.constant dense<0xFF800000> : vector<4x8xf32>
    %21 = vector.multi_reduction <maximumf>, %20, %cst_11 [2] : vector<4x8x8xf32> to vector<4x8xf32>
    %22 = vector.shape_cast %21 : vector<4x8xf32> to vector<4x8x1xf32>
    %23 = vector.broadcast %22 : vector<4x8x1xf32> to vector<4x8x8xf32>
    %24 = arith.subf %20, %23 : vector<4x8x8xf32>
    %25 = math.exp %24 : vector<4x8x8xf32>
    %cst_12 = arith.constant dense<0.000000e+00> : vector<4x8xf32>
    %26 = vector.multi_reduction <add>, %25, %cst_12 [2] : vector<4x8x8xf32> to vector<4x8xf32>
    %27 = vector.shape_cast %26 : vector<4x8xf32> to vector<4x8x1xf32>
    %28 = vector.broadcast %27 : vector<4x8x1xf32> to vector<4x8x8xf32>
    %29 = arith.divf %25, %28 : vector<4x8x8xf32>
    %30 = arith.truncf %29 : vector<4x8x8xf32> to vector<4x8x8xbf16>
    %31 = arith.truncf %17 : vector<4x8x8xf32> to vector<4x8x8xbf16>
    %cst_13 = arith.constant dense<0.000000e+00> : vector<4x8x8xf32>
    %32 = tpu.matmul %30, %31, %cst_13 {dimension_numbers = #tpu.dot_dimension_numbers<[2], [1], [1], [2], [0, 0, 0, 1, 1, 2], [0], [0]>} : vector<4x8x8xbf16>, vector<4x8x8xbf16>, vector<4x8x8xf32> -> vector<4x8x8xf32>
    %c0_14 = arith.constant 0 : index
    %c0_15 = arith.constant 0 : index
    %c0_16 = arith.constant 0 : index
    %c0_17 = arith.constant 0 : index
    %33 = vector.load %arg6[%c0_14, %c0_15, %c0_16, %c0_17] : memref<1x4x8x32xbf16, #tpu.memory_space<vmem>>, vector<1x4x8x32xbf16>
    %34 = vector.shape_cast %33 : vector<1x4x8x32xbf16> to vector<4x8x32xbf16>
    %c0_18 = arith.constant 0 : index
    %c0_19 = arith.constant 0 : index
    %c0_20 = arith.constant 0 : index
    %35 = vector.load %arg7[%c0_18, %c0_19, %c0_20] : memref<1x1x32xf32, #tpu.memory_space<vmem>>, vector<1x1x32xf32>
    %36 = vector.shape_cast %35 : vector<1x1x32xf32> to vector<1x32xf32>
    %37 = arith.truncf %32 : vector<4x8x8xf32> to vector<4x8x8xbf16>
    %cst_21 = arith.constant dense<0.000000e+00> : vector<4x8x32xf32>
    %38 = tpu.matmul %37, %34, %cst_21 {dimension_numbers = #tpu.dot_dimension_numbers<[2], [1], [1], [2], [0, 0, 0, 1, 1, 2], [0], [0]>} : vector<4x8x8xbf16>, vector<4x8x32xbf16>, vector<4x8x32xf32> -> vector<4x8x32xf32>
    %cst_22 = arith.constant dense<0.000000e+00> : vector<8x32xf32>
    %39 = vector.multi_reduction <add>, %38, %cst_22 [0] : vector<4x8x32xf32> to vector<8x32xf32>
    %40 = vector.broadcast %36 : vector<1x32xf32> to vector<8x32xf32>
    %41 = arith.addf %39, %40 : vector<8x32xf32>
    %42 = arith.addf %3, %41 : vector<8x32xf32>
    %c0_23 = arith.constant 0 : index
    %c0_24 = arith.constant 0 : index
    %c0_25 = arith.constant 0 : index
    %43 = vector.load %arg12[%c0_23, %c0_24, %c0_25] : memref<1x1x32xf32, #tpu.memory_space<vmem>>, vector<1x1x32xf32>
    %44 = vector.shape_cast %43 : vector<1x1x32xf32> to vector<1x32xf32>
    %c0_26 = arith.constant 0 : index
    %c0_27 = arith.constant 0 : index
    %c0_28 = arith.constant 0 : index
    %45 = vector.load %arg13[%c0_26, %c0_27, %c0_28] : memref<1x1x32xf32, #tpu.memory_space<vmem>>, vector<1x1x32xf32>
    %46 = vector.shape_cast %45 : vector<1x1x32xf32> to vector<1x32xf32>
    %cst_29 = arith.constant dense<0.000000e+00> : vector<8xf32>
    %47 = vector.multi_reduction <add>, %42, %cst_29 [1] : vector<8x32xf32> to vector<8xf32>
    %48 = vector.shape_cast %47 : vector<8xf32> to vector<8x1xf32>
    %cst_30 = arith.constant 3.200000e+01 : f32
    %49 = vector.broadcast %cst_30 : f32 to vector<8x1xf32>
    %50 = arith.divf %48, %49 : vector<8x1xf32>
    %51 = vector.broadcast %50 : vector<8x1xf32> to vector<8x32xf32>
    %52 = arith.subf %42, %51 : vector<8x32xf32>
    %53 = arith.mulf %52, %52 : vector<8x32xf32>
    %cst_31 = arith.constant dense<0.000000e+00> : vector<8xf32>
    %54 = vector.multi_reduction <add>, %53, %cst_31 [1] : vector<8x32xf32> to vector<8xf32>
    %55 = vector.shape_cast %54 : vector<8xf32> to vector<8x1xf32>
    %cst_32 = arith.constant 3.200000e+01 : f32
    %56 = vector.broadcast %cst_32 : f32 to vector<8x1xf32>
    %57 = arith.divf %55, %56 : vector<8x1xf32>
    %58 = vector.broadcast %50 : vector<8x1xf32> to vector<8x32xf32>
    %59 = arith.subf %42, %58 : vector<8x32xf32>
    %cst_33 = arith.constant 9.99999974E-6 : f32
    %60 = vector.broadcast %cst_33 : f32 to vector<8x1xf32>
    %61 = arith.addf %57, %60 : vector<8x1xf32>
    %62 = math.rsqrt %61 : vector<8x1xf32>
    %63 = vector.broadcast %62 : vector<8x1xf32> to vector<8x32xf32>
    %64 = arith.mulf %59, %63 : vector<8x32xf32>
    %65 = vector.broadcast %44 : vector<1x32xf32> to vector<8x32xf32>
    %66 = arith.mulf %64, %65 : vector<8x32xf32>
    %67 = vector.broadcast %46 : vector<1x32xf32> to vector<8x32xf32>
    %68 = arith.addf %66, %67 : vector<8x32xf32>
    %c0_34 = arith.constant 0 : index
    %c0_35 = arith.constant 0 : index
    %c0_36 = arith.constant 0 : index
    %69 = vector.load %arg8[%c0_34, %c0_35, %c0_36] : memref<1x32x64xbf16, #tpu.memory_space<vmem>>, vector<1x32x64xbf16>
    %70 = vector.shape_cast %69 : vector<1x32x64xbf16> to vector<32x64xbf16>
    %c0_37 = arith.constant 0 : index
    %c0_38 = arith.constant 0 : index
    %c0_39 = arith.constant 0 : index
    %71 = vector.load %arg9[%c0_37, %c0_38, %c0_39] : memref<1x1x64xf32, #tpu.memory_space<vmem>>, vector<1x1x64xf32>
    %72 = vector.shape_cast %71 : vector<1x1x64xf32> to vector<1x64xf32>
    %c0_40 = arith.constant 0 : index
    %c0_41 = arith.constant 0 : index
    %c0_42 = arith.constant 0 : index
    %73 = vector.load %arg10[%c0_40, %c0_41, %c0_42] : memref<1x64x32xbf16, #tpu.memory_space<vmem>>, vector<1x64x32xbf16>
    %74 = vector.shape_cast %73 : vector<1x64x32xbf16> to vector<64x32xbf16>
    %c0_43 = arith.constant 0 : index
    %c0_44 = arith.constant 0 : index
    %c0_45 = arith.constant 0 : index
    %75 = vector.load %arg11[%c0_43, %c0_44, %c0_45] : memref<1x1x32xf32, #tpu.memory_space<vmem>>, vector<1x1x32xf32>
    %76 = vector.shape_cast %75 : vector<1x1x32xf32> to vector<1x32xf32>
    %77 = arith.truncf %68 : vector<8x32xf32> to vector<8x32xbf16>
    %cst_46 = arith.constant dense<0.000000e+00> : vector<8x64xf32>
    %78 = tpu.matmul %77, %70, %cst_46 {dimension_numbers = #tpu.dot_dimension_numbers<[1], [0], [0], [1], [0, 0, 1, 1], [], []>} : vector<8x32xbf16>, vector<32x64xbf16>, vector<8x64xf32> -> vector<8x64xf32>
    %79 = vector.broadcast %72 : vector<1x64xf32> to vector<8x64xf32>
    %80 = arith.addf %78, %79 : vector<8x64xf32>
    %cst_47 = arith.constant 0.000000e+00 : f32
    %81 = vector.broadcast %cst_47 : f32 to vector<8x64xf32>
    %82 = arith.maximumf %80, %81 : vector<8x64xf32>
    %83 = arith.truncf %82 : vector<8x64xf32> to vector<8x64xbf16>
    %cst_48 = arith.constant dense<0.000000e+00> : vector<8x32xf32>
    %84 = tpu.matmul %83, %74, %cst_48 {dimension_numbers = #tpu.dot_dimension_numbers<[1], [0], [0], [1], [0, 0, 1, 1], [], []>} : vector<8x64xbf16>, vector<64x32xbf16>, vector<8x32xf32> -> vector<8x32xf32>
    %85 = vector.broadcast %76 : vector<1x32xf32> to vector<8x32xf32>
    %86 = arith.addf %84, %85 : vector<8x32xf32>
    %87 = arith.addf %68, %86 : vector<8x32xf32>
    %c0_49 = arith.constant 0 : index
    %c0_50 = arith.constant 0 : index
    %c0_51 = arith.constant 0 : index
    %88 = vector.load %arg14[%c0_49, %c0_50, %c0_51] : memref<1x1x32xf32, #tpu.memory_space<vmem>>, vector<1x1x32xf32>
    %89 = vector.shape_cast %88 : vector<1x1x32xf32> to vector<1x32xf32>
    %c0_52 = arith.constant 0 : index
    %c0_53 = arith.constant 0 : index
    %c0_54 = arith.constant 0 : index
    %90 = vector.load %arg15[%c0_52, %c0_53, %c0_54] : memref<1x1x32xf32, #tpu.memory_space<vmem>>, vector<1x1x32xf32>
    %91 = vector.shape_cast %90 : vector<1x1x32xf32> to vector<1x32xf32>
    %cst_55 = arith.constant dense<0.000000e+00> : vector<8xf32>
    %92 = vector.multi_reduction <add>, %87, %cst_55 [1] : vector<8x32xf32> to vector<8xf32>
    %93 = vector.shape_cast %92 : vector<8xf32> to vector<8x1xf32>
    %cst_56 = arith.constant 3.200000e+01 : f32
    %94 = vector.broadcast %cst_56 : f32 to vector<8x1xf32>
    %95 = arith.divf %93, %94 : vector<8x1xf32>
    %96 = vector.broadcast %95 : vector<8x1xf32> to vector<8x32xf32>
    %97 = arith.subf %87, %96 : vector<8x32xf32>
    %98 = arith.mulf %97, %97 : vector<8x32xf32>
    %cst_57 = arith.constant dense<0.000000e+00> : vector<8xf32>
    %99 = vector.multi_reduction <add>, %98, %cst_57 [1] : vector<8x32xf32> to vector<8xf32>
    %100 = vector.shape_cast %99 : vector<8xf32> to vector<8x1xf32>
    %cst_58 = arith.constant 3.200000e+01 : f32
    %101 = vector.broadcast %cst_58 : f32 to vector<8x1xf32>
    %102 = arith.divf %100, %101 : vector<8x1xf32>
    %103 = vector.broadcast %95 : vector<8x1xf32> to vector<8x32xf32>
    %104 = arith.subf %87, %103 : vector<8x32xf32>
    %cst_59 = arith.constant 9.99999974E-6 : f32
    %105 = vector.broadcast %cst_59 : f32 to vector<8x1xf32>
    %106 = arith.addf %102, %105 : vector<8x1xf32>
    %107 = math.rsqrt %106 : vector<8x1xf32>
    %108 = vector.broadcast %107 : vector<8x1xf32> to vector<8x32xf32>
    %109 = arith.mulf %104, %108 : vector<8x32xf32>
    %110 = vector.broadcast %89 : vector<1x32xf32> to vector<8x32xf32>
    %111 = arith.mulf %109, %110 : vector<8x32xf32>
    %112 = vector.broadcast %91 : vector<1x32xf32> to vector<8x32xf32>
    %113 = arith.addf %111, %112 : vector<8x32xf32>
    %c0_60 = arith.constant 0 : index
    %c0_61 = arith.constant 0 : index
    %114 = vector.load %arg19[%c0_60, %c0_61] : memref<8x32xf32, #tpu.memory_space<vmem>>, vector<8x32xf32>
    tpu.vector_store %arg19[%c0_60, %c0_61], %113 {strides = array<i32>} : memref<8x32xf32, #tpu.memory_space<vmem>>, vector<8x32xf32>,
    %c1_i32 = arith.constant 1 : i32
    %115 = arith.cmpi eq, %arg1, %c1_i32 : i32
    %116 = arith.extui %115 : i1 to i32
    %c0_i32_62 = arith.constant 0 : i32
    %117 = arith.cmpi ne, %116, %c0_i32_62 : i32
    scf.if %117 {
      %c0_63 = arith.constant 0 : index
      %c0_64 = arith.constant 0 : index
      %118 = vector.load %arg16[%c0_63, %c0_64] : memref<1x32xf32, #tpu.memory_space<vmem>>, vector<1x32xf32>
      %c0_65 = arith.constant 0 : index
      %c0_66 = arith.constant 0 : index
      %119 = vector.load %arg17[%c0_65, %c0_66] : memref<1x32xf32, #tpu.memory_space<vmem>>, vector<1x32xf32>
      %cst_67 = arith.constant dense<0.000000e+00> : vector<8xf32>
      %120 = vector.multi_reduction <add>, %113, %cst_67 [1] : vector<8x32xf32> to vector<8xf32>
      %121 = vector.shape_cast %120 : vector<8xf32> to vector<8x1xf32>
      %cst_68 = arith.constant 3.200000e+01 : f32
      %122 = vector.broadcast %cst_68 : f32 to vector<8x1xf32>
      %123 = arith.divf %121, %122 : vector<8x1xf32>
      %124 = vector.broadcast %123 : vector<8x1xf32> to vector<8x32xf32>
      %125 = arith.subf %113, %124 : vector<8x32xf32>
      %126 = arith.mulf %125, %125 : vector<8x32xf32>
      %cst_69 = arith.constant dense<0.000000e+00> : vector<8xf32>
      %127 = vector.multi_reduction <add>, %126, %cst_69 [1] : vector<8x32xf32> to vector<8xf32>
      %128 = vector.shape_cast %127 : vector<8xf32> to vector<8x1xf32>
      %cst_70 = arith.constant 3.200000e+01 : f32
      %129 = vector.broadcast %cst_70 : f32 to vector<8x1xf32>
      %130 = arith.divf %128, %129 : vector<8x1xf32>
      %131 = vector.broadcast %123 : vector<8x1xf32> to vector<8x32xf32>
      %132 = arith.subf %113, %131 : vector<8x32xf32>
      %cst_71 = arith.constant 9.99999974E-6 : f32
      %133 = vector.broadcast %cst_71 : f32 to vector<8x1xf32>
      %134 = arith.addf %130, %133 : vector<8x1xf32>
      %135 = math.rsqrt %134 : vector<8x1xf32>
      %136 = vector.broadcast %135 : vector<8x1xf32> to vector<8x32xf32>
      %137 = arith.mulf %132, %136 : vector<8x32xf32>
      %138 = vector.broadcast %118 : vector<1x32xf32> to vector<8x32xf32>
      %139 = arith.mulf %137, %138 : vector<8x32xf32>
      %140 = vector.broadcast %119 : vector<1x32xf32> to vector<8x32xf32>
      %141 = arith.addf %139, %140 : vector<8x32xf32>
      %c0_72 = arith.constant 0 : index
      %c0_73 = arith.constant 0 : index
      %c0_74 = arith.constant 0 : index
      %142 = vector.load %arg18[%c0_72, %c0_73, %c0_74] : memref<1x8x32xf32, #tpu.memory_space<vmem>>, vector<1x8x32xf32>
      %143 = vector.shape_cast %142 : vector<1x8x32xf32> to vector<8x32xf32>
      %144 = vector.shape_cast %141 : vector<8x32xf32> to vector<1x8x32xf32>
      tpu.vector_store %arg18[%c0_72, %c0_73, %c0_74], %144 {strides = array<i32>} : memref<1x8x32xf32, #tpu.memory_space<vmem>>, vector<1x8x32xf32>,
    } else {
    }
    return
  }
  func.func @transform_0(%arg0: i32, %arg1: i32) -> (i32, i32, i32) {
    %c0_i32 = arith.constant 0 : i32
    %c0_i32_0 = arith.constant 0 : i32
    %c0_i32_1 = arith.constant 0 : i32
    return %arg0, %c0_i32, %c0_i32_0 : i32, i32, i32
  }
  func.func @transform_1(%arg0: i32, %arg1: i32) -> (i32, i32, i32) {
    %c0_i32 = arith.constant 0 : i32
    %c0_i32_0 = arith.constant 0 : i32
    %c0_i32_1 = arith.constant 0 : i32
    %c0_i32_2 = arith.constant 0 : i32
    return %c0_i32, %c0_i32_0, %c0_i32_1 : i32, i32, i32
  }
  func.func @transform_2(%arg0: i32, %arg1: i32) -> (i32, i32, i32, i32) {
    %c0_i32 = arith.constant 0 : i32
    %c0_i32_0 = arith.constant 0 : i32
    %c0_i32_1 = arith.constant 0 : i32
    %c0_i32_2 = arith.constant 0 : i32
    return %arg1, %c0_i32, %c0_i32_0, %c0_i32_1 : i32, i32, i32, i32
  }
  func.func @transform_3(%arg0: i32, %arg1: i32) -> (i32, i32, i32, i32) {
    %c0_i32 = arith.constant 0 : i32
    %c0_i32_0 = arith.constant 0 : i32
    %c0_i32_1 = arith.constant 0 : i32
    %c0_i32_2 = arith.constant 0 : i32
    return %arg1, %c0_i32, %c0_i32_0, %c0_i32_1 : i32, i32, i32, i32
  }
  func.func @transform_4(%arg0: i32, %arg1: i32) -> (i32, i32, i32, i32) {
    %c0_i32 = arith.constant 0 : i32
    %c0_i32_0 = arith.constant 0 : i32
    %c0_i32_1 = arith.constant 0 : i32
    %c0_i32_2 = arith.constant 0 : i32
    return %arg1, %c0_i32, %c0_i32_0, %c0_i32_1 : i32, i32, i32, i32
  }
  func.func @transform_5(%arg0: i32, %arg1: i32) -> (i32, i32, i32) {
    %c0_i32 = arith.constant 0 : i32
    %c0_i32_0 = arith.constant 0 : i32
    %c0_i32_1 = arith.constant 0 : i32
    return %arg1, %c0_i32, %c0_i32_0 : i32, i32, i32
  }
  func.func @transform_6(%arg0: i32, %arg1: i32) -> (i32, i32, i32) {
    %c0_i32 = arith.constant 0 : i32
    %c0_i32_0 = arith.constant 0 : i32
    %c0_i32_1 = arith.constant 0 : i32
    return %arg1, %c0_i32, %c0_i32_0 : i32, i32, i32
  }
  func.func @transform_7(%arg0: i32, %arg1: i32) -> (i32, i32, i32) {
    %c0_i32 = arith.constant 0 : i32
    %c0_i32_0 = arith.constant 0 : i32
    %c0_i32_1 = arith.constant 0 : i32
    return %arg1, %c0_i32, %c0_i32_0 : i32, i32, i32
  }
  func.func @transform_8(%arg0: i32, %arg1: i32) -> (i32, i32, i32) {
    %c0_i32 = arith.constant 0 : i32
    %c0_i32_0 = arith.constant 0 : i32
    %c0_i32_1 = arith.constant 0 : i32
    return %arg1, %c0_i32, %c0_i32_0 : i32, i32, i32
  }
  func.func @transform_9(%arg0: i32, %arg1: i32) -> (i32, i32, i32) {
    %c0_i32 = arith.constant 0 : i32
    %c0_i32_0 = arith.constant 0 : i32
    %c0_i32_1 = arith.constant 0 : i32
    return %arg1, %c0_i32, %c0_i32_0 : i32, i32, i32
  }
  func.func @transform_10(%arg0: i32, %arg1: i32) -> (i32, i32, i32) {
    %c0_i32 = arith.constant 0 : i32
    %c0_i32_0 = arith.constant 0 : i32
    %c0_i32_1 = arith.constant 0 : i32
    return %arg1, %c0_i32, %c0_i32_0 : i32, i32, i32
  }
  func.func @transform_11(%arg0: i32, %arg1: i32) -> (i32, i32, i32) {
    %c0_i32 = arith.constant 0 : i32
    %c0_i32_0 = arith.constant 0 : i32
    %c0_i32_1 = arith.constant 0 : i32
    return %arg1, %c0_i32, %c0_i32_0 : i32, i32, i32
  }
  func.func @transform_12(%arg0: i32, %arg1: i32) -> (i32, i32, i32) {
    %c0_i32 = arith.constant 0 : i32
    %c0_i32_0 = arith.constant 0 : i32
    %c0_i32_1 = arith.constant 0 : i32
    return %arg1, %c0_i32, %c0_i32_0 : i32, i32, i32
  }
  func.func @transform_13(%arg0: i32, %arg1: i32) -> (i32, i32, i32) {
    %c0_i32 = arith.constant 0 : i32
    %c0_i32_0 = arith.constant 0 : i32
    %c0_i32_1 = arith.constant 0 : i32
    return %arg1, %c0_i32, %c0_i32_0 : i32, i32, i32
  }
  func.func @transform_14(%arg0: i32, %arg1: i32) -> (i32, i32) {
    %c0_i32 = arith.constant 0 : i32
    %c0_i32_0 = arith.constant 0 : i32
    %c0_i32_1 = arith.constant 0 : i32
    return %c0_i32, %c0_i32_0 : i32, i32
  }
  func.func @transform_15(%arg0: i32, %arg1: i32) -> (i32, i32) {
    %c0_i32 = arith.constant 0 : i32
    %c0_i32_0 = arith.constant 0 : i32
    %c0_i32_1 = arith.constant 0 : i32
    return %c0_i32, %c0_i32_0 : i32, i32
  }
  func.func @transform_16(%arg0: i32, %arg1: i32) -> (i32, i32, i32) {
    %c0_i32 = arith.constant 0 : i32
    %c0_i32_0 = arith.constant 0 : i32
    %c0_i32_1 = arith.constant 0 : i32
    return %arg0, %c0_i32, %c0_i32_0 : i32, i32, i32
  }
}

module attributes {stable_mosaic.version = 11 : i64} {
  func.func @_dec_stack_kernel(%arg0: i32, %arg1: i32, %arg2: memref<1x8x32xf32, #tpu.memory_space<vmem>>, %arg3: memref<1x8x32xf32, #tpu.memory_space<vmem>>, %arg4: memref<1x8x32xf32, #tpu.memory_space<vmem>>, %arg5: memref<1x12x32x8xbf16, #tpu.memory_space<vmem>>, %arg6: memref<1x12x1x8xf32, #tpu.memory_space<vmem>>, %arg7: memref<1x4x8x32xbf16, #tpu.memory_space<vmem>>, %arg8: memref<1x1x32xf32, #tpu.memory_space<vmem>>, %arg9: memref<1x4x32x8xbf16, #tpu.memory_space<vmem>>, %arg10: memref<1x4x1x8xf32, #tpu.memory_space<vmem>>, %arg11: memref<1x8x32x8xbf16, #tpu.memory_space<vmem>>, %arg12: memref<1x8x1x8xf32, #tpu.memory_space<vmem>>, %arg13: memref<1x4x8x32xbf16, #tpu.memory_space<vmem>>, %arg14: memref<1x1x32xf32, #tpu.memory_space<vmem>>, %arg15: memref<1x32x64xbf16, #tpu.memory_space<vmem>>, %arg16: memref<1x1x64xf32, #tpu.memory_space<vmem>>, %arg17: memref<1x64x32xbf16, #tpu.memory_space<vmem>>, %arg18: memref<1x1x32xf32, #tpu.memory_space<vmem>>, %arg19: memref<1x1x32xf32, #tpu.memory_space<vmem>>, %arg20: memref<1x1x32xf32, #tpu.memory_space<vmem>>, %arg21: memref<1x1x32xf32, #tpu.memory_space<vmem>>, %arg22: memref<1x1x32xf32, #tpu.memory_space<vmem>>, %arg23: memref<1x1x32xf32, #tpu.memory_space<vmem>>, %arg24: memref<1x1x32xf32, #tpu.memory_space<vmem>>, %arg25: memref<1x32xf32, #tpu.memory_space<vmem>>, %arg26: memref<1x32xf32, #tpu.memory_space<vmem>>, %arg27: memref<32x128xbf16, #tpu.memory_space<vmem>>, %arg28: memref<1x128xf32, #tpu.memory_space<vmem>>, %arg29: memref<8x128xf32, #tpu.memory_space<vmem>>, %arg30: memref<8x32xf32, #tpu.memory_space<vmem>>) attributes {dimension_semantics = [#tpu.dimension_semantics<parallel>, #tpu.dimension_semantics<arbitrary>], iteration_bounds = array<i64: 2, 2>, scalar_prefetch = 0 : i64, scratch_operands = 1 : i64, tpu.core_type = #tpu.core_type<tc>, window_params = [{transform_indices = @transform_0, window_bounds = array<i64: 1, 8, 32>}, {pipeline_mode = #tpu.pipeline_mode<synchronous>, transform_indices = @transform_1, window_bounds = array<i64: 1, 8, 32>}, {transform_indices = @transform_2, window_bounds = array<i64: 1, 8, 32>}, {transform_indices = @transform_3, window_bounds = array<i64: 1, 12, 32, 8>}, {transform_indices = @transform_4, window_bounds = array<i64: 1, 12, 1, 8>}, {transform_indices = @transform_5, window_bounds = array<i64: 1, 4, 8, 32>}, {transform_indices = @transform_6, window_bounds = array<i64: 1, 1, 32>}, {transform_indices = @transform_7, window_bounds = array<i64: 1, 4, 32, 8>}, {transform_indices = @transform_8, window_bounds = array<i64: 1, 4, 1, 8>}, {transform_indices = @transform_9, window_bounds = array<i64: 1, 8, 32, 8>}, {transform_indices = @transform_10, window_bounds = array<i64: 1, 8, 1, 8>}, {transform_indices = @transform_11, window_bounds = array<i64: 1, 4, 8, 32>}, {transform_indices = @transform_12, window_bounds = array<i64: 1, 1, 32>}, {transform_indices = @transform_13, window_bounds = array<i64: 1, 32, 64>}, {transform_indices = @transform_14, window_bounds = array<i64: 1, 1, 64>}, {transform_indices = @transform_15, window_bounds = array<i64: 1, 64, 32>}, {transform_indices = @transform_16, window_bounds = array<i64: 1, 1, 32>}, {transform_indices = @transform_17, window_bounds = array<i64: 1, 1, 32>}, {transform_indices = @transform_18, window_bounds = array<i64: 1, 1, 32>}, {transform_indices = @transform_19, window_bounds = array<i64: 1, 1, 32>}, {transform_indices = @transform_20, window_bounds = array<i64: 1, 1, 32>}, {transform_indices = @transform_21, window_bounds = array<i64: 1, 1, 32>}, {transform_indices = @transform_22, window_bounds = array<i64: 1, 1, 32>}, {pipeline_mode = #tpu.pipeline_mode<synchronous>, transform_indices = @transform_23, window_bounds = array<i64: 1, 32>}, {pipeline_mode = #tpu.pipeline_mode<synchronous>, transform_indices = @transform_24, window_bounds = array<i64: 1, 32>}, {pipeline_mode = #tpu.pipeline_mode<synchronous>, transform_indices = @transform_25, window_bounds = array<i64: 32, 128>}, {pipeline_mode = #tpu.pipeline_mode<synchronous>, transform_indices = @transform_26, window_bounds = array<i64: 1, 128>}, {transform_indices = @transform_27, window_bounds = array<i64: 8, 128>}]} {
    %c0_i32 = arith.constant 0 : i32
    %0 = arith.cmpi eq, %arg1, %c0_i32 : i32
    %1 = arith.extui %0 : i1 to i32
    %c0_i32_0 = arith.constant 0 : i32
    %2 = arith.cmpi ne, %1, %c0_i32_0 : i32
    scf.if %2 {
      %c0_110 = arith.constant 0 : index
      %c0_111 = arith.constant 0 : index
      %c0_112 = arith.constant 0 : index
      %204 = vector.load %arg2[%c0_110, %c0_111, %c0_112] : memref<1x8x32xf32, #tpu.memory_space<vmem>>, vector<1x8x32xf32>
      %205 = vector.shape_cast %204 : vector<1x8x32xf32> to vector<8x32xf32>
      %cst_113 = arith.constant 5.65685415 : f32
      %206 = vector.broadcast %cst_113 : f32 to vector<8x32xf32>
      %207 = arith.mulf %205, %206 : vector<8x32xf32>
      %c0_114 = arith.constant 0 : index
      %c0_115 = arith.constant 0 : index
      %c0_116 = arith.constant 0 : index
      %208 = vector.load %arg3[%c0_114, %c0_115, %c0_116] : memref<1x8x32xf32, #tpu.memory_space<vmem>>, vector<1x8x32xf32>
      %209 = vector.shape_cast %208 : vector<1x8x32xf32> to vector<8x32xf32>
      %210 = arith.addf %207, %209 : vector<8x32xf32>
      %c0_117 = arith.constant 0 : index
      %c0_118 = arith.constant 0 : index
      %211 = vector.load %arg30[%c0_117, %c0_118] : memref<8x32xf32, #tpu.memory_space<vmem>>, vector<8x32xf32>
      tpu.vector_store %arg30[%c0_117, %c0_118], %210 {strides = array<i32>} : memref<8x32xf32, #tpu.memory_space<vmem>>, vector<8x32xf32>,
    } else {
    }
    %c0 = arith.constant 0 : index
    %c0_1 = arith.constant 0 : index
    %3 = vector.load %arg30[%c0, %c0_1] : memref<8x32xf32, #tpu.memory_space<vmem>>, vector<8x32xf32>
    %4 = arith.truncf %3 : vector<8x32xf32> to vector<8x32xbf16>
    %5 = tpu.iota {dimensions = array<i32: 0>} : vector<8x8xi32>
    %6 = tpu.iota {dimensions = array<i32: 1>} : vector<8x8xi32>
    %7 = arith.cmpi sgt, %6, %5 : vector<8x8xi32>
    %cst = arith.constant -1.000000e+09 : f32
    %cst_2 = arith.constant 0.000000e+00 : f32
    %8 = vector.broadcast %cst : f32 to vector<8x8xf32>
    %9 = vector.broadcast %cst_2 : f32 to vector<8x8xf32>
    %10 = arith.select %7, %8, %9 : vector<8x8xi1>, vector<8x8xf32>
    %c0_3 = arith.constant 0 : index
    %c0_4 = arith.constant 0 : index
    %c0_5 = arith.constant 0 : index
    %c0_6 = arith.constant 0 : index
    %11 = vector.load %arg5[%c0_3, %c0_4, %c0_5, %c0_6] : memref<1x12x32x8xbf16, #tpu.memory_space<vmem>>, vector<1x12x32x8xbf16>
    %12 = vector.shape_cast %11 : vector<1x12x32x8xbf16> to vector<12x32x8xbf16>
    %c0_7 = arith.constant 0 : index
    %c0_8 = arith.constant 0 : index
    %c0_9 = arith.constant 0 : index
    %c0_10 = arith.constant 0 : index
    %13 = vector.load %arg6[%c0_7, %c0_8, %c0_9, %c0_10] : memref<1x12x1x8xf32, #tpu.memory_space<vmem>>, vector<1x12x1x8xf32>
    %14 = vector.shape_cast %13 : vector<1x12x1x8xf32> to vector<12x1x8xf32>
    %15 = vector.shape_cast %4 : vector<8x32xbf16> to vector<1x8x32xbf16>
    %16 = vector.shape_cast %15 : vector<1x8x32xbf16> to vector<1x8x32xbf16>
    %17 = vector.broadcast %16 : vector<1x8x32xbf16> to vector<12x8x32xbf16>
    %cst_11 = arith.constant dense<0.000000e+00> : vector<12x8x8xf32>
    %18 = tpu.matmul %17, %12, %cst_11 {dimension_numbers = #tpu.dot_dimension_numbers<[2], [1], [1], [2], [0, 0, 0, 1, 1, 2], [0], [0]>} : vector<12x8x32xbf16>, vector<12x32x8xbf16>, vector<12x8x8xf32> -> vector<12x8x8xf32>
    %19 = vector.broadcast %14 : vector<12x1x8xf32> to vector<12x8x8xf32>
    %20 = arith.addf %18, %19 : vector<12x8x8xf32>
    %21 = vector.extract_strided_slice %20 {offsets = [0, 0, 0], sizes = [4, 8, 8], strides = [1, 1, 1]} : vector<12x8x8xf32> to vector<4x8x8xf32>
    %22 = vector.extract_strided_slice %20 {offsets = [4, 0, 0], sizes = [4, 8, 8], strides = [1, 1, 1]} : vector<12x8x8xf32> to vector<4x8x8xf32>
    %23 = vector.extract_strided_slice %20 {offsets = [8, 0, 0], sizes = [4, 8, 8], strides = [1, 1, 1]} : vector<12x8x8xf32> to vector<4x8x8xf32>
    %24 = arith.truncf %21 : vector<4x8x8xf32> to vector<4x8x8xbf16>
    %25 = arith.truncf %22 : vector<4x8x8xf32> to vector<4x8x8xbf16>
    %cst_12 = arith.constant dense<0.000000e+00> : vector<4x8x8xf32>
    %26 = tpu.matmul %24, %25, %cst_12 {dimension_numbers = #tpu.dot_dimension_numbers<[2], [2], [1], [1], [0, 0, 0, 1, 1, 1], [0], [0]>} : vector<4x8x8xbf16>, vector<4x8x8xbf16>, vector<4x8x8xf32> -> vector<4x8x8xf32>
    %27 = vector.shape_cast %10 : vector<8x8xf32> to vector<1x8x8xf32>
    %28 = vector.broadcast %27 : vector<1x8x8xf32> to vector<4x8x8xf32>
    %29 = arith.addf %26, %28 : vector<4x8x8xf32>
    %cst_13 = arith.constant dense<0xFF800000> : vector<4x8xf32>
    %30 = vector.multi_reduction <maximumf>, %29, %cst_13 [2] : vector<4x8x8xf32> to vector<4x8xf32>
    %31 = vector.shape_cast %30 : vector<4x8xf32> to vector<4x8x1xf32>
    %32 = vector.broadcast %31 : vector<4x8x1xf32> to vector<4x8x8xf32>
    %33 = arith.subf %29, %32 : vector<4x8x8xf32>
    %34 = math.exp %33 : vector<4x8x8xf32>
    %cst_14 = arith.constant dense<0.000000e+00> : vector<4x8xf32>
    %35 = vector.multi_reduction <add>, %34, %cst_14 [2] : vector<4x8x8xf32> to vector<4x8xf32>
    %36 = vector.shape_cast %35 : vector<4x8xf32> to vector<4x8x1xf32>
    %37 = vector.broadcast %36 : vector<4x8x1xf32> to vector<4x8x8xf32>
    %38 = arith.divf %34, %37 : vector<4x8x8xf32>
    %39 = arith.truncf %38 : vector<4x8x8xf32> to vector<4x8x8xbf16>
    %40 = arith.truncf %23 : vector<4x8x8xf32> to vector<4x8x8xbf16>
    %cst_15 = arith.constant dense<0.000000e+00> : vector<4x8x8xf32>
    %41 = tpu.matmul %39, %40, %cst_15 {dimension_numbers = #tpu.dot_dimension_numbers<[2], [1], [1], [2], [0, 0, 0, 1, 1, 2], [0], [0]>} : vector<4x8x8xbf16>, vector<4x8x8xbf16>, vector<4x8x8xf32> -> vector<4x8x8xf32>
    %c0_16 = arith.constant 0 : index
    %c0_17 = arith.constant 0 : index
    %c0_18 = arith.constant 0 : index
    %c0_19 = arith.constant 0 : index
    %42 = vector.load %arg7[%c0_16, %c0_17, %c0_18, %c0_19] : memref<1x4x8x32xbf16, #tpu.memory_space<vmem>>, vector<1x4x8x32xbf16>
    %43 = vector.shape_cast %42 : vector<1x4x8x32xbf16> to vector<4x8x32xbf16>
    %c0_20 = arith.constant 0 : index
    %c0_21 = arith.constant 0 : index
    %c0_22 = arith.constant 0 : index
    %44 = vector.load %arg8[%c0_20, %c0_21, %c0_22] : memref<1x1x32xf32, #tpu.memory_space<vmem>>, vector<1x1x32xf32>
    %45 = vector.shape_cast %44 : vector<1x1x32xf32> to vector<1x32xf32>
    %46 = arith.truncf %41 : vector<4x8x8xf32> to vector<4x8x8xbf16>
    %cst_23 = arith.constant dense<0.000000e+00> : vector<4x8x32xf32>
    %47 = tpu.matmul %46, %43, %cst_23 {dimension_numbers = #tpu.dot_dimension_numbers<[2], [1], [1], [2], [0, 0, 0, 1, 1, 2], [0], [0]>} : vector<4x8x8xbf16>, vector<4x8x32xbf16>, vector<4x8x32xf32> -> vector<4x8x32xf32>
    %cst_24 = arith.constant dense<0.000000e+00> : vector<8x32xf32>
    %48 = vector.multi_reduction <add>, %47, %cst_24 [0] : vector<4x8x32xf32> to vector<8x32xf32>
    %49 = vector.broadcast %45 : vector<1x32xf32> to vector<8x32xf32>
    %50 = arith.addf %48, %49 : vector<8x32xf32>
    %51 = arith.addf %3, %50 : vector<8x32xf32>
    %c0_25 = arith.constant 0 : index
    %c0_26 = arith.constant 0 : index
    %c0_27 = arith.constant 0 : index
    %52 = vector.load %arg19[%c0_25, %c0_26, %c0_27] : memref<1x1x32xf32, #tpu.memory_space<vmem>>, vector<1x1x32xf32>
    %53 = vector.shape_cast %52 : vector<1x1x32xf32> to vector<1x32xf32>
    %c0_28 = arith.constant 0 : index
    %c0_29 = arith.constant 0 : index
    %c0_30 = arith.constant 0 : index
    %54 = vector.load %arg20[%c0_28, %c0_29, %c0_30] : memref<1x1x32xf32, #tpu.memory_space<vmem>>, vector<1x1x32xf32>
    %55 = vector.shape_cast %54 : vector<1x1x32xf32> to vector<1x32xf32>
    %cst_31 = arith.constant dense<0.000000e+00> : vector<8xf32>
    %56 = vector.multi_reduction <add>, %51, %cst_31 [1] : vector<8x32xf32> to vector<8xf32>
    %57 = vector.shape_cast %56 : vector<8xf32> to vector<8x1xf32>
    %cst_32 = arith.constant 3.200000e+01 : f32
    %58 = vector.broadcast %cst_32 : f32 to vector<8x1xf32>
    %59 = arith.divf %57, %58 : vector<8x1xf32>
    %60 = vector.broadcast %59 : vector<8x1xf32> to vector<8x32xf32>
    %61 = arith.subf %51, %60 : vector<8x32xf32>
    %62 = arith.mulf %61, %61 : vector<8x32xf32>
    %cst_33 = arith.constant dense<0.000000e+00> : vector<8xf32>
    %63 = vector.multi_reduction <add>, %62, %cst_33 [1] : vector<8x32xf32> to vector<8xf32>
    %64 = vector.shape_cast %63 : vector<8xf32> to vector<8x1xf32>
    %cst_34 = arith.constant 3.200000e+01 : f32
    %65 = vector.broadcast %cst_34 : f32 to vector<8x1xf32>
    %66 = arith.divf %64, %65 : vector<8x1xf32>
    %67 = vector.broadcast %59 : vector<8x1xf32> to vector<8x32xf32>
    %68 = arith.subf %51, %67 : vector<8x32xf32>
    %cst_35 = arith.constant 9.99999974E-6 : f32
    %69 = vector.broadcast %cst_35 : f32 to vector<8x1xf32>
    %70 = arith.addf %66, %69 : vector<8x1xf32>
    %71 = math.rsqrt %70 : vector<8x1xf32>
    %72 = vector.broadcast %71 : vector<8x1xf32> to vector<8x32xf32>
    %73 = arith.mulf %68, %72 : vector<8x32xf32>
    %74 = vector.broadcast %53 : vector<1x32xf32> to vector<8x32xf32>
    %75 = arith.mulf %73, %74 : vector<8x32xf32>
    %76 = vector.broadcast %55 : vector<1x32xf32> to vector<8x32xf32>
    %77 = arith.addf %75, %76 : vector<8x32xf32>
    %c0_36 = arith.constant 0 : index
    %c0_37 = arith.constant 0 : index
    %c0_38 = arith.constant 0 : index
    %78 = vector.load %arg4[%c0_36, %c0_37, %c0_38] : memref<1x8x32xf32, #tpu.memory_space<vmem>>, vector<1x8x32xf32>
    %79 = vector.shape_cast %78 : vector<1x8x32xf32> to vector<8x32xf32>
    %80 = arith.truncf %79 : vector<8x32xf32> to vector<8x32xbf16>
    %81 = arith.truncf %77 : vector<8x32xf32> to vector<8x32xbf16>
    %c0_39 = arith.constant 0 : index
    %c0_40 = arith.constant 0 : index
    %c0_41 = arith.constant 0 : index
    %c0_42 = arith.constant 0 : index
    %82 = vector.load %arg9[%c0_39, %c0_40, %c0_41, %c0_42] : memref<1x4x32x8xbf16, #tpu.memory_space<vmem>>, vector<1x4x32x8xbf16>
    %83 = vector.shape_cast %82 : vector<1x4x32x8xbf16> to vector<4x32x8xbf16>
    %c0_43 = arith.constant 0 : index
    %c0_44 = arith.constant 0 : index
    %c0_45 = arith.constant 0 : index
    %c0_46 = arith.constant 0 : index
    %84 = vector.load %arg10[%c0_43, %c0_44, %c0_45, %c0_46] : memref<1x4x1x8xf32, #tpu.memory_space<vmem>>, vector<1x4x1x8xf32>
    %85 = vector.shape_cast %84 : vector<1x4x1x8xf32> to vector<4x1x8xf32>
    %86 = vector.shape_cast %81 : vector<8x32xbf16> to vector<1x8x32xbf16>
    %87 = vector.shape_cast %86 : vector<1x8x32xbf16> to vector<1x8x32xbf16>
    %88 = vector.broadcast %87 : vector<1x8x32xbf16> to vector<4x8x32xbf16>
    %cst_47 = arith.constant dense<0.000000e+00> : vector<4x8x8xf32>
    %89 = tpu.matmul %88, %83, %cst_47 {dimension_numbers = #tpu.dot_dimension_numbers<[2], [1], [1], [2], [0, 0, 0, 1, 1, 2], [0], [0]>} : vector<4x8x32xbf16>, vector<4x32x8xbf16>, vector<4x8x8xf32> -> vector<4x8x8xf32>
    %90 = vector.broadcast %85 : vector<4x1x8xf32> to vector<4x8x8xf32>
    %91 = arith.addf %89, %90 : vector<4x8x8xf32>
    %c0_48 = arith.constant 0 : index
    %c0_49 = arith.constant 0 : index
    %c0_50 = arith.constant 0 : index
    %c0_51 = arith.constant 0 : index
    %92 = vector.load %arg11[%c0_48, %c0_49, %c0_50, %c0_51] : memref<1x8x32x8xbf16, #tpu.memory_space<vmem>>, vector<1x8x32x8xbf16>
    %93 = vector.shape_cast %92 : vector<1x8x32x8xbf16> to vector<8x32x8xbf16>
    %c0_52 = arith.constant 0 : index
    %c0_53 = arith.constant 0 : index
    %c0_54 = arith.constant 0 : index
    %c0_55 = arith.constant 0 : index
    %94 = vector.load %arg12[%c0_52, %c0_53, %c0_54, %c0_55] : memref<1x8x1x8xf32, #tpu.memory_space<vmem>>, vector<1x8x1x8xf32>
    %95 = vector.shape_cast %94 : vector<1x8x1x8xf32> to vector<8x1x8xf32>
    %96 = vector.shape_cast %80 : vector<8x32xbf16> to vector<1x8x32xbf16>
    %97 = vector.shape_cast %96 : vector<1x8x32xbf16> to vector<1x8x32xbf16>
    %98 = vector.broadcast %97 : vector<1x8x32xbf16> to vector<8x8x32xbf16>
    %cst_56 = arith.constant dense<0.000000e+00> : vector<8x8x8xf32>
    %99 = tpu.matmul %98, %93, %cst_56 {dimension_numbers = #tpu.dot_dimension_numbers<[2], [1], [1], [2], [0, 0, 0, 1, 1, 2], [0], [0]>} : vector<8x8x32xbf16>, vector<8x32x8xbf16>, vector<8x8x8xf32> -> vector<8x8x8xf32>
    %100 = vector.broadcast %95 : vector<8x1x8xf32> to vector<8x8x8xf32>
    %101 = arith.addf %99, %100 : vector<8x8x8xf32>
    %102 = vector.extract_strided_slice %101 {offsets = [0, 0, 0], sizes = [4, 8, 8], strides = [1, 1, 1]} : vector<8x8x8xf32> to vector<4x8x8xf32>
    %103 = vector.extract_strided_slice %101 {offsets = [4, 0, 0], sizes = [4, 8, 8], strides = [1, 1, 1]} : vector<8x8x8xf32> to vector<4x8x8xf32>
    %104 = arith.truncf %91 : vector<4x8x8xf32> to vector<4x8x8xbf16>
    %105 = arith.truncf %102 : vector<4x8x8xf32> to vector<4x8x8xbf16>
    %cst_57 = arith.constant dense<0.000000e+00> : vector<4x8x8xf32>
    %106 = tpu.matmul %104, %105, %cst_57 {dimension_numbers = #tpu.dot_dimension_numbers<[2], [2], [1], [1], [0, 0, 0, 1, 1, 1], [0], [0]>} : vector<4x8x8xbf16>, vector<4x8x8xbf16>, vector<4x8x8xf32> -> vector<4x8x8xf32>
    %cst_58 = arith.constant dense<0xFF800000> : vector<4x8xf32>
    %107 = vector.multi_reduction <maximumf>, %106, %cst_58 [2] : vector<4x8x8xf32> to vector<4x8xf32>
    %108 = vector.shape_cast %107 : vector<4x8xf32> to vector<4x8x1xf32>
    %109 = vector.broadcast %108 : vector<4x8x1xf32> to vector<4x8x8xf32>
    %110 = arith.subf %106, %109 : vector<4x8x8xf32>
    %111 = math.exp %110 : vector<4x8x8xf32>
    %cst_59 = arith.constant dense<0.000000e+00> : vector<4x8xf32>
    %112 = vector.multi_reduction <add>, %111, %cst_59 [2] : vector<4x8x8xf32> to vector<4x8xf32>
    %113 = vector.shape_cast %112 : vector<4x8xf32> to vector<4x8x1xf32>
    %114 = vector.broadcast %113 : vector<4x8x1xf32> to vector<4x8x8xf32>
    %115 = arith.divf %111, %114 : vector<4x8x8xf32>
    %116 = arith.truncf %115 : vector<4x8x8xf32> to vector<4x8x8xbf16>
    %117 = arith.truncf %103 : vector<4x8x8xf32> to vector<4x8x8xbf16>
    %cst_60 = arith.constant dense<0.000000e+00> : vector<4x8x8xf32>
    %118 = tpu.matmul %116, %117, %cst_60 {dimension_numbers = #tpu.dot_dimension_numbers<[2], [1], [1], [2], [0, 0, 0, 1, 1, 2], [0], [0]>} : vector<4x8x8xbf16>, vector<4x8x8xbf16>, vector<4x8x8xf32> -> vector<4x8x8xf32>
    %c0_61 = arith.constant 0 : index
    %c0_62 = arith.constant 0 : index
    %c0_63 = arith.constant 0 : index
    %c0_64 = arith.constant 0 : index
    %119 = vector.load %arg13[%c0_61, %c0_62, %c0_63, %c0_64] : memref<1x4x8x32xbf16, #tpu.memory_space<vmem>>, vector<1x4x8x32xbf16>
    %120 = vector.shape_cast %119 : vector<1x4x8x32xbf16> to vector<4x8x32xbf16>
    %c0_65 = arith.constant 0 : index
    %c0_66 = arith.constant 0 : index
    %c0_67 = arith.constant 0 : index
    %121 = vector.load %arg14[%c0_65, %c0_66, %c0_67] : memref<1x1x32xf32, #tpu.memory_space<vmem>>, vector<1x1x32xf32>
    %122 = vector.shape_cast %121 : vector<1x1x32xf32> to vector<1x32xf32>
    %123 = arith.truncf %118 : vector<4x8x8xf32> to vector<4x8x8xbf16>
    %cst_68 = arith.constant dense<0.000000e+00> : vector<4x8x32xf32>
    %124 = tpu.matmul %123, %120, %cst_68 {dimension_numbers = #tpu.dot_dimension_numbers<[2], [1], [1], [2], [0, 0, 0, 1, 1, 2], [0], [0]>} : vector<4x8x8xbf16>, vector<4x8x32xbf16>, vector<4x8x32xf32> -> vector<4x8x32xf32>
    %cst_69 = arith.constant dense<0.000000e+00> : vector<8x32xf32>
    %125 = vector.multi_reduction <add>, %124, %cst_69 [0] : vector<4x8x32xf32> to vector<8x32xf32>
    %126 = vector.broadcast %122 : vector<1x32xf32> to vector<8x32xf32>
    %127 = arith.addf %125, %126 : vector<8x32xf32>
    %128 = arith.addf %77, %127 : vector<8x32xf32>
    %c0_70 = arith.constant 0 : index
    %c0_71 = arith.constant 0 : index
    %c0_72 = arith.constant 0 : index
    %129 = vector.load %arg21[%c0_70, %c0_71, %c0_72] : memref<1x1x32xf32, #tpu.memory_space<vmem>>, vector<1x1x32xf32>
    %130 = vector.shape_cast %129 : vector<1x1x32xf32> to vector<1x32xf32>
    %c0_73 = arith.constant 0 : index
    %c0_74 = arith.constant 0 : index
    %c0_75 = arith.constant 0 : index
    %131 = vector.load %arg22[%c0_73, %c0_74, %c0_75] : memref<1x1x32xf32, #tpu.memory_space<vmem>>, vector<1x1x32xf32>
    %132 = vector.shape_cast %131 : vector<1x1x32xf32> to vector<1x32xf32>
    %cst_76 = arith.constant dense<0.000000e+00> : vector<8xf32>
    %133 = vector.multi_reduction <add>, %128, %cst_76 [1] : vector<8x32xf32> to vector<8xf32>
    %134 = vector.shape_cast %133 : vector<8xf32> to vector<8x1xf32>
    %cst_77 = arith.constant 3.200000e+01 : f32
    %135 = vector.broadcast %cst_77 : f32 to vector<8x1xf32>
    %136 = arith.divf %134, %135 : vector<8x1xf32>
    %137 = vector.broadcast %136 : vector<8x1xf32> to vector<8x32xf32>
    %138 = arith.subf %128, %137 : vector<8x32xf32>
    %139 = arith.mulf %138, %138 : vector<8x32xf32>
    %cst_78 = arith.constant dense<0.000000e+00> : vector<8xf32>
    %140 = vector.multi_reduction <add>, %139, %cst_78 [1] : vector<8x32xf32> to vector<8xf32>
    %141 = vector.shape_cast %140 : vector<8xf32> to vector<8x1xf32>
    %cst_79 = arith.constant 3.200000e+01 : f32
    %142 = vector.broadcast %cst_79 : f32 to vector<8x1xf32>
    %143 = arith.divf %141, %142 : vector<8x1xf32>
    %144 = vector.broadcast %136 : vector<8x1xf32> to vector<8x32xf32>
    %145 = arith.subf %128, %144 : vector<8x32xf32>
    %cst_80 = arith.constant 9.99999974E-6 : f32
    %146 = vector.broadcast %cst_80 : f32 to vector<8x1xf32>
    %147 = arith.addf %143, %146 : vector<8x1xf32>
    %148 = math.rsqrt %147 : vector<8x1xf32>
    %149 = vector.broadcast %148 : vector<8x1xf32> to vector<8x32xf32>
    %150 = arith.mulf %145, %149 : vector<8x32xf32>
    %151 = vector.broadcast %130 : vector<1x32xf32> to vector<8x32xf32>
    %152 = arith.mulf %150, %151 : vector<8x32xf32>
    %153 = vector.broadcast %132 : vector<1x32xf32> to vector<8x32xf32>
    %154 = arith.addf %152, %153 : vector<8x32xf32>
    %c0_81 = arith.constant 0 : index
    %c0_82 = arith.constant 0 : index
    %c0_83 = arith.constant 0 : index
    %155 = vector.load %arg15[%c0_81, %c0_82, %c0_83] : memref<1x32x64xbf16, #tpu.memory_space<vmem>>, vector<1x32x64xbf16>
    %156 = vector.shape_cast %155 : vector<1x32x64xbf16> to vector<32x64xbf16>
    %c0_84 = arith.constant 0 : index
    %c0_85 = arith.constant 0 : index
    %c0_86 = arith.constant 0 : index
    %157 = vector.load %arg16[%c0_84, %c0_85, %c0_86] : memref<1x1x64xf32, #tpu.memory_space<vmem>>, vector<1x1x64xf32>
    %158 = vector.shape_cast %157 : vector<1x1x64xf32> to vector<1x64xf32>
    %c0_87 = arith.constant 0 : index
    %c0_88 = arith.constant 0 : index
    %c0_89 = arith.constant 0 : index
    %159 = vector.load %arg17[%c0_87, %c0_88, %c0_89] : memref<1x64x32xbf16, #tpu.memory_space<vmem>>, vector<1x64x32xbf16>
    %160 = vector.shape_cast %159 : vector<1x64x32xbf16> to vector<64x32xbf16>
    %c0_90 = arith.constant 0 : index
    %c0_91 = arith.constant 0 : index
    %c0_92 = arith.constant 0 : index
    %161 = vector.load %arg18[%c0_90, %c0_91, %c0_92] : memref<1x1x32xf32, #tpu.memory_space<vmem>>, vector<1x1x32xf32>
    %162 = vector.shape_cast %161 : vector<1x1x32xf32> to vector<1x32xf32>
    %163 = arith.truncf %154 : vector<8x32xf32> to vector<8x32xbf16>
    %cst_93 = arith.constant dense<0.000000e+00> : vector<8x64xf32>
    %164 = tpu.matmul %163, %156, %cst_93 {dimension_numbers = #tpu.dot_dimension_numbers<[1], [0], [0], [1], [0, 0, 1, 1], [], []>} : vector<8x32xbf16>, vector<32x64xbf16>, vector<8x64xf32> -> vector<8x64xf32>
    %165 = vector.broadcast %158 : vector<1x64xf32> to vector<8x64xf32>
    %166 = arith.addf %164, %165 : vector<8x64xf32>
    %cst_94 = arith.constant 0.000000e+00 : f32
    %167 = vector.broadcast %cst_94 : f32 to vector<8x64xf32>
    %168 = arith.maximumf %166, %167 : vector<8x64xf32>
    %169 = arith.truncf %168 : vector<8x64xf32> to vector<8x64xbf16>
    %cst_95 = arith.constant dense<0.000000e+00> : vector<8x32xf32>
    %170 = tpu.matmul %169, %160, %cst_95 {dimension_numbers = #tpu.dot_dimension_numbers<[1], [0], [0], [1], [0, 0, 1, 1], [], []>} : vector<8x64xbf16>, vector<64x32xbf16>, vector<8x32xf32> -> vector<8x32xf32>
    %171 = vector.broadcast %162 : vector<1x32xf32> to vector<8x32xf32>
    %172 = arith.addf %170, %171 : vector<8x32xf32>
    %173 = arith.addf %154, %172 : vector<8x32xf32>
    %c0_96 = arith.constant 0 : index
    %c0_97 = arith.constant 0 : index
    %c0_98 = arith.constant 0 : index
    %174 = vector.load %arg23[%c0_96, %c0_97, %c0_98] : memref<1x1x32xf32, #tpu.memory_space<vmem>>, vector<1x1x32xf32>
    %175 = vector.shape_cast %174 : vector<1x1x32xf32> to vector<1x32xf32>
    %c0_99 = arith.constant 0 : index
    %c0_100 = arith.constant 0 : index
    %c0_101 = arith.constant 0 : index
    %176 = vector.load %arg24[%c0_99, %c0_100, %c0_101] : memref<1x1x32xf32, #tpu.memory_space<vmem>>, vector<1x1x32xf32>
    %177 = vector.shape_cast %176 : vector<1x1x32xf32> to vector<1x32xf32>
    %cst_102 = arith.constant dense<0.000000e+00> : vector<8xf32>
    %178 = vector.multi_reduction <add>, %173, %cst_102 [1] : vector<8x32xf32> to vector<8xf32>
    %179 = vector.shape_cast %178 : vector<8xf32> to vector<8x1xf32>
    %cst_103 = arith.constant 3.200000e+01 : f32
    %180 = vector.broadcast %cst_103 : f32 to vector<8x1xf32>
    %181 = arith.divf %179, %180 : vector<8x1xf32>
    %182 = vector.broadcast %181 : vector<8x1xf32> to vector<8x32xf32>
    %183 = arith.subf %173, %182 : vector<8x32xf32>
    %184 = arith.mulf %183, %183 : vector<8x32xf32>
    %cst_104 = arith.constant dense<0.000000e+00> : vector<8xf32>
    %185 = vector.multi_reduction <add>, %184, %cst_104 [1] : vector<8x32xf32> to vector<8xf32>
    %186 = vector.shape_cast %185 : vector<8xf32> to vector<8x1xf32>
    %cst_105 = arith.constant 3.200000e+01 : f32
    %187 = vector.broadcast %cst_105 : f32 to vector<8x1xf32>
    %188 = arith.divf %186, %187 : vector<8x1xf32>
    %189 = vector.broadcast %181 : vector<8x1xf32> to vector<8x32xf32>
    %190 = arith.subf %173, %189 : vector<8x32xf32>
    %cst_106 = arith.constant 9.99999974E-6 : f32
    %191 = vector.broadcast %cst_106 : f32 to vector<8x1xf32>
    %192 = arith.addf %188, %191 : vector<8x1xf32>
    %193 = math.rsqrt %192 : vector<8x1xf32>
    %194 = vector.broadcast %193 : vector<8x1xf32> to vector<8x32xf32>
    %195 = arith.mulf %190, %194 : vector<8x32xf32>
    %196 = vector.broadcast %175 : vector<1x32xf32> to vector<8x32xf32>
    %197 = arith.mulf %195, %196 : vector<8x32xf32>
    %198 = vector.broadcast %177 : vector<1x32xf32> to vector<8x32xf32>
    %199 = arith.addf %197, %198 : vector<8x32xf32>
    %c0_107 = arith.constant 0 : index
    %c0_108 = arith.constant 0 : index
    %200 = vector.load %arg30[%c0_107, %c0_108] : memref<8x32xf32, #tpu.memory_space<vmem>>, vector<8x32xf32>
    tpu.vector_store %arg30[%c0_107, %c0_108], %199 {strides = array<i32>} : memref<8x32xf32, #tpu.memory_space<vmem>>, vector<8x32xf32>,
    %c1_i32 = arith.constant 1 : i32
    %201 = arith.cmpi eq, %arg1, %c1_i32 : i32
    %202 = arith.extui %201 : i1 to i32
    %c0_i32_109 = arith.constant 0 : i32
    %203 = arith.cmpi ne, %202, %c0_i32_109 : i32
    scf.if %203 {
      %c0_110 = arith.constant 0 : index
      %c0_111 = arith.constant 0 : index
      %204 = vector.load %arg25[%c0_110, %c0_111] : memref<1x32xf32, #tpu.memory_space<vmem>>, vector<1x32xf32>
      %c0_112 = arith.constant 0 : index
      %c0_113 = arith.constant 0 : index
      %205 = vector.load %arg26[%c0_112, %c0_113] : memref<1x32xf32, #tpu.memory_space<vmem>>, vector<1x32xf32>
      %cst_114 = arith.constant dense<0.000000e+00> : vector<8xf32>
      %206 = vector.multi_reduction <add>, %199, %cst_114 [1] : vector<8x32xf32> to vector<8xf32>
      %207 = vector.shape_cast %206 : vector<8xf32> to vector<8x1xf32>
      %cst_115 = arith.constant 3.200000e+01 : f32
      %208 = vector.broadcast %cst_115 : f32 to vector<8x1xf32>
      %209 = arith.divf %207, %208 : vector<8x1xf32>
      %210 = vector.broadcast %209 : vector<8x1xf32> to vector<8x32xf32>
      %211 = arith.subf %199, %210 : vector<8x32xf32>
      %212 = arith.mulf %211, %211 : vector<8x32xf32>
      %cst_116 = arith.constant dense<0.000000e+00> : vector<8xf32>
      %213 = vector.multi_reduction <add>, %212, %cst_116 [1] : vector<8x32xf32> to vector<8xf32>
      %214 = vector.shape_cast %213 : vector<8xf32> to vector<8x1xf32>
      %cst_117 = arith.constant 3.200000e+01 : f32
      %215 = vector.broadcast %cst_117 : f32 to vector<8x1xf32>
      %216 = arith.divf %214, %215 : vector<8x1xf32>
      %217 = vector.broadcast %209 : vector<8x1xf32> to vector<8x32xf32>
      %218 = arith.subf %199, %217 : vector<8x32xf32>
      %cst_118 = arith.constant 9.99999974E-6 : f32
      %219 = vector.broadcast %cst_118 : f32 to vector<8x1xf32>
      %220 = arith.addf %216, %219 : vector<8x1xf32>
      %221 = math.rsqrt %220 : vector<8x1xf32>
      %222 = vector.broadcast %221 : vector<8x1xf32> to vector<8x32xf32>
      %223 = arith.mulf %218, %222 : vector<8x32xf32>
      %224 = vector.broadcast %204 : vector<1x32xf32> to vector<8x32xf32>
      %225 = arith.mulf %223, %224 : vector<8x32xf32>
      %226 = vector.broadcast %205 : vector<1x32xf32> to vector<8x32xf32>
      %227 = arith.addf %225, %226 : vector<8x32xf32>
      %228 = arith.truncf %227 : vector<8x32xf32> to vector<8x32xbf16>
      %c0_119 = arith.constant 0 : index
      %c0_120 = arith.constant 0 : index
      %229 = vector.load %arg27[%c0_119, %c0_120] : memref<32x128xbf16, #tpu.memory_space<vmem>>, vector<32x128xbf16>
      %cst_121 = arith.constant dense<0.000000e+00> : vector<8x128xf32>
      %230 = tpu.matmul %228, %229, %cst_121 {dimension_numbers = #tpu.dot_dimension_numbers<[1], [0], [0], [1], [0, 0, 1, 1], [], []>} : vector<8x32xbf16>, vector<32x128xbf16>, vector<8x128xf32> -> vector<8x128xf32>
      %c0_122 = arith.constant 0 : index
      %c0_123 = arith.constant 0 : index
      %231 = vector.load %arg28[%c0_122, %c0_123] : memref<1x128xf32, #tpu.memory_space<vmem>>, vector<1x128xf32>
      %232 = vector.broadcast %231 : vector<1x128xf32> to vector<8x128xf32>
      %233 = arith.addf %230, %232 : vector<8x128xf32>
      %c0_124 = arith.constant 0 : index
      %c0_125 = arith.constant 0 : index
      %234 = vector.load %arg29[%c0_124, %c0_125] : memref<8x128xf32, #tpu.memory_space<vmem>>, vector<8x128xf32>
      tpu.vector_store %arg29[%c0_124, %c0_125], %233 {strides = array<i32>} : memref<8x128xf32, #tpu.memory_space<vmem>>, vector<8x128xf32>,
    } else {
    }
    return
  }
  func.func @transform_0(%arg0: i32, %arg1: i32) -> (i32, i32, i32) {
    %c0_i32 = arith.constant 0 : i32
    %c0_i32_0 = arith.constant 0 : i32
    %c0_i32_1 = arith.constant 0 : i32
    return %arg0, %c0_i32, %c0_i32_0 : i32, i32, i32
  }
  func.func @transform_1(%arg0: i32, %arg1: i32) -> (i32, i32, i32) {
    %c0_i32 = arith.constant 0 : i32
    %c0_i32_0 = arith.constant 0 : i32
    %c0_i32_1 = arith.constant 0 : i32
    %c0_i32_2 = arith.constant 0 : i32
    return %c0_i32, %c0_i32_0, %c0_i32_1 : i32, i32, i32
  }
  func.func @transform_2(%arg0: i32, %arg1: i32) -> (i32, i32, i32) {
    %c0_i32 = arith.constant 0 : i32
    %c0_i32_0 = arith.constant 0 : i32
    %c0_i32_1 = arith.constant 0 : i32
    return %arg0, %c0_i32, %c0_i32_0 : i32, i32, i32
  }
  func.func @transform_3(%arg0: i32, %arg1: i32) -> (i32, i32, i32, i32) {
    %c0_i32 = arith.constant 0 : i32
    %c0_i32_0 = arith.constant 0 : i32
    %c0_i32_1 = arith.constant 0 : i32
    %c0_i32_2 = arith.constant 0 : i32
    return %arg1, %c0_i32, %c0_i32_0, %c0_i32_1 : i32, i32, i32, i32
  }
  func.func @transform_4(%arg0: i32, %arg1: i32) -> (i32, i32, i32, i32) {
    %c0_i32 = arith.constant 0 : i32
    %c0_i32_0 = arith.constant 0 : i32
    %c0_i32_1 = arith.constant 0 : i32
    %c0_i32_2 = arith.constant 0 : i32
    return %arg1, %c0_i32, %c0_i32_0, %c0_i32_1 : i32, i32, i32, i32
  }
  func.func @transform_5(%arg0: i32, %arg1: i32) -> (i32, i32, i32, i32) {
    %c0_i32 = arith.constant 0 : i32
    %c0_i32_0 = arith.constant 0 : i32
    %c0_i32_1 = arith.constant 0 : i32
    %c0_i32_2 = arith.constant 0 : i32
    return %arg1, %c0_i32, %c0_i32_0, %c0_i32_1 : i32, i32, i32, i32
  }
  func.func @transform_6(%arg0: i32, %arg1: i32) -> (i32, i32, i32) {
    %c0_i32 = arith.constant 0 : i32
    %c0_i32_0 = arith.constant 0 : i32
    %c0_i32_1 = arith.constant 0 : i32
    return %arg1, %c0_i32, %c0_i32_0 : i32, i32, i32
  }
  func.func @transform_7(%arg0: i32, %arg1: i32) -> (i32, i32, i32, i32) {
    %c0_i32 = arith.constant 0 : i32
    %c0_i32_0 = arith.constant 0 : i32
    %c0_i32_1 = arith.constant 0 : i32
    %c0_i32_2 = arith.constant 0 : i32
    return %arg1, %c0_i32, %c0_i32_0, %c0_i32_1 : i32, i32, i32, i32
  }
  func.func @transform_8(%arg0: i32, %arg1: i32) -> (i32, i32, i32, i32) {
    %c0_i32 = arith.constant 0 : i32
    %c0_i32_0 = arith.constant 0 : i32
    %c0_i32_1 = arith.constant 0 : i32
    %c0_i32_2 = arith.constant 0 : i32
    return %arg1, %c0_i32, %c0_i32_0, %c0_i32_1 : i32, i32, i32, i32
  }
  func.func @transform_9(%arg0: i32, %arg1: i32) -> (i32, i32, i32, i32) {
    %c0_i32 = arith.constant 0 : i32
    %c0_i32_0 = arith.constant 0 : i32
    %c0_i32_1 = arith.constant 0 : i32
    %c0_i32_2 = arith.constant 0 : i32
    return %arg1, %c0_i32, %c0_i32_0, %c0_i32_1 : i32, i32, i32, i32
  }
  func.func @transform_10(%arg0: i32, %arg1: i32) -> (i32, i32, i32, i32) {
    %c0_i32 = arith.constant 0 : i32
    %c0_i32_0 = arith.constant 0 : i32
    %c0_i32_1 = arith.constant 0 : i32
    %c0_i32_2 = arith.constant 0 : i32
    return %arg1, %c0_i32, %c0_i32_0, %c0_i32_1 : i32, i32, i32, i32
  }
  func.func @transform_11(%arg0: i32, %arg1: i32) -> (i32, i32, i32, i32) {
    %c0_i32 = arith.constant 0 : i32
    %c0_i32_0 = arith.constant 0 : i32
    %c0_i32_1 = arith.constant 0 : i32
    %c0_i32_2 = arith.constant 0 : i32
    return %arg1, %c0_i32, %c0_i32_0, %c0_i32_1 : i32, i32, i32, i32
  }
  func.func @transform_12(%arg0: i32, %arg1: i32) -> (i32, i32, i32) {
    %c0_i32 = arith.constant 0 : i32
    %c0_i32_0 = arith.constant 0 : i32
    %c0_i32_1 = arith.constant 0 : i32
    return %arg1, %c0_i32, %c0_i32_0 : i32, i32, i32
  }
  func.func @transform_13(%arg0: i32, %arg1: i32) -> (i32, i32, i32) {
    %c0_i32 = arith.constant 0 : i32
    %c0_i32_0 = arith.constant 0 : i32
    %c0_i32_1 = arith.constant 0 : i32
    return %arg1, %c0_i32, %c0_i32_0 : i32, i32, i32
  }
  func.func @transform_14(%arg0: i32, %arg1: i32) -> (i32, i32, i32) {
    %c0_i32 = arith.constant 0 : i32
    %c0_i32_0 = arith.constant 0 : i32
    %c0_i32_1 = arith.constant 0 : i32
    return %arg1, %c0_i32, %c0_i32_0 : i32, i32, i32
  }
  func.func @transform_15(%arg0: i32, %arg1: i32) -> (i32, i32, i32) {
    %c0_i32 = arith.constant 0 : i32
    %c0_i32_0 = arith.constant 0 : i32
    %c0_i32_1 = arith.constant 0 : i32
    return %arg1, %c0_i32, %c0_i32_0 : i32, i32, i32
  }
  func.func @transform_16(%arg0: i32, %arg1: i32) -> (i32, i32, i32) {
    %c0_i32 = arith.constant 0 : i32
    %c0_i32_0 = arith.constant 0 : i32
    %c0_i32_1 = arith.constant 0 : i32
    return %arg1, %c0_i32, %c0_i32_0 : i32, i32, i32
  }
  func.func @transform_17(%arg0: i32, %arg1: i32) -> (i32, i32, i32) {
    %c0_i32 = arith.constant 0 : i32
    %c0_i32_0 = arith.constant 0 : i32
    %c0_i32_1 = arith.constant 0 : i32
    return %arg1, %c0_i32, %c0_i32_0 : i32, i32, i32
  }
  func.func @transform_18(%arg0: i32, %arg1: i32) -> (i32, i32, i32) {
    %c0_i32 = arith.constant 0 : i32
    %c0_i32_0 = arith.constant 0 : i32
    %c0_i32_1 = arith.constant 0 : i32
    return %arg1, %c0_i32, %c0_i32_0 : i32, i32, i32
  }
  func.func @transform_19(%arg0: i32, %arg1: i32) -> (i32, i32, i32) {
    %c0_i32 = arith.constant 0 : i32
    %c0_i32_0 = arith.constant 0 : i32
    %c0_i32_1 = arith.constant 0 : i32
    return %arg1, %c0_i32, %c0_i32_0 : i32, i32, i32
  }
  func.func @transform_20(%arg0: i32, %arg1: i32) -> (i32, i32, i32) {
    %c0_i32 = arith.constant 0 : i32
    %c0_i32_0 = arith.constant 0 : i32
    %c0_i32_1 = arith.constant 0 : i32
    return %arg1, %c0_i32, %c0_i32_0 : i32, i32, i32
  }
  func.func @transform_21(%arg0: i32, %arg1: i32) -> (i32, i32, i32) {
    %c0_i32 = arith.constant 0 : i32
    %c0_i32_0 = arith.constant 0 : i32
    %c0_i32_1 = arith.constant 0 : i32
    return %arg1, %c0_i32, %c0_i32_0 : i32, i32, i32
  }
  func.func @transform_22(%arg0: i32, %arg1: i32) -> (i32, i32, i32) {
    %c0_i32 = arith.constant 0 : i32
    %c0_i32_0 = arith.constant 0 : i32
    %c0_i32_1 = arith.constant 0 : i32
    return %arg1, %c0_i32, %c0_i32_0 : i32, i32, i32
  }
  func.func @transform_23(%arg0: i32, %arg1: i32) -> (i32, i32) {
    %c0_i32 = arith.constant 0 : i32
    %c0_i32_0 = arith.constant 0 : i32
    %c0_i32_1 = arith.constant 0 : i32
    return %c0_i32, %c0_i32_0 : i32, i32
  }
  func.func @transform_24(%arg0: i32, %arg1: i32) -> (i32, i32) {
    %c0_i32 = arith.constant 0 : i32
    %c0_i32_0 = arith.constant 0 : i32
    %c0_i32_1 = arith.constant 0 : i32
    return %c0_i32, %c0_i32_0 : i32, i32
  }
  func.func @transform_25(%arg0: i32, %arg1: i32) -> (i32, i32) {
    %c0_i32 = arith.constant 0 : i32
    %c0_i32_0 = arith.constant 0 : i32
    %c0_i32_1 = arith.constant 0 : i32
    return %c0_i32, %c0_i32_0 : i32, i32
  }
  func.func @transform_26(%arg0: i32, %arg1: i32) -> (i32, i32) {
    %c0_i32 = arith.constant 0 : i32
    %c0_i32_0 = arith.constant 0 : i32
    %c0_i32_1 = arith.constant 0 : i32
    return %c0_i32, %c0_i32_0 : i32, i32
  }
  func.func @transform_27(%arg0: i32, %arg1: i32) -> (i32, i32) {
    %c0_i32 = arith.constant 0 : i32
    %c0_i32_0 = arith.constant 0 : i32
    return %arg0, %c0_i32 : i32, i32
  }
}

</mosaic_0001>

<llo_original>
// kernel: _lambda_.2
$region0: #{_lambda_.2}
  #allocation0 [shape = 'u32[]', space=smem, size = 0x4, offset = 0x4, fixed_abs, tag = 'smem constant byte address 0x4 - core index']
  #allocation1 [shape = 'u32[144,128]{1,0:T(1,128)}', space=vmem, size = 0x12000, scoped, tag = 'internal scratch']
  #allocation2 [shape = 'f32[8,32]{1,0:T(8,128)}', space=vmem, size = 0x1000, scoped, tag = 'scratch operand']
  %s0 = inlined_call_operand.vmem [shape: f32[2,8,32], index: 0, kind: input, shape index: {}]
  %s1 = inlined_call_operand.hbm [shape: f32[1,8,32], index: 1, kind: input, shape index: {}]
  %s2 = inlined_call_operand.vmem [shape: bf16[2,12,32,8], index: 2, kind: input, shape index: {}]
  %s3 = inlined_call_operand.vmem [shape: f32[2,12,1,8], index: 3, kind: input, shape index: {}]
  %s4 = inlined_call_operand.hbm [shape: bf16[2,4,8,32], index: 4, kind: input, shape index: {}]
  %s5 = inlined_call_operand.vmem [shape: f32[2,1,32], index: 5, kind: input, shape index: {}, may-alias: {5,9,11,13}]
  %s6 = inlined_call_operand.hbm [shape: bf16[2,32,64], index: 6, kind: input, shape index: {}]
  %s7 = inlined_call_operand.vmem [shape: f32[2,1,64], index: 7, kind: input, shape index: {}]
  %s8 = inlined_call_operand.hbm [shape: bf16[2,64,32], index: 8, kind: input, shape index: {}]
  %s9 = inlined_call_operand.vmem [shape: f32[2,1,32], index: 9, kind: input, shape index: {}, may-alias: {5,9,11,13}]
  %s10 = inlined_call_operand.vmem [shape: f32[2,1,32], index: 10, kind: input, shape index: {}, may-alias: {10,12}]
  %s11 = inlined_call_operand.vmem [shape: f32[2,1,32], index: 11, kind: input, shape index: {}, may-alias: {5,9,11,13}]
  %s12 = inlined_call_operand.vmem [shape: f32[2,1,32], index: 12, kind: input, shape index: {}, may-alias: {10,12}]
  %s13 = inlined_call_operand.vmem [shape: f32[2,1,32], index: 13, kind: input, shape index: {}, may-alias: {5,9,11,13}]
  %s14 = inlined_call_operand.vmem [shape: f32[1,32], index: 14, kind: input, shape index: {}]
  %s15 = inlined_call_operand.vmem [shape: f32[1,32], index: 15, kind: input, shape index: {}]
  %s16 = inlined_call_operand.vmem [shape: f32[2,8,32], index: 16, kind: output, shape index: {}]
  %s17 = sld [smem:[#allocation0]]
  $region121: #{_lambda_.2} parent=0
    _
  %s19 = ssub.s32 1, %s17
  %s20 = scalar_select 0, %s19, %s17
  $region1: #{_lambda_.2} parent=0
    #allocation3 [shape = 'u8[4096]{0}', space=vmem, size = 0x1000, scoped, tag = 'input window, operand 1, single buffered']
    #allocation4 [shape = 's32[2]{0}', space=sflag, size = 0x8, scoped, tag = 'scoped memory for _lambda_.2']
    #allocation5 [shape = 'u8[16384]{0}', space=vmem, size = 0x4000, scoped, tag = 'input window, operand 4']
    #allocation6 [shape = 's32[2]{0}', space=sflag, size = 0x8, scoped, tag = 'scoped memory for _lambda_.2']
    #allocation7 [shape = 'u8[16384]{0}', space=vmem, size = 0x4000, scoped, tag = 'input window, operand 6']
    #allocation8 [shape = 'u8[32768]{0}', space=vmem, size = 0x8000, scoped, tag = 'input window, operand 8']
    #allocation9 [shape = 's32[2]{0}', space=sflag, size = 0x8, scoped, tag = 'scoped memory for _lambda_.2']
    %21 = vsyncpa [#allocation4], 0
    %22 = vsyncpa [#allocation6], 0
    %s23 = scalar_lea.sflag [#allocation6], 1
    %24 = vsyncpa %s23, 0
    %25 = vsyncpa [#allocation9], 0
    %s26 = scalar_lea.sflag [#allocation9], 1
    %27 = vsyncpa %s26, 0
    loop: start=0, step=1, limit=6
    $region2: #{_lambda_.2} parent=1 // loop_pre_header
      _
    $region3: #{_lambda_.2} parent=1 // loop_header
      %s29 = sphi 0, %s33
      %p30 = scmp.ge.s32.totalorder %s29, 6
      %s36 = sphi 0, %s48
      %s37 = sphi 0, %s44
      %s38 = sphi 0, %s36
      %s39 = sphi 0, %s37
      %s40 = sphi 0, %s38
      %s41 = sphi 0, %s39
      %s51 = sphi 0, %s53
      %s54 = sphi 0, %s51
      %s55 = sphi 0, %s54
      %s71 = sphi 0, %s55
      %s75 = sphi 0, %s75
      %s77 = sphi 0, %s75
      %s78 = sphi 0, %s77
      %s92 = sphi 0, %s78
      %s98 = sphi 0, %s100
      %s101 = sphi 0, %s98
      %s102 = sphi 0, %s101
      %s118 = sphi 0, %s102
      %s124 = sphi 0, %s126
      %s127 = sphi 0, %s124
      %s128 = sphi 0, %s127
      %s144 = sphi 0, %s128
      %s150 = sphi 0, %s152
      %s153 = sphi 0, %s150
      %s154 = sphi 0, %s153
      %s170 = sphi 0, %s154
      %s176 = sphi 0, %s178
      %s179 = sphi 0, %s176
      %s180 = sphi 0, %s179
      %s196 = sphi 0, %s180
      %s202 = sphi 0, %s204
      %s205 = sphi 0, %s202
      %s206 = sphi 0, %s205
      %s222 = sphi 0, %s206
      %s228 = sphi 0, %s230
      %s231 = sphi 0, %s228
      %s232 = sphi 0, %s231
      %s248 = sphi 0, %s232
      %s254 = sphi 0, %s256
      %s257 = sphi 0, %s254
      %s258 = sphi 0, %s257
      %s274 = sphi 0, %s258
      %s280 = sphi 0, %s282
      %s283 = sphi 0, %s280
      %s284 = sphi 0, %s283
      %s300 = sphi 0, %s284
      %s306 = sphi 0, %s308
      %s309 = sphi 0, %s306
      %s310 = sphi 0, %s309
      %s326 = sphi 0, %s310
      %s332 = sphi 0, %s334
      %s335 = sphi 0, %s332
      %s336 = sphi 0, %s335
      %s352 = sphi 0, %s336
      %s358 = sphi 0, %s360
      %s361 = sphi 0, %s358
      %s362 = sphi 0, %s361
      %s378 = sphi 0, %s362
      %s384 = sphi 0, %s386
      %s387 = sphi 0, %s384
      %s388 = sphi 0, %s387
      %s404 = sphi 0, %s388
      %s408 = sphi 0, %s408
      %s410 = sphi 0, %s408
      %s411 = sphi 0, %s410
      %s425 = sphi 0, %s411
      %s429 = sphi 0, %s429
      %s431 = sphi 0, %s429
      %s432 = sphi 0, %s431
      %s446 = sphi 0, %s432
      %s452 = sphi 0, %s454
      %s455 = sphi 0, %s452
      %s456 = sphi 0, %s455
      %s472 = sphi 0, %s456
    $region4: #{_lambda_.2} parent=1 // loop_header_branch
      %32 = sbr.rel (%p30) target = $region8
    $region5: #{_lambda_.2} parent=1 // loop_body
      %s34 = ssub.s32 %s29, 1
      %s35 = ssub.s32 %s29, 2
      %s42 = sadd.s32 1, %s37
      %p43 = scmp.ge.s32.totalorder %s42, 2
      %s44 = scalar_select %p43, 0, %s42
      %s45 = sadd.s32 1, %s36
      %s46 = scalar_select %p43, %s45, %s36
      %p47 = scmp.ge.s32.totalorder %s46, 2
      %s48 = scalar_select %p47, 0, %s46
      %s49 = ssub.s32 %s36, %s48
      %p50 = scmp.eq.s32.totalorder %s49, 0
      %s52 = sadd.s32 %s51, 1
      %s53 = scalar_select %p50, %s51, %s52
      %p56 = pneg %p50
      %p57 = scmp.eq.s32.totalorder %s29, 3
      %p58 = por %p56, %p57
      %p59 = scmp.ne.s32.totalorder %s51, %s54
      %p60 = scmp.eq.s32.totalorder %s29, 0
      %p61 = por %p59, %p60
      %p62 = scmp.ne.s32.totalorder %s51, %s54
      %p63 = scmp.eq.s32.totalorder %s34, 3
      %p64 = por %p62, %p63
      %p65 = scmp.ne.s32.totalorder %s54, %s55
      %p66 = scmp.eq.s32.totalorder %s34, 0
      %p67 = por %p65, %p66
      %p68 = scmp.ne.s32.totalorder %s54, %s55
      %p69 = scmp.eq.s32.totalorder %s35, 3
      %p70 = por %p68, %p69
      %p72 = scmp.ne.s32.totalorder %s55, %s71
      %p73 = scmp.eq.s32.totalorder %s35, 0
      %p74 = por %p72, %p73
      %s76 = sadd.s32 %s75, 1
      %p79 = scmp.eq.s32.totalorder %s29, 3
      %p80 = scmp.ne.s32.totalorder %s75, %s77
      %p81 = scmp.eq.s32.totalorder %s29, 0
      %p82 = por %p80, %p81
      %p83 = scmp.ne.s32.totalorder %s75, %s77
      %p84 = scmp.eq.s32.totalorder %s34, 3
      %p85 = por %p83, %p84
      %p86 = scmp.ne.s32.totalorder %s77, %s78
      %p87 = scmp.eq.s32.totalorder %s34, 0
      %p88 = por %p86, %p87
      %p89 = scmp.ne.s32.totalorder %s77, %s78
      %p90 = scmp.eq.s32.totalorder %s35, 3
      %p91 = por %p89, %p90
      %p93 = scmp.ne.s32.totalorder %s78, %s92
      %p94 = scmp.eq.s32.totalorder %s35, 0
      %p95 = por %p93, %p94
      %s96 = ssub.s32 %s37, %s44
      %p97 = scmp.eq.s32.totalorder %s96, 0
      %s99 = sadd.s32 %s98, 1
      %s100 = scalar_select %p97, %s98, %s99
      %p103 = pneg %p97
      %p104 = scmp.eq.s32.totalorder %s29, 3
      %p105 = por %p103, %p104
      %p106 = scmp.ne.s32.totalorder %s98, %s101
      %p107 = scmp.eq.s32.totalorder %s29, 0
      %p108 = por %p106, %p107
      %p109 = scmp.ne.s32.totalorder %s98, %s101
      %p110 = scmp.eq.s32.totalorder %s34, 3
      %p111 = por %p109, %p110
      %p112 = scmp.ne.s32.totalorder %s101, %s102
      %p113 = scmp.eq.s32.totalorder %s34, 0
      %p114 = por %p112, %p113
      %p115 = scmp.ne.s32.totalorder %s101, %s102
      %p116 = scmp.eq.s32.totalorder %s35, 3
      %p117 = por %p115, %p116
      %p119 = scmp.ne.s32.totalorder %s102, %s118
      %p120 = scmp.eq.s32.totalorder %s35, 0
      %p121 = por %p119, %p120
      %s122 = ssub.s32 %s37, %s44
      %p123 = scmp.eq.s32.totalorder %s122, 0
      %s125 = sadd.s32 %s124, 1
      %s126 = scalar_select %p123, %s124, %s125
      %p129 = pneg %p123
      %p130 = scmp.eq.s32.totalorder %s29, 3
      %p131 = por %p129, %p130
      %p132 = scmp.ne.s32.totalorder %s124, %s127
      %p133 = scmp.eq.s32.totalorder %s29, 0
      %p134 = por %p132, %p133
      %p135 = scmp.ne.s32.totalorder %s124, %s127
      %p136 = scmp.eq.s32.totalorder %s34, 3
      %p137 = por %p135, %p136
      %p138 = scmp.ne.s32.totalorder %s127, %s128
      %p139 = scmp.eq.s32.totalorder %s34, 0
      %p140 = por %p138, %p139
      %p141 = scmp.ne.s32.totalorder %s127, %s128
      %p142 = scmp.eq.s32.totalorder %s35, 3
      %p143 = por %p141, %p142
      %p145 = scmp.ne.s32.totalorder %s128, %s144
      %p146 = scmp.eq.s32.totalorder %s35, 0
      %p147 = por %p145, %p146
      %s148 = ssub.s32 %s37, %s44
      %p149 = scmp.eq.s32.totalorder %s148, 0
      %s151 = sadd.s32 %s150, 1
      %s152 = scalar_select %p149, %s150, %s151
      %p155 = pneg %p149
      %p156 = scmp.eq.s32.totalorder %s29, 3
      %p157 = por %p155, %p156
      %p158 = scmp.ne.s32.totalorder %s150, %s153
      %p159 = scmp.eq.s32.totalorder %s29, 0
      %p160 = por %p158, %p159
      %p161 = scmp.ne.s32.totalorder %s150, %s153
      %p162 = scmp.eq.s32.totalorder %s34, 3
      %p163 = por %p161, %p162
      %p164 = scmp.ne.s32.totalorder %s153, %s154
      %p165 = scmp.eq.s32.totalorder %s34, 0
      %p166 = por %p164, %p165
      %p167 = scmp.ne.s32.totalorder %s153, %s154
      %p168 = scmp.eq.s32.totalorder %s35, 3
      %p169 = por %p167, %p168
      %p171 = scmp.ne.s32.totalorder %s154, %s170
      %p172 = scmp.eq.s32.totalorder %s35, 0
      %p173 = por %p171, %p172
      %s174 = ssub.s32 %s37, %s44
      %p175 = scmp.eq.s32.totalorder %s174, 0
      %s177 = sadd.s32 %s176, 1
      %s178 = scalar_select %p175, %s176, %s177
      %p181 = pneg %p175
      %p182 = scmp.eq.s32.totalorder %s29, 3
      %p183 = por %p181, %p182
      %p184 = scmp.ne.s32.totalorder %s176, %s179
      %p185 = scmp.eq.s32.totalorder %s29, 0
      %p186 = por %p184, %p185
      %p187 = scmp.ne.s32.totalorder %s176, %s179
      %p188 = scmp.eq.s32.totalorder %s34, 3
      %p189 = por %p187, %p188
      %p190 = scmp.ne.s32.totalorder %s179, %s180
      %p191 = scmp.eq.s32.totalorder %s34, 0
      %p192 = por %p190, %p191
      %p193 = scmp.ne.s32.totalorder %s179, %s180
      %p194 = scmp.eq.s32.totalorder %s35, 3
      %p195 = por %p193, %p194
      %p197 = scmp.ne.s32.totalorder %s180, %s196
      %p198 = scmp.eq.s32.totalorder %s35, 0
      %p199 = por %p197, %p198
      %s200 = ssub.s32 %s37, %s44
      %p201 = scmp.eq.s32.totalorder %s200, 0
      %s203 = sadd.s32 %s202, 1
      %s204 = scalar_select %p201, %s202, %s203
      %p207 = pneg %p201
      %p208 = scmp.eq.s32.totalorder %s29, 3
      %p209 = por %p207, %p208
      %p210 = scmp.ne.s32.totalorder %s202, %s205
      %p211 = scmp.eq.s32.totalorder %s29, 0
      %p212 = por %p210, %p211
      %p213 = scmp.ne.s32.totalorder %s202, %s205
      %p214 = scmp.eq.s32.totalorder %s34, 3
      %p215 = por %p213, %p214
      %p216 = scmp.ne.s32.totalorder %s205, %s206
      %p217 = scmp.eq.s32.totalorder %s34, 0
      %p218 = por %p216, %p217
      %p219 = scmp.ne.s32.totalorder %s205, %s206
      %p220 = scmp.eq.s32.totalorder %s35, 3
      %p221 = por %p219, %p220
      %p223 = scmp.ne.s32.totalorder %s206, %s222
      %p224 = scmp.eq.s32.totalorder %s35, 0
      %p225 = por %p223, %p224
      %s226 = ssub.s32 %s37, %s44
      %p227 = scmp.eq.s32.totalorder %s226, 0
      %s229 = sadd.s32 %s228, 1
      %s230 = scalar_select %p227, %s228, %s229
      %p233 = pneg %p227
      %p234 = scmp.eq.s32.totalorder %s29, 3
      %p235 = por %p233, %p234
      %p236 = scmp.ne.s32.totalorder %s228, %s231
      %p237 = scmp.eq.s32.totalorder %s29, 0
      %p238 = por %p236, %p237
      %p239 = scmp.ne.s32.totalorder %s228, %s231
      %p240 = scmp.eq.s32.totalorder %s34, 3
      %p241 = por %p239, %p240
      %p242 = scmp.ne.s32.totalorder %s231, %s232
      %p243 = scmp.eq.s32.totalorder %s34, 0
      %p244 = por %p242, %p243
      %p245 = scmp.ne.s32.totalorder %s231, %s232
      %p246 = scmp.eq.s32.totalorder %s35, 3
      %p247 = por %p245, %p246
      %p249 = scmp.ne.s32.totalorder %s232, %s248
      %p250 = scmp.eq.s32.totalorder %s35, 0
      %p251 = por %p249, %p250
      %s252 = ssub.s32 %s37, %s44
      %p253 = scmp.eq.s32.totalorder %s252, 0
      %s255 = sadd.s32 %s254, 1
      %s256 = scalar_select %p253, %s254, %s255
      %p259 = pneg %p253
      %p260 = scmp.eq.s32.totalorder %s29, 3
      %p261 = por %p259, %p260
      %p262 = scmp.ne.s32.totalorder %s254, %s257
      %p263 = scmp.eq.s32.totalorder %s29, 0
      %p264 = por %p262, %p263
      %p265 = scmp.ne.s32.totalorder %s254, %s257
      %p266 = scmp.eq.s32.totalorder %s34, 3
      %p267 = por %p265, %p266
      %p268 = scmp.ne.s32.totalorder %s257, %s258
      %p269 = scmp.eq.s32.totalorder %s34, 0
      %p270 = por %p268, %p269
      %p271 = scmp.ne.s32.totalorder %s257, %s258
      %p272 = scmp.eq.s32.totalorder %s35, 3
      %p273 = por %p271, %p272
      %p275 = scmp.ne.s32.totalorder %s258, %s274
      %p276 = scmp.eq.s32.totalorder %s35, 0
      %p277 = por %p275, %p276
      %s278 = ssub.s32 %s37, %s44
      %p279 = scmp.eq.s32.totalorder %s278, 0
      %s281 = sadd.s32 %s280, 1
      %s282 = scalar_select %p279, %s280, %s281
      %p285 = pneg %p279
      %p286 = scmp.eq.s32.totalorder %s29, 3
      %p287 = por %p285, %p286
      %p288 = scmp.ne.s32.totalorder %s280, %s283
      %p289 = scmp.eq.s32.totalorder %s29, 0
      %p290 = por %p288, %p289
      %p291 = scmp.ne.s32.totalorder %s280, %s283
      %p292 = scmp.eq.s32.totalorder %s34, 3
      %p293 = por %p291, %p292
      %p294 = scmp.ne.s32.totalorder %s283, %s284
      %p295 = scmp.eq.s32.totalorder %s34, 0
      %p296 = por %p294, %p295
      %p297 = scmp.ne.s32.totalorder %s283, %s284
      %p298 = scmp.eq.s32.totalorder %s35, 3
      %p299 = por %p297, %p298
      %p301 = scmp.ne.s32.totalorder %s284, %s300
      %p302 = scmp.eq.s32.totalorder %s35, 0
      %p303 = por %p301, %p302
      %s304 = ssub.s32 %s37, %s44
      %p305 = scmp.eq.s32.totalorder %s304, 0
      %s307 = sadd.s32 %s306, 1
      %s308 = scalar_select %p305, %s306, %s307
      %p311 = pneg %p305
      %p312 = scmp.eq.s32.totalorder %s29, 3
      %p313 = por %p311, %p312
      %p314 = scmp.ne.s32.totalorder %s306, %s309
      %p315 = scmp.eq.s32.totalorder %s29, 0
      %p316 = por %p314, %p315
      %p317 = scmp.ne.s32.totalorder %s306, %s309
      %p318 = scmp.eq.s32.totalorder %s34, 3
      %p319 = por %p317, %p318
      %p320 = scmp.ne.s32.totalorder %s309, %s310
      %p321 = scmp.eq.s32.totalorder %s34, 0
      %p322 = por %p320, %p321
      %p323 = scmp.ne.s32.totalorder %s309, %s310
      %p324 = scmp.eq.s32.totalorder %s35, 3
      %p325 = por %p323, %p324
      %p327 = scmp.ne.s32.totalorder %s310, %s326
      %p328 = scmp.eq.s32.totalorder %s35, 0
      %p329 = por %p327, %p328
      %s330 = ssub.s32 %s37, %s44
      %p331 = scmp.eq.s32.totalorder %s330, 0
      %s333 = sadd.s32 %s332, 1
      %s334 = scalar_select %p331, %s332, %s333
      %p337 = pneg %p331
      %p338 = scmp.eq.s32.totalorder %s29, 3
      %p339 = por %p337, %p338
      %p340 = scmp.ne.s32.totalorder %s332, %s335
      %p341 = scmp.eq.s32.totalorder %s29, 0
      %p342 = por %p340, %p341
      %p343 = scmp.ne.s32.totalorder %s332, %s335
      %p344 = scmp.eq.s32.totalorder %s34, 3
      %p345 = por %p343, %p344
      %p346 = scmp.ne.s32.totalorder %s335, %s336
      %p347 = scmp.eq.s32.totalorder %s34, 0
      %p348 = por %p346, %p347
      %p349 = scmp.ne.s32.totalorder %s335, %s336
      %p350 = scmp.eq.s32.totalorder %s35, 3
      %p351 = por %p349, %p350
      %p353 = scmp.ne.s32.totalorder %s336, %s352
      %p354 = scmp.eq.s32.totalorder %s35, 0
      %p355 = por %p353, %p354
      %s356 = ssub.s32 %s37, %s44
      %p357 = scmp.eq.s32.totalorder %s356, 0
      %s359 = sadd.s32 %s358, 1
      %s360 = scalar_select %p357, %s358, %s359
      %p363 = pneg %p357
      %p364 = scmp.eq.s32.totalorder %s29, 3
      %p365 = por %p363, %p364
      %p366 = scmp.ne.s32.totalorder %s358, %s361
      %p367 = scmp.eq.s32.totalorder %s29, 0
      %p368 = por %p366, %p367
      %p369 = scmp.ne.s32.totalorder %s358, %s361
      %p370 = scmp.eq.s32.totalorder %s34, 3
      %p371 = por %p369, %p370
      %p372 = scmp.ne.s32.totalorder %s361, %s362
      %p373 = scmp.eq.s32.totalorder %s34, 0
      %p374 = por %p372, %p373
      %p375 = scmp.ne.s32.totalorder %s361, %s362
      %p376 = scmp.eq.s32.totalorder %s35, 3
      %p377 = por %p375, %p376
      %p379 = scmp.ne.s32.totalorder %s362, %s378
      %p380 = scmp.eq.s32.totalorder %s35, 0
      %p381 = por %p379, %p380
      %s382 = ssub.s32 %s37, %s44
      %p383 = scmp.eq.s32.totalorder %s382, 0
      %s385 = sadd.s32 %s384, 1
      %s386 = scalar_select %p383, %s384, %s385
      %p389 = pneg %p383
      %p390 = scmp.eq.s32.totalorder %s29, 3
      %p391 = por %p389, %p390
      %p392 = scmp.ne.s32.totalorder %s384, %s387
      %p393 = scmp.eq.s32.totalorder %s29, 0
      %p394 = por %p392, %p393
      %p395 = scmp.ne.s32.totalorder %s384, %s387
      %p396 = scmp.eq.s32.totalorder %s34, 3
      %p397 = por %p395, %p396
      %p398 = scmp.ne.s32.totalorder %s387, %s388
      %p399 = scmp.eq.s32.totalorder %s34, 0
      %p400 = por %p398, %p399
      %p401 = scmp.ne.s32.totalorder %s387, %s388
      %p402 = scmp.eq.s32.totalorder %s35, 3
      %p403 = por %p401, %p402
      %p405 = scmp.ne.s32.totalorder %s388, %s404
      %p406 = scmp.eq.s32.totalorder %s35, 0
      %p407 = por %p405, %p406
      %s409 = sadd.s32 %s408, 1
      %p412 = scmp.eq.s32.totalorder %s29, 3
      %p413 = scmp.ne.s32.totalorder %s408, %s410
      %p414 = scmp.eq.s32.totalorder %s29, 0
      %p415 = por %p413, %p414
      %p416 = scmp.ne.s32.totalorder %s408, %s410
      %p417 = scmp.eq.s32.totalorder %s34, 3
      %p418 = por %p416, %p417
      %p419 = scmp.ne.s32.totalorder %s410, %s411
      %p420 = scmp.eq.s32.totalorder %s34, 0
      %p421 = por %p419, %p420
      %p422 = scmp.ne.s32.totalorder %s410, %s411
      %p423 = scmp.eq.s32.totalorder %s35, 3
      %p424 = por %p422, %p423
      %p426 = scmp.ne.s32.totalorder %s411, %s425
      %p427 = scmp.eq.s32.totalorder %s35, 0
      %p428 = por %p426, %p427
      %s430 = sadd.s32 %s429, 1
      %p433 = scmp.eq.s32.totalorder %s29, 3
      %p434 = scmp.ne.s32.totalorder %s429, %s431
      %p435 = scmp.eq.s32.totalorder %s29, 0
      %p436 = por %p434, %p435
      %p437 = scmp.ne.s32.totalorder %s429, %s431
      %p438 = scmp.eq.s32.totalorder %s34, 3
      %p439 = por %p437, %p438
      %p440 = scmp.ne.s32.totalorder %s431, %s432
      %p441 = scmp.eq.s32.totalorder %s34, 0
      %p442 = por %p440, %p441
      %p443 = scmp.ne.s32.totalorder %s431, %s432
      %p444 = scmp.eq.s32.totalorder %s35, 3
      %p445 = por %p443, %p444
      %p447 = scmp.ne.s32.totalorder %s432, %s446
      %p448 = scmp.eq.s32.totalorder %s35, 0
      %p449 = por %p447, %p448
      %s450 = ssub.s32 %s36, %s48
      %p451 = scmp.eq.s32.totalorder %s450, 0
      %s453 = sadd.s32 %s452, 1
      %s454 = scalar_select %p451, %s452, %s453
      %p457 = pneg %p451
      %p458 = scmp.eq.s32.totalorder %s29, 3
      %p459 = por %p457, %p458
      %p460 = scmp.ne.s32.totalorder %s452, %s455
      %p461 = scmp.eq.s32.totalorder %s29, 0
      %p462 = por %p460, %p461
      %p463 = scmp.ne.s32.totalorder %s452, %s455
      %p464 = scmp.eq.s32.totalorder %s34, 3
      %p465 = por %p463, %p464
      %p466 = scmp.ne.s32.totalorder %s455, %s456
      %p467 = scmp.eq.s32.totalorder %s34, 0
      %p468 = por %p466, %p467
      %p469 = scmp.ne.s32.totalorder %s455, %s456
      %p470 = scmp.eq.s32.totalorder %s35, 3
      %p471 = por %p469, %p470
      %p473 = scmp.ne.s32.totalorder %s456, %s472
      %p474 = scmp.eq.s32.totalorder %s35, 0
      %p475 = por %p473, %p474
      %p476 = scmp.le.s32.totalorder 1, %s29
      %p477 = scmp.lt.s32.totalorder %s29, 5
      %p478 = pnand %p476, %p477
      %p479 = pneg %p478
      // Predicated region
      $region9: #{_lambda_.2} parent=5 // pred_check
        _
      $region10: #{_lambda_.2} parent=5 // pred_check_branch
        %481 = sbr.rel (%p478) target = $region12
      $region11: #{_lambda_.2} parent=5 // pred_region
        %s482 = ssub.s32 %s29, 1
        // Predicated region
        $region13: #{_lambda_.2} parent=11 // pred_check
          %p483 = pneg %p88
        $region14: #{_lambda_.2} parent=11 // pred_check_branch
          %485 = sbr.rel (%p483) target = $region16
        $region15: #{_lambda_.2} parent=11 // pred_region
          %s487 = ssub.s32 128, 128
          %488 = vsyncadd [#allocation4], %s487
          %s490 = sshll.u32 [#allocation3], 4
          %s491 = int_to_ptr.vmem [resolvable:$true] %s490
          %493 = dma.hbm_to_vmem [thread:$0]  %s1, 128, %s491, [#allocation4]
        $region16: #{_lambda_.2} parent=11 // pred_fallthru
          _
        // Predicated region
        $region17: #{_lambda_.2} parent=11 // pred_check
          %p494 = pneg %p421
        $region18: #{_lambda_.2} parent=11 // pred_check_branch
          %496 = sbr.rel (%p494) target = $region20
        $region19: #{_lambda_.2} parent=11 // pred_region
          _
        $region20: #{_lambda_.2} parent=11 // pred_fallthru
          _
        // Predicated region
        $region21: #{_lambda_.2} parent=11 // pred_check
          %p497 = pneg %p442
        $region22: #{_lambda_.2} parent=11 // pred_check_branch
          %499 = sbr.rel (%p497) target = $region24
        $region23: #{_lambda_.2} parent=11 // pred_region
          _
        $region24: #{_lambda_.2} parent=11 // pred_fallthru
          _
      $region12: #{_lambda_.2} parent=5 // pred_fallthru
        _
      %p500 = scmp.lt.s32.totalorder %s29, 4
      // Predicated region
      $region25: #{_lambda_.2} parent=5 // pred_check
        %p501 = pneg %p500
      $region26: #{_lambda_.2} parent=5 // pred_check_branch
        %503 = sbr.rel (%p501) target = $region28
      $region27: #{_lambda_.2} parent=5 // pred_region
        // Predicated region
        $region29: #{_lambda_.2} parent=27 // pred_check
          %p504 = pneg %p61
        $region30: #{_lambda_.2} parent=27 // pred_check_branch
          %506 = sbr.rel (%p504) target = $region32
        $region31: #{_lambda_.2} parent=27 // pred_region
          %p507 = scmp.lt.s32.totalorder %s36, 1
          %s508 = scalar_select %p507, %s36, 1
          %s509 = smul.addr %s508, 8
          %s510 = scalar_lea.vmem %s0, %s509
        $region32: #{_lambda_.2} parent=27 // pred_fallthru
          _
        // Predicated region
        $region33: #{_lambda_.2} parent=27 // pred_check
          %p511 = pneg %p108
        $region34: #{_lambda_.2} parent=27 // pred_check_branch
          %513 = sbr.rel (%p511) target = $region36
        $region35: #{_lambda_.2} parent=27 // pred_region
          %p514 = scmp.lt.s32.totalorder %s37, 1
          %s515 = scalar_select %p514, %s37, 1
          %s516 = smul.addr %s515, 48
          %s517 = smul.addr %s516, 4
          %s518 = scalar_lea.vmem %s2, %s517
        $region36: #{_lambda_.2} parent=27 // pred_fallthru
          _
        // Predicated region
        $region37: #{_lambda_.2} parent=27 // pred_check
          %p519 = pneg %p134
        $region38: #{_lambda_.2} parent=27 // pred_check_branch
          %521 = sbr.rel (%p519) target = $region40
        $region39: #{_lambda_.2} parent=27 // pred_region
          %p522 = scmp.lt.s32.totalorder %s37, 1
          %s523 = scalar_select %p522, %s37, 1
          %s524 = smul.addr %s523, 12
          %s525 = scalar_lea.vmem %s3, %s524
        $region40: #{_lambda_.2} parent=27 // pred_fallthru
          _
        // Predicated region
        $region41: #{_lambda_.2} parent=27 // pred_check
          %p526 = pneg %p160
        $region42: #{_lambda_.2} parent=27 // pred_check_branch
          %528 = sbr.rel (%p526) target = $region44
        $region43: #{_lambda_.2} parent=27 // pred_region
          %s529 = sand.u32 %s29, 1
          %s530 = scalar_lea.sflag [#allocation6], %s529
          %s531 = sand.u32 %s150, 1
          %s532 = smul.addr %s531, 16
          %s533 = scalar_lea.vmem [#allocation5], %s532
          %s535 = ssub.s32 256, 256
          %536 = vsyncadd %s530, %s535
          %s537 = smul.addr %s37, 4
          %s538 = smul.addr %s537, 64
          %s539 = scalar_lea.hbm %s4, %s538
          %s540 = sshll.u32 %s533, 4
          %s541 = int_to_ptr.vmem [resolvable:$true] %s540
          %546 = dma.hbm_to_vmem [thread:$0]  %s539, 256, %s541, %s530, 64, 64, 4
        $region44: #{_lambda_.2} parent=27 // pred_fallthru
          _
        // Predicated region
        $region45: #{_lambda_.2} parent=27 // pred_check
          %p547 = pneg %p186
        $region46: #{_lambda_.2} parent=27 // pred_check_branch
          %549 = sbr.rel (%p547) target = $region48
        $region47: #{_lambda_.2} parent=27 // pred_region
          %p550 = scmp.lt.s32.totalorder %s37, 1
          %s551 = scalar_select %p550, %s37, 1
          %s552 = scalar_lea.vmem %s5, %s551
        $region48: #{_lambda_.2} parent=27 // pred_fallthru
          _
        // Predicated region
        $region49: #{_lambda_.2} parent=27 // pred_check
          %p553 = pneg %p212
        $region50: #{_lambda_.2} parent=27 // pred_check_branch
          %555 = sbr.rel (%p553) target = $region52
        $region51: #{_lambda_.2} parent=27 // pred_region
          %s556 = sand.u32 %s29, 1
          %s557 = scalar_lea.sflag [#allocation6], %s556
          %s558 = sand.u32 %s202, 1
          %s559 = smul.addr %s558, 16
          %s560 = scalar_lea.vmem [#allocation7], %s559
          %s562 = ssub.s32 256, 256
          %563 = vsyncadd %s557, %s562
          %s564 = smul.addr %s37, 4
          %s565 = smul.addr %s564, 64
          %s566 = scalar_lea.hbm %s6, %s565
          %s567 = sshll.u32 %s560, 4
          %s568 = int_to_ptr.vmem [resolvable:$true] %s567
          %573 = dma.hbm_to_vmem [thread:$0]  %s566, 256, %s568, %s557, 64, 64, 4
        $region52: #{_lambda_.2} parent=27 // pred_fallthru
          _
        // Predicated region
        $region53: #{_lambda_.2} parent=27 // pred_check
          %p574 = pneg %p238
        $region54: #{_lambda_.2} parent=27 // pred_check_branch
          %576 = sbr.rel (%p574) target = $region56
        $region55: #{_lambda_.2} parent=27 // pred_region
          %p577 = scmp.lt.s32.totalorder %s37, 1
          %s578 = scalar_select %p577, %s37, 1
          %s579 = scalar_lea.vmem %s7, %s578
        $region56: #{_lambda_.2} parent=27 // pred_fallthru
          _
        // Predicated region
        $region57: #{_lambda_.2} parent=27 // pred_check
          %p580 = pneg %p264
        $region58: #{_lambda_.2} parent=27 // pred_check_branch
          %582 = sbr.rel (%p580) target = $region60
        $region59: #{_lambda_.2} parent=27 // pred_region
          %s583 = sand.u32 %s254, 1
          %s584 = scalar_lea.sflag [#allocation9], %s583
          %s585 = sand.u32 %s254, 1
          %s586 = smul.addr %s585, 32
          %s587 = scalar_lea.vmem [#allocation8], %s586
          %s589 = ssub.s32 512, 512
          %590 = vsyncadd %s584, %s589
          %s591 = smul.addr %s37, 8
          %s592 = smul.addr %s591, 64
          %s593 = scalar_lea.hbm %s8, %s592
          %s594 = sshll.u32 %s587, 4
          %s595 = int_to_ptr.vmem [resolvable:$true] %s594
          %600 = dma.hbm_to_vmem [thread:$0]  %s593, 512, %s595, %s584, 64, 64, 4
        $region60: #{_lambda_.2} parent=27 // pred_fallthru
          _
        // Predicated region
        $region61: #{_lambda_.2} parent=27 // pred_check
          %p601 = pneg %p290
        $region62: #{_lambda_.2} parent=27 // pred_check_branch
          %603 = sbr.rel (%p601) target = $region64
        $region63: #{_lambda_.2} parent=27 // pred_region
          %p604 = scmp.lt.s32.totalorder %s37, 1
          %s605 = scalar_select %p604, %s37, 1
          %s606 = scalar_lea.vmem %s9, %s605
        $region64: #{_lambda_.2} parent=27 // pred_fallthru
          _
        // Predicated region
        $region65: #{_lambda_.2} parent=27 // pred_check
          %p607 = pneg %p316
        $region66: #{_lambda_.2} parent=27 // pred_check_branch
          %609 = sbr.rel (%p607) target = $region68
        $region67: #{_lambda_.2} parent=27 // pred_region
          %p610 = scmp.lt.s32.totalorder %s37, 1
          %s611 = scalar_select %p610, %s37, 1
          %s612 = scalar_lea.vmem %s10, %s611
        $region68: #{_lambda_.2} parent=27 // pred_fallthru
          _
        // Predicated region
        $region69: #{_lambda_.2} parent=27 // pred_check
          %p613 = pneg %p342
        $region70: #{_lambda_.2} parent=27 // pred_check_branch
          %615 = sbr.rel (%p613) target = $region72
        $region71: #{_lambda_.2} parent=27 // pred_region
          %p616 = scmp.lt.s32.totalorder %s37, 1
          %s617 = scalar_select %p616, %s37, 1
          %s618 = scalar_lea.vmem %s11, %s617
        $region72: #{_lambda_.2} parent=27 // pred_fallthru
          _
        // Predicated region
        $region73: #{_lambda_.2} parent=27 // pred_check
          %p619 = pneg %p368
        $region74: #{_lambda_.2} parent=27 // pred_check_branch
          %621 = sbr.rel (%p619) target = $region76
        $region75: #{_lambda_.2} parent=27 // pred_region
          %p622 = scmp.lt.s32.totalorder %s37, 1
          %s623 = scalar_select %p622, %s37, 1
          %s624 = scalar_lea.vmem %s12, %s623
        $region76: #{_lambda_.2} parent=27 // pred_fallthru
          _
        // Predicated region
        $region77: #{_lambda_.2} parent=27 // pred_check
          %p625 = pneg %p394
        $region78: #{_lambda_.2} parent=27 // pred_check_branch
          %627 = sbr.rel (%p625) target = $region80
        $region79: #{_lambda_.2} parent=27 // pred_region
          %p628 = scmp.lt.s32.totalorder %s37, 1
          %s629 = scalar_select %p628, %s37, 1
          %s630 = scalar_lea.vmem %s13, %s629
        $region80: #{_lambda_.2} parent=27 // pred_fallthru
          _
      $region28: #{_lambda_.2} parent=5 // pred_fallthru
        _
      %p631 = scmp.le.s32.totalorder 1, %s29
      %p632 = scmp.lt.s32.totalorder %s29, 5
      %p633 = pnand %p631, %p632
      %p634 = pneg %p633
      // Predicated region
      $region81: #{_lambda_.2} parent=5 // pred_check
        _
      $region82: #{_lambda_.2} parent=5 // pred_check_branch
        %636 = sbr.rel (%p633) target = $region84
      $region83: #{_lambda_.2} parent=5 // pred_region
        %s637 = ssub.s32 %s29, 1
        // Predicated region
        $region85: #{_lambda_.2} parent=83 // pred_check
          %p638 = pneg %p88
        $region86: #{_lambda_.2} parent=83 // pred_check_branch
          %640 = sbr.rel (%p638) target = $region88
        $region87: #{_lambda_.2} parent=83 // pred_region
          %641 = dma.done [#allocation4], 128
        $region88: #{_lambda_.2} parent=83 // pred_fallthru
          _
        %s642 = sand.u32 %s34, 1
        %s643 = scalar_lea.sflag [#allocation6], %s642
        %s644 = sand.u32 %s153, 1
        %s645 = smul.addr %s644, 16
        %s646 = scalar_lea.vmem [#allocation5], %s645
        // Predicated region
        $region89: #{_lambda_.2} parent=83 // pred_check
          %p647 = pneg %p166
        $region90: #{_lambda_.2} parent=83 // pred_check_branch
          %649 = sbr.rel (%p647) target = $region92
        $region91: #{_lambda_.2} parent=83 // pred_region
          %650 = dma.done %s643, 256
        $region92: #{_lambda_.2} parent=83 // pred_fallthru
          _
        %s651 = sand.u32 %s34, 1
        %s652 = scalar_lea.sflag [#allocation6], %s651
        %s653 = sand.u32 %s205, 1
        %s654 = smul.addr %s653, 16
        %s655 = scalar_lea.vmem [#allocation7], %s654
        // Predicated region
        $region93: #{_lambda_.2} parent=83 // pred_check
          %p656 = pneg %p218
        $region94: #{_lambda_.2} parent=83 // pred_check_branch
          %658 = sbr.rel (%p656) target = $region96
        $region95: #{_lambda_.2} parent=83 // pred_region
          %659 = dma.done %s652, 256
        $region96: #{_lambda_.2} parent=83 // pred_fallthru
          _
        %s660 = sand.u32 %s257, 1
        %s661 = scalar_lea.sflag [#allocation9], %s660
        %s662 = sand.u32 %s257, 1
        %s663 = smul.addr %s662, 32
        %s664 = scalar_lea.vmem [#allocation8], %s663
        // Predicated region
        $region97: #{_lambda_.2} parent=83 // pred_check
          %p665 = pneg %p270
        $region98: #{_lambda_.2} parent=83 // pred_check_branch
          %667 = sbr.rel (%p665) target = $region100
        $region99: #{_lambda_.2} parent=83 // pred_region
          %668 = dma.done %s661, 512
        $region100: #{_lambda_.2} parent=83 // pred_fallthru
          _
        %p669 = scmp.lt.s32.totalorder %s38, 1
        %s670 = scalar_select %p669, %s38, 1
        %s671 = smul.addr %s670, 8
        %s672 = scalar_lea.vmem %s0, %s671
        %p673 = pneg %p67
        %p674 = pneg %p64
        %p675 = pneg %p88
        %p676 = pneg %p85
        %p677 = scmp.lt.s32.totalorder %s39, 1
        %s678 = scalar_select %p677, %s39, 1
        %s679 = smul.addr %s678, 48
        %s680 = smul.addr %s679, 4
        %s681 = scalar_lea.vmem %s2, %s680
        %p682 = pneg %p114
        %p683 = pneg %p111
        %p684 = scmp.lt.s32.totalorder %s39, 1
        %s685 = scalar_select %p684, %s39, 1
        %s686 = smul.addr %s685, 12
        %s687 = scalar_lea.vmem %s3, %s686
        %p688 = pneg %p140
        %p689 = pneg %p137
        %s690 = sand.u32 %s34, 1
        %s691 = scalar_lea.sflag [#allocation6], %s690
        %s692 = sand.u32 %s153, 1
        %s693 = smul.addr %s692, 16
        %s694 = scalar_lea.vmem [#allocation5], %s693
        %p695 = pneg %p166
        %p696 = pneg %p163
        %p697 = scmp.lt.s32.totalorder %s39, 1
        %s698 = scalar_select %p697, %s39, 1
        %s699 = scalar_lea.vmem %s5, %s698
        %p700 = pneg %p192
        %p701 = pneg %p189
        %s702 = sand.u32 %s34, 1
        %s703 = scalar_lea.sflag [#allocation6], %s702
        %s704 = sand.u32 %s205, 1
        %s705 = smul.addr %s704, 16
        %s706 = scalar_lea.vmem [#allocation7], %s705
        %p707 = pneg %p218
        %p708 = pneg %p215
        %p709 = scmp.lt.s32.totalorder %s39, 1
        %s710 = scalar_select %p709, %s39, 1
        %s711 = scalar_lea.vmem %s7, %s710
        %p712 = pneg %p244
        %p713 = pneg %p241
        %s714 = sand.u32 %s257, 1
        %s715 = scalar_lea.sflag [#allocation9], %s714
        %s716 = sand.u32 %s257, 1
        %s717 = smul.addr %s716, 32
        %s718 = scalar_lea.vmem [#allocation8], %s717
        %p719 = pneg %p270
        %p720 = pneg %p267
        %p721 = scmp.lt.s32.totalorder %s39, 1
        %s722 = scalar_select %p721, %s39, 1
        %s723 = scalar_lea.vmem %s9, %s722
        %p724 = pneg %p296
        %p725 = pneg %p293
        %p726 = scmp.lt.s32.totalorder %s39, 1
        %s727 = scalar_select %p726, %s39, 1
        %s728 = scalar_lea.vmem %s10, %s727
        %p729 = pneg %p322
        %p730 = pneg %p319
        %p731 = scmp.lt.s32.totalorder %s39, 1
        %s732 = scalar_select %p731, %s39, 1
        %s733 = scalar_lea.vmem %s11, %s732
        %p734 = pneg %p348
        %p735 = pneg %p345
        %p736 = scmp.lt.s32.totalorder %s39, 1
        %s737 = scalar_select %p736, %s39, 1
        %s738 = scalar_lea.vmem %s12, %s737
        %p739 = pneg %p374
        %p740 = pneg %p371
        %p741 = scmp.lt.s32.totalorder %s39, 1
        %s742 = scalar_select %p741, %s39, 1
        %s743 = scalar_lea.vmem %s13, %s742
        %p744 = pneg %p400
        %p745 = pneg %p397
        %p746 = pneg %p421
        %p747 = pneg %p418
        %p748 = pneg %p442
        %p749 = pneg %p439
        %p750 = pneg %p468
        %p751 = pneg %p465
        %p752 = scmp.lt.s32.totalorder %s38, 1
        %s753 = scalar_select %p752, %s38, 1
        %s754 = smul.addr %s753, 8
        %s755 = scalar_lea.vmem %s16, %s754
        %p756 = scmp.lt.s32.totalorder %s38, 1
        %s757 = scalar_select %p756, %s38, 1
        %s758 = smul.addr %s757, 8
        %s759 = scalar_lea.vmem %s0, %s758
        %p760 = scmp.lt.s32.totalorder %s39, 1
        %s761 = scalar_select %p760, %s39, 1
        %s762 = smul.addr %s761, 48
        %s763 = smul.addr %s762, 4
        %s764 = scalar_lea.vmem %s2, %s763
        %p765 = scmp.lt.s32.totalorder %s39, 1
        %s766 = scalar_select %p765, %s39, 1
        %s767 = smul.addr %s766, 12
        %s768 = scalar_lea.vmem %s3, %s767
        %p769 = scmp.lt.s32.totalorder %s39, 1
        %s770 = scalar_select %p769, %s39, 1
        %s771 = scalar_lea.vmem %s5, %s770
        %p772 = scmp.lt.s32.totalorder %s39, 1
        %s773 = scalar_select %p772, %s39, 1
        %s774 = scalar_lea.vmem %s7, %s773
        %p775 = scmp.lt.s32.totalorder %s39, 1
        %s776 = scalar_select %p775, %s39, 1
        %s777 = scalar_lea.vmem %s9, %s776
        %p778 = scmp.lt.s32.totalorder %s39, 1
        %s779 = scalar_select %p778, %s39, 1
        %s780 = scalar_lea.vmem %s10, %s779
        %p781 = scmp.lt.s32.totalorder %s39, 1
        %s782 = scalar_select %p781, %s39, 1
        %s783 = scalar_lea.vmem %s11, %s782
        %p784 = scmp.lt.s32.totalorder %s39, 1
        %s785 = scalar_select %p784, %s39, 1
        %s786 = scalar_lea.vmem %s12, %s785
        %p787 = scmp.lt.s32.totalorder %s39, 1
        %s788 = scalar_select %p787, %s39, 1
        %s789 = scalar_lea.vmem %s13, %s788
        %p790 = scmp.lt.s32.totalorder %s38, 1
        %s791 = scalar_select %p790, %s38, 1
        %s792 = smul.addr %s791, 8
        %s793 = scalar_lea.vmem %s16, %s792
        %p795 = scmp.eq.s32.totalorder %s39, 0
        // Predicated region
        $region101: #{_lambda_.2} parent=83 // pred_check
          %p796 = pneg %p795
        $region102: #{_lambda_.2} parent=83 // pred_check_branch
          %798 = sbr.rel (%p796) target = $region104
        $region103: #{_lambda_.2} parent=83 // pred_region
          %v799 = vld [vmem:[%s759] sm:$0xff]
          %v800 = vmul.f32 %v799, 5.656854
          %v801 = vld [vmem:[#allocation3] sm:$0xff]
          %v802 = vadd.f32 %v800, %v801
          %vm803 = vcmask 261120
          %804 = vst.msk [vmem:[#allocation2] sm:$0xff] %vm803, %v802
        $region104: #{_lambda_.2} parent=83 // pred_fallthru
          _
        %v805 = vld [vmem:[#allocation2] sm:$0xff]
        %v806 = vpack.c.bf16 %v805, %v805
        %v807 = vld [vmem:[%s764] sm:$0xf]
        %v808 = vld [vmem:[%s764 + $0x4] sm:$0xf]
        %v809 = vld [vmem:[%s764 + $0x8] sm:$0xf]
        %v810 = vld [vmem:[%s764 + $0xc] sm:$0xf]
        %v811 = vld [vmem:[%s764 + $0x10] sm:$0xf]
        %v812 = vld [vmem:[%s764 + $0x14] sm:$0xf]
        %v813 = vld [vmem:[%s764 + $0x18] sm:$0xf]
        %v814 = vld [vmem:[%s764 + $0x1c] sm:$0xf]
        %v815 = vld [vmem:[%s764 + $0x20] sm:$0xf]
        %v816 = vld [vmem:[%s764 + $0x24] sm:$0xf]
        %v817 = vld [vmem:[%s764 + $0x28] sm:$0xf]
        %v818 = vld [vmem:[%s764 + $0x2c] sm:$0xf]
        %v819 = vld [vmem:[%s764 + $0x30] sm:$0xf]
        %v820 = vld [vmem:[%s764 + $0x34] sm:$0xf]
        %v821 = vld [vmem:[%s764 + $0x38] sm:$0xf]
        %v822 = vld [vmem:[%s764 + $0x3c] sm:$0xf]
        %v823 = vld [vmem:[%s764 + $0x40] sm:$0xf]
        %v824 = vld [vmem:[%s764 + $0x44] sm:$0xf]
        %v825 = vld [vmem:[%s764 + $0x48] sm:$0xf]
        %v826 = vld [vmem:[%s764 + $0x4c] sm:$0xf]
        %v827 = vld [vmem:[%s764 + $0x50] sm:$0xf]
        %v828 = vld [vmem:[%s764 + $0x54] sm:$0xf]
        %v829 = vld [vmem:[%s764 + $0x58] sm:$0xf]
        %v830 = vld [vmem:[%s764 + $0x5c] sm:$0xf]
        %v831 = vld [vmem:[%s764 + $0x60] sm:$0xf]
        %v832 = vld [vmem:[%s764 + $0x64] sm:$0xf]
        %v833 = vld [vmem:[%s764 + $0x68] sm:$0xf]
        %v834 = vld [vmem:[%s764 + $0x6c] sm:$0xf]
        %v835 = vld [vmem:[%s764 + $0x70] sm:$0xf]
        %v836 = vld [vmem:[%s764 + $0x74] sm:$0xf]
        %v837 = vld [vmem:[%s764 + $0x78] sm:$0xf]
        %v838 = vld [vmem:[%s764 + $0x7c] sm:$0xf]
        %v839 = vld [vmem:[%s764 + $0x80] sm:$0xf]
        %v840 = vld [vmem:[%s764 + $0x84] sm:$0xf]
        %v841 = vld [vmem:[%s764 + $0x88] sm:$0xf]
        %v842 = vld [vmem:[%s764 + $0x8c] sm:$0xf]
        %v843 = vld [vmem:[%s764 + $0x90] sm:$0xf]
        %v844 = vld [vmem:[%s764 + $0x94] sm:$0xf]
        %v845 = vld [vmem:[%s764 + $0x98] sm:$0xf]
        %v846 = vld [vmem:[%s764 + $0x9c] sm:$0xf]
        %v847 = vld [vmem:[%s764 + $0xa0] sm:$0xf]
        %v848 = vld [vmem:[%s764 + $0xa4] sm:$0xf]
        %v849 = vld [vmem:[%s764 + $0xa8] sm:$0xf]
        %v850 = vld [vmem:[%s764 + $0xac] sm:$0xf]
        %v851 = vld [vmem:[%s764 + $0xb0] sm:$0xf]
        %v852 = vld [vmem:[%s764 + $0xb4] sm:$0xf]
        %v853 = vld [vmem:[%s764 + $0xb8] sm:$0xf]
        %v854 = vld [vmem:[%s764 + $0xbc] sm:$0xf]
        %v855 = vld [vmem:[%s768] sm:$0x1]
        %v856 = vld [vmem:[%s768 + $0x1] sm:$0x1]
        %v857 = vld [vmem:[%s768 + $0x2] sm:$0x1]
        %v858 = vld [vmem:[%s768 + $0x3] sm:$0x1]
        %v859 = vld [vmem:[%s768 + $0x4] sm:$0x1]
        %v860 = vld [vmem:[%s768 + $0x5] sm:$0x1]
        %v861 = vld [vmem:[%s768 + $0x6] sm:$0x1]
        %v862 = vld [vmem:[%s768 + $0x7] sm:$0x1]
        %v863 = vld [vmem:[%s768 + $0x8] sm:$0x1]
        %v864 = vld [vmem:[%s768 + $0x9] sm:$0x1]
        %v865 = vld [vmem:[%s768 + $0xa] sm:$0x1]
        %v866 = vld [vmem:[%s768 + $0xb] sm:$0x1]
        %v879 = vlaneseq
        %v880 = vshrl.u32 %v879, 7
        %v881 = vsub.s32 0, %v880
        %v882 = vrot.slane %v855, %v881
        %v883 = vlaneseq
        %v884 = vshrl.u32 %v883, 7
        %v885 = vsub.s32 0, %v884
        %v886 = vrot.slane %v856, %v885
        %v887 = vlaneseq
        %v888 = vshrl.u32 %v887, 7
        %v889 = vsub.s32 0, %v888
        %v890 = vrot.slane %v857, %v889
        %v891 = vlaneseq
        %v892 = vshrl.u32 %v891, 7
        %v893 = vsub.s32 0, %v892
        %v894 = vrot.slane %v858, %v893
        %v895 = vlaneseq
        %v896 = vshrl.u32 %v895, 7
        %v897 = vsub.s32 0, %v896
        %v898 = vrot.slane %v859, %v897
        %v899 = vlaneseq
        %v900 = vshrl.u32 %v899, 7
        %v901 = vsub.s32 0, %v900
        %v902 = vrot.slane %v860, %v901
        %v903 = vlaneseq
        %v904 = vshrl.u32 %v903, 7
        %v905 = vsub.s32 0, %v904
        %v906 = vrot.slane %v861, %v905
        %v907 = vlaneseq
        %v908 = vshrl.u32 %v907, 7
        %v909 = vsub.s32 0, %v908
        %v910 = vrot.slane %v862, %v909
        %v911 = vlaneseq
        %v912 = vshrl.u32 %v911, 7
        %v913 = vsub.s32 0, %v912
        %v914 = vrot.slane %v863, %v913
        %v915 = vlaneseq
        %v916 = vshrl.u32 %v915, 7
        %v917 = vsub.s32 0, %v916
        %v918 = vrot.slane %v864, %v917
        %v919 = vlaneseq
        %v920 = vshrl.u32 %v919, 7
        %v921 = vsub.s32 0, %v920
        %v922 = vrot.slane %v865, %v921
        %v923 = vlaneseq
        %v924 = vshrl.u32 %v923, 7
        %v925 = vsub.s32 0, %v924
        %v926 = vrot.slane %v866, %v925
        %v943 = vunpack.c.l.b16 %v807
        %v944 = vunpack.c.l.b16 %v808
        %v945 = vunpack.c.l.b16 %v809
        %v946 = vunpack.c.l.b16 %v810
        %v947 = vpack.c.b16 %v944, %v943
        %v948 = vpack.c.b16 %v946, %v945
        %vm951 = vcmask 261120
        %v953 = vsel %vm951, %v806, 0
        %955 = vmatprep.subr.bf16.mxu0 0
        %956 = vmatpush1.bf16.msra.mxu0 %v947
        %957 = vmatprep.subr.bf16.mxu0 0
        %958 = vmatpush1.bf16.msra.mxu0 %v948
        %959 = vmatprep.subr.bf16.mxu0 0
        %960 = vmatpush1.bf16.msra.mxu0 0
        %961 = vmatprep.subr.bf16.mxu0 0
        %962 = vmatpush1.bf16.msra.mxu0 0
        %963 = vmatprep.subr.bf16.mxu0 0
        %964 = vmatpush1.bf16.msra.mxu0 0
        %965 = vmatprep.subr.bf16.mxu0 0
        %966 = vmatpush1.bf16.msra.mxu0 0
        %967 = vmatprep.subr.bf16.mxu0 0
        %968 = vmatpush1.bf16.msra.mxu0 0
        %969 = vmatprep.subr.bf16.mxu0 0
        %970 = vmatpush1.bf16.msra.mxu0 0
        %971 = vmatprep.subr.bf16.mxu0 0
        %972 = vmatpush1.bf16.msra.mxu0 0
        %973 = vmatprep.subr.bf16.mxu0 0
        %974 = vmatpush1.bf16.msra.mxu0 0
        %975 = vmatprep.subr.bf16.mxu0 0
        %976 = vmatpush1.bf16.msra.mxu0 0
        %977 = vmatprep.subr.bf16.mxu0 0
        %978 = vmatpush1.bf16.msra.mxu0 0
        %979 = vmatprep.subr.bf16.mxu0 0
        %980 = vmatpush1.bf16.msra.mxu0 0
        %981 = vmatprep.subr.bf16.mxu0 0
        %982 = vmatpush1.bf16.msra.mxu0 0
        %983 = vmatprep.subr.bf16.mxu0 0
        %984 = vmatpush1.bf16.msra.mxu0 0
        %985 = vmatprep.subr.bf16.mxu0 0
        %986 = vmatpush1.bf16.msra.mxu0 0
        %987 = vmatprep.mubr.bf16.mxu0 0
        %988 = vmatmul.mubr.bf16.gmra.mrb[0].mxu0 %v953
        %v989 = vpop.f32.mrb[0].mxu0
        %v990 = vadd.f32 %v882, %v989
        %v991 = vpop.f32.mrb[0].mxu0
        %v992 = vpop.f32.mrb[0].mxu0
        %v993 = vpop.f32.mrb[0].mxu0
        %994 = vdwg.mxu0
        %v999 = vunpack.c.l.b16 %v811
        %v1000 = vunpack.c.l.b16 %v812
        %v1001 = vunpack.c.l.b16 %v813
        %v1002 = vunpack.c.l.b16 %v814
        %v1003 = vpack.c.b16 %v1000, %v999
        %v1004 = vpack.c.b16 %v1002, %v1001
        %1007 = vmatprep.subr.bf16.mxu0 0
        %1008 = vmatpush1.bf16.msra.mxu0 %v1003
        %1009 = vmatprep.subr.bf16.mxu0 0
        %1010 = vmatpush1.bf16.msra.mxu0 %v1004
        %1011 = vmatprep.subr.bf16.mxu0 0
        %1012 = vmatpush1.bf16.msra.mxu0 0
        %1013 = vmatprep.subr.bf16.mxu0 0
        %1014 = vmatpush1.bf16.msra.mxu0 0
        %1015 = vmatprep.subr.bf16.mxu0 0
        %1016 = vmatpush1.bf16.msra.mxu0 0
        %1017 = vmatprep.subr.bf16.mxu0 0
        %1018 = vmatpush1.bf16.msra.mxu0 0
        %1019 = vmatprep.subr.bf16.mxu0 0
        %1020 = vmatpush1.bf16.msra.mxu0 0
        %1021 = vmatprep.subr.bf16.mxu0 0
        %1022 = vmatpush1.bf16.msra.mxu0 0
        %1023 = vmatprep.subr.bf16.mxu0 0
        %1024 = vmatpush1.bf16.msra.mxu0 0
        %1025 = vmatprep.subr.bf16.mxu0 0
        %1026 = vmatpush1.bf16.msra.mxu0 0
        %1027 = vmatprep.subr.bf16.mxu0 0
        %1028 = vmatpush1.bf16.msra.mxu0 0
        %1029 = vmatprep.subr.bf16.mxu0 0
        %1030 = vmatpush1.bf16.msra.mxu0 0
        %1031 = vmatprep.subr.bf16.mxu0 0
        %1032 = vmatpush1.bf16.msra.mxu0 0
        %1033 = vmatprep.subr.bf16.mxu0 0
        %1034 = vmatpush1.bf16.msra.mxu0 0
        %1035 = vmatprep.subr.bf16.mxu0 0
        %1036 = vmatpush1.bf16.msra.mxu0 0
        %1037 = vmatprep.subr.bf16.mxu0 0
        %1038 = vmatpush1.bf16.msra.mxu0 0
        %1039 = vmatprep.mubr.bf16.mxu0 0
        %1040 = vmatmul.mubr.bf16.gmra.mrb[0].mxu0 %v953
        %v1041 = vpop.f32.mrb[0].mxu0
        %v1042 = vadd.f32 %v886, %v1041
        %v1043 = vpop.f32.mrb[0].mxu0
        %v1044 = vpop.f32.mrb[0].mxu0
        %v1045 = vpop.f32.mrb[0].mxu0
        %1046 = vdwg.mxu0
        %v1051 = vunpack.c.l.b16 %v815
        %v1052 = vunpack.c.l.b16 %v816
        %v1053 = vunpack.c.l.b16 %v817
        %v1054 = vunpack.c.l.b16 %v818
        %v1055 = vpack.c.b16 %v1052, %v1051
        %v1056 = vpack.c.b16 %v1054, %v1053
        %1059 = vmatprep.subr.bf16.mxu0 0
        %1060 = vmatpush1.bf16.msra.mxu0 %v1055
        %1061 = vmatprep.subr.bf16.mxu0 0
        %1062 = vmatpush1.bf16.msra.mxu0 %v1056
        %1063 = vmatprep.subr.bf16.mxu0 0
        %1064 = vmatpush1.bf16.msra.mxu0 0
        %1065 = vmatprep.subr.bf16.mxu0 0
        %1066 = vmatpush1.bf16.msra.mxu0 0
        %1067 = vmatprep.subr.bf16.mxu0 0
        %1068 = vmatpush1.bf16.msra.mxu0 0
        %1069 = vmatprep.subr.bf16.mxu0 0
        %1070 = vmatpush1.bf16.msra.mxu0 0
        %1071 = vmatprep.subr.bf16.mxu0 0
        %1072 = vmatpush1.bf16.msra.mxu0 0
        %1073 = vmatprep.subr.bf16.mxu0 0
        %1074 = vmatpush1.bf16.msra.mxu0 0
        %1075 = vmatprep.subr.bf16.mxu0 0
        %1076 = vmatpush1.bf16.msra.mxu0 0
        %1077 = vmatprep.subr.bf16.mxu0 0
        %1078 = vmatpush1.bf16.msra.mxu0 0
        %1079 = vmatprep.subr.bf16.mxu0 0
        %1080 = vmatpush1.bf16.msra.mxu0 0
        %1081 = vmatprep.subr.bf16.mxu0 0
        %1082 = vmatpush1.bf16.msra.mxu0 0
        %1083 = vmatprep.subr.bf16.mxu0 0
        %1084 = vmatpush1.bf16.msra.mxu0 0
        %1085 = vmatprep.subr.bf16.mxu0 0
        %1086 = vmatpush1.bf16.msra.mxu0 0
        %1087 = vmatprep.subr.bf16.mxu0 0
        %1088 = vmatpush1.bf16.msra.mxu0 0
        %1089 = vmatprep.subr.bf16.mxu0 0
        %1090 = vmatpush1.bf16.msra.mxu0 0
        %1091 = vmatprep.mubr.bf16.mxu0 0
        %1092 = vmatmul.mubr.bf16.gmra.mrb[0].mxu0 %v953
        %v1093 = vpop.f32.mrb[0].mxu0
        %v1094 = vadd.f32 %v890, %v1093
        %v1095 = vpop.f32.mrb[0].mxu0
        %v1096 = vpop.f32.mrb[0].mxu0
        %v1097 = vpop.f32.mrb[0].mxu0
        %1098 = vdwg.mxu0
        %v1103 = vunpack.c.l.b16 %v819
        %v1104 = vunpack.c.l.b16 %v820
        %v1105 = vunpack.c.l.b16 %v821
        %v1106 = vunpack.c.l.b16 %v822
        %v1107 = vpack.c.b16 %v1104, %v1103
        %v1108 = vpack.c.b16 %v1106, %v1105
        %1111 = vmatprep.subr.bf16.mxu0 0
        %1112 = vmatpush1.bf16.msra.mxu0 %v1107
        %1113 = vmatprep.subr.bf16.mxu0 0
        %1114 = vmatpush1.bf16.msra.mxu0 %v1108
        %1115 = vmatprep.subr.bf16.mxu0 0
        %1116 = vmatpush1.bf16.msra.mxu0 0
        %1117 = vmatprep.subr.bf16.mxu0 0
        %1118 = vmatpush1.bf16.msra.mxu0 0
        %1119 = vmatprep.subr.bf16.mxu0 0
        %1120 = vmatpush1.bf16.msra.mxu0 0
        %1121 = vmatprep.subr.bf16.mxu0 0
        %1122 = vmatpush1.bf16.msra.mxu0 0
        %1123 = vmatprep.subr.bf16.mxu0 0
        %1124 = vmatpush1.bf16.msra.mxu0 0
        %1125 = vmatprep.subr.bf16.mxu0 0
        %1126 = vmatpush1.bf16.msra.mxu0 0
        %1127 = vmatprep.subr.bf16.mxu0 0
        %1128 = vmatpush1.bf16.msra.mxu0 0
        %1129 = vmatprep.subr.bf16.mxu0 0
        %1130 = vmatpush1.bf16.msra.mxu0 0
        %1131 = vmatprep.subr.bf16.mxu0 0
        %1132 = vmatpush1.bf16.msra.mxu0 0
        %1133 = vmatprep.subr.bf16.mxu0 0
        %1134 = vmatpush1.bf16.msra.mxu0 0
        %1135 = vmatprep.subr.bf16.mxu0 0
        %1136 = vmatpush1.bf16.msra.mxu0 0
        %1137 = vmatprep.subr.bf16.mxu0 0
        %1138 = vmatpush1.bf16.msra.mxu0 0
        %1139 = vmatprep.subr.bf16.mxu0 0
        %1140 = vmatpush1.bf16.msra.mxu0 0
        %1141 = vmatprep.subr.bf16.mxu0 0
        %1142 = vmatpush1.bf16.msra.mxu0 0
        %1143 = vmatprep.mubr.bf16.mxu0 0
        %1144 = vmatmul.mubr.bf16.gmra.mrb[0].mxu0 %v953
        %v1145 = vpop.f32.mrb[0].mxu0
        %v1146 = vadd.f32 %v894, %v1145
        %v1147 = vpop.f32.mrb[0].mxu0
        %v1148 = vpop.f32.mrb[0].mxu0
        %v1149 = vpop.f32.mrb[0].mxu0
        %1150 = vdwg.mxu0
        %v1155 = vunpack.c.l.b16 %v823
        %v1156 = vunpack.c.l.b16 %v824
        %v1157 = vunpack.c.l.b16 %v825
        %v1158 = vunpack.c.l.b16 %v826
        %v1159 = vpack.c.b16 %v1156, %v1155
        %v1160 = vpack.c.b16 %v1158, %v1157
        %1163 = vmatprep.subr.bf16.mxu0 0
        %1164 = vmatpush1.bf16.msra.mxu0 %v1159
        %1165 = vmatprep.subr.bf16.mxu0 0
        %1166 = vmatpush1.bf16.msra.mxu0 %v1160
        %1167 = vmatprep.subr.bf16.mxu0 0
        %1168 = vmatpush1.bf16.msra.mxu0 0
        %1169 = vmatprep.subr.bf16.mxu0 0
        %1170 = vmatpush1.bf16.msra.mxu0 0
        %1171 = vmatprep.subr.bf16.mxu0 0
        %1172 = vmatpush1.bf16.msra.mxu0 0
        %1173 = vmatprep.subr.bf16.mxu0 0
        %1174 = vmatpush1.bf16.msra.mxu0 0
        %1175 = vmatprep.subr.bf16.mxu0 0
        %1176 = vmatpush1.bf16.msra.mxu0 0
        %1177 = vmatprep.subr.bf16.mxu0 0
        %1178 = vmatpush1.bf16.msra.mxu0 0
        %1179 = vmatprep.subr.bf16.mxu0 0
        %1180 = vmatpush1.bf16.msra.mxu0 0
        %1181 = vmatprep.subr.bf16.mxu0 0
        %1182 = vmatpush1.bf16.msra.mxu0 0
        %1183 = vmatprep.subr.bf16.mxu0 0
        %1184 = vmatpush1.bf16.msra.mxu0 0
        %1185 = vmatprep.subr.bf16.mxu0 0
        %1186 = vmatpush1.bf16.msra.mxu0 0
        %1187 = vmatprep.subr.bf16.mxu0 0
        %1188 = vmatpush1.bf16.msra.mxu0 0
        %1189 = vmatprep.subr.bf16.mxu0 0
        %1190 = vmatpush1.bf16.msra.mxu0 0
        %1191 = vmatprep.subr.bf16.mxu0 0
        %1192 = vmatpush1.bf16.msra.mxu0 0
        %1193 = vmatprep.subr.bf16.mxu0 0
        %1194 = vmatpush1.bf16.msra.mxu0 0
        %1195 = vmatprep.mubr.bf16.mxu0 0
        %1196 = vmatmul.mubr.bf16.gmra.mrb[0].mxu0 %v953
        %v1197 = vpop.f32.mrb[0].mxu0
        %v1198 = vadd.f32 %v898, %v1197
        %v1199 = vpop.f32.mrb[0].mxu0
        %v1200 = vpop.f32.mrb[0].mxu0
        %v1201 = vpop.f32.mrb[0].mxu0
        %1202 = vdwg.mxu0
        %v1207 = vunpack.c.l.b16 %v827
        %v1208 = vunpack.c.l.b16 %v828
        %v1209 = vunpack.c.l.b16 %v829
        %v1210 = vunpack.c.l.b16 %v830
        %v1211 = vpack.c.b16 %v1208, %v1207
        %v1212 = vpack.c.b16 %v1210, %v1209
        %1215 = vmatprep.subr.bf16.mxu0 0
        %1216 = vmatpush1.bf16.msra.mxu0 %v1211
        %1217 = vmatprep.subr.bf16.mxu0 0
        %1218 = vmatpush1.bf16.msra.mxu0 %v1212
        %1219 = vmatprep.subr.bf16.mxu0 0
        %1220 = vmatpush1.bf16.msra.mxu0 0
        %1221 = vmatprep.subr.bf16.mxu0 0
        %1222 = vmatpush1.bf16.msra.mxu0 0
        %1223 = vmatprep.subr.bf16.mxu0 0
        %1224 = vmatpush1.bf16.msra.mxu0 0
        %1225 = vmatprep.subr.bf16.mxu0 0
        %1226 = vmatpush1.bf16.msra.mxu0 0
        %1227 = vmatprep.subr.bf16.mxu0 0
        %1228 = vmatpush1.bf16.msra.mxu0 0
        %1229 = vmatprep.subr.bf16.mxu0 0
        %1230 = vmatpush1.bf16.msra.mxu0 0
        %1231 = vmatprep.subr.bf16.mxu0 0
        %1232 = vmatpush1.bf16.msra.mxu0 0
        %1233 = vmatprep.subr.bf16.mxu0 0
        %1234 = vmatpush1.bf16.msra.mxu0 0
        %1235 = vmatprep.subr.bf16.mxu0 0
        %1236 = vmatpush1.bf16.msra.mxu0 0
        %1237 = vmatprep.subr.bf16.mxu0 0
        %1238 = vmatpush1.bf16.msra.mxu0 0
        %1239 = vmatprep.subr.bf16.mxu0 0
        %1240 = vmatpush1.bf16.msra.mxu0 0
        %1241 = vmatprep.subr.bf16.mxu0 0
        %1242 = vmatpush1.bf16.msra.mxu0 0
        %1243 = vmatprep.subr.bf16.mxu0 0
        %1244 = vmatpush1.bf16.msra.mxu0 0
        %1245 = vmatprep.subr.bf16.mxu0 0
        %1246 = vmatpush1.bf16.msra.mxu0 0
        %1247 = vmatprep.mubr.bf16.mxu0 0
        %1248 = vmatmul.mubr.bf16.gmra.mrb[0].mxu0 %v953
        %v1249 = vpop.f32.mrb[0].mxu0
        %v1250 = vadd.f32 %v902, %v1249
        %v1251 = vpop.f32.mrb[0].mxu0
        %v1252 = vpop.f32.mrb[0].mxu0
        %v1253 = vpop.f32.mrb[0].mxu0
        %1254 = vdwg.mxu0
        %v1259 = vunpack.c.l.b16 %v831
        %v1260 = vunpack.c.l.b16 %v832
        %v1261 = vunpack.c.l.b16 %v833
        %v1262 = vunpack.c.l.b16 %v834
        %v1263 = vpack.c.b16 %v1260, %v1259
        %v1264 = vpack.c.b16 %v1262, %v1261
        %1267 = vmatprep.subr.bf16.mxu0 0
        %1268 = vmatpush1.bf16.msra.mxu0 %v1263
        %1269 = vmatprep.subr.bf16.mxu0 0
        %1270 = vmatpush1.bf16.msra.mxu0 %v1264
        %1271 = vmatprep.subr.bf16.mxu0 0
        %1272 = vmatpush1.bf16.msra.mxu0 0
        %1273 = vmatprep.subr.bf16.mxu0 0
        %1274 = vmatpush1.bf16.msra.mxu0 0
        %1275 = vmatprep.subr.bf16.mxu0 0
        %1276 = vmatpush1.bf16.msra.mxu0 0
        %1277 = vmatprep.subr.bf16.mxu0 0
        %1278 = vmatpush1.bf16.msra.mxu0 0
        %1279 = vmatprep.subr.bf16.mxu0 0
        %1280 = vmatpush1.bf16.msra.mxu0 0
        %1281 = vmatprep.subr.bf16.mxu0 0
        %1282 = vmatpush1.bf16.msra.mxu0 0
        %1283 = vmatprep.subr.bf16.mxu0 0
        %1284 = vmatpush1.bf16.msra.mxu0 0
        %1285 = vmatprep.subr.bf16.mxu0 0
        %1286 = vmatpush1.bf16.msra.mxu0 0
        %1287 = vmatprep.subr.bf16.mxu0 0
        %1288 = vmatpush1.bf16.msra.mxu0 0
        %1289 = vmatprep.subr.bf16.mxu0 0
        %1290 = vmatpush1.bf16.msra.mxu0 0
        %1291 = vmatprep.subr.bf16.mxu0 0
        %1292 = vmatpush1.bf16.msra.mxu0 0
        %1293 = vmatprep.subr.bf16.mxu0 0
        %1294 = vmatpush1.bf16.msra.mxu0 0
        %1295 = vmatprep.subr.bf16.mxu0 0
        %1296 = vmatpush1.bf16.msra.mxu0 0
        %1297 = vmatprep.subr.bf16.mxu0 0
        %1298 = vmatpush1.bf16.msra.mxu0 0
        %1299 = vmatprep.mubr.bf16.mxu0 0
        %1300 = vmatmul.mubr.bf16.gmra.mrb[0].mxu0 %v953
        %v1301 = vpop.f32.mrb[0].mxu0
        %v1302 = vadd.f32 %v906, %v1301
        %v1303 = vpop.f32.mrb[0].mxu0
        %v1304 = vpop.f32.mrb[0].mxu0
        %v1305 = vpop.f32.mrb[0].mxu0
        %1306 = vdwg.mxu0
        %v1311 = vunpack.c.l.b16 %v835
        %v1312 = vunpack.c.l.b16 %v836
        %v1313 = vunpack.c.l.b16 %v837
        %v1314 = vunpack.c.l.b16 %v838
        %v1315 = vpack.c.b16 %v1312, %v1311
        %v1316 = vpack.c.b16 %v1314, %v1313
        %1319 = vmatprep.subr.bf16.mxu0 0
        %1320 = vmatpush1.bf16.msra.mxu0 %v1315
        %1321 = vmatprep.subr.bf16.mxu0 0
        %1322 = vmatpush1.bf16.msra.mxu0 %v1316
        %1323 = vmatprep.subr.bf16.mxu0 0
        %1324 = vmatpush1.bf16.msra.mxu0 0
        %1325 = vmatprep.subr.bf16.mxu0 0
        %1326 = vmatpush1.bf16.msra.mxu0 0
        %1327 = vmatprep.subr.bf16.mxu0 0
        %1328 = vmatpush1.bf16.msra.mxu0 0
        %1329 = vmatprep.subr.bf16.mxu0 0
        %1330 = vmatpush1.bf16.msra.mxu0 0
        %1331 = vmatprep.subr.bf16.mxu0 0
        %1332 = vmatpush1.bf16.msra.mxu0 0
        %1333 = vmatprep.subr.bf16.mxu0 0
        %1334 = vmatpush1.bf16.msra.mxu0 0
        %1335 = vmatprep.subr.bf16.mxu0 0
        %1336 = vmatpush1.bf16.msra.mxu0 0
        %1337 = vmatprep.subr.bf16.mxu0 0
        %1338 = vmatpush1.bf16.msra.mxu0 0
        %1339 = vmatprep.subr.bf16.mxu0 0
        %1340 = vmatpush1.bf16.msra.mxu0 0
        %1341 = vmatprep.subr.bf16.mxu0 0
        %1342 = vmatpush1.bf16.msra.mxu0 0
        %1343 = vmatprep.subr.bf16.mxu0 0
        %1344 = vmatpush1.bf16.msra.mxu0 0
        %1345 = vmatprep.subr.bf16.mxu0 0
        %1346 = vmatpush1.bf16.msra.mxu0 0
        %1347 = vmatprep.subr.bf16.mxu0 0
        %1348 = vmatpush1.bf16.msra.mxu0 0
        %1349 = vmatprep.subr.bf16.mxu0 0
        %1350 = vmatpush1.bf16.msra.mxu0 0
        %1351 = vmatprep.mubr.bf16.mxu0 0
        %1352 = vmatmul.mubr.bf16.gmra.mrb[0].mxu0 %v953
        %v1353 = vpop.f32.mrb[0].mxu0
        %v1354 = vadd.f32 %v910, %v1353
        %v1355 = vpop.f32.mrb[0].mxu0
        %v1356 = vpop.f32.mrb[0].mxu0
        %v1357 = vpop.f32.mrb[0].mxu0
        %1358 = vdwg.mxu0
        %v1363 = vunpack.c.l.b16 %v839
        %v1364 = vunpack.c.l.b16 %v840
        %v1365 = vunpack.c.l.b16 %v841
        %v1366 = vunpack.c.l.b16 %v842
        %v1367 = vpack.c.b16 %v1364, %v1363
        %v1368 = vpack.c.b16 %v1366, %v1365
        %1371 = vmatprep.subr.bf16.mxu0 0
        %1372 = vmatpush1.bf16.msra.mxu0 %v1367
        %1373 = vmatprep.subr.bf16.mxu0 0
        %1374 = vmatpush1.bf16.msra.mxu0 %v1368
        %1375 = vmatprep.subr.bf16.mxu0 0
        %1376 = vmatpush1.bf16.msra.mxu0 0
        %1377 = vmatprep.subr.bf16.mxu0 0
        %1378 = vmatpush1.bf16.msra.mxu0 0
        %1379 = vmatprep.subr.bf16.mxu0 0
        %1380 = vmatpush1.bf16.msra.mxu0 0
        %1381 = vmatprep.subr.bf16.mxu0 0
        %1382 = vmatpush1.bf16.msra.mxu0 0
        %1383 = vmatprep.subr.bf16.mxu0 0
        %1384 = vmatpush1.bf16.msra.mxu0 0
        %1385 = vmatprep.subr.bf16.mxu0 0
        %1386 = vmatpush1.bf16.msra.mxu0 0
        %1387 = vmatprep.subr.bf16.mxu0 0
        %1388 = vmatpush1.bf16.msra.mxu0 0
        %1389 = vmatprep.subr.bf16.mxu0 0
        %1390 = vmatpush1.bf16.msra.mxu0 0
        %1391 = vmatprep.subr.bf16.mxu0 0
        %1392 = vmatpush1.bf16.msra.mxu0 0
        %1393 = vmatprep.subr.bf16.mxu0 0
        %1394 = vmatpush1.bf16.msra.mxu0 0
        %1395 = vmatprep.subr.bf16.mxu0 0
        %1396 = vmatpush1.bf16.msra.mxu0 0
        %1397 = vmatprep.subr.bf16.mxu0 0
        %1398 = vmatpush1.bf16.msra.mxu0 0
        %1399 = vmatprep.subr.bf16.mxu0 0
        %1400 = vmatpush1.bf16.msra.mxu0 0
        %1401 = vmatprep.subr.bf16.mxu0 0
        %1402 = vmatpush1.bf16.msra.mxu0 0
        %1403 = vmatprep.mubr.bf16.mxu0 0
        %1404 = vmatmul.mubr.bf16.gmra.mrb[0].mxu0 %v953
        %v1405 = vpop.f32.mrb[0].mxu0
        %v1406 = vadd.f32 %v914, %v1405
        %v1407 = vpop.f32.mrb[0].mxu0
        %v1408 = vpop.f32.mrb[0].mxu0
        %v1409 = vpop.f32.mrb[0].mxu0
        %1410 = vdwg.mxu0
        %v1415 = vunpack.c.l.b16 %v843
        %v1416 = vunpack.c.l.b16 %v844
        %v1417 = vunpack.c.l.b16 %v845
        %v1418 = vunpack.c.l.b16 %v846
        %v1419 = vpack.c.b16 %v1416, %v1415
        %v1420 = vpack.c.b16 %v1418, %v1417
        %1423 = vmatprep.subr.bf16.mxu0 0
        %1424 = vmatpush1.bf16.msra.mxu0 %v1419
        %1425 = vmatprep.subr.bf16.mxu0 0
        %1426 = vmatpush1.bf16.msra.mxu0 %v1420
        %1427 = vmatprep.subr.bf16.mxu0 0
        %1428 = vmatpush1.bf16.msra.mxu0 0
        %1429 = vmatprep.subr.bf16.mxu0 0
        %1430 = vmatpush1.bf16.msra.mxu0 0
        %1431 = vmatprep.subr.bf16.mxu0 0
        %1432 = vmatpush1.bf16.msra.mxu0 0
        %1433 = vmatprep.subr.bf16.mxu0 0
        %1434 = vmatpush1.bf16.msra.mxu0 0
        %1435 = vmatprep.subr.bf16.mxu0 0
        %1436 = vmatpush1.bf16.msra.mxu0 0
        %1437 = vmatprep.subr.bf16.mxu0 0
        %1438 = vmatpush1.bf16.msra.mxu0 0
        %1439 = vmatprep.subr.bf16.mxu0 0
        %1440 = vmatpush1.bf16.msra.mxu0 0
        %1441 = vmatprep.subr.bf16.mxu0 0
        %1442 = vmatpush1.bf16.msra.mxu0 0
        %1443 = vmatprep.subr.bf16.mxu0 0
        %1444 = vmatpush1.bf16.msra.mxu0 0
        %1445 = vmatprep.subr.bf16.mxu0 0
        %1446 = vmatpush1.bf16.msra.mxu0 0
        %1447 = vmatprep.subr.bf16.mxu0 0
        %1448 = vmatpush1.bf16.msra.mxu0 0
        %1449 = vmatprep.subr.bf16.mxu0 0
        %1450 = vmatpush1.bf16.msra.mxu0 0
        %1451 = vmatprep.subr.bf16.mxu0 0
        %1452 = vmatpush1.bf16.msra.mxu0 0
        %1453 = vmatprep.subr.bf16.mxu0 0
        %1454 = vmatpush1.bf16.msra.mxu0 0
        %1455 = vmatprep.mubr.bf16.mxu0 0
        %1456 = vmatmul.mubr.bf16.gmra.mrb[0].mxu0 %v953
        %v1457 = vpop.f32.mrb[0].mxu0
        %v1458 = vadd.f32 %v918, %v1457
        %v1459 = vpop.f32.mrb[0].mxu0
        %v1460 = vpop.f32.mrb[0].mxu0
        %v1461 = vpop.f32.mrb[0].mxu0
        %1462 = vdwg.mxu0
        %v1467 = vunpack.c.l.b16 %v847
        %v1468 = vunpack.c.l.b16 %v848
        %v1469 = vunpack.c.l.b16 %v849
        %v1470 = vunpack.c.l.b16 %v850
        %v1471 = vpack.c.b16 %v1468, %v1467
        %v1472 = vpack.c.b16 %v1470, %v1469
        %1475 = vmatprep.subr.bf16.mxu0 0
        %1476 = vmatpush1.bf16.msra.mxu0 %v1471
        %1477 = vmatprep.subr.bf16.mxu0 0
        %1478 = vmatpush1.bf16.msra.mxu0 %v1472
        %1479 = vmatprep.subr.bf16.mxu0 0
        %1480 = vmatpush1.bf16.msra.mxu0 0
        %1481 = vmatprep.subr.bf16.mxu0 0
        %1482 = vmatpush1.bf16.msra.mxu0 0
        %1483 = vmatprep.subr.bf16.mxu0 0
        %1484 = vmatpush1.bf16.msra.mxu0 0
        %1485 = vmatprep.subr.bf16.mxu0 0
        %1486 = vmatpush1.bf16.msra.mxu0 0
        %1487 = vmatprep.subr.bf16.mxu0 0
        %1488 = vmatpush1.bf16.msra.mxu0 0
        %1489 = vmatprep.subr.bf16.mxu0 0
        %1490 = vmatpush1.bf16.msra.mxu0 0
        %1491 = vmatprep.subr.bf16.mxu0 0
        %1492 = vmatpush1.bf16.msra.mxu0 0
        %1493 = vmatprep.subr.bf16.mxu0 0
        %1494 = vmatpush1.bf16.msra.mxu0 0
        %1495 = vmatprep.subr.bf16.mxu0 0
        %1496 = vmatpush1.bf16.msra.mxu0 0
        %1497 = vmatprep.subr.bf16.mxu0 0
        %1498 = vmatpush1.bf16.msra.mxu0 0
        %1499 = vmatprep.subr.bf16.mxu0 0
        %1500 = vmatpush1.bf16.msra.mxu0 0
        %1501 = vmatprep.subr.bf16.mxu0 0
        %1502 = vmatpush1.bf16.msra.mxu0 0
        %1503 = vmatprep.subr.bf16.mxu0 0
        %1504 = vmatpush1.bf16.msra.mxu0 0
        %1505 = vmatprep.subr.bf16.mxu0 0
        %1506 = vmatpush1.bf16.msra.mxu0 0
        %1507 = vmatprep.mubr.bf16.mxu0 0
        %1508 = vmatmul.mubr.bf16.gmra.mrb[0].mxu0 %v953
        %v1509 = vpop.f32.mrb[0].mxu0
        %v1510 = vadd.f32 %v922, %v1509
        %v1511 = vpop.f32.mrb[0].mxu0
        %v1512 = vpop.f32.mrb[0].mxu0
        %v1513 = vpop.f32.mrb[0].mxu0
        %1514 = vdwg.mxu0
        %v1519 = vunpack.c.l.b16 %v851
        %v1520 = vunpack.c.l.b16 %v852
        %v1521 = vunpack.c.l.b16 %v853
        %v1522 = vunpack.c.l.b16 %v854
        %v1523 = vpack.c.b16 %v1520, %v1519
        %v1524 = vpack.c.b16 %v1522, %v1521
        %1527 = vmatprep.subr.bf16.mxu0 0
        %1528 = vmatpush1.bf16.msra.mxu0 %v1523
        %1529 = vmatprep.subr.bf16.mxu0 0
        %1530 = vmatpush1.bf16.msra.mxu0 %v1524
        %1531 = vmatprep.subr.bf16.mxu0 0
        %1532 = vmatpush1.bf16.msra.mxu0 0
        %1533 = vmatprep.subr.bf16.mxu0 0
        %1534 = vmatpush1.bf16.msra.mxu0 0
        %1535 = vmatprep.subr.bf16.mxu0 0
        %1536 = vmatpush1.bf16.msra.mxu0 0
        %1537 = vmatprep.subr.bf16.mxu0 0
        %1538 = vmatpush1.bf16.msra.mxu0 0
        %1539 = vmatprep.subr.bf16.mxu0 0
        %1540 = vmatpush1.bf16.msra.mxu0 0
        %1541 = vmatprep.subr.bf16.mxu0 0
        %1542 = vmatpush1.bf16.msra.mxu0 0
        %1543 = vmatprep.subr.bf16.mxu0 0
        %1544 = vmatpush1.bf16.msra.mxu0 0
        %1545 = vmatprep.subr.bf16.mxu0 0
        %1546 = vmatpush1.bf16.msra.mxu0 0
        %1547 = vmatprep.subr.bf16.mxu0 0
        %1548 = vmatpush1.bf16.msra.mxu0 0
        %1549 = vmatprep.subr.bf16.mxu0 0
        %1550 = vmatpush1.bf16.msra.mxu0 0
        %1551 = vmatprep.subr.bf16.mxu0 0
        %1552 = vmatpush1.bf16.msra.mxu0 0
        %1553 = vmatprep.subr.bf16.mxu0 0
        %1554 = vmatpush1.bf16.msra.mxu0 0
        %1555 = vmatprep.subr.bf16.mxu0 0
        %1556 = vmatpush1.bf16.msra.mxu0 0
        %1557 = vmatprep.subr.bf16.mxu0 0
        %1558 = vmatpush1.bf16.msra.mxu0 0
        %1559 = vmatprep.mubr.bf16.mxu0 0
        %1560 = vmatmul.mubr.bf16.gmra.mrb[0].mxu0 %v953
        %v1561 = vpop.f32.mrb[0].mxu0
        %v1562 = vadd.f32 %v926, %v1561
        %v1563 = vpop.f32.mrb[0].mxu0
        %v1564 = vpop.f32.mrb[0].mxu0
        %v1565 = vpop.f32.mrb[0].mxu0
        %1566 = vdwg.mxu0
        %v1567 = vpack.c.bf16 %v990, %v990
        %v1568 = vpack.c.bf16 %v1042, %v1042
        %v1569 = vpack.c.bf16 %v1094, %v1094
        %v1570 = vpack.c.bf16 %v1146, %v1146
        %v1571 = vpack.c.bf16 %v1198, %v1198
        %v1572 = vpack.c.bf16 %v1250, %v1250
        %v1573 = vpack.c.bf16 %v1302, %v1302
        %v1574 = vpack.c.bf16 %v1354, %v1354
        %vm1575 = vcmask 64512
        %v1577 = vsel %vm1575, %v1567, 0
        %v1580 = vsel %vm1575, %v1571, 0
        %1582 = vmatprep.subr.bf16.mxu0 0
        %1583 = vmatpush1.bf16.xpose.msra.mxu0 %v1580
        %1584 = vmatprep.subr.bf16.mxu0 0
        %1585 = vmatpush1.bf16.xpose.msra.mxu0 0
        %1586 = vmatprep.subr.bf16.mxu0 0
        %1587 = vmatpush1.bf16.xpose.msra.mxu0 0
        %1588 = vmatprep.subr.bf16.mxu0 0
        %1589 = vmatpush1.bf16.xpose.msra.mxu0 0
        %1590 = vmatprep.subr.bf16.mxu0 0
        %1591 = vmatpush1.bf16.xpose.msra.mxu0 0
        %1592 = vmatprep.subr.bf16.mxu0 0
        %1593 = vmatpush1.bf16.xpose.msra.mxu0 0
        %1594 = vmatprep.subr.bf16.mxu0 0
        %1595 = vmatpush1.bf16.xpose.msra.mxu0 0
        %1596 = vmatprep.subr.bf16.mxu0 0
        %1597 = vmatpush1.bf16.xpose.msra.mxu0 0
        %1598 = vmatprep.subr.bf16.mxu0 0
        %1599 = vmatpush1.bf16.xpose.msra.mxu0 0
        %1600 = vmatprep.subr.bf16.mxu0 0
        %1601 = vmatpush1.bf16.xpose.msra.mxu0 0
        %1602 = vmatprep.subr.bf16.mxu0 0
        %1603 = vmatpush1.bf16.xpose.msra.mxu0 0
        %1604 = vmatprep.subr.bf16.mxu0 0
        %1605 = vmatpush1.bf16.xpose.msra.mxu0 0
        %1606 = vmatprep.subr.bf16.mxu0 0
        %1607 = vmatpush1.bf16.xpose.msra.mxu0 0
        %1608 = vmatprep.subr.bf16.mxu0 0
        %1609 = vmatpush1.bf16.xpose.msra.mxu0 0
        %1610 = vmatprep.subr.bf16.mxu0 0
        %1611 = vmatpush1.bf16.xpose.msra.mxu0 0
        %1612 = vmatprep.subr.bf16.mxu0 0
        %1613 = vmatpush1.bf16.xpose.msra.mxu0 0
        %1614 = vmatprep.mubr.bf16.mxu0 0
        %1615 = vmatmul.mubr.bf16.gmra.mrb[0].mxu0 %v1577
        %v1616 = vpop.f32.mrb[0].mxu0
        %v1617 = vadd.f32 0.0, %v1616
        %v1618 = vpop.f32.mrb[0].mxu0
        %v1619 = vpop.f32.mrb[0].mxu0
        %v1620 = vpop.f32.mrb[0].mxu0
        %1621 = vdwg.mxu0
        %v1623 = vsel %vm1575, %v1568, 0
        %v1626 = vsel %vm1575, %v1572, 0
        %1628 = vmatprep.subr.bf16.mxu0 0
        %1629 = vmatpush1.bf16.xpose.msra.mxu0 %v1626
        %1630 = vmatprep.subr.bf16.mxu0 0
        %1631 = vmatpush1.bf16.xpose.msra.mxu0 0
        %1632 = vmatprep.subr.bf16.mxu0 0
        %1633 = vmatpush1.bf16.xpose.msra.mxu0 0
        %1634 = vmatprep.subr.bf16.mxu0 0
        %1635 = vmatpush1.bf16.xpose.msra.mxu0 0
        %1636 = vmatprep.subr.bf16.mxu0 0
        %1637 = vmatpush1.bf16.xpose.msra.mxu0 0
        %1638 = vmatprep.subr.bf16.mxu0 0
        %1639 = vmatpush1.bf16.xpose.msra.mxu0 0
        %1640 = vmatprep.subr.bf16.mxu0 0
        %1641 = vmatpush1.bf16.xpose.msra.mxu0 0
        %1642 = vmatprep.subr.bf16.mxu0 0
        %1643 = vmatpush1.bf16.xpose.msra.mxu0 0
        %1644 = vmatprep.subr.bf16.mxu0 0
        %1645 = vmatpush1.bf16.xpose.msra.mxu0 0
        %1646 = vmatprep.subr.bf16.mxu0 0
        %1647 = vmatpush1.bf16.xpose.msra.mxu0 0
        %1648 = vmatprep.subr.bf16.mxu0 0
        %1649 = vmatpush1.bf16.xpose.msra.mxu0 0
        %1650 = vmatprep.subr.bf16.mxu0 0
        %1651 = vmatpush1.bf16.xpose.msra.mxu0 0
        %1652 = vmatprep.subr.bf16.mxu0 0
        %1653 = vmatpush1.bf16.xpose.msra.mxu0 0
        %1654 = vmatprep.subr.bf16.mxu0 0
        %1655 = vmatpush1.bf16.xpose.msra.mxu0 0
        %1656 = vmatprep.subr.bf16.mxu0 0
        %1657 = vmatpush1.bf16.xpose.msra.mxu0 0
        %1658 = vmatprep.subr.bf16.mxu0 0
        %1659 = vmatpush1.bf16.xpose.msra.mxu0 0
        %1660 = vmatprep.mubr.bf16.mxu0 0
        %1661 = vmatmul.mubr.bf16.gmra.mrb[0].mxu0 %v1623
        %v1662 = vpop.f32.mrb[0].mxu0
        %v1663 = vadd.f32 0.0, %v1662
        %v1664 = vpop.f32.mrb[0].mxu0
        %v1665 = vpop.f32.mrb[0].mxu0
        %v1666 = vpop.f32.mrb[0].mxu0
        %1667 = vdwg.mxu0
        %v1669 = vsel %vm1575, %v1569, 0
        %v1672 = vsel %vm1575, %v1573, 0
        %1674 = vmatprep.subr.bf16.mxu0 0
        %1675 = vmatpush1.bf16.xpose.msra.mxu0 %v1672
        %1676 = vmatprep.subr.bf16.mxu0 0
        %1677 = vmatpush1.bf16.xpose.msra.mxu0 0
        %1678 = vmatprep.subr.bf16.mxu0 0
        %1679 = vmatpush1.bf16.xpose.msra.mxu0 0
        %1680 = vmatprep.subr.bf16.mxu0 0
        %1681 = vmatpush1.bf16.xpose.msra.mxu0 0
        %1682 = vmatprep.subr.bf16.mxu0 0
        %1683 = vmatpush1.bf16.xpose.msra.mxu0 0
        %1684 = vmatprep.subr.bf16.mxu0 0
        %1685 = vmatpush1.bf16.xpose.msra.mxu0 0
        %1686 = vmatprep.subr.bf16.mxu0 0
        %1687 = vmatpush1.bf16.xpose.msra.mxu0 0
        %1688 = vmatprep.subr.bf16.mxu0 0
        %1689 = vmatpush1.bf16.xpose.msra.mxu0 0
        %1690 = vmatprep.subr.bf16.mxu0 0
        %1691 = vmatpush1.bf16.xpose.msra.mxu0 0
        %1692 = vmatprep.subr.bf16.mxu0 0
        %1693 = vmatpush1.bf16.xpose.msra.mxu0 0
        %1694 = vmatprep.subr.bf16.mxu0 0
        %1695 = vmatpush1.bf16.xpose.msra.mxu0 0
        %1696 = vmatprep.subr.bf16.mxu0 0
        %1697 = vmatpush1.bf16.xpose.msra.mxu0 0
        %1698 = vmatprep.subr.bf16.mxu0 0
        %1699 = vmatpush1.bf16.xpose.msra.mxu0 0
        %1700 = vmatprep.subr.bf16.mxu0 0
        %1701 = vmatpush1.bf16.xpose.msra.mxu0 0
        %1702 = vmatprep.subr.bf16.mxu0 0
        %1703 = vmatpush1.bf16.xpose.msra.mxu0 0
        %1704 = vmatprep.subr.bf16.mxu0 0
        %1705 = vmatpush1.bf16.xpose.msra.mxu0 0
        %1706 = vmatprep.mubr.bf16.mxu0 0
        %1707 = vmatmul.mubr.bf16.gmra.mrb[0].mxu0 %v1669
        %v1708 = vpop.f32.mrb[0].mxu0
        %v1709 = vadd.f32 0.0, %v1708
        %v1710 = vpop.f32.mrb[0].mxu0
        %v1711 = vpop.f32.mrb[0].mxu0
        %v1712 = vpop.f32.mrb[0].mxu0
        %1713 = vdwg.mxu0
        %v1715 = vsel %vm1575, %v1570, 0
        %v1718 = vsel %vm1575, %v1574, 0
        %1720 = vmatprep.subr.bf16.mxu0 0
        %1721 = vmatpush1.bf16.xpose.msra.mxu0 %v1718
        %1722 = vmatprep.subr.bf16.mxu0 0
        %1723 = vmatpush1.bf16.xpose.msra.mxu0 0
        %1724 = vmatprep.subr.bf16.mxu0 0
        %1725 = vmatpush1.bf16.xpose.msra.mxu0 0
        %1726 = vmatprep.subr.bf16.mxu0 0
        %1727 = vmatpush1.bf16.xpose.msra.mxu0 0
        %1728 = vmatprep.subr.bf16.mxu0 0
        %1729 = vmatpush1.bf16.xpose.msra.mxu0 0
        %1730 = vmatprep.subr.bf16.mxu0 0
        %1731 = vmatpush1.bf16.xpose.msra.mxu0 0
        %1732 = vmatprep.subr.bf16.mxu0 0
        %1733 = vmatpush1.bf16.xpose.msra.mxu0 0
        %1734 = vmatprep.subr.bf16.mxu0 0
        %1735 = vmatpush1.bf16.xpose.msra.mxu0 0
        %1736 = vmatprep.subr.bf16.mxu0 0
        %1737 = vmatpush1.bf16.xpose.msra.mxu0 0
        %1738 = vmatprep.subr.bf16.mxu0 0
        %1739 = vmatpush1.bf16.xpose.msra.mxu0 0
        %1740 = vmatprep.subr.bf16.mxu0 0
        %1741 = vmatpush1.bf16.xpose.msra.mxu0 0
        %1742 = vmatprep.subr.bf16.mxu0 0
        %1743 = vmatpush1.bf16.xpose.msra.mxu0 0
        %1744 = vmatprep.subr.bf16.mxu0 0
        %1745 = vmatpush1.bf16.xpose.msra.mxu0 0
        %1746 = vmatprep.subr.bf16.mxu0 0
        %1747 = vmatpush1.bf16.xpose.msra.mxu0 0
        %1748 = vmatprep.subr.bf16.mxu0 0
        %1749 = vmatpush1.bf16.xpose.msra.mxu0 0
        %1750 = vmatprep.subr.bf16.mxu0 0
        %1751 = vmatpush1.bf16.xpose.msra.mxu0 0
        %1752 = vmatprep.mubr.bf16.mxu0 0
        %1753 = vmatmul.mubr.bf16.gmra.mrb[0].mxu0 %v1715
        %v1754 = vpop.f32.mrb[0].mxu0
        %v1755 = vadd.f32 0.0, %v1754
        %v1756 = vpop.f32.mrb[0].mxu0
        %v1757 = vpop.f32.mrb[0].mxu0
        %v1758 = vpop.f32.mrb[0].mxu0
        %1759 = vdwg.mxu0
        %v1760 = vsel %vm1575, %v1617, -inf
        %1761 = vmax.xlane.f32.xlu0 %v1760
        %v1762 = vpop.xlane.xlu0 %1761
        %v1763 = vsel %vm1575, %v1663, -inf
        %1764 = vmax.xlane.f32.xlu0 %v1763
        %v1765 = vpop.xlane.xlu0 %1764
        %v1766 = vsel %vm1575, %v1709, -inf
        %1767 = vmax.xlane.f32.xlu0 %v1766
        %v1768 = vpop.xlane.xlu0 %1767
        %v1769 = vsel %vm1575, %v1755, -inf
        %1770 = vmax.xlane.f32.xlu0 %v1769
        %v1771 = vpop.xlane.xlu0 %1770
        %v1772 = vsub.f32 %v1617, %v1762
        %v1773 = vsub.f32 %v1663, %v1765
        %v1774 = vsub.f32 %v1709, %v1768
        %v1775 = vsub.f32 %v1755, %v1771
        %v1776 = vmul.f32 %v1772, 1.442695
        %v1777 = vpow.pop %v1776
        %v1778 = vmul.f32 %v1773, 1.442695
        %v1779 = vpow.pop %v1778
        %v1780 = vmul.f32 %v1774, 1.442695
        %v1781 = vpow.pop %v1780
        %v1782 = vmul.f32 %v1775, 1.442695
        %v1783 = vpow.pop %v1782
        %v1784 = vsel %vm1575, %v1777, 0.0
        %1785 = vadd.xlane.f32.xlu0 %v1784
        %v1786 = vpop.xlane.xlu0 %1785
        %v1787 = vsel %vm1575, %v1779, 0.0
        %1788 = vadd.xlane.f32.xlu0 %v1787
        %v1789 = vpop.xlane.xlu0 %1788
        %v1790 = vsel %vm1575, %v1781, 0.0
        %1791 = vadd.xlane.f32.xlu0 %v1790
        %v1792 = vpop.xlane.xlu0 %1791
        %v1793 = vsel %vm1575, %v1783, 0.0
        %1794 = vadd.xlane.f32.xlu0 %v1793
        %v1795 = vpop.xlane.xlu0 %1794
        %v1796 = vrcp.pop %v1786
        %v1797 = vmul.f32 %v1777, %v1796
        %v1798 = vrcp.pop %v1789
        %v1799 = vmul.f32 %v1779, %v1798
        %v1800 = vrcp.pop %v1792
        %v1801 = vmul.f32 %v1781, %v1800
        %v1802 = vrcp.pop %v1795
        %v1803 = vmul.f32 %v1783, %v1802
        %v1804 = vpack.c.bf16 %v1797, %v1797
        %v1805 = vpack.c.bf16 %v1799, %v1799
        %v1806 = vpack.c.bf16 %v1801, %v1801
        %v1807 = vpack.c.bf16 %v1803, %v1803
        %v1808 = vpack.c.bf16 %v1406, %v1406
        %v1809 = vpack.c.bf16 %v1458, %v1458
        %v1810 = vpack.c.bf16 %v1510, %v1510
        %v1811 = vpack.c.bf16 %v1562, %v1562
        %v1813 = vsel %vm1575, %v1804, 0
        %vm1815 = vcmask 1043456
        %v1817 = vsel %vm1815, %v1808, 0
        %1819 = vmatprep.subr.bf16.mxu0 0
        %1820 = vmatpush1.bf16.msra.mxu0 %v1817
        %1821 = vmatprep.subr.bf16.mxu0 0
        %1822 = vmatpush1.bf16.msra.mxu0 0
        %1823 = vmatprep.subr.bf16.mxu0 0
        %1824 = vmatpush1.bf16.msra.mxu0 0
        %1825 = vmatprep.subr.bf16.mxu0 0
        %1826 = vmatpush1.bf16.msra.mxu0 0
        %1827 = vmatprep.subr.bf16.mxu0 0
        %1828 = vmatpush1.bf16.msra.mxu0 0
        %1829 = vmatprep.subr.bf16.mxu0 0
        %1830 = vmatpush1.bf16.msra.mxu0 0
        %1831 = vmatprep.subr.bf16.mxu0 0
        %1832 = vmatpush1.bf16.msra.mxu0 0
        %1833 = vmatprep.subr.bf16.mxu0 0
        %1834 = vmatpush1.bf16.msra.mxu0 0
        %1835 = vmatprep.subr.bf16.mxu0 0
        %1836 = vmatpush1.bf16.msra.mxu0 0
        %1837 = vmatprep.subr.bf16.mxu0 0
        %1838 = vmatpush1.bf16.msra.mxu0 0
        %1839 = vmatprep.subr.bf16.mxu0 0
        %1840 = vmatpush1.bf16.msra.mxu0 0
        %1841 = vmatprep.subr.bf16.mxu0 0
        %1842 = vmatpush1.bf16.msra.mxu0 0
        %1843 = vmatprep.subr.bf16.mxu0 0
        %1844 = vmatpush1.bf16.msra.mxu0 0
        %1845 = vmatprep.subr.bf16.mxu0 0
        %1846 = vmatpush1.bf16.msra.mxu0 0
        %1847 = vmatprep.subr.bf16.mxu0 0
        %1848 = vmatpush1.bf16.msra.mxu0 0
        %1849 = vmatprep.subr.bf16.mxu0 0
        %1850 = vmatpush1.bf16.msra.mxu0 0
        %1851 = vmatprep.mubr.bf16.mxu0 0
        %1852 = vmatmul.mubr.bf16.gmra.mrb[0].mxu0 %v1813
        %v1853 = vpop.f32.mrb[0].mxu0
        %v1854 = vadd.f32 0.0, %v1853
        %v1855 = vpop.f32.mrb[0].mxu0
        %v1856 = vpop.f32.mrb[0].mxu0
        %v1857 = vpop.f32.mrb[0].mxu0
        %1858 = vdwg.mxu0
        %v1860 = vsel %vm1575, %v1805, 0
        %v1863 = vsel %vm1815, %v1809, 0
        %1865 = vmatprep.subr.bf16.mxu0 0
        %1866 = vmatpush1.bf16.msra.mxu0 %v1863
        %1867 = vmatprep.subr.bf16.mxu0 0
        %1868 = vmatpush1.bf16.msra.mxu0 0
        %1869 = vmatprep.subr.bf16.mxu0 0
        %1870 = vmatpush1.bf16.msra.mxu0 0
        %1871 = vmatprep.subr.bf16.mxu0 0
        %1872 = vmatpush1.bf16.msra.mxu0 0
        %1873 = vmatprep.subr.bf16.mxu0 0
        %1874 = vmatpush1.bf16.msra.mxu0 0
        %1875 = vmatprep.subr.bf16.mxu0 0
        %1876 = vmatpush1.bf16.msra.mxu0 0
        %1877 = vmatprep.subr.bf16.mxu0 0
        %1878 = vmatpush1.bf16.msra.mxu0 0
        %1879 = vmatprep.subr.bf16.mxu0 0
        %1880 = vmatpush1.bf16.msra.mxu0 0
        %1881 = vmatprep.subr.bf16.mxu0 0
        %1882 = vmatpush1.bf16.msra.mxu0 0
        %1883 = vmatprep.subr.bf16.mxu0 0
        %1884 = vmatpush1.bf16.msra.mxu0 0
        %1885 = vmatprep.subr.bf16.mxu0 0
        %1886 = vmatpush1.bf16.msra.mxu0 0
        %1887 = vmatprep.subr.bf16.mxu0 0
        %1888 = vmatpush1.bf16.msra.mxu0 0
        %1889 = vmatprep.subr.bf16.mxu0 0
        %1890 = vmatpush1.bf16.msra.mxu0 0
        %1891 = vmatprep.subr.bf16.mxu0 0
        %1892 = vmatpush1.bf16.msra.mxu0 0
        %1893 = vmatprep.subr.bf16.mxu0 0
        %1894 = vmatpush1.bf16.msra.mxu0 0
        %1895 = vmatprep.subr.bf16.mxu0 0
        %1896 = vmatpush1.bf16.msra.mxu0 0
        %1897 = vmatprep.mubr.bf16.mxu0 0
        %1898 = vmatmul.mubr.bf16.gmra.mrb[0].mxu0 %v1860
        %v1899 = vpop.f32.mrb[0].mxu0
        %v1900 = vadd.f32 0.0, %v1899
        %v1901 = vpop.f32.mrb[0].mxu0
        %v1902 = vpop.f32.mrb[0].mxu0
        %v1903 = vpop.f32.mrb[0].mxu0
        %1904 = vdwg.mxu0
        %v1906 = vsel %vm1575, %v1806, 0
        %v1909 = vsel %vm1815, %v1810, 0
        %1911 = vmatprep.subr.bf16.mxu0 0
        %1912 = vmatpush1.bf16.msra.mxu0 %v1909
        %1913 = vmatprep.subr.bf16.mxu0 0
        %1914 = vmatpush1.bf16.msra.mxu0 0
        %1915 = vmatprep.subr.bf16.mxu0 0
        %1916 = vmatpush1.bf16.msra.mxu0 0
        %1917 = vmatprep.subr.bf16.mxu0 0
        %1918 = vmatpush1.bf16.msra.mxu0 0
        %1919 = vmatprep.subr.bf16.mxu0 0
        %1920 = vmatpush1.bf16.msra.mxu0 0
        %1921 = vmatprep.subr.bf16.mxu0 0
        %1922 = vmatpush1.bf16.msra.mxu0 0
        %1923 = vmatprep.subr.bf16.mxu0 0
        %1924 = vmatpush1.bf16.msra.mxu0 0
        %1925 = vmatprep.subr.bf16.mxu0 0
        %1926 = vmatpush1.bf16.msra.mxu0 0
        %1927 = vmatprep.subr.bf16.mxu0 0
        %1928 = vmatpush1.bf16.msra.mxu0 0
        %1929 = vmatprep.subr.bf16.mxu0 0
        %1930 = vmatpush1.bf16.msra.mxu0 0
        %1931 = vmatprep.subr.bf16.mxu0 0
        %1932 = vmatpush1.bf16.msra.mxu0 0
        %1933 = vmatprep.subr.bf16.mxu0 0
        %1934 = vmatpush1.bf16.msra.mxu0 0
        %1935 = vmatprep.subr.bf16.mxu0 0
        %1936 = vmatpush1.bf16.msra.mxu0 0
        %1937 = vmatprep.subr.bf16.mxu0 0
        %1938 = vmatpush1.bf16.msra.mxu0 0
        %1939 = vmatprep.subr.bf16.mxu0 0
        %1940 = vmatpush1.bf16.msra.mxu0 0
        %1941 = vmatprep.subr.bf16.mxu0 0
        %1942 = vmatpush1.bf16.msra.mxu0 0
        %1943 = vmatprep.mubr.bf16.mxu0 0
        %1944 = vmatmul.mubr.bf16.gmra.mrb[0].mxu0 %v1906
        %v1945 = vpop.f32.mrb[0].mxu0
        %v1946 = vadd.f32 0.0, %v1945
        %v1947 = vpop.f32.mrb[0].mxu0
        %v1948 = vpop.f32.mrb[0].mxu0
        %v1949 = vpop.f32.mrb[0].mxu0
        %1950 = vdwg.mxu0
        %v1952 = vsel %vm1575, %v1807, 0
        %v1955 = vsel %vm1815, %v1811, 0
        %1957 = vmatprep.subr.bf16.mxu0 0
        %1958 = vmatpush1.bf16.msra.mxu0 %v1955
        %1959 = vmatprep.subr.bf16.mxu0 0
        %1960 = vmatpush1.bf16.msra.mxu0 0
        %1961 = vmatprep.subr.bf16.mxu0 0
        %1962 = vmatpush1.bf16.msra.mxu0 0
        %1963 = vmatprep.subr.bf16.mxu0 0
        %1964 = vmatpush1.bf16.msra.mxu0 0
        %1965 = vmatprep.subr.bf16.mxu0 0
        %1966 = vmatpush1.bf16.msra.mxu0 0
        %1967 = vmatprep.subr.bf16.mxu0 0
        %1968 = vmatpush1.bf16.msra.mxu0 0
        %1969 = vmatprep.subr.bf16.mxu0 0
        %1970 = vmatpush1.bf16.msra.mxu0 0
        %1971 = vmatprep.subr.bf16.mxu0 0
        %1972 = vmatpush1.bf16.msra.mxu0 0
        %1973 = vmatprep.subr.bf16.mxu0 0
        %1974 = vmatpush1.bf16.msra.mxu0 0
        %1975 = vmatprep.subr.bf16.mxu0 0
        %1976 = vmatpush1.bf16.msra.mxu0 0
        %1977 = vmatprep.subr.bf16.mxu0 0
        %1978 = vmatpush1.bf16.msra.mxu0 0
        %1979 = vmatprep.subr.bf16.mxu0 0
        %1980 = vmatpush1.bf16.msra.mxu0 0
        %1981 = vmatprep.subr.bf16.mxu0 0
        %1982 = vmatpush1.bf16.msra.mxu0 0
        %1983 = vmatprep.subr.bf16.mxu0 0
        %1984 = vmatpush1.bf16.msra.mxu0 0
        %1985 = vmatprep.subr.bf16.mxu0 0
        %1986 = vmatpush1.bf16.msra.mxu0 0
        %1987 = vmatprep.subr.bf16.mxu0 0
        %1988 = vmatpush1.bf16.msra.mxu0 0
        %1989 = vmatprep.mubr.bf16.mxu0 0
        %1990 = vmatmul.mubr.bf16.gmra.mrb[0].mxu0 %v1952
        %v1991 = vpop.f32.mrb[0].mxu0
        %v1992 = vadd.f32 0.0, %v1991
        %v1993 = vpop.f32.mrb[0].mxu0
        %v1994 = vpop.f32.mrb[0].mxu0
        %v1995 = vpop.f32.mrb[0].mxu0
        %1996 = vdwg.mxu0
        %v1997 = vld [vmem:[%s646] sm:$0xf]
        %v1998 = vld [vmem:[%s646 + $0x4] sm:$0xf]
        %v1999 = vld [vmem:[%s646 + $0x8] sm:$0xf]
        %v2000 = vld [vmem:[%s646 + $0xc] sm:$0xf]
        %v2001 = vld [vmem:[%s771] sm:$0x1]
        %v2002 = vpack.c.bf16 %v1854, %v1854
        %v2003 = vpack.c.bf16 %v1900, %v1900
        %v2004 = vpack.c.bf16 %v1946, %v1946
        %v2005 = vpack.c.bf16 %v1992, %v1992
        %v2007 = vsel %vm1575, %v2002, 0
        %v2010 = vsel %vm1815, %v1997, 0
        %2012 = vmatprep.subr.bf16.mxu0 0
        %2013 = vmatpush1.bf16.msra.mxu0 %v2010
        %2014 = vmatprep.subr.bf16.mxu0 0
        %2015 = vmatpush1.bf16.msra.mxu0 0
        %2016 = vmatprep.subr.bf16.mxu0 0
        %2017 = vmatpush1.bf16.msra.mxu0 0
        %2018 = vmatprep.subr.bf16.mxu0 0
        %2019 = vmatpush1.bf16.msra.mxu0 0
        %2020 = vmatprep.subr.bf16.mxu0 0
        %2021 = vmatpush1.bf16.msra.mxu0 0
        %2022 = vmatprep.subr.bf16.mxu0 0
        %2023 = vmatpush1.bf16.msra.mxu0 0
        %2024 = vmatprep.subr.bf16.mxu0 0
        %2025 = vmatpush1.bf16.msra.mxu0 0
        %2026 = vmatprep.subr.bf16.mxu0 0
        %2027 = vmatpush1.bf16.msra.mxu0 0
        %2028 = vmatprep.subr.bf16.mxu0 0
        %2029 = vmatpush1.bf16.msra.mxu0 0
        %2030 = vmatprep.subr.bf16.mxu0 0
        %2031 = vmatpush1.bf16.msra.mxu0 0
        %2032 = vmatprep.subr.bf16.mxu0 0
        %2033 = vmatpush1.bf16.msra.mxu0 0
        %2034 = vmatprep.subr.bf16.mxu0 0
        %2035 = vmatpush1.bf16.msra.mxu0 0
        %2036 = vmatprep.subr.bf16.mxu0 0
        %2037 = vmatpush1.bf16.msra.mxu0 0
        %2038 = vmatprep.subr.bf16.mxu0 0
        %2039 = vmatpush1.bf16.msra.mxu0 0
        %2040 = vmatprep.subr.bf16.mxu0 0
        %2041 = vmatpush1.bf16.msra.mxu0 0
        %2042 = vmatprep.subr.bf16.mxu0 0
        %2043 = vmatpush1.bf16.msra.mxu0 0
        %2044 = vmatprep.mubr.bf16.mxu0 0
        %2045 = vmatmul.mubr.bf16.gmra.mrb[0].mxu0 %v2007
        %v2046 = vpop.f32.mrb[0].mxu0
        %v2047 = vadd.f32 0.0, %v2046
        %v2048 = vpop.f32.mrb[0].mxu0
        %v2049 = vpop.f32.mrb[0].mxu0
        %v2050 = vpop.f32.mrb[0].mxu0
        %2051 = vdwg.mxu0
        %v2053 = vsel %vm1575, %v2003, 0
        %v2056 = vsel %vm1815, %v1998, 0
        %2058 = vmatprep.subr.bf16.mxu0 0
        %2059 = vmatpush1.bf16.msra.mxu0 %v2056
        %2060 = vmatprep.subr.bf16.mxu0 0
        %2061 = vmatpush1.bf16.msra.mxu0 0
        %2062 = vmatprep.subr.bf16.mxu0 0
        %2063 = vmatpush1.bf16.msra.mxu0 0
        %2064 = vmatprep.subr.bf16.mxu0 0
        %2065 = vmatpush1.bf16.msra.mxu0 0
        %2066 = vmatprep.subr.bf16.mxu0 0
        %2067 = vmatpush1.bf16.msra.mxu0 0
        %2068 = vmatprep.subr.bf16.mxu0 0
        %2069 = vmatpush1.bf16.msra.mxu0 0
        %2070 = vmatprep.subr.bf16.mxu0 0
        %2071 = vmatpush1.bf16.msra.mxu0 0
        %2072 = vmatprep.subr.bf16.mxu0 0
        %2073 = vmatpush1.bf16.msra.mxu0 0
        %2074 = vmatprep.subr.bf16.mxu0 0
        %2075 = vmatpush1.bf16.msra.mxu0 0
        %2076 = vmatprep.subr.bf16.mxu0 0
        %2077 = vmatpush1.bf16.msra.mxu0 0
        %2078 = vmatprep.subr.bf16.mxu0 0
        %2079 = vmatpush1.bf16.msra.mxu0 0
        %2080 = vmatprep.subr.bf16.mxu0 0
        %2081 = vmatpush1.bf16.msra.mxu0 0
        %2082 = vmatprep.subr.bf16.mxu0 0
        %2083 = vmatpush1.bf16.msra.mxu0 0
        %2084 = vmatprep.subr.bf16.mxu0 0
        %2085 = vmatpush1.bf16.msra.mxu0 0
        %2086 = vmatprep.subr.bf16.mxu0 0
        %2087 = vmatpush1.bf16.msra.mxu0 0
        %2088 = vmatprep.subr.bf16.mxu0 0
        %2089 = vmatpush1.bf16.msra.mxu0 0
        %2090 = vmatprep.mubr.bf16.mxu0 0
        %2091 = vmatmul.mubr.bf16.gmra.mrb[0].mxu0 %v2053
        %v2092 = vpop.f32.mrb[0].mxu0
        %v2093 = vadd.f32 0.0, %v2092
        %v2094 = vpop.f32.mrb[0].mxu0
        %v2095 = vpop.f32.mrb[0].mxu0
        %v2096 = vpop.f32.mrb[0].mxu0
        %2097 = vdwg.mxu0
        %v2099 = vsel %vm1575, %v2004, 0
        %v2102 = vsel %vm1815, %v1999, 0
        %2104 = vmatprep.subr.bf16.mxu0 0
        %2105 = vmatpush1.bf16.msra.mxu0 %v2102
        %2106 = vmatprep.subr.bf16.mxu0 0
        %2107 = vmatpush1.bf16.msra.mxu0 0
        %2108 = vmatprep.subr.bf16.mxu0 0
        %2109 = vmatpush1.bf16.msra.mxu0 0
        %2110 = vmatprep.subr.bf16.mxu0 0
        %2111 = vmatpush1.bf16.msra.mxu0 0
        %2112 = vmatprep.subr.bf16.mxu0 0
        %2113 = vmatpush1.bf16.msra.mxu0 0
        %2114 = vmatprep.subr.bf16.mxu0 0
        %2115 = vmatpush1.bf16.msra.mxu0 0
        %2116 = vmatprep.subr.bf16.mxu0 0
        %2117 = vmatpush1.bf16.msra.mxu0 0
        %2118 = vmatprep.subr.bf16.mxu0 0
        %2119 = vmatpush1.bf16.msra.mxu0 0
        %2120 = vmatprep.subr.bf16.mxu0 0
        %2121 = vmatpush1.bf16.msra.mxu0 0
        %2122 = vmatprep.subr.bf16.mxu0 0
        %2123 = vmatpush1.bf16.msra.mxu0 0
        %2124 = vmatprep.subr.bf16.mxu0 0
        %2125 = vmatpush1.bf16.msra.mxu0 0
        %2126 = vmatprep.subr.bf16.mxu0 0
        %2127 = vmatpush1.bf16.msra.mxu0 0
        %2128 = vmatprep.subr.bf16.mxu0 0
        %2129 = vmatpush1.bf16.msra.mxu0 0
        %2130 = vmatprep.subr.bf16.mxu0 0
        %2131 = vmatpush1.bf16.msra.mxu0 0
        %2132 = vmatprep.subr.bf16.mxu0 0
        %2133 = vmatpush1.bf16.msra.mxu0 0
        %2134 = vmatprep.subr.bf16.mxu0 0
        %2135 = vmatpush1.bf16.msra.mxu0 0
        %2136 = vmatprep.mubr.bf16.mxu0 0
        %2137 = vmatmul.mubr.bf16.gmra.mrb[0].mxu0 %v2099
        %v2138 = vpop.f32.mrb[0].mxu0
        %v2139 = vadd.f32 0.0, %v2138
        %v2140 = vpop.f32.mrb[0].mxu0
        %v2141 = vpop.f32.mrb[0].mxu0
        %v2142 = vpop.f32.mrb[0].mxu0
        %2143 = vdwg.mxu0
        %v2145 = vsel %vm1575, %v2005, 0
        %v2148 = vsel %vm1815, %v2000, 0
        %2150 = vmatprep.subr.bf16.mxu0 0
        %2151 = vmatpush1.bf16.msra.mxu0 %v2148
        %2152 = vmatprep.subr.bf16.mxu0 0
        %2153 = vmatpush1.bf16.msra.mxu0 0
        %2154 = vmatprep.subr.bf16.mxu0 0
        %2155 = vmatpush1.bf16.msra.mxu0 0
        %2156 = vmatprep.subr.bf16.mxu0 0
        %2157 = vmatpush1.bf16.msra.mxu0 0
        %2158 = vmatprep.subr.bf16.mxu0 0
        %2159 = vmatpush1.bf16.msra.mxu0 0
        %2160 = vmatprep.subr.bf16.mxu0 0
        %2161 = vmatpush1.bf16.msra.mxu0 0
        %2162 = vmatprep.subr.bf16.mxu0 0
        %2163 = vmatpush1.bf16.msra.mxu0 0
        %2164 = vmatprep.subr.bf16.mxu0 0
        %2165 = vmatpush1.bf16.msra.mxu0 0
        %2166 = vmatprep.subr.bf16.mxu0 0
        %2167 = vmatpush1.bf16.msra.mxu0 0
        %2168 = vmatprep.subr.bf16.mxu0 0
        %2169 = vmatpush1.bf16.msra.mxu0 0
        %2170 = vmatprep.subr.bf16.mxu0 0
        %2171 = vmatpush1.bf16.msra.mxu0 0
        %2172 = vmatprep.subr.bf16.mxu0 0
        %2173 = vmatpush1.bf16.msra.mxu0 0
        %2174 = vmatprep.subr.bf16.mxu0 0
        %2175 = vmatpush1.bf16.msra.mxu0 0
        %2176 = vmatprep.subr.bf16.mxu0 0
        %2177 = vmatpush1.bf16.msra.mxu0 0
        %2178 = vmatprep.subr.bf16.mxu0 0
        %2179 = vmatpush1.bf16.msra.mxu0 0
        %2180 = vmatprep.subr.bf16.mxu0 0
        %2181 = vmatpush1.bf16.msra.mxu0 0
        %2182 = vmatprep.mubr.bf16.mxu0 0
        %2183 = vmatmul.mubr.bf16.gmra.mrb[0].mxu0 %v2145
        %v2184 = vpop.f32.mrb[0].mxu0
        %v2185 = vadd.f32 0.0, %v2184
        %v2186 = vpop.f32.mrb[0].mxu0
        %v2187 = vpop.f32.mrb[0].mxu0
        %v2188 = vpop.f32.mrb[0].mxu0
        %2189 = vdwg.mxu0
        %v2190 = vsel %vm951, %v2047, 0.0
        %v2191 = vsel %vm951, %v2093, 0.0
        %v2192 = vadd.f32 %v2190, %v2191
        %v2193 = vsel %vm951, %v2139, 0.0
        %v2194 = vadd.f32 %v2192, %v2193
        %v2195 = vsel %vm951, %v2185, 0.0
        %v2196 = vadd.f32 %v2194, %v2195
        %v2198 = vlaneseq
        %v2199 = vshrl.u32 %v2198, 7
        %v2200 = vsub.s32 0, %v2199
        %v2201 = vrot.slane %v2001, %v2200
        %v2203 = vadd.f32 %v2196, %v2201
        %v2204 = vadd.f32 %v805, %v2203
        %v2205 = vld [vmem:[%s780] sm:$0x1]
        %v2206 = vld [vmem:[%s783] sm:$0x1]
        %v2207 = vsel %vm951, %v2204, 0.0
        %2208 = vadd.xlane.f32.xlu0 %v2207
        %v2209 = vpop.xlane.xlu0 %2208
        %v2210 = vrcp.pop 32.0
        %v2211 = vmul.f32 %v2209, %v2210
        %v2212 = vsub.f32 %v2204, %v2211
        %v2213 = vmul.f32 %v2212, %v2212
        %v2214 = vsel %vm951, %v2213, 0.0
        %2215 = vadd.xlane.f32.xlu0 %v2214
        %v2216 = vpop.xlane.xlu0 %2215
        %v2217 = vmul.f32 %v2216, %v2210
        %v2218 = vadd.f32 %v2217, 1e-05
        %v2219 = vrsqrt.pop %v2218
        %v2220 = vmul.f32 %v2212, %v2219
        %v2222 = vlaneseq
        %v2223 = vshrl.u32 %v2222, 7
        %v2224 = vsub.s32 0, %v2223
        %v2225 = vrot.slane %v2205, %v2224
        %v2227 = vmul.f32 %v2220, %v2225
        %v2229 = vlaneseq
        %v2230 = vshrl.u32 %v2229, 7
        %v2231 = vsub.s32 0, %v2230
        %v2232 = vrot.slane %v2206, %v2231
        %v2234 = vadd.f32 %v2227, %v2232
        %v2235 = vld [vmem:[%s655] sm:$0xf]
        %v2236 = vld [vmem:[%s655 + $0x4] sm:$0xf]
        %v2237 = vld [vmem:[%s655 + $0x8] sm:$0xf]
        %v2238 = vld [vmem:[%s655 + $0xc] sm:$0xf]
        %v2239 = vld [vmem:[%s774] sm:$0x1]
        %v2240 = vld [vmem:[%s664] sm:$0xf]
        %v2241 = vld [vmem:[%s664 + $0x4] sm:$0xf]
        %v2242 = vld [vmem:[%s664 + $0x8] sm:$0xf]
        %v2243 = vld [vmem:[%s664 + $0xc] sm:$0xf]
        %v2244 = vld [vmem:[%s664 + $0x10] sm:$0xf]
        %v2245 = vld [vmem:[%s664 + $0x14] sm:$0xf]
        %v2246 = vld [vmem:[%s664 + $0x18] sm:$0xf]
        %v2247 = vld [vmem:[%s664 + $0x1c] sm:$0xf]
        %v2248 = vld [vmem:[%s777] sm:$0x1]
        %v2249 = vpack.c.bf16 %v2234, %v2234
        %v2251 = vlaneseq
        %v2252 = vshrl.u32 %v2251, 7
        %v2253 = vsub.s32 0, %v2252
        %v2254 = vrot.slane %v2239, %v2253
        %v2260 = vunpack.c.l.b16 %v2235
        %v2261 = vunpack.c.l.b16 %v2236
        %v2262 = vunpack.c.l.b16 %v2237
        %v2263 = vunpack.c.l.b16 %v2238
        %v2264 = vpack.c.b16 %v2261, %v2260
        %v2265 = vpack.c.b16 %v2263, %v2262
        %v2269 = vsel %vm951, %v2249, 0
        %2271 = vmatprep.subr.bf16.mxu0 0
        %2272 = vmatpush1.bf16.msra.mxu0 %v2264
        %2273 = vmatprep.subr.bf16.mxu0 0
        %2274 = vmatpush1.bf16.msra.mxu0 %v2265
        %2275 = vmatprep.subr.bf16.mxu0 0
        %2276 = vmatpush1.bf16.msra.mxu0 0
        %2277 = vmatprep.subr.bf16.mxu0 0
        %2278 = vmatpush1.bf16.msra.mxu0 0
        %2279 = vmatprep.subr.bf16.mxu0 0
        %2280 = vmatpush1.bf16.msra.mxu0 0
        %2281 = vmatprep.subr.bf16.mxu0 0
        %2282 = vmatpush1.bf16.msra.mxu0 0
        %2283 = vmatprep.subr.bf16.mxu0 0
        %2284 = vmatpush1.bf16.msra.mxu0 0
        %2285 = vmatprep.subr.bf16.mxu0 0
        %2286 = vmatpush1.bf16.msra.mxu0 0
        %2287 = vmatprep.subr.bf16.mxu0 0
        %2288 = vmatpush1.bf16.msra.mxu0 0
        %2289 = vmatprep.subr.bf16.mxu0 0
        %2290 = vmatpush1.bf16.msra.mxu0 0
        %2291 = vmatprep.subr.bf16.mxu0 0
        %2292 = vmatpush1.bf16.msra.mxu0 0
        %2293 = vmatprep.subr.bf16.mxu0 0
        %2294 = vmatpush1.bf16.msra.mxu0 0
        %2295 = vmatprep.subr.bf16.mxu0 0
        %2296 = vmatpush1.bf16.msra.mxu0 0
        %2297 = vmatprep.subr.bf16.mxu0 0
        %2298 = vmatpush1.bf16.msra.mxu0 0
        %2299 = vmatprep.subr.bf16.mxu0 0
        %2300 = vmatpush1.bf16.msra.mxu0 0
        %2301 = vmatprep.subr.bf16.mxu0 0
        %2302 = vmatpush1.bf16.msra.mxu0 0
        %2303 = vmatprep.mubr.bf16.mxu0 0
        %2304 = vmatmul.mubr.bf16.gmra.mrb[0].mxu0 %v2269
        %v2305 = vpop.f32.mrb[0].mxu0
        %v2306 = vadd.f32 %v2254, %v2305
        %v2307 = vpop.f32.mrb[0].mxu0
        %v2308 = vpop.f32.mrb[0].mxu0
        %v2309 = vpop.f32.mrb[0].mxu0
        %2310 = vdwg.mxu0
        %v2311 = vmax.f32 %v2306, 0.0
        %v2312 = vpack.c.bf16 %v2311, %v2311
        %v2314 = vlaneseq
        %v2315 = vshrl.u32 %v2314, 7
        %v2316 = vsub.s32 0, %v2315
        %v2317 = vrot.slane %v2248, %v2316
        %v2327 = vunpack.c.l.b16 %v2240
        %v2328 = vunpack.c.l.b16 %v2241
        %v2329 = vunpack.c.l.b16 %v2242
        %v2330 = vunpack.c.l.b16 %v2243
        %v2331 = vunpack.c.l.b16 %v2244
        %v2332 = vunpack.c.l.b16 %v2245
        %v2333 = vunpack.c.l.b16 %v2246
        %v2334 = vunpack.c.l.b16 %v2247
        %v2335 = vpack.c.b16 %v2328, %v2327
        %v2336 = vpack.c.b16 %v2330, %v2329
        %v2337 = vpack.c.b16 %v2332, %v2331
        %v2338 = vpack.c.b16 %v2334, %v2333
        %vm2343 = vcmask 523264
        %v2345 = vsel %vm2343, %v2312, 0
        %2347 = vmatprep.subr.bf16.mxu0 0
        %2348 = vmatpush1.bf16.msra.mxu0 %v2335
        %2349 = vmatprep.subr.bf16.mxu0 0
        %2350 = vmatpush1.bf16.msra.mxu0 %v2336
        %2351 = vmatprep.subr.bf16.mxu0 0
        %2352 = vmatpush1.bf16.msra.mxu0 %v2337
        %2353 = vmatprep.subr.bf16.mxu0 0
        %2354 = vmatpush1.bf16.msra.mxu0 %v2338
        %2355 = vmatprep.subr.bf16.mxu0 0
        %2356 = vmatpush1.bf16.msra.mxu0 0
        %2357 = vmatprep.subr.bf16.mxu0 0
        %2358 = vmatpush1.bf16.msra.mxu0 0
        %2359 = vmatprep.subr.bf16.mxu0 0
        %2360 = vmatpush1.bf16.msra.mxu0 0
        %2361 = vmatprep.subr.bf16.mxu0 0
        %2362 = vmatpush1.bf16.msra.mxu0 0
        %2363 = vmatprep.subr.bf16.mxu0 0
        %2364 = vmatpush1.bf16.msra.mxu0 0
        %2365 = vmatprep.subr.bf16.mxu0 0
        %2366 = vmatpush1.bf16.msra.mxu0 0
        %2367 = vmatprep.subr.bf16.mxu0 0
        %2368 = vmatpush1.bf16.msra.mxu0 0
        %2369 = vmatprep.subr.bf16.mxu0 0
        %2370 = vmatpush1.bf16.msra.mxu0 0
        %2371 = vmatprep.subr.bf16.mxu0 0
        %2372 = vmatpush1.bf16.msra.mxu0 0
        %2373 = vmatprep.subr.bf16.mxu0 0
        %2374 = vmatpush1.bf16.msra.mxu0 0
        %2375 = vmatprep.subr.bf16.mxu0 0
        %2376 = vmatpush1.bf16.msra.mxu0 0
        %2377 = vmatprep.subr.bf16.mxu0 0
        %2378 = vmatpush1.bf16.msra.mxu0 0
        %2379 = vmatprep.mubr.bf16.mxu0 0
        %2380 = vmatmul.mubr.bf16.gmra.mrb[0].mxu0 %v2345
        %v2381 = vpop.f32.mrb[0].mxu0
        %v2382 = vadd.f32 %v2317, %v2381
        %v2383 = vpop.f32.mrb[0].mxu0
        %v2384 = vpop.f32.mrb[0].mxu0
        %v2385 = vpop.f32.mrb[0].mxu0
        %2386 = vdwg.mxu0
        %v2387 = vadd.f32 %v2234, %v2382
        %v2388 = vld [vmem:[%s786] sm:$0x1]
        %v2389 = vld [vmem:[%s789] sm:$0x1]
        %v2390 = vsel %vm951, %v2387, 0.0
        %2391 = vadd.xlane.f32.xlu0 %v2390
        %v2392 = vpop.xlane.xlu0 %2391
        %v2393 = vmul.f32 %v2392, %v2210
        %v2394 = vsub.f32 %v2387, %v2393
        %v2395 = vmul.f32 %v2394, %v2394
        %v2396 = vsel %vm951, %v2395, 0.0
        %2397 = vadd.xlane.f32.xlu0 %v2396
        %v2398 = vpop.xlane.xlu0 %2397
        %v2399 = vmul.f32 %v2398, %v2210
        %v2400 = vadd.f32 %v2399, 1e-05
        %v2401 = vrsqrt.pop %v2400
        %v2402 = vmul.f32 %v2394, %v2401
        %v2404 = vlaneseq
        %v2405 = vshrl.u32 %v2404, 7
        %v2406 = vsub.s32 0, %v2405
        %v2407 = vrot.slane %v2388, %v2406
        %v2409 = vmul.f32 %v2402, %v2407
        %v2411 = vlaneseq
        %v2412 = vshrl.u32 %v2411, 7
        %v2413 = vsub.s32 0, %v2412
        %v2414 = vrot.slane %v2389, %v2413
        %v2416 = vadd.f32 %v2409, %v2414
        %2417 = vst.msk [vmem:[#allocation2] sm:$0xff] %vm951, %v2416
        %p2418 = scmp.eq.s32.totalorder %s39, 1
        // Predicated region
        $region105: #{_lambda_.2} parent=83 // pred_check
          %p2419 = pneg %p2418
        $region106: #{_lambda_.2} parent=83 // pred_check_branch
          %2421 = sbr.rel (%p2419) target = $region108
        $region107: #{_lambda_.2} parent=83 // pred_region
          %v2422 = vld [vmem:[%s14] sm:$0x1]
          %v2423 = vld [vmem:[%s15] sm:$0x1]
          %v2424 = vsel %vm951, %v2416, 0.0
          %2425 = vadd.xlane.f32.xlu0 %v2424
          %v2426 = vpop.xlane.xlu0 %2425
          %v2427 = vmul.f32 %v2426, %v2210
          %v2428 = vsub.f32 %v2416, %v2427
          %v2429 = vmul.f32 %v2428, %v2428
          %v2430 = vsel %vm951, %v2429, 0.0
          %2431 = vadd.xlane.f32.xlu0 %v2430
          %v2432 = vpop.xlane.xlu0 %2431
          %v2433 = vmul.f32 %v2432, %v2210
          %v2434 = vadd.f32 %v2433, 1e-05
          %v2435 = vrsqrt.pop %v2434
          %v2436 = vmul.f32 %v2428, %v2435
          %v2438 = vlaneseq
          %v2439 = vshrl.u32 %v2438, 7
          %v2440 = vsub.s32 0, %v2439
          %v2441 = vrot.slane %v2422, %v2440
          %v2443 = vmul.f32 %v2436, %v2441
          %v2445 = vlaneseq
          %v2446 = vshrl.u32 %v2445, 7
          %v2447 = vsub.s32 0, %v2446
          %v2448 = vrot.slane %v2423, %v2447
          %v2450 = vadd.f32 %v2443, %v2448
          %2451 = vst.msk [vmem:[%s793] sm:$0xff] %vm951, %v2450
        $region108: #{_lambda_.2} parent=83 // pred_fallthru
          _
        %p2452 = scmp.lt.s32.totalorder %s38, 1
        %s2453 = scalar_select %p2452, %s38, 1
        %s2454 = smul.addr %s2453, 8
        %s2455 = scalar_lea.vmem %s16, %s2454
        // Predicated region
        $region109: #{_lambda_.2} parent=83 // pred_check
          %p2456 = pneg %p465
        $region110: #{_lambda_.2} parent=83 // pred_check_branch
          %2458 = sbr.rel (%p2456) target = $region112
        $region111: #{_lambda_.2} parent=83 // pred_region
          _
        $region112: #{_lambda_.2} parent=83 // pred_fallthru
          _
      $region84: #{_lambda_.2} parent=5 // pred_fallthru
        _
      %p2459 = scmp.le.s32.totalorder 2, %s29
      // Predicated region
      $region113: #{_lambda_.2} parent=5 // pred_check
        %p2460 = pneg %p2459
      $region114: #{_lambda_.2} parent=5 // pred_check_branch
        %2462 = sbr.rel (%p2460) target = $region116
      $region115: #{_lambda_.2} parent=5 // pred_region
        %s2463 = ssub.s32 %s29, 2
        // Predicated region
        $region117: #{_lambda_.2} parent=115 // pred_check
          %p2464 = pneg %p471
        $region118: #{_lambda_.2} parent=115 // pred_check_branch
          %2466 = sbr.rel (%p2464) target = $region120
        $region119: #{_lambda_.2} parent=115 // pred_region
          %p2467 = scmp.lt.s32.totalorder %s40, 1
          %s2468 = scalar_select %p2467, %s40, 1
          %s2469 = smul.addr %s2468, 8
          %s2470 = scalar_lea.vmem %s16, %s2469
        $region120: #{_lambda_.2} parent=115 // pred_fallthru
          _
      $region116: #{_lambda_.2} parent=5 // pred_fallthru
        _
    $region6: #{_lambda_.2} parent=1 // loop_footer
      %s33 = sadd.s32 1, %s29
    $region7: #{_lambda_.2} parent=1 // loop_footer_branch
      %28 = sbr.rel target = $region3
    $region8: #{_lambda_.2} parent=1 // loop_exit
      _
    %2471 = vsyncpa [#allocation4], 1
    %s2472 = scalar_lea.sflag [#allocation4], 1
    %2473 = vsyncpa %s2472, 1
    %2474 = vsyncpa [#allocation6], 1
    %s2475 = scalar_lea.sflag [#allocation6], 1
    %2476 = vsyncpa %s2475, 1
    %2477 = vsyncpa [#allocation9], 1
    %s2478 = scalar_lea.sflag [#allocation9], 1
    %2479 = vsyncpa %s2478, 1

// kernel: _lambda_.3
$region0: #{_lambda_.3}
  #allocation0 [shape = 'u32[]', space=smem, size = 0x4, offset = 0x4, fixed_abs, tag = 'smem constant byte address 0x4 - core index']
  #allocation1 [shape = 'u32[144,128]{1,0:T(1,128)}', space=vmem, size = 0x12000, scoped, tag = 'internal scratch']
  #allocation2 [shape = 'f32[8,32]{1,0:T(8,128)}', space=vmem, size = 0x1000, scoped, tag = 'scratch operand']
  %s0 = inlined_call_operand.vmem [shape: f32[2,8,32], index: 0, kind: input, shape index: {}]
  %s1 = inlined_call_operand.hbm [shape: f32[1,8,32], index: 1, kind: input, shape index: {}]
  %s2 = inlined_call_operand.vmem [shape: f32[2,8,32], index: 2, kind: input, shape index: {}]
  %s3 = inlined_call_operand.vmem [shape: bf16[2,12,32,8], index: 3, kind: input, shape index: {}]
  %s4 = inlined_call_operand.vmem [shape: f32[2,12,1,8], index: 4, kind: input, shape index: {}]
  %s5 = inlined_call_operand.hbm [shape: bf16[2,4,8,32], index: 5, kind: input, shape index: {}]
  %s6 = inlined_call_operand.vmem [shape: f32[2,1,32], index: 6, kind: input, shape index: {}, may-alias: {6,12,16,18,20,22}]
  %s7 = inlined_call_operand.hbm [shape: bf16[2,4,32,8], index: 7, kind: input, shape index: {}]
  %s8 = inlined_call_operand.vmem [shape: f32[2,4,1,8], index: 8, kind: input, shape index: {}]
  %s9 = inlined_call_operand.vmem [shape: bf16[2,8,32,8], index: 9, kind: input, shape index: {}]
  %s10 = inlined_call_operand.vmem [shape: f32[2,8,1,8], index: 10, kind: input, shape index: {}]
  %s11 = inlined_call_operand.hbm [shape: bf16[2,4,8,32], index: 11, kind: input, shape index: {}]
  %s12 = inlined_call_operand.vmem [shape: f32[2,1,32], index: 12, kind: input, shape index: {}, may-alias: {6,12,16,18,20,22}]
  %s13 = inlined_call_operand.hbm [shape: bf16[2,32,64], index: 13, kind: input, shape index: {}]
  %s14 = inlined_call_operand.vmem [shape: f32[2,1,64], index: 14, kind: input, shape index: {}]
  %s15 = inlined_call_operand.vmem [shape: bf16[2,64,32], index: 15, kind: input, shape index: {}]
  %s16 = inlined_call_operand.vmem [shape: f32[2,1,32], index: 16, kind: input, shape index: {}, may-alias: {6,12,16,18,20,22}]
  %s17 = inlined_call_operand.vmem [shape: f32[2,1,32], index: 17, kind: input, shape index: {}, may-alias: {17,19,21}]
  %s18 = inlined_call_operand.vmem [shape: f32[2,1,32], index: 18, kind: input, shape index: {}, may-alias: {6,12,16,18,20,22}]
  %s19 = inlined_call_operand.vmem [shape: f32[2,1,32], index: 19, kind: input, shape index: {}, may-alias: {17,19,21}]
  %s20 = inlined_call_operand.vmem [shape: f32[2,1,32], index: 20, kind: input, shape index: {}, may-alias: {6,12,16,18,20,22}]
  %s21 = inlined_call_operand.vmem [shape: f32[2,1,32], index: 21, kind: input, shape index: {}, may-alias: {17,19,21}]
  %s22 = inlined_call_operand.vmem [shape: f32[2,1,32], index: 22, kind: input, shape index: {}, may-alias: {6,12,16,18,20,22}]
  %s23 = inlined_call_operand.vmem [shape: f32[1,32], index: 23, kind: input, shape index: {}]
  %s24 = inlined_call_operand.vmem [shape: f32[1,32], index: 24, kind: input, shape index: {}]
  %s25 = inlined_call_operand.vmem [shape: bf16[32,128], index: 25, kind: input, shape index: {}]
  %s26 = inlined_call_operand.vmem [shape: f32[1,128], index: 26, kind: input, shape index: {}]
  %s27 = inlined_call_operand.vmem [shape: f32[16,128], index: 27, kind: output, shape index: {}]
  %s28 = sld [smem:[#allocation0]]
  $region169: #{_lambda_.3} parent=0
    _
  %s30 = ssub.s32 1, %s28
  %s31 = scalar_select 0, %s30, %s28
  $region1: #{_lambda_.3} parent=0
    #allocation3 [shape = 'u8[4096]{0}', space=vmem, size = 0x1000, scoped, tag = 'input window, operand 1, single buffered']
    #allocation4 [shape = 's32[2]{0}', space=sflag, size = 0x8, scoped, tag = 'scoped memory for _lambda_.3']
    #allocation5 [shape = 'u8[16384]{0}', space=vmem, size = 0x4000, scoped, tag = 'input window, operand 5']
    #allocation6 [shape = 's32[2]{0}', space=sflag, size = 0x8, scoped, tag = 'scoped memory for _lambda_.3']
    #allocation7 [shape = 'u8[65536]{0}', space=vmem, size = 0x10000, scoped, tag = 'input window, operand 7']
    #allocation8 [shape = 'u8[16384]{0}', space=vmem, size = 0x4000, scoped, tag = 'input window, operand 11']
    #allocation9 [shape = 's32[2]{0}', space=sflag, size = 0x8, scoped, tag = 'scoped memory for _lambda_.3']
    #allocation10 [shape = 'u8[16384]{0}', space=vmem, size = 0x4000, scoped, tag = 'input window, operand 13']
    %32 = vsyncpa [#allocation4], 0
    %33 = vsyncpa [#allocation6], 0
    %s34 = scalar_lea.sflag [#allocation6], 1
    %35 = vsyncpa %s34, 0
    %36 = vsyncpa [#allocation9], 0
    %s37 = scalar_lea.sflag [#allocation9], 1
    %38 = vsyncpa %s37, 0
    loop: start=0, step=1, limit=6
    $region2: #{_lambda_.3} parent=1 // loop_pre_header
      _
    $region3: #{_lambda_.3} parent=1 // loop_header
      %s40 = sphi 0, %s44
      %p41 = scmp.ge.s32.totalorder %s40, 6
      %s47 = sphi 0, %s59
      %s48 = sphi 0, %s55
      %s49 = sphi 0, %s47
      %s50 = sphi 0, %s48
      %s51 = sphi 0, %s49
      %s52 = sphi 0, %s50
      %s62 = sphi 0, %s64
      %s65 = sphi 0, %s62
      %s66 = sphi 0, %s65
      %s82 = sphi 0, %s66
      %s86 = sphi 0, %s86
      %s88 = sphi 0, %s86
      %s89 = sphi 0, %s88
      %s103 = sphi 0, %s89
      %s109 = sphi 0, %s111
      %s112 = sphi 0, %s109
      %s113 = sphi 0, %s112
      %s129 = sphi 0, %s113
      %s135 = sphi 0, %s137
      %s138 = sphi 0, %s135
      %s139 = sphi 0, %s138
      %s155 = sphi 0, %s139
      %s161 = sphi 0, %s163
      %s164 = sphi 0, %s161
      %s165 = sphi 0, %s164
      %s181 = sphi 0, %s165
      %s187 = sphi 0, %s189
      %s190 = sphi 0, %s187
      %s191 = sphi 0, %s190
      %s207 = sphi 0, %s191
      %s213 = sphi 0, %s215
      %s216 = sphi 0, %s213
      %s217 = sphi 0, %s216
      %s233 = sphi 0, %s217
      %s239 = sphi 0, %s241
      %s242 = sphi 0, %s239
      %s243 = sphi 0, %s242
      %s259 = sphi 0, %s243
      %s265 = sphi 0, %s267
      %s268 = sphi 0, %s265
      %s269 = sphi 0, %s268
      %s285 = sphi 0, %s269
      %s291 = sphi 0, %s293
      %s294 = sphi 0, %s291
      %s295 = sphi 0, %s294
      %s311 = sphi 0, %s295
      %s317 = sphi 0, %s319
      %s320 = sphi 0, %s317
      %s321 = sphi 0, %s320
      %s337 = sphi 0, %s321
      %s343 = sphi 0, %s345
      %s346 = sphi 0, %s343
      %s347 = sphi 0, %s346
      %s363 = sphi 0, %s347
      %s369 = sphi 0, %s371
      %s372 = sphi 0, %s369
      %s373 = sphi 0, %s372
      %s389 = sphi 0, %s373
      %s395 = sphi 0, %s397
      %s398 = sphi 0, %s395
      %s399 = sphi 0, %s398
      %s415 = sphi 0, %s399
      %s421 = sphi 0, %s423
      %s424 = sphi 0, %s421
      %s425 = sphi 0, %s424
      %s441 = sphi 0, %s425
      %s447 = sphi 0, %s449
      %s450 = sphi 0, %s447
      %s451 = sphi 0, %s450
      %s467 = sphi 0, %s451
      %s473 = sphi 0, %s475
      %s476 = sphi 0, %s473
      %s477 = sphi 0, %s476
      %s493 = sphi 0, %s477
      %s499 = sphi 0, %s501
      %s502 = sphi 0, %s499
      %s503 = sphi 0, %s502
      %s519 = sphi 0, %s503
      %s525 = sphi 0, %s527
      %s528 = sphi 0, %s525
      %s529 = sphi 0, %s528
      %s545 = sphi 0, %s529
      %s551 = sphi 0, %s553
      %s554 = sphi 0, %s551
      %s555 = sphi 0, %s554
      %s571 = sphi 0, %s555
      %s577 = sphi 0, %s579
      %s580 = sphi 0, %s577
      %s581 = sphi 0, %s580
      %s597 = sphi 0, %s581
      %s603 = sphi 0, %s605
      %s606 = sphi 0, %s603
      %s607 = sphi 0, %s606
      %s623 = sphi 0, %s607
      %s629 = sphi 0, %s631
      %s632 = sphi 0, %s629
      %s633 = sphi 0, %s632
      %s649 = sphi 0, %s633
      %s653 = sphi 0, %s653
      %s655 = sphi 0, %s653
      %s656 = sphi 0, %s655
      %s670 = sphi 0, %s656
      %s674 = sphi 0, %s674
      %s676 = sphi 0, %s674
      %s677 = sphi 0, %s676
      %s691 = sphi 0, %s677
      %s695 = sphi 0, %s695
      %s697 = sphi 0, %s695
      %s698 = sphi 0, %s697
      %s712 = sphi 0, %s698
      %s716 = sphi 0, %s716
      %s718 = sphi 0, %s716
      %s719 = sphi 0, %s718
      %s733 = sphi 0, %s719
      %s739 = sphi 0, %s741
      %s742 = sphi 0, %s739
      %s743 = sphi 0, %s742
      %s759 = sphi 0, %s743
    $region4: #{_lambda_.3} parent=1 // loop_header_branch
      %43 = sbr.rel (%p41) target = $region8
    $region5: #{_lambda_.3} parent=1 // loop_body
      %s45 = ssub.s32 %s40, 1
      %s46 = ssub.s32 %s40, 2
      %s53 = sadd.s32 1, %s48
      %p54 = scmp.ge.s32.totalorder %s53, 2
      %s55 = scalar_select %p54, 0, %s53
      %s56 = sadd.s32 1, %s47
      %s57 = scalar_select %p54, %s56, %s47
      %p58 = scmp.ge.s32.totalorder %s57, 2
      %s59 = scalar_select %p58, 0, %s57
      %s60 = ssub.s32 %s47, %s59
      %p61 = scmp.eq.s32.totalorder %s60, 0
      %s63 = sadd.s32 %s62, 1
      %s64 = scalar_select %p61, %s62, %s63
      %p67 = pneg %p61
      %p68 = scmp.eq.s32.totalorder %s40, 3
      %p69 = por %p67, %p68
      %p70 = scmp.ne.s32.totalorder %s62, %s65
      %p71 = scmp.eq.s32.totalorder %s40, 0
      %p72 = por %p70, %p71
      %p73 = scmp.ne.s32.totalorder %s62, %s65
      %p74 = scmp.eq.s32.totalorder %s45, 3
      %p75 = por %p73, %p74
      %p76 = scmp.ne.s32.totalorder %s65, %s66
      %p77 = scmp.eq.s32.totalorder %s45, 0
      %p78 = por %p76, %p77
      %p79 = scmp.ne.s32.totalorder %s65, %s66
      %p80 = scmp.eq.s32.totalorder %s46, 3
      %p81 = por %p79, %p80
      %p83 = scmp.ne.s32.totalorder %s66, %s82
      %p84 = scmp.eq.s32.totalorder %s46, 0
      %p85 = por %p83, %p84
      %s87 = sadd.s32 %s86, 1
      %p90 = scmp.eq.s32.totalorder %s40, 3
      %p91 = scmp.ne.s32.totalorder %s86, %s88
      %p92 = scmp.eq.s32.totalorder %s40, 0
      %p93 = por %p91, %p92
      %p94 = scmp.ne.s32.totalorder %s86, %s88
      %p95 = scmp.eq.s32.totalorder %s45, 3
      %p96 = por %p94, %p95
      %p97 = scmp.ne.s32.totalorder %s88, %s89
      %p98 = scmp.eq.s32.totalorder %s45, 0
      %p99 = por %p97, %p98
      %p100 = scmp.ne.s32.totalorder %s88, %s89
      %p101 = scmp.eq.s32.totalorder %s46, 3
      %p102 = por %p100, %p101
      %p104 = scmp.ne.s32.totalorder %s89, %s103
      %p105 = scmp.eq.s32.totalorder %s46, 0
      %p106 = por %p104, %p105
      %s107 = ssub.s32 %s47, %s59
      %p108 = scmp.eq.s32.totalorder %s107, 0
      %s110 = sadd.s32 %s109, 1
      %s111 = scalar_select %p108, %s109, %s110
      %p114 = pneg %p108
      %p115 = scmp.eq.s32.totalorder %s40, 3
      %p116 = por %p114, %p115
      %p117 = scmp.ne.s32.totalorder %s109, %s112
      %p118 = scmp.eq.s32.totalorder %s40, 0
      %p119 = por %p117, %p118
      %p120 = scmp.ne.s32.totalorder %s109, %s112
      %p121 = scmp.eq.s32.totalorder %s45, 3
      %p122 = por %p120, %p121
      %p123 = scmp.ne.s32.totalorder %s112, %s113
      %p124 = scmp.eq.s32.totalorder %s45, 0
      %p125 = por %p123, %p124
      %p126 = scmp.ne.s32.totalorder %s112, %s113
      %p127 = scmp.eq.s32.totalorder %s46, 3
      %p128 = por %p126, %p127
      %p130 = scmp.ne.s32.totalorder %s113, %s129
      %p131 = scmp.eq.s32.totalorder %s46, 0
      %p132 = por %p130, %p131
      %s133 = ssub.s32 %s48, %s55
      %p134 = scmp.eq.s32.totalorder %s133, 0
      %s136 = sadd.s32 %s135, 1
      %s137 = scalar_select %p134, %s135, %s136
      %p140 = pneg %p134
      %p141 = scmp.eq.s32.totalorder %s40, 3
      %p142 = por %p140, %p141
      %p143 = scmp.ne.s32.totalorder %s135, %s138
      %p144 = scmp.eq.s32.totalorder %s40, 0
      %p145 = por %p143, %p144
      %p146 = scmp.ne.s32.totalorder %s135, %s138
      %p147 = scmp.eq.s32.totalorder %s45, 3
      %p148 = por %p146, %p147
      %p149 = scmp.ne.s32.totalorder %s138, %s139
      %p150 = scmp.eq.s32.totalorder %s45, 0
      %p151 = por %p149, %p150
      %p152 = scmp.ne.s32.totalorder %s138, %s139
      %p153 = scmp.eq.s32.totalorder %s46, 3
      %p154 = por %p152, %p153
      %p156 = scmp.ne.s32.totalorder %s139, %s155
      %p157 = scmp.eq.s32.totalorder %s46, 0
      %p158 = por %p156, %p157
      %s159 = ssub.s32 %s48, %s55
      %p160 = scmp.eq.s32.totalorder %s159, 0
      %s162 = sadd.s32 %s161, 1
      %s163 = scalar_select %p160, %s161, %s162
      %p166 = pneg %p160
      %p167 = scmp.eq.s32.totalorder %s40, 3
      %p168 = por %p166, %p167
      %p169 = scmp.ne.s32.totalorder %s161, %s164
      %p170 = scmp.eq.s32.totalorder %s40, 0
      %p171 = por %p169, %p170
      %p172 = scmp.ne.s32.totalorder %s161, %s164
      %p173 = scmp.eq.s32.totalorder %s45, 3
      %p174 = por %p172, %p173
      %p175 = scmp.ne.s32.totalorder %s164, %s165
      %p176 = scmp.eq.s32.totalorder %s45, 0
      %p177 = por %p175, %p176
      %p178 = scmp.ne.s32.totalorder %s164, %s165
      %p179 = scmp.eq.s32.totalorder %s46, 3
      %p180 = por %p178, %p179
      %p182 = scmp.ne.s32.totalorder %s165, %s181
      %p183 = scmp.eq.s32.totalorder %s46, 0
      %p184 = por %p182, %p183
      %s185 = ssub.s32 %s48, %s55
      %p186 = scmp.eq.s32.totalorder %s185, 0
      %s188 = sadd.s32 %s187, 1
      %s189 = scalar_select %p186, %s187, %s188
      %p192 = pneg %p186
      %p193 = scmp.eq.s32.totalorder %s40, 3
      %p194 = por %p192, %p193
      %p195 = scmp.ne.s32.totalorder %s187, %s190
      %p196 = scmp.eq.s32.totalorder %s40, 0
      %p197 = por %p195, %p196
      %p198 = scmp.ne.s32.totalorder %s187, %s190
      %p199 = scmp.eq.s32.totalorder %s45, 3
      %p200 = por %p198, %p199
      %p201 = scmp.ne.s32.totalorder %s190, %s191
      %p202 = scmp.eq.s32.totalorder %s45, 0
      %p203 = por %p201, %p202
      %p204 = scmp.ne.s32.totalorder %s190, %s191
      %p205 = scmp.eq.s32.totalorder %s46, 3
      %p206 = por %p204, %p205
      %p208 = scmp.ne.s32.totalorder %s191, %s207
      %p209 = scmp.eq.s32.totalorder %s46, 0
      %p210 = por %p208, %p209
      %s211 = ssub.s32 %s48, %s55
      %p212 = scmp.eq.s32.totalorder %s211, 0
      %s214 = sadd.s32 %s213, 1
      %s215 = scalar_select %p212, %s213, %s214
      %p218 = pneg %p212
      %p219 = scmp.eq.s32.totalorder %s40, 3
      %p220 = por %p218, %p219
      %p221 = scmp.ne.s32.totalorder %s213, %s216
      %p222 = scmp.eq.s32.totalorder %s40, 0
      %p223 = por %p221, %p222
      %p224 = scmp.ne.s32.totalorder %s213, %s216
      %p225 = scmp.eq.s32.totalorder %s45, 3
      %p226 = por %p224, %p225
      %p227 = scmp.ne.s32.totalorder %s216, %s217
      %p228 = scmp.eq.s32.totalorder %s45, 0
      %p229 = por %p227, %p228
      %p230 = scmp.ne.s32.totalorder %s216, %s217
      %p231 = scmp.eq.s32.totalorder %s46, 3
      %p232 = por %p230, %p231
      %p234 = scmp.ne.s32.totalorder %s217, %s233
      %p235 = scmp.eq.s32.totalorder %s46, 0
      %p236 = por %p234, %p235
      %s237 = ssub.s32 %s48, %s55
      %p238 = scmp.eq.s32.totalorder %s237, 0
      %s240 = sadd.s32 %s239, 1
      %s241 = scalar_select %p238, %s239, %s240
      %p244 = pneg %p238
      %p245 = scmp.eq.s32.totalorder %s40, 3
      %p246 = por %p244, %p245
      %p247 = scmp.ne.s32.totalorder %s239, %s242
      %p248 = scmp.eq.s32.totalorder %s40, 0
      %p249 = por %p247, %p248
      %p250 = scmp.ne.s32.totalorder %s239, %s242
      %p251 = scmp.eq.s32.totalorder %s45, 3
      %p252 = por %p250, %p251
      %p253 = scmp.ne.s32.totalorder %s242, %s243
      %p254 = scmp.eq.s32.totalorder %s45, 0
      %p255 = por %p253, %p254
      %p256 = scmp.ne.s32.totalorder %s242, %s243
      %p257 = scmp.eq.s32.totalorder %s46, 3
      %p258 = por %p256, %p257
      %p260 = scmp.ne.s32.totalorder %s243, %s259
      %p261 = scmp.eq.s32.totalorder %s46, 0
      %p262 = por %p260, %p261
      %s263 = ssub.s32 %s48, %s55
      %p264 = scmp.eq.s32.totalorder %s263, 0
      %s266 = sadd.s32 %s265, 1
      %s267 = scalar_select %p264, %s265, %s266
      %p270 = pneg %p264
      %p271 = scmp.eq.s32.totalorder %s40, 3
      %p272 = por %p270, %p271
      %p273 = scmp.ne.s32.totalorder %s265, %s268
      %p274 = scmp.eq.s32.totalorder %s40, 0
      %p275 = por %p273, %p274
      %p276 = scmp.ne.s32.totalorder %s265, %s268
      %p277 = scmp.eq.s32.totalorder %s45, 3
      %p278 = por %p276, %p277
      %p279 = scmp.ne.s32.totalorder %s268, %s269
      %p280 = scmp.eq.s32.totalorder %s45, 0
      %p281 = por %p279, %p280
      %p282 = scmp.ne.s32.totalorder %s268, %s269
      %p283 = scmp.eq.s32.totalorder %s46, 3
      %p284 = por %p282, %p283
      %p286 = scmp.ne.s32.totalorder %s269, %s285
      %p287 = scmp.eq.s32.totalorder %s46, 0
      %p288 = por %p286, %p287
      %s289 = ssub.s32 %s48, %s55
      %p290 = scmp.eq.s32.totalorder %s289, 0
      %s292 = sadd.s32 %s291, 1
      %s293 = scalar_select %p290, %s291, %s292
      %p296 = pneg %p290
      %p297 = scmp.eq.s32.totalorder %s40, 3
      %p298 = por %p296, %p297
      %p299 = scmp.ne.s32.totalorder %s291, %s294
      %p300 = scmp.eq.s32.totalorder %s40, 0
      %p301 = por %p299, %p300
      %p302 = scmp.ne.s32.totalorder %s291, %s294
      %p303 = scmp.eq.s32.totalorder %s45, 3
      %p304 = por %p302, %p303
      %p305 = scmp.ne.s32.totalorder %s294, %s295
      %p306 = scmp.eq.s32.totalorder %s45, 0
      %p307 = por %p305, %p306
      %p308 = scmp.ne.s32.totalorder %s294, %s295
      %p309 = scmp.eq.s32.totalorder %s46, 3
      %p310 = por %p308, %p309
      %p312 = scmp.ne.s32.totalorder %s295, %s311
      %p313 = scmp.eq.s32.totalorder %s46, 0
      %p314 = por %p312, %p313
      %s315 = ssub.s32 %s48, %s55
      %p316 = scmp.eq.s32.totalorder %s315, 0
      %s318 = sadd.s32 %s317, 1
      %s319 = scalar_select %p316, %s317, %s318
      %p322 = pneg %p316
      %p323 = scmp.eq.s32.totalorder %s40, 3
      %p324 = por %p322, %p323
      %p325 = scmp.ne.s32.totalorder %s317, %s320
      %p326 = scmp.eq.s32.totalorder %s40, 0
      %p327 = por %p325, %p326
      %p328 = scmp.ne.s32.totalorder %s317, %s320
      %p329 = scmp.eq.s32.totalorder %s45, 3
      %p330 = por %p328, %p329
      %p331 = scmp.ne.s32.totalorder %s320, %s321
      %p332 = scmp.eq.s32.totalorder %s45, 0
      %p333 = por %p331, %p332
      %p334 = scmp.ne.s32.totalorder %s320, %s321
      %p335 = scmp.eq.s32.totalorder %s46, 3
      %p336 = por %p334, %p335
      %p338 = scmp.ne.s32.totalorder %s321, %s337
      %p339 = scmp.eq.s32.totalorder %s46, 0
      %p340 = por %p338, %p339
      %s341 = ssub.s32 %s48, %s55
      %p342 = scmp.eq.s32.totalorder %s341, 0
      %s344 = sadd.s32 %s343, 1
      %s345 = scalar_select %p342, %s343, %s344
      %p348 = pneg %p342
      %p349 = scmp.eq.s32.totalorder %s40, 3
      %p350 = por %p348, %p349
      %p351 = scmp.ne.s32.totalorder %s343, %s346
      %p352 = scmp.eq.s32.totalorder %s40, 0
      %p353 = por %p351, %p352
      %p354 = scmp.ne.s32.totalorder %s343, %s346
      %p355 = scmp.eq.s32.totalorder %s45, 3
      %p356 = por %p354, %p355
      %p357 = scmp.ne.s32.totalorder %s346, %s347
      %p358 = scmp.eq.s32.totalorder %s45, 0
      %p359 = por %p357, %p358
      %p360 = scmp.ne.s32.totalorder %s346, %s347
      %p361 = scmp.eq.s32.totalorder %s46, 3
      %p362 = por %p360, %p361
      %p364 = scmp.ne.s32.totalorder %s347, %s363
      %p365 = scmp.eq.s32.totalorder %s46, 0
      %p366 = por %p364, %p365
      %s367 = ssub.s32 %s48, %s55
      %p368 = scmp.eq.s32.totalorder %s367, 0
      %s370 = sadd.s32 %s369, 1
      %s371 = scalar_select %p368, %s369, %s370
      %p374 = pneg %p368
      %p375 = scmp.eq.s32.totalorder %s40, 3
      %p376 = por %p374, %p375
      %p377 = scmp.ne.s32.totalorder %s369, %s372
      %p378 = scmp.eq.s32.totalorder %s40, 0
      %p379 = por %p377, %p378
      %p380 = scmp.ne.s32.totalorder %s369, %s372
      %p381 = scmp.eq.s32.totalorder %s45, 3
      %p382 = por %p380, %p381
      %p383 = scmp.ne.s32.totalorder %s372, %s373
      %p384 = scmp.eq.s32.totalorder %s45, 0
      %p385 = por %p383, %p384
      %p386 = scmp.ne.s32.totalorder %s372, %s373
      %p387 = scmp.eq.s32.totalorder %s46, 3
      %p388 = por %p386, %p387
      %p390 = scmp.ne.s32.totalorder %s373, %s389
      %p391 = scmp.eq.s32.totalorder %s46, 0
      %p392 = por %p390, %p391
      %s393 = ssub.s32 %s48, %s55
      %p394 = scmp.eq.s32.totalorder %s393, 0
      %s396 = sadd.s32 %s395, 1
      %s397 = scalar_select %p394, %s395, %s396
      %p400 = pneg %p394
      %p401 = scmp.eq.s32.totalorder %s40, 3
      %p402 = por %p400, %p401
      %p403 = scmp.ne.s32.totalorder %s395, %s398
      %p404 = scmp.eq.s32.totalorder %s40, 0
      %p405 = por %p403, %p404
      %p406 = scmp.ne.s32.totalorder %s395, %s398
      %p407 = scmp.eq.s32.totalorder %s45, 3
      %p408 = por %p406, %p407
      %p409 = scmp.ne.s32.totalorder %s398, %s399
      %p410 = scmp.eq.s32.totalorder %s45, 0
      %p411 = por %p409, %p410
      %p412 = scmp.ne.s32.totalorder %s398, %s399
      %p413 = scmp.eq.s32.totalorder %s46, 3
      %p414 = por %p412, %p413
      %p416 = scmp.ne.s32.totalorder %s399, %s415
      %p417 = scmp.eq.s32.totalorder %s46, 0
      %p418 = por %p416, %p417
      %s419 = ssub.s32 %s48, %s55
      %p420 = scmp.eq.s32.totalorder %s419, 0
      %s422 = sadd.s32 %s421, 1
      %s423 = scalar_select %p420, %s421, %s422
      %p426 = pneg %p420
      %p427 = scmp.eq.s32.totalorder %s40, 3
      %p428 = por %p426, %p427
      %p429 = scmp.ne.s32.totalorder %s421, %s424
      %p430 = scmp.eq.s32.totalorder %s40, 0
      %p431 = por %p429, %p430
      %p432 = scmp.ne.s32.totalorder %s421, %s424
      %p433 = scmp.eq.s32.totalorder %s45, 3
      %p434 = por %p432, %p433
      %p435 = scmp.ne.s32.totalorder %s424, %s425
      %p436 = scmp.eq.s32.totalorder %s45, 0
      %p437 = por %p435, %p436
      %p438 = scmp.ne.s32.totalorder %s424, %s425
      %p439 = scmp.eq.s32.totalorder %s46, 3
      %p440 = por %p438, %p439
      %p442 = scmp.ne.s32.totalorder %s425, %s441
      %p443 = scmp.eq.s32.totalorder %s46, 0
      %p444 = por %p442, %p443
      %s445 = ssub.s32 %s48, %s55
      %p446 = scmp.eq.s32.totalorder %s445, 0
      %s448 = sadd.s32 %s447, 1
      %s449 = scalar_select %p446, %s447, %s448
      %p452 = pneg %p446
      %p453 = scmp.eq.s32.totalorder %s40, 3
      %p454 = por %p452, %p453
      %p455 = scmp.ne.s32.totalorder %s447, %s450
      %p456 = scmp.eq.s32.totalorder %s40, 0
      %p457 = por %p455, %p456
      %p458 = scmp.ne.s32.totalorder %s447, %s450
      %p459 = scmp.eq.s32.totalorder %s45, 3
      %p460 = por %p458, %p459
      %p461 = scmp.ne.s32.totalorder %s450, %s451
      %p462 = scmp.eq.s32.totalorder %s45, 0
      %p463 = por %p461, %p462
      %p464 = scmp.ne.s32.totalorder %s450, %s451
      %p465 = scmp.eq.s32.totalorder %s46, 3
      %p466 = por %p464, %p465
      %p468 = scmp.ne.s32.totalorder %s451, %s467
      %p469 = scmp.eq.s32.totalorder %s46, 0
      %p470 = por %p468, %p469
      %s471 = ssub.s32 %s48, %s55
      %p472 = scmp.eq.s32.totalorder %s471, 0
      %s474 = sadd.s32 %s473, 1
      %s475 = scalar_select %p472, %s473, %s474
      %p478 = pneg %p472
      %p479 = scmp.eq.s32.totalorder %s40, 3
      %p480 = por %p478, %p479
      %p481 = scmp.ne.s32.totalorder %s473, %s476
      %p482 = scmp.eq.s32.totalorder %s40, 0
      %p483 = por %p481, %p482
      %p484 = scmp.ne.s32.totalorder %s473, %s476
      %p485 = scmp.eq.s32.totalorder %s45, 3
      %p486 = por %p484, %p485
      %p487 = scmp.ne.s32.totalorder %s476, %s477
      %p488 = scmp.eq.s32.totalorder %s45, 0
      %p489 = por %p487, %p488
      %p490 = scmp.ne.s32.totalorder %s476, %s477
      %p491 = scmp.eq.s32.totalorder %s46, 3
      %p492 = por %p490, %p491
      %p494 = scmp.ne.s32.totalorder %s477, %s493
      %p495 = scmp.eq.s32.totalorder %s46, 0
      %p496 = por %p494, %p495
      %s497 = ssub.s32 %s48, %s55
      %p498 = scmp.eq.s32.totalorder %s497, 0
      %s500 = sadd.s32 %s499, 1
      %s501 = scalar_select %p498, %s499, %s500
      %p504 = pneg %p498
      %p505 = scmp.eq.s32.totalorder %s40, 3
      %p506 = por %p504, %p505
      %p507 = scmp.ne.s32.totalorder %s499, %s502
      %p508 = scmp.eq.s32.totalorder %s40, 0
      %p509 = por %p507, %p508
      %p510 = scmp.ne.s32.totalorder %s499, %s502
      %p511 = scmp.eq.s32.totalorder %s45, 3
      %p512 = por %p510, %p511
      %p513 = scmp.ne.s32.totalorder %s502, %s503
      %p514 = scmp.eq.s32.totalorder %s45, 0
      %p515 = por %p513, %p514
      %p516 = scmp.ne.s32.totalorder %s502, %s503
      %p517 = scmp.eq.s32.totalorder %s46, 3
      %p518 = por %p516, %p517
      %p520 = scmp.ne.s32.totalorder %s503, %s519
      %p521 = scmp.eq.s32.totalorder %s46, 0
      %p522 = por %p520, %p521
      %s523 = ssub.s32 %s48, %s55
      %p524 = scmp.eq.s32.totalorder %s523, 0
      %s526 = sadd.s32 %s525, 1
      %s527 = scalar_select %p524, %s525, %s526
      %p530 = pneg %p524
      %p531 = scmp.eq.s32.totalorder %s40, 3
      %p532 = por %p530, %p531
      %p533 = scmp.ne.s32.totalorder %s525, %s528
      %p534 = scmp.eq.s32.totalorder %s40, 0
      %p535 = por %p533, %p534
      %p536 = scmp.ne.s32.totalorder %s525, %s528
      %p537 = scmp.eq.s32.totalorder %s45, 3
      %p538 = por %p536, %p537
      %p539 = scmp.ne.s32.totalorder %s528, %s529
      %p540 = scmp.eq.s32.totalorder %s45, 0
      %p541 = por %p539, %p540
      %p542 = scmp.ne.s32.totalorder %s528, %s529
      %p543 = scmp.eq.s32.totalorder %s46, 3
      %p544 = por %p542, %p543
      %p546 = scmp.ne.s32.totalorder %s529, %s545
      %p547 = scmp.eq.s32.totalorder %s46, 0
      %p548 = por %p546, %p547
      %s549 = ssub.s32 %s48, %s55
      %p550 = scmp.eq.s32.totalorder %s549, 0
      %s552 = sadd.s32 %s551, 1
      %s553 = scalar_select %p550, %s551, %s552
      %p556 = pneg %p550
      %p557 = scmp.eq.s32.totalorder %s40, 3
      %p558 = por %p556, %p557
      %p559 = scmp.ne.s32.totalorder %s551, %s554
      %p560 = scmp.eq.s32.totalorder %s40, 0
      %p561 = por %p559, %p560
      %p562 = scmp.ne.s32.totalorder %s551, %s554
      %p563 = scmp.eq.s32.totalorder %s45, 3
      %p564 = por %p562, %p563
      %p565 = scmp.ne.s32.totalorder %s554, %s555
      %p566 = scmp.eq.s32.totalorder %s45, 0
      %p567 = por %p565, %p566
      %p568 = scmp.ne.s32.totalorder %s554, %s555
      %p569 = scmp.eq.s32.totalorder %s46, 3
      %p570 = por %p568, %p569
      %p572 = scmp.ne.s32.totalorder %s555, %s571
      %p573 = scmp.eq.s32.totalorder %s46, 0
      %p574 = por %p572, %p573
      %s575 = ssub.s32 %s48, %s55
      %p576 = scmp.eq.s32.totalorder %s575, 0
      %s578 = sadd.s32 %s577, 1
      %s579 = scalar_select %p576, %s577, %s578
      %p582 = pneg %p576
      %p583 = scmp.eq.s32.totalorder %s40, 3
      %p584 = por %p582, %p583
      %p585 = scmp.ne.s32.totalorder %s577, %s580
      %p586 = scmp.eq.s32.totalorder %s40, 0
      %p587 = por %p585, %p586
      %p588 = scmp.ne.s32.totalorder %s577, %s580
      %p589 = scmp.eq.s32.totalorder %s45, 3
      %p590 = por %p588, %p589
      %p591 = scmp.ne.s32.totalorder %s580, %s581
      %p592 = scmp.eq.s32.totalorder %s45, 0
      %p593 = por %p591, %p592
      %p594 = scmp.ne.s32.totalorder %s580, %s581
      %p595 = scmp.eq.s32.totalorder %s46, 3
      %p596 = por %p594, %p595
      %p598 = scmp.ne.s32.totalorder %s581, %s597
      %p599 = scmp.eq.s32.totalorder %s46, 0
      %p600 = por %p598, %p599
      %s601 = ssub.s32 %s48, %s55
      %p602 = scmp.eq.s32.totalorder %s601, 0
      %s604 = sadd.s32 %s603, 1
      %s605 = scalar_select %p602, %s603, %s604
      %p608 = pneg %p602
      %p609 = scmp.eq.s32.totalorder %s40, 3
      %p610 = por %p608, %p609
      %p611 = scmp.ne.s32.totalorder %s603, %s606
      %p612 = scmp.eq.s32.totalorder %s40, 0
      %p613 = por %p611, %p612
      %p614 = scmp.ne.s32.totalorder %s603, %s606
      %p615 = scmp.eq.s32.totalorder %s45, 3
      %p616 = por %p614, %p615
      %p617 = scmp.ne.s32.totalorder %s606, %s607
      %p618 = scmp.eq.s32.totalorder %s45, 0
      %p619 = por %p617, %p618
      %p620 = scmp.ne.s32.totalorder %s606, %s607
      %p621 = scmp.eq.s32.totalorder %s46, 3
      %p622 = por %p620, %p621
      %p624 = scmp.ne.s32.totalorder %s607, %s623
      %p625 = scmp.eq.s32.totalorder %s46, 0
      %p626 = por %p624, %p625
      %s627 = ssub.s32 %s48, %s55
      %p628 = scmp.eq.s32.totalorder %s627, 0
      %s630 = sadd.s32 %s629, 1
      %s631 = scalar_select %p628, %s629, %s630
      %p634 = pneg %p628
      %p635 = scmp.eq.s32.totalorder %s40, 3
      %p636 = por %p634, %p635
      %p637 = scmp.ne.s32.totalorder %s629, %s632
      %p638 = scmp.eq.s32.totalorder %s40, 0
      %p639 = por %p637, %p638
      %p640 = scmp.ne.s32.totalorder %s629, %s632
      %p641 = scmp.eq.s32.totalorder %s45, 3
      %p642 = por %p640, %p641
      %p643 = scmp.ne.s32.totalorder %s632, %s633
      %p644 = scmp.eq.s32.totalorder %s45, 0
      %p645 = por %p643, %p644
      %p646 = scmp.ne.s32.totalorder %s632, %s633
      %p647 = scmp.eq.s32.totalorder %s46, 3
      %p648 = por %p646, %p647
      %p650 = scmp.ne.s32.totalorder %s633, %s649
      %p651 = scmp.eq.s32.totalorder %s46, 0
      %p652 = por %p650, %p651
      %s654 = sadd.s32 %s653, 1
      %p657 = scmp.eq.s32.totalorder %s40, 3
      %p658 = scmp.ne.s32.totalorder %s653, %s655
      %p659 = scmp.eq.s32.totalorder %s40, 0
      %p660 = por %p658, %p659
      %p661 = scmp.ne.s32.totalorder %s653, %s655
      %p662 = scmp.eq.s32.totalorder %s45, 3
      %p663 = por %p661, %p662
      %p664 = scmp.ne.s32.totalorder %s655, %s656
      %p665 = scmp.eq.s32.totalorder %s45, 0
      %p666 = por %p664, %p665
      %p667 = scmp.ne.s32.totalorder %s655, %s656
      %p668 = scmp.eq.s32.totalorder %s46, 3
      %p669 = por %p667, %p668
      %p671 = scmp.ne.s32.totalorder %s656, %s670
      %p672 = scmp.eq.s32.totalorder %s46, 0
      %p673 = por %p671, %p672
      %s675 = sadd.s32 %s674, 1
      %p678 = scmp.eq.s32.totalorder %s40, 3
      %p679 = scmp.ne.s32.totalorder %s674, %s676
      %p680 = scmp.eq.s32.totalorder %s40, 0
      %p681 = por %p679, %p680
      %p682 = scmp.ne.s32.totalorder %s674, %s676
      %p683 = scmp.eq.s32.totalorder %s45, 3
      %p684 = por %p682, %p683
      %p685 = scmp.ne.s32.totalorder %s676, %s677
      %p686 = scmp.eq.s32.totalorder %s45, 0
      %p687 = por %p685, %p686
      %p688 = scmp.ne.s32.totalorder %s676, %s677
      %p689 = scmp.eq.s32.totalorder %s46, 3
      %p690 = por %p688, %p689
      %p692 = scmp.ne.s32.totalorder %s677, %s691
      %p693 = scmp.eq.s32.totalorder %s46, 0
      %p694 = por %p692, %p693
      %s696 = sadd.s32 %s695, 1
      %p699 = scmp.eq.s32.totalorder %s40, 3
      %p700 = scmp.ne.s32.totalorder %s695, %s697
      %p701 = scmp.eq.s32.totalorder %s40, 0
      %p702 = por %p700, %p701
      %p703 = scmp.ne.s32.totalorder %s695, %s697
      %p704 = scmp.eq.s32.totalorder %s45, 3
      %p705 = por %p703, %p704
      %p706 = scmp.ne.s32.totalorder %s697, %s698
      %p707 = scmp.eq.s32.totalorder %s45, 0
      %p708 = por %p706, %p707
      %p709 = scmp.ne.s32.totalorder %s697, %s698
      %p710 = scmp.eq.s32.totalorder %s46, 3
      %p711 = por %p709, %p710
      %p713 = scmp.ne.s32.totalorder %s698, %s712
      %p714 = scmp.eq.s32.totalorder %s46, 0
      %p715 = por %p713, %p714
      %s717 = sadd.s32 %s716, 1
      %p720 = scmp.eq.s32.totalorder %s40, 3
      %p721 = scmp.ne.s32.totalorder %s716, %s718
      %p722 = scmp.eq.s32.totalorder %s40, 0
      %p723 = por %p721, %p722
      %p724 = scmp.ne.s32.totalorder %s716, %s718
      %p725 = scmp.eq.s32.totalorder %s45, 3
      %p726 = por %p724, %p725
      %p727 = scmp.ne.s32.totalorder %s718, %s719
      %p728 = scmp.eq.s32.totalorder %s45, 0
      %p729 = por %p727, %p728
      %p730 = scmp.ne.s32.totalorder %s718, %s719
      %p731 = scmp.eq.s32.totalorder %s46, 3
      %p732 = por %p730, %p731
      %p734 = scmp.ne.s32.totalorder %s719, %s733
      %p735 = scmp.eq.s32.totalorder %s46, 0
      %p736 = por %p734, %p735
      %s737 = ssub.s32 %s47, %s59
      %p738 = scmp.eq.s32.totalorder %s737, 0
      %s740 = sadd.s32 %s739, 1
      %s741 = scalar_select %p738, %s739, %s740
      %p744 = pneg %p738
      %p745 = scmp.eq.s32.totalorder %s40, 3
      %p746 = por %p744, %p745
      %p747 = scmp.ne.s32.totalorder %s739, %s742
      %p748 = scmp.eq.s32.totalorder %s40, 0
      %p749 = por %p747, %p748
      %p750 = scmp.ne.s32.totalorder %s739, %s742
      %p751 = scmp.eq.s32.totalorder %s45, 3
      %p752 = por %p750, %p751
      %p753 = scmp.ne.s32.totalorder %s742, %s743
      %p754 = scmp.eq.s32.totalorder %s45, 0
      %p755 = por %p753, %p754
      %p756 = scmp.ne.s32.totalorder %s742, %s743
      %p757 = scmp.eq.s32.totalorder %s46, 3
      %p758 = por %p756, %p757
      %p760 = scmp.ne.s32.totalorder %s743, %s759
      %p761 = scmp.eq.s32.totalorder %s46, 0
      %p762 = por %p760, %p761
      %p763 = scmp.le.s32.totalorder 1, %s40
      %p764 = scmp.lt.s32.totalorder %s40, 5
      %p765 = pnand %p763, %p764
      %p766 = pneg %p765
      // Predicated region
      $region9: #{_lambda_.3} parent=5 // pred_check
        _
      $region10: #{_lambda_.3} parent=5 // pred_check_branch
        %768 = sbr.rel (%p765) target = $region12
      $region11: #{_lambda_.3} parent=5 // pred_region
        %s769 = ssub.s32 %s40, 1
        // Predicated region
        $region13: #{_lambda_.3} parent=11 // pred_check
          %p770 = pneg %p99
        $region14: #{_lambda_.3} parent=11 // pred_check_branch
          %772 = sbr.rel (%p770) target = $region16
        $region15: #{_lambda_.3} parent=11 // pred_region
          %s774 = ssub.s32 128, 128
          %775 = vsyncadd [#allocation4], %s774
          %s777 = sshll.u32 [#allocation3], 4
          %s778 = int_to_ptr.vmem [resolvable:$true] %s777
          %780 = dma.hbm_to_vmem [thread:$0]  %s1, 128, %s778, [#allocation4]
        $region16: #{_lambda_.3} parent=11 // pred_fallthru
          _
        // Predicated region
        $region17: #{_lambda_.3} parent=11 // pred_check
          %p781 = pneg %p666
        $region18: #{_lambda_.3} parent=11 // pred_check_branch
          %783 = sbr.rel (%p781) target = $region20
        $region19: #{_lambda_.3} parent=11 // pred_region
          _
        $region20: #{_lambda_.3} parent=11 // pred_fallthru
          _
        // Predicated region
        $region21: #{_lambda_.3} parent=11 // pred_check
          %p784 = pneg %p687
        $region22: #{_lambda_.3} parent=11 // pred_check_branch
          %786 = sbr.rel (%p784) target = $region24
        $region23: #{_lambda_.3} parent=11 // pred_region
          _
        $region24: #{_lambda_.3} parent=11 // pred_fallthru
          _
        // Predicated region
        $region25: #{_lambda_.3} parent=11 // pred_check
          %p787 = pneg %p708
        $region26: #{_lambda_.3} parent=11 // pred_check_branch
          %789 = sbr.rel (%p787) target = $region28
        $region27: #{_lambda_.3} parent=11 // pred_region
          _
        $region28: #{_lambda_.3} parent=11 // pred_fallthru
          _
        // Predicated region
        $region29: #{_lambda_.3} parent=11 // pred_check
          %p790 = pneg %p729
        $region30: #{_lambda_.3} parent=11 // pred_check_branch
          %792 = sbr.rel (%p790) target = $region32
        $region31: #{_lambda_.3} parent=11 // pred_region
          _
        $region32: #{_lambda_.3} parent=11 // pred_fallthru
          _
      $region12: #{_lambda_.3} parent=5 // pred_fallthru
        _
      %p793 = scmp.lt.s32.totalorder %s40, 4
      // Predicated region
      $region33: #{_lambda_.3} parent=5 // pred_check
        %p794 = pneg %p793
      $region34: #{_lambda_.3} parent=5 // pred_check_branch
        %796 = sbr.rel (%p794) target = $region36
      $region35: #{_lambda_.3} parent=5 // pred_region
        // Predicated region
        $region37: #{_lambda_.3} parent=35 // pred_check
          %p797 = pneg %p72
        $region38: #{_lambda_.3} parent=35 // pred_check_branch
          %799 = sbr.rel (%p797) target = $region40
        $region39: #{_lambda_.3} parent=35 // pred_region
          %p800 = scmp.lt.s32.totalorder %s47, 1
          %s801 = scalar_select %p800, %s47, 1
          %s802 = smul.addr %s801, 8
          %s803 = scalar_lea.vmem %s0, %s802
        $region40: #{_lambda_.3} parent=35 // pred_fallthru
          _
        // Predicated region
        $region41: #{_lambda_.3} parent=35 // pred_check
          %p804 = pneg %p119
        $region42: #{_lambda_.3} parent=35 // pred_check_branch
          %806 = sbr.rel (%p804) target = $region44
        $region43: #{_lambda_.3} parent=35 // pred_region
          %p807 = scmp.lt.s32.totalorder %s47, 1
          %s808 = scalar_select %p807, %s47, 1
          %s809 = smul.addr %s808, 8
          %s810 = scalar_lea.vmem %s2, %s809
        $region44: #{_lambda_.3} parent=35 // pred_fallthru
          _
        // Predicated region
        $region45: #{_lambda_.3} parent=35 // pred_check
          %p811 = pneg %p145
        $region46: #{_lambda_.3} parent=35 // pred_check_branch
          %813 = sbr.rel (%p811) target = $region48
        $region47: #{_lambda_.3} parent=35 // pred_region
          %p814 = scmp.lt.s32.totalorder %s48, 1
          %s815 = scalar_select %p814, %s48, 1
          %s816 = smul.addr %s815, 48
          %s817 = smul.addr %s816, 4
          %s818 = scalar_lea.vmem %s3, %s817
        $region48: #{_lambda_.3} parent=35 // pred_fallthru
          _
        // Predicated region
        $region49: #{_lambda_.3} parent=35 // pred_check
          %p819 = pneg %p171
        $region50: #{_lambda_.3} parent=35 // pred_check_branch
          %821 = sbr.rel (%p819) target = $region52
        $region51: #{_lambda_.3} parent=35 // pred_region
          %p822 = scmp.lt.s32.totalorder %s48, 1
          %s823 = scalar_select %p822, %s48, 1
          %s824 = smul.addr %s823, 12
          %s825 = scalar_lea.vmem %s4, %s824
        $region52: #{_lambda_.3} parent=35 // pred_fallthru
          _
        // Predicated region
        $region53: #{_lambda_.3} parent=35 // pred_check
          %p826 = pneg %p197
        $region54: #{_lambda_.3} parent=35 // pred_check_branch
          %828 = sbr.rel (%p826) target = $region56
        $region55: #{_lambda_.3} parent=35 // pred_region
          %s829 = sand.u32 %s40, 1
          %s830 = scalar_lea.sflag [#allocation6], %s829
          %s831 = sand.u32 %s187, 1
          %s832 = smul.addr %s831, 16
          %s833 = scalar_lea.vmem [#allocation5], %s832
          %s835 = ssub.s32 256, 256
          %836 = vsyncadd %s830, %s835
          %s837 = smul.addr %s48, 4
          %s838 = smul.addr %s837, 64
          %s839 = scalar_lea.hbm %s5, %s838
          %s840 = sshll.u32 %s833, 4
          %s841 = int_to_ptr.vmem [resolvable:$true] %s840
          %846 = dma.hbm_to_vmem [thread:$0]  %s839, 256, %s841, %s830, 64, 64, 4
        $region56: #{_lambda_.3} parent=35 // pred_fallthru
          _
        // Predicated region
        $region57: #{_lambda_.3} parent=35 // pred_check
          %p847 = pneg %p223
        $region58: #{_lambda_.3} parent=35 // pred_check_branch
          %849 = sbr.rel (%p847) target = $region60
        $region59: #{_lambda_.3} parent=35 // pred_region
          %p850 = scmp.lt.s32.totalorder %s48, 1
          %s851 = scalar_select %p850, %s48, 1
          %s852 = scalar_lea.vmem %s6, %s851
        $region60: #{_lambda_.3} parent=35 // pred_fallthru
          _
        // Predicated region
        $region61: #{_lambda_.3} parent=35 // pred_check
          %p853 = pneg %p249
        $region62: #{_lambda_.3} parent=35 // pred_check_branch
          %855 = sbr.rel (%p853) target = $region64
        $region63: #{_lambda_.3} parent=35 // pred_region
          %s856 = sand.u32 %s40, 1
          %s857 = scalar_lea.sflag [#allocation6], %s856
          %s858 = sand.u32 %s239, 1
          %s859 = smul.addr %s858, 64
          %s860 = scalar_lea.vmem [#allocation7], %s859
          %s862 = ssub.s32 1024, 1024
          %863 = vsyncadd %s857, %s862
          %s864 = smul.addr %s48, 16
          %s865 = smul.addr %s864, 64
          %s866 = scalar_lea.hbm %s7, %s865
          %s867 = sshll.u32 %s860, 4
          %s868 = int_to_ptr.vmem [resolvable:$true] %s867
          %873 = dma.hbm_to_vmem [thread:$0]  %s866, 1024, %s868, %s857, 64, 64, 4
        $region64: #{_lambda_.3} parent=35 // pred_fallthru
          _
        // Predicated region
        $region65: #{_lambda_.3} parent=35 // pred_check
          %p874 = pneg %p275
        $region66: #{_lambda_.3} parent=35 // pred_check_branch
          %876 = sbr.rel (%p874) target = $region68
        $region67: #{_lambda_.3} parent=35 // pred_region
          %p877 = scmp.lt.s32.totalorder %s48, 1
          %s878 = scalar_select %p877, %s48, 1
          %s879 = smul.addr %s878, 4
          %s880 = scalar_lea.vmem %s8, %s879
        $region68: #{_lambda_.3} parent=35 // pred_fallthru
          _
        // Predicated region
        $region69: #{_lambda_.3} parent=35 // pred_check
          %p881 = pneg %p301
        $region70: #{_lambda_.3} parent=35 // pred_check_branch
          %883 = sbr.rel (%p881) target = $region72
        $region71: #{_lambda_.3} parent=35 // pred_region
          %p884 = scmp.lt.s32.totalorder %s48, 1
          %s885 = scalar_select %p884, %s48, 1
          %s886 = smul.addr %s885, 32
          %s887 = smul.addr %s886, 4
          %s888 = scalar_lea.vmem %s9, %s887
        $region72: #{_lambda_.3} parent=35 // pred_fallthru
          _
        // Predicated region
        $region73: #{_lambda_.3} parent=35 // pred_check
          %p889 = pneg %p327
        $region74: #{_lambda_.3} parent=35 // pred_check_branch
          %891 = sbr.rel (%p889) target = $region76
        $region75: #{_lambda_.3} parent=35 // pred_region
          %p892 = scmp.lt.s32.totalorder %s48, 1
          %s893 = scalar_select %p892, %s48, 1
          %s894 = smul.addr %s893, 8
          %s895 = scalar_lea.vmem %s10, %s894
        $region76: #{_lambda_.3} parent=35 // pred_fallthru
          _
        // Predicated region
        $region77: #{_lambda_.3} parent=35 // pred_check
          %p896 = pneg %p353
        $region78: #{_lambda_.3} parent=35 // pred_check_branch
          %898 = sbr.rel (%p896) target = $region80
        $region79: #{_lambda_.3} parent=35 // pred_region
          %s899 = sand.u32 %s40, 1
          %s900 = scalar_lea.sflag [#allocation9], %s899
          %s901 = sand.u32 %s343, 1
          %s902 = smul.addr %s901, 16
          %s903 = scalar_lea.vmem [#allocation8], %s902
          %s905 = ssub.s32 256, 256
          %906 = vsyncadd %s900, %s905
          %s907 = smul.addr %s48, 4
          %s908 = smul.addr %s907, 64
          %s909 = scalar_lea.hbm %s11, %s908
          %s910 = sshll.u32 %s903, 4
          %s911 = int_to_ptr.vmem [resolvable:$true] %s910
          %916 = dma.hbm_to_vmem [thread:$0]  %s909, 256, %s911, %s900, 64, 64, 4
        $region80: #{_lambda_.3} parent=35 // pred_fallthru
          _
        // Predicated region
        $region81: #{_lambda_.3} parent=35 // pred_check
          %p917 = pneg %p379
        $region82: #{_lambda_.3} parent=35 // pred_check_branch
          %919 = sbr.rel (%p917) target = $region84
        $region83: #{_lambda_.3} parent=35 // pred_region
          %p920 = scmp.lt.s32.totalorder %s48, 1
          %s921 = scalar_select %p920, %s48, 1
          %s922 = scalar_lea.vmem %s12, %s921
        $region84: #{_lambda_.3} parent=35 // pred_fallthru
          _
        // Predicated region
        $region85: #{_lambda_.3} parent=35 // pred_check
          %p923 = pneg %p405
        $region86: #{_lambda_.3} parent=35 // pred_check_branch
          %925 = sbr.rel (%p923) target = $region88
        $region87: #{_lambda_.3} parent=35 // pred_region
          %s926 = sand.u32 %s40, 1
          %s927 = scalar_lea.sflag [#allocation9], %s926
          %s928 = sand.u32 %s395, 1
          %s929 = smul.addr %s928, 16
          %s930 = scalar_lea.vmem [#allocation10], %s929
          %s932 = ssub.s32 256, 256
          %933 = vsyncadd %s927, %s932
          %s934 = smul.addr %s48, 4
          %s935 = smul.addr %s934, 64
          %s936 = scalar_lea.hbm %s13, %s935
          %s937 = sshll.u32 %s930, 4
          %s938 = int_to_ptr.vmem [resolvable:$true] %s937
          %943 = dma.hbm_to_vmem [thread:$0]  %s936, 256, %s938, %s927, 64, 64, 4
        $region88: #{_lambda_.3} parent=35 // pred_fallthru
          _
        // Predicated region
        $region89: #{_lambda_.3} parent=35 // pred_check
          %p944 = pneg %p431
        $region90: #{_lambda_.3} parent=35 // pred_check_branch
          %946 = sbr.rel (%p944) target = $region92
        $region91: #{_lambda_.3} parent=35 // pred_region
          %p947 = scmp.lt.s32.totalorder %s48, 1
          %s948 = scalar_select %p947, %s48, 1
          %s949 = scalar_lea.vmem %s14, %s948
        $region92: #{_lambda_.3} parent=35 // pred_fallthru
          _
        // Predicated region
        $region93: #{_lambda_.3} parent=35 // pred_check
          %p950 = pneg %p457
        $region94: #{_lambda_.3} parent=35 // pred_check_branch
          %952 = sbr.rel (%p950) target = $region96
        $region95: #{_lambda_.3} parent=35 // pred_region
          %p953 = scmp.lt.s32.totalorder %s48, 1
          %s954 = scalar_select %p953, %s48, 1
          %s955 = smul.addr %s954, 8
          %s956 = smul.addr %s955, 4
          %s957 = scalar_lea.vmem %s15, %s956
        $region96: #{_lambda_.3} parent=35 // pred_fallthru
          _
        // Predicated region
        $region97: #{_lambda_.3} parent=35 // pred_check
          %p958 = pneg %p483
        $region98: #{_lambda_.3} parent=35 // pred_check_branch
          %960 = sbr.rel (%p958) target = $region100
        $region99: #{_lambda_.3} parent=35 // pred_region
          %p961 = scmp.lt.s32.totalorder %s48, 1
          %s962 = scalar_select %p961, %s48, 1
          %s963 = scalar_lea.vmem %s16, %s962
        $region100: #{_lambda_.3} parent=35 // pred_fallthru
          _
        // Predicated region
        $region101: #{_lambda_.3} parent=35 // pred_check
          %p964 = pneg %p509
        $region102: #{_lambda_.3} parent=35 // pred_check_branch
          %966 = sbr.rel (%p964) target = $region104
        $region103: #{_lambda_.3} parent=35 // pred_region
          %p967 = scmp.lt.s32.totalorder %s48, 1
          %s968 = scalar_select %p967, %s48, 1
          %s969 = scalar_lea.vmem %s17, %s968
        $region104: #{_lambda_.3} parent=35 // pred_fallthru
          _
        // Predicated region
        $region105: #{_lambda_.3} parent=35 // pred_check
          %p970 = pneg %p535
        $region106: #{_lambda_.3} parent=35 // pred_check_branch
          %972 = sbr.rel (%p970) target = $region108
        $region107: #{_lambda_.3} parent=35 // pred_region
          %p973 = scmp.lt.s32.totalorder %s48, 1
          %s974 = scalar_select %p973, %s48, 1
          %s975 = scalar_lea.vmem %s18, %s974
        $region108: #{_lambda_.3} parent=35 // pred_fallthru
          _
        // Predicated region
        $region109: #{_lambda_.3} parent=35 // pred_check
          %p976 = pneg %p561
        $region110: #{_lambda_.3} parent=35 // pred_check_branch
          %978 = sbr.rel (%p976) target = $region112
        $region111: #{_lambda_.3} parent=35 // pred_region
          %p979 = scmp.lt.s32.totalorder %s48, 1
          %s980 = scalar_select %p979, %s48, 1
          %s981 = scalar_lea.vmem %s19, %s980
        $region112: #{_lambda_.3} parent=35 // pred_fallthru
          _
        // Predicated region
        $region113: #{_lambda_.3} parent=35 // pred_check
          %p982 = pneg %p587
        $region114: #{_lambda_.3} parent=35 // pred_check_branch
          %984 = sbr.rel (%p982) target = $region116
        $region115: #{_lambda_.3} parent=35 // pred_region
          %p985 = scmp.lt.s32.totalorder %s48, 1
          %s986 = scalar_select %p985, %s48, 1
          %s987 = scalar_lea.vmem %s20, %s986
        $region116: #{_lambda_.3} parent=35 // pred_fallthru
          _
        // Predicated region
        $region117: #{_lambda_.3} parent=35 // pred_check
          %p988 = pneg %p613
        $region118: #{_lambda_.3} parent=35 // pred_check_branch
          %990 = sbr.rel (%p988) target = $region120
        $region119: #{_lambda_.3} parent=35 // pred_region
          %p991 = scmp.lt.s32.totalorder %s48, 1
          %s992 = scalar_select %p991, %s48, 1
          %s993 = scalar_lea.vmem %s21, %s992
        $region120: #{_lambda_.3} parent=35 // pred_fallthru
          _
        // Predicated region
        $region121: #{_lambda_.3} parent=35 // pred_check
          %p994 = pneg %p639
        $region122: #{_lambda_.3} parent=35 // pred_check_branch
          %996 = sbr.rel (%p994) target = $region124
        $region123: #{_lambda_.3} parent=35 // pred_region
          %p997 = scmp.lt.s32.totalorder %s48, 1
          %s998 = scalar_select %p997, %s48, 1
          %s999 = scalar_lea.vmem %s22, %s998
        $region124: #{_lambda_.3} parent=35 // pred_fallthru
          _
      $region36: #{_lambda_.3} parent=5 // pred_fallthru
        _
      %p1000 = scmp.le.s32.totalorder 1, %s40
      %p1001 = scmp.lt.s32.totalorder %s40, 5
      %p1002 = pnand %p1000, %p1001
      %p1003 = pneg %p1002
      // Predicated region
      $region125: #{_lambda_.3} parent=5 // pred_check
        _
      $region126: #{_lambda_.3} parent=5 // pred_check_branch
        %1005 = sbr.rel (%p1002) target = $region128
      $region127: #{_lambda_.3} parent=5 // pred_region
        %s1006 = ssub.s32 %s40, 1
        // Predicated region
        $region129: #{_lambda_.3} parent=127 // pred_check
          %p1007 = pneg %p99
        $region130: #{_lambda_.3} parent=127 // pred_check_branch
          %1009 = sbr.rel (%p1007) target = $region132
        $region131: #{_lambda_.3} parent=127 // pred_region
          %1010 = dma.done [#allocation4], 128
        $region132: #{_lambda_.3} parent=127 // pred_fallthru
          _
        %s1011 = sand.u32 %s45, 1
        %s1012 = scalar_lea.sflag [#allocation6], %s1011
        %s1013 = sand.u32 %s190, 1
        %s1014 = smul.addr %s1013, 16
        %s1015 = scalar_lea.vmem [#allocation5], %s1014
        // Predicated region
        $region133: #{_lambda_.3} parent=127 // pred_check
          %p1016 = pneg %p203
        $region134: #{_lambda_.3} parent=127 // pred_check_branch
          %1018 = sbr.rel (%p1016) target = $region136
        $region135: #{_lambda_.3} parent=127 // pred_region
          %1019 = dma.done %s1012, 256
        $region136: #{_lambda_.3} parent=127 // pred_fallthru
          _
        %s1020 = sand.u32 %s45, 1
        %s1021 = scalar_lea.sflag [#allocation6], %s1020
        %s1022 = sand.u32 %s242, 1
        %s1023 = smul.addr %s1022, 64
        %s1024 = scalar_lea.vmem [#allocation7], %s1023
        // Predicated region
        $region137: #{_lambda_.3} parent=127 // pred_check
          %p1025 = pneg %p255
        $region138: #{_lambda_.3} parent=127 // pred_check_branch
          %1027 = sbr.rel (%p1025) target = $region140
        $region139: #{_lambda_.3} parent=127 // pred_region
          %1028 = dma.done %s1021, 1024
        $region140: #{_lambda_.3} parent=127 // pred_fallthru
          _
        %s1029 = sand.u32 %s45, 1
        %s1030 = scalar_lea.sflag [#allocation9], %s1029
        %s1031 = sand.u32 %s346, 1
        %s1032 = smul.addr %s1031, 16
        %s1033 = scalar_lea.vmem [#allocation8], %s1032
        // Predicated region
        $region141: #{_lambda_.3} parent=127 // pred_check
          %p1034 = pneg %p359
        $region142: #{_lambda_.3} parent=127 // pred_check_branch
          %1036 = sbr.rel (%p1034) target = $region144
        $region143: #{_lambda_.3} parent=127 // pred_region
          %1037 = dma.done %s1030, 256
        $region144: #{_lambda_.3} parent=127 // pred_fallthru
          _
        %s1038 = sand.u32 %s45, 1
        %s1039 = scalar_lea.sflag [#allocation9], %s1038
        %s1040 = sand.u32 %s398, 1
        %s1041 = smul.addr %s1040, 16
        %s1042 = scalar_lea.vmem [#allocation10], %s1041
        // Predicated region
        $region145: #{_lambda_.3} parent=127 // pred_check
          %p1043 = pneg %p411
        $region146: #{_lambda_.3} parent=127 // pred_check_branch
          %1045 = sbr.rel (%p1043) target = $region148
        $region147: #{_lambda_.3} parent=127 // pred_region
          %1046 = dma.done %s1039, 256
        $region148: #{_lambda_.3} parent=127 // pred_fallthru
          _
        %p1047 = scmp.lt.s32.totalorder %s49, 1
        %s1048 = scalar_select %p1047, %s49, 1
        %s1049 = smul.addr %s1048, 8
        %s1050 = scalar_lea.vmem %s0, %s1049
        %p1051 = pneg %p78
        %p1052 = pneg %p75
        %p1053 = pneg %p99
        %p1054 = pneg %p96
        %p1055 = scmp.lt.s32.totalorder %s49, 1
        %s1056 = scalar_select %p1055, %s49, 1
        %s1057 = smul.addr %s1056, 8
        %s1058 = scalar_lea.vmem %s2, %s1057
        %p1059 = pneg %p125
        %p1060 = pneg %p122
        %p1061 = scmp.lt.s32.totalorder %s50, 1
        %s1062 = scalar_select %p1061, %s50, 1
        %s1063 = smul.addr %s1062, 48
        %s1064 = smul.addr %s1063, 4
        %s1065 = scalar_lea.vmem %s3, %s1064
        %p1066 = pneg %p151
        %p1067 = pneg %p148
        %p1068 = scmp.lt.s32.totalorder %s50, 1
        %s1069 = scalar_select %p1068, %s50, 1
        %s1070 = smul.addr %s1069, 12
        %s1071 = scalar_lea.vmem %s4, %s1070
        %p1072 = pneg %p177
        %p1073 = pneg %p174
        %s1074 = sand.u32 %s45, 1
        %s1075 = scalar_lea.sflag [#allocation6], %s1074
        %s1076 = sand.u32 %s190, 1
        %s1077 = smul.addr %s1076, 16
        %s1078 = scalar_lea.vmem [#allocation5], %s1077
        %p1079 = pneg %p203
        %p1080 = pneg %p200
        %p1081 = scmp.lt.s32.totalorder %s50, 1
        %s1082 = scalar_select %p1081, %s50, 1
        %s1083 = scalar_lea.vmem %s6, %s1082
        %p1084 = pneg %p229
        %p1085 = pneg %p226
        %s1086 = sand.u32 %s45, 1
        %s1087 = scalar_lea.sflag [#allocation6], %s1086
        %s1088 = sand.u32 %s242, 1
        %s1089 = smul.addr %s1088, 64
        %s1090 = scalar_lea.vmem [#allocation7], %s1089
        %p1091 = pneg %p255
        %p1092 = pneg %p252
        %p1093 = scmp.lt.s32.totalorder %s50, 1
        %s1094 = scalar_select %p1093, %s50, 1
        %s1095 = smul.addr %s1094, 4
        %s1096 = scalar_lea.vmem %s8, %s1095
        %p1097 = pneg %p281
        %p1098 = pneg %p278
        %p1099 = scmp.lt.s32.totalorder %s50, 1
        %s1100 = scalar_select %p1099, %s50, 1
        %s1101 = smul.addr %s1100, 32
        %s1102 = smul.addr %s1101, 4
        %s1103 = scalar_lea.vmem %s9, %s1102
        %p1104 = pneg %p307
        %p1105 = pneg %p304
        %p1106 = scmp.lt.s32.totalorder %s50, 1
        %s1107 = scalar_select %p1106, %s50, 1
        %s1108 = smul.addr %s1107, 8
        %s1109 = scalar_lea.vmem %s10, %s1108
        %p1110 = pneg %p333
        %p1111 = pneg %p330
        %s1112 = sand.u32 %s45, 1
        %s1113 = scalar_lea.sflag [#allocation9], %s1112
        %s1114 = sand.u32 %s346, 1
        %s1115 = smul.addr %s1114, 16
        %s1116 = scalar_lea.vmem [#allocation8], %s1115
        %p1117 = pneg %p359
        %p1118 = pneg %p356
        %p1119 = scmp.lt.s32.totalorder %s50, 1
        %s1120 = scalar_select %p1119, %s50, 1
        %s1121 = scalar_lea.vmem %s12, %s1120
        %p1122 = pneg %p385
        %p1123 = pneg %p382
        %s1124 = sand.u32 %s45, 1
        %s1125 = scalar_lea.sflag [#allocation9], %s1124
        %s1126 = sand.u32 %s398, 1
        %s1127 = smul.addr %s1126, 16
        %s1128 = scalar_lea.vmem [#allocation10], %s1127
        %p1129 = pneg %p411
        %p1130 = pneg %p408
        %p1131 = scmp.lt.s32.totalorder %s50, 1
        %s1132 = scalar_select %p1131, %s50, 1
        %s1133 = scalar_lea.vmem %s14, %s1132
        %p1134 = pneg %p437
        %p1135 = pneg %p434
        %p1136 = scmp.lt.s32.totalorder %s50, 1
        %s1137 = scalar_select %p1136, %s50, 1
        %s1138 = smul.addr %s1137, 8
        %s1139 = smul.addr %s1138, 4
        %s1140 = scalar_lea.vmem %s15, %s1139
        %p1141 = pneg %p463
        %p1142 = pneg %p460
        %p1143 = scmp.lt.s32.totalorder %s50, 1
        %s1144 = scalar_select %p1143, %s50, 1
        %s1145 = scalar_lea.vmem %s16, %s1144
        %p1146 = pneg %p489
        %p1147 = pneg %p486
        %p1148 = scmp.lt.s32.totalorder %s50, 1
        %s1149 = scalar_select %p1148, %s50, 1
        %s1150 = scalar_lea.vmem %s17, %s1149
        %p1151 = pneg %p515
        %p1152 = pneg %p512
        %p1153 = scmp.lt.s32.totalorder %s50, 1
        %s1154 = scalar_select %p1153, %s50, 1
        %s1155 = scalar_lea.vmem %s18, %s1154
        %p1156 = pneg %p541
        %p1157 = pneg %p538
        %p1158 = scmp.lt.s32.totalorder %s50, 1
        %s1159 = scalar_select %p1158, %s50, 1
        %s1160 = scalar_lea.vmem %s19, %s1159
        %p1161 = pneg %p567
        %p1162 = pneg %p564
        %p1163 = scmp.lt.s32.totalorder %s50, 1
        %s1164 = scalar_select %p1163, %s50, 1
        %s1165 = scalar_lea.vmem %s20, %s1164
        %p1166 = pneg %p593
        %p1167 = pneg %p590
        %p1168 = scmp.lt.s32.totalorder %s50, 1
        %s1169 = scalar_select %p1168, %s50, 1
        %s1170 = scalar_lea.vmem %s21, %s1169
        %p1171 = pneg %p619
        %p1172 = pneg %p616
        %p1173 = scmp.lt.s32.totalorder %s50, 1
        %s1174 = scalar_select %p1173, %s50, 1
        %s1175 = scalar_lea.vmem %s22, %s1174
        %p1176 = pneg %p645
        %p1177 = pneg %p642
        %p1178 = pneg %p666
        %p1179 = pneg %p663
        %p1180 = pneg %p687
        %p1181 = pneg %p684
        %p1182 = pneg %p708
        %p1183 = pneg %p705
        %p1184 = pneg %p729
        %p1185 = pneg %p726
        %p1186 = pneg %p755
        %p1187 = pneg %p752
        %p1188 = scmp.lt.s32.totalorder %s49, 1
        %s1189 = scalar_select %p1188, %s49, 1
        %s1190 = smul.addr %s1189, 8
        %s1191 = scalar_lea.vmem %s27, %s1190
        %p1192 = scmp.lt.s32.totalorder %s49, 1
        %s1193 = scalar_select %p1192, %s49, 1
        %s1194 = smul.addr %s1193, 8
        %s1195 = scalar_lea.vmem %s0, %s1194
        %p1196 = scmp.lt.s32.totalorder %s49, 1
        %s1197 = scalar_select %p1196, %s49, 1
        %s1198 = smul.addr %s1197, 8
        %s1199 = scalar_lea.vmem %s2, %s1198
        %p1200 = scmp.lt.s32.totalorder %s50, 1
        %s1201 = scalar_select %p1200, %s50, 1
        %s1202 = smul.addr %s1201, 48
        %s1203 = smul.addr %s1202, 4
        %s1204 = scalar_lea.vmem %s3, %s1203
        %p1205 = scmp.lt.s32.totalorder %s50, 1
        %s1206 = scalar_select %p1205, %s50, 1
        %s1207 = smul.addr %s1206, 12
        %s1208 = scalar_lea.vmem %s4, %s1207
        %p1209 = scmp.lt.s32.totalorder %s50, 1
        %s1210 = scalar_select %p1209, %s50, 1
        %s1211 = scalar_lea.vmem %s6, %s1210
        %p1212 = scmp.lt.s32.totalorder %s50, 1
        %s1213 = scalar_select %p1212, %s50, 1
        %s1214 = smul.addr %s1213, 4
        %s1215 = scalar_lea.vmem %s8, %s1214
        %p1216 = scmp.lt.s32.totalorder %s50, 1
        %s1217 = scalar_select %p1216, %s50, 1
        %s1218 = smul.addr %s1217, 32
        %s1219 = smul.addr %s1218, 4
        %s1220 = scalar_lea.vmem %s9, %s1219
        %p1221 = scmp.lt.s32.totalorder %s50, 1
        %s1222 = scalar_select %p1221, %s50, 1
        %s1223 = smul.addr %s1222, 8
        %s1224 = scalar_lea.vmem %s10, %s1223
        %p1225 = scmp.lt.s32.totalorder %s50, 1
        %s1226 = scalar_select %p1225, %s50, 1
        %s1227 = scalar_lea.vmem %s12, %s1226
        %p1228 = scmp.lt.s32.totalorder %s50, 1
        %s1229 = scalar_select %p1228, %s50, 1
        %s1230 = scalar_lea.vmem %s14, %s1229
        %p1231 = scmp.lt.s32.totalorder %s50, 1
        %s1232 = scalar_select %p1231, %s50, 1
        %s1233 = smul.addr %s1232, 8
        %s1234 = smul.addr %s1233, 4
        %s1235 = scalar_lea.vmem %s15, %s1234
        %p1236 = scmp.lt.s32.totalorder %s50, 1
        %s1237 = scalar_select %p1236, %s50, 1
        %s1238 = scalar_lea.vmem %s16, %s1237
        %p1239 = scmp.lt.s32.totalorder %s50, 1
        %s1240 = scalar_select %p1239, %s50, 1
        %s1241 = scalar_lea.vmem %s17, %s1240
        %p1242 = scmp.lt.s32.totalorder %s50, 1
        %s1243 = scalar_select %p1242, %s50, 1
        %s1244 = scalar_lea.vmem %s18, %s1243
        %p1245 = scmp.lt.s32.totalorder %s50, 1
        %s1246 = scalar_select %p1245, %s50, 1
        %s1247 = scalar_lea.vmem %s19, %s1246
        %p1248 = scmp.lt.s32.totalorder %s50, 1
        %s1249 = scalar_select %p1248, %s50, 1
        %s1250 = scalar_lea.vmem %s20, %s1249
        %p1251 = scmp.lt.s32.totalorder %s50, 1
        %s1252 = scalar_select %p1251, %s50, 1
        %s1253 = scalar_lea.vmem %s21, %s1252
        %p1254 = scmp.lt.s32.totalorder %s50, 1
        %s1255 = scalar_select %p1254, %s50, 1
        %s1256 = scalar_lea.vmem %s22, %s1255
        %p1257 = scmp.lt.s32.totalorder %s49, 1
        %s1258 = scalar_select %p1257, %s49, 1
        %s1259 = smul.addr %s1258, 8
        %s1260 = scalar_lea.vmem %s27, %s1259
        %p1262 = scmp.eq.s32.totalorder %s50, 0
        // Predicated region
        $region149: #{_lambda_.3} parent=127 // pred_check
          %p1263 = pneg %p1262
        $region150: #{_lambda_.3} parent=127 // pred_check_branch
          %1265 = sbr.rel (%p1263) target = $region152
        $region151: #{_lambda_.3} parent=127 // pred_region
          %v1266 = vld [vmem:[%s1195] sm:$0xff]
          %v1267 = vmul.f32 %v1266, 5.656854
          %v1268 = vld [vmem:[#allocation3] sm:$0xff]
          %v1269 = vadd.f32 %v1267, %v1268
          %vm1270 = vcmask 261120
          %1271 = vst.msk [vmem:[#allocation2] sm:$0xff] %vm1270, %v1269
        $region152: #{_lambda_.3} parent=127 // pred_fallthru
          _
        %v1272 = vld [vmem:[#allocation2] sm:$0xff]
        %v1273 = vpack.c.bf16 %v1272, %v1272
        %v1274 = vlaneseq
        %v1275 = vshrl.u32 %v1274, 7
        %v1276 = vlaneseq
        %v1277 = vand.u32 %v1276, 127
        %vm1278 = vcmp.gt.s32.totalorder %v1277, %v1275
        %v1279 = vsel %vm1278, -1e+09, 0.0
        %v1280 = vld [vmem:[%s1204] sm:$0xf]
        %v1281 = vld [vmem:[%s1204 + $0x4] sm:$0xf]
        %v1282 = vld [vmem:[%s1204 + $0x8] sm:$0xf]
        %v1283 = vld [vmem:[%s1204 + $0xc] sm:$0xf]
        %v1284 = vld [vmem:[%s1204 + $0x10] sm:$0xf]
        %v1285 = vld [vmem:[%s1204 + $0x14] sm:$0xf]
        %v1286 = vld [vmem:[%s1204 + $0x18] sm:$0xf]
        %v1287 = vld [vmem:[%s1204 + $0x1c] sm:$0xf]
        %v1288 = vld [vmem:[%s1204 + $0x20] sm:$0xf]
        %v1289 = vld [vmem:[%s1204 + $0x24] sm:$0xf]
        %v1290 = vld [vmem:[%s1204 + $0x28] sm:$0xf]
        %v1291 = vld [vmem:[%s1204 + $0x2c] sm:$0xf]
        %v1292 = vld [vmem:[%s1204 + $0x30] sm:$0xf]
        %v1293 = vld [vmem:[%s1204 + $0x34] sm:$0xf]
        %v1294 = vld [vmem:[%s1204 + $0x38] sm:$0xf]
        %v1295 = vld [vmem:[%s1204 + $0x3c] sm:$0xf]
        %v1296 = vld [vmem:[%s1204 + $0x40] sm:$0xf]
        %v1297 = vld [vmem:[%s1204 + $0x44] sm:$0xf]
        %v1298 = vld [vmem:[%s1204 + $0x48] sm:$0xf]
        %v1299 = vld [vmem:[%s1204 + $0x4c] sm:$0xf]
        %v1300 = vld [vmem:[%s1204 + $0x50] sm:$0xf]
        %v1301 = vld [vmem:[%s1204 + $0x54] sm:$0xf]
        %v1302 = vld [vmem:[%s1204 + $0x58] sm:$0xf]
        %v1303 = vld [vmem:[%s1204 + $0x5c] sm:$0xf]
        %v1304 = vld [vmem:[%s1204 + $0x60] sm:$0xf]
        %v1305 = vld [vmem:[%s1204 + $0x64] sm:$0xf]
        %v1306 = vld [vmem:[%s1204 + $0x68] sm:$0xf]
        %v1307 = vld [vmem:[%s1204 + $0x6c] sm:$0xf]
        %v1308 = vld [vmem:[%s1204 + $0x70] sm:$0xf]
        %v1309 = vld [vmem:[%s1204 + $0x74] sm:$0xf]
        %v1310 = vld [vmem:[%s1204 + $0x78] sm:$0xf]
        %v1311 = vld [vmem:[%s1204 + $0x7c] sm:$0xf]
        %v1312 = vld [vmem:[%s1204 + $0x80] sm:$0xf]
        %v1313 = vld [vmem:[%s1204 + $0x84] sm:$0xf]
        %v1314 = vld [vmem:[%s1204 + $0x88] sm:$0xf]
        %v1315 = vld [vmem:[%s1204 + $0x8c] sm:$0xf]
        %v1316 = vld [vmem:[%s1204 + $0x90] sm:$0xf]
        %v1317 = vld [vmem:[%s1204 + $0x94] sm:$0xf]
        %v1318 = vld [vmem:[%s1204 + $0x98] sm:$0xf]
        %v1319 = vld [vmem:[%s1204 + $0x9c] sm:$0xf]
        %v1320 = vld [vmem:[%s1204 + $0xa0] sm:$0xf]
        %v1321 = vld [vmem:[%s1204 + $0xa4] sm:$0xf]
        %v1322 = vld [vmem:[%s1204 + $0xa8] sm:$0xf]
        %v1323 = vld [vmem:[%s1204 + $0xac] sm:$0xf]
        %v1324 = vld [vmem:[%s1204 + $0xb0] sm:$0xf]
        %v1325 = vld [vmem:[%s1204 + $0xb4] sm:$0xf]
        %v1326 = vld [vmem:[%s1204 + $0xb8] sm:$0xf]
        %v1327 = vld [vmem:[%s1204 + $0xbc] sm:$0xf]
        %v1328 = vld [vmem:[%s1208] sm:$0x1]
        %v1329 = vld [vmem:[%s1208 + $0x1] sm:$0x1]
        %v1330 = vld [vmem:[%s1208 + $0x2] sm:$0x1]
        %v1331 = vld [vmem:[%s1208 + $0x3] sm:$0x1]
        %v1332 = vld [vmem:[%s1208 + $0x4] sm:$0x1]
        %v1333 = vld [vmem:[%s1208 + $0x5] sm:$0x1]
        %v1334 = vld [vmem:[%s1208 + $0x6] sm:$0x1]
        %v1335 = vld [vmem:[%s1208 + $0x7] sm:$0x1]
        %v1336 = vld [vmem:[%s1208 + $0x8] sm:$0x1]
        %v1337 = vld [vmem:[%s1208 + $0x9] sm:$0x1]
        %v1338 = vld [vmem:[%s1208 + $0xa] sm:$0x1]
        %v1339 = vld [vmem:[%s1208 + $0xb] sm:$0x1]
        %v1352 = vlaneseq
        %v1353 = vshrl.u32 %v1352, 7
        %v1354 = vsub.s32 0, %v1353
        %v1355 = vrot.slane %v1328, %v1354
        %v1356 = vlaneseq
        %v1357 = vshrl.u32 %v1356, 7
        %v1358 = vsub.s32 0, %v1357
        %v1359 = vrot.slane %v1329, %v1358
        %v1360 = vlaneseq
        %v1361 = vshrl.u32 %v1360, 7
        %v1362 = vsub.s32 0, %v1361
        %v1363 = vrot.slane %v1330, %v1362
        %v1364 = vlaneseq
        %v1365 = vshrl.u32 %v1364, 7
        %v1366 = vsub.s32 0, %v1365
        %v1367 = vrot.slane %v1331, %v1366
        %v1368 = vlaneseq
        %v1369 = vshrl.u32 %v1368, 7
        %v1370 = vsub.s32 0, %v1369
        %v1371 = vrot.slane %v1332, %v1370
        %v1372 = vlaneseq
        %v1373 = vshrl.u32 %v1372, 7
        %v1374 = vsub.s32 0, %v1373
        %v1375 = vrot.slane %v1333, %v1374
        %v1376 = vlaneseq
        %v1377 = vshrl.u32 %v1376, 7
        %v1378 = vsub.s32 0, %v1377
        %v1379 = vrot.slane %v1334, %v1378
        %v1380 = vlaneseq
        %v1381 = vshrl.u32 %v1380, 7
        %v1382 = vsub.s32 0, %v1381
        %v1383 = vrot.slane %v1335, %v1382
        %v1384 = vlaneseq
        %v1385 = vshrl.u32 %v1384, 7
        %v1386 = vsub.s32 0, %v1385
        %v1387 = vrot.slane %v1336, %v1386
        %v1388 = vlaneseq
        %v1389 = vshrl.u32 %v1388, 7
        %v1390 = vsub.s32 0, %v1389
        %v1391 = vrot.slane %v1337, %v1390
        %v1392 = vlaneseq
        %v1393 = vshrl.u32 %v1392, 7
        %v1394 = vsub.s32 0, %v1393
        %v1395 = vrot.slane %v1338, %v1394
        %v1396 = vlaneseq
        %v1397 = vshrl.u32 %v1396, 7
        %v1398 = vsub.s32 0, %v1397
        %v1399 = vrot.slane %v1339, %v1398
        %v1416 = vunpack.c.l.b16 %v1280
        %v1417 = vunpack.c.l.b16 %v1281
        %v1418 = vunpack.c.l.b16 %v1282
        %v1419 = vunpack.c.l.b16 %v1283
        %v1420 = vpack.c.b16 %v1417, %v1416
        %v1421 = vpack.c.b16 %v1419, %v1418
        %vm1424 = vcmask 261120
        %v1426 = vsel %vm1424, %v1273, 0
        %1428 = vmatprep.subr.bf16.mxu0 0
        %1429 = vmatpush1.bf16.msra.mxu0 %v1420
        %1430 = vmatprep.subr.bf16.mxu0 0
        %1431 = vmatpush1.bf16.msra.mxu0 %v1421
        %1432 = vmatprep.subr.bf16.mxu0 0
        %1433 = vmatpush1.bf16.msra.mxu0 0
        %1434 = vmatprep.subr.bf16.mxu0 0
        %1435 = vmatpush1.bf16.msra.mxu0 0
        %1436 = vmatprep.subr.bf16.mxu0 0
        %1437 = vmatpush1.bf16.msra.mxu0 0
        %1438 = vmatprep.subr.bf16.mxu0 0
        %1439 = vmatpush1.bf16.msra.mxu0 0
        %1440 = vmatprep.subr.bf16.mxu0 0
        %1441 = vmatpush1.bf16.msra.mxu0 0
        %1442 = vmatprep.subr.bf16.mxu0 0
        %1443 = vmatpush1.bf16.msra.mxu0 0
        %1444 = vmatprep.subr.bf16.mxu0 0
        %1445 = vmatpush1.bf16.msra.mxu0 0
        %1446 = vmatprep.subr.bf16.mxu0 0
        %1447 = vmatpush1.bf16.msra.mxu0 0
        %1448 = vmatprep.subr.bf16.mxu0 0
        %1449 = vmatpush1.bf16.msra.mxu0 0
        %1450 = vmatprep.subr.bf16.mxu0 0
        %1451 = vmatpush1.bf16.msra.mxu0 0
        %1452 = vmatprep.subr.bf16.mxu0 0
        %1453 = vmatpush1.bf16.msra.mxu0 0
        %1454 = vmatprep.subr.bf16.mxu0 0
        %1455 = vmatpush1.bf16.msra.mxu0 0
        %1456 = vmatprep.subr.bf16.mxu0 0
        %1457 = vmatpush1.bf16.msra.mxu0 0
        %1458 = vmatprep.subr.bf16.mxu0 0
        %1459 = vmatpush1.bf16.msra.mxu0 0
        %1460 = vmatprep.mubr.bf16.mxu0 0
        %1461 = vmatmul.mubr.bf16.gmra.mrb[0].mxu0 %v1426
        %v1462 = vpop.f32.mrb[0].mxu0
        %v1463 = vadd.f32 %v1355, %v1462
        %v1464 = vpop.f32.mrb[0].mxu0
        %v1465 = vpop.f32.mrb[0].mxu0
        %v1466 = vpop.f32.mrb[0].mxu0
        %1467 = vdwg.mxu0
        %v1472 = vunpack.c.l.b16 %v1284
        %v1473 = vunpack.c.l.b16 %v1285
        %v1474 = vunpack.c.l.b16 %v1286
        %v1475 = vunpack.c.l.b16 %v1287
        %v1476 = vpack.c.b16 %v1473, %v1472
        %v1477 = vpack.c.b16 %v1475, %v1474
        %1480 = vmatprep.subr.bf16.mxu0 0
        %1481 = vmatpush1.bf16.msra.mxu0 %v1476
        %1482 = vmatprep.subr.bf16.mxu0 0
        %1483 = vmatpush1.bf16.msra.mxu0 %v1477
        %1484 = vmatprep.subr.bf16.mxu0 0
        %1485 = vmatpush1.bf16.msra.mxu0 0
        %1486 = vmatprep.subr.bf16.mxu0 0
        %1487 = vmatpush1.bf16.msra.mxu0 0
        %1488 = vmatprep.subr.bf16.mxu0 0
        %1489 = vmatpush1.bf16.msra.mxu0 0
        %1490 = vmatprep.subr.bf16.mxu0 0
        %1491 = vmatpush1.bf16.msra.mxu0 0
        %1492 = vmatprep.subr.bf16.mxu0 0
        %1493 = vmatpush1.bf16.msra.mxu0 0
        %1494 = vmatprep.subr.bf16.mxu0 0
        %1495 = vmatpush1.bf16.msra.mxu0 0
        %1496 = vmatprep.subr.bf16.mxu0 0
        %1497 = vmatpush1.bf16.msra.mxu0 0
        %1498 = vmatprep.subr.bf16.mxu0 0
        %1499 = vmatpush1.bf16.msra.mxu0 0
        %1500 = vmatprep.subr.bf16.mxu0 0
        %1501 = vmatpush1.bf16.msra.mxu0 0
        %1502 = vmatprep.subr.bf16.mxu0 0
        %1503 = vmatpush1.bf16.msra.mxu0 0
        %1504 = vmatprep.subr.bf16.mxu0 0
        %1505 = vmatpush1.bf16.msra.mxu0 0
        %1506 = vmatprep.subr.bf16.mxu0 0
        %1507 = vmatpush1.bf16.msra.mxu0 0
        %1508 = vmatprep.subr.bf16.mxu0 0
        %1509 = vmatpush1.bf16.msra.mxu0 0
        %1510 = vmatprep.subr.bf16.mxu0 0
        %1511 = vmatpush1.bf16.msra.mxu0 0
        %1512 = vmatprep.mubr.bf16.mxu0 0
        %1513 = vmatmul.mubr.bf16.gmra.mrb[0].mxu0 %v1426
        %v1514 = vpop.f32.mrb[0].mxu0
        %v1515 = vadd.f32 %v1359, %v1514
        %v1516 = vpop.f32.mrb[0].mxu0
        %v1517 = vpop.f32.mrb[0].mxu0
        %v1518 = vpop.f32.mrb[0].mxu0
        %1519 = vdwg.mxu0
        %v1524 = vunpack.c.l.b16 %v1288
        %v1525 = vunpack.c.l.b16 %v1289
        %v1526 = vunpack.c.l.b16 %v1290
        %v1527 = vunpack.c.l.b16 %v1291
        %v1528 = vpack.c.b16 %v1525, %v1524
        %v1529 = vpack.c.b16 %v1527, %v1526
        %1532 = vmatprep.subr.bf16.mxu0 0
        %1533 = vmatpush1.bf16.msra.mxu0 %v1528
        %1534 = vmatprep.subr.bf16.mxu0 0
        %1535 = vmatpush1.bf16.msra.mxu0 %v1529
        %1536 = vmatprep.subr.bf16.mxu0 0
        %1537 = vmatpush1.bf16.msra.mxu0 0
        %1538 = vmatprep.subr.bf16.mxu0 0
        %1539 = vmatpush1.bf16.msra.mxu0 0
        %1540 = vmatprep.subr.bf16.mxu0 0
        %1541 = vmatpush1.bf16.msra.mxu0 0
        %1542 = vmatprep.subr.bf16.mxu0 0
        %1543 = vmatpush1.bf16.msra.mxu0 0
        %1544 = vmatprep.subr.bf16.mxu0 0
        %1545 = vmatpush1.bf16.msra.mxu0 0
        %1546 = vmatprep.subr.bf16.mxu0 0
        %1547 = vmatpush1.bf16.msra.mxu0 0
        %1548 = vmatprep.subr.bf16.mxu0 0
        %1549 = vmatpush1.bf16.msra.mxu0 0
        %1550 = vmatprep.subr.bf16.mxu0 0
        %1551 = vmatpush1.bf16.msra.mxu0 0
        %1552 = vmatprep.subr.bf16.mxu0 0
        %1553 = vmatpush1.bf16.msra.mxu0 0
        %1554 = vmatprep.subr.bf16.mxu0 0
        %1555 = vmatpush1.bf16.msra.mxu0 0
        %1556 = vmatprep.subr.bf16.mxu0 0
        %1557 = vmatpush1.bf16.msra.mxu0 0
        %1558 = vmatprep.subr.bf16.mxu0 0
        %1559 = vmatpush1.bf16.msra.mxu0 0
        %1560 = vmatprep.subr.bf16.mxu0 0
        %1561 = vmatpush1.bf16.msra.mxu0 0
        %1562 = vmatprep.subr.bf16.mxu0 0
        %1563 = vmatpush1.bf16.msra.mxu0 0
        %1564 = vmatprep.mubr.bf16.mxu0 0
        %1565 = vmatmul.mubr.bf16.gmra.mrb[0].mxu0 %v1426
        %v1566 = vpop.f32.mrb[0].mxu0
        %v1567 = vadd.f32 %v1363, %v1566
        %v1568 = vpop.f32.mrb[0].mxu0
        %v1569 = vpop.f32.mrb[0].mxu0
        %v1570 = vpop.f32.mrb[0].mxu0
        %1571 = vdwg.mxu0
        %v1576 = vunpack.c.l.b16 %v1292
        %v1577 = vunpack.c.l.b16 %v1293
        %v1578 = vunpack.c.l.b16 %v1294
        %v1579 = vunpack.c.l.b16 %v1295
        %v1580 = vpack.c.b16 %v1577, %v1576
        %v1581 = vpack.c.b16 %v1579, %v1578
        %1584 = vmatprep.subr.bf16.mxu0 0
        %1585 = vmatpush1.bf16.msra.mxu0 %v1580
        %1586 = vmatprep.subr.bf16.mxu0 0
        %1587 = vmatpush1.bf16.msra.mxu0 %v1581
        %1588 = vmatprep.subr.bf16.mxu0 0
        %1589 = vmatpush1.bf16.msra.mxu0 0
        %1590 = vmatprep.subr.bf16.mxu0 0
        %1591 = vmatpush1.bf16.msra.mxu0 0
        %1592 = vmatprep.subr.bf16.mxu0 0
        %1593 = vmatpush1.bf16.msra.mxu0 0
        %1594 = vmatprep.subr.bf16.mxu0 0
        %1595 = vmatpush1.bf16.msra.mxu0 0
        %1596 = vmatprep.subr.bf16.mxu0 0
        %1597 = vmatpush1.bf16.msra.mxu0 0
        %1598 = vmatprep.subr.bf16.mxu0 0
        %1599 = vmatpush1.bf16.msra.mxu0 0
        %1600 = vmatprep.subr.bf16.mxu0 0
        %1601 = vmatpush1.bf16.msra.mxu0 0
        %1602 = vmatprep.subr.bf16.mxu0 0
        %1603 = vmatpush1.bf16.msra.mxu0 0
        %1604 = vmatprep.subr.bf16.mxu0 0
        %1605 = vmatpush1.bf16.msra.mxu0 0
        %1606 = vmatprep.subr.bf16.mxu0 0
        %1607 = vmatpush1.bf16.msra.mxu0 0
        %1608 = vmatprep.subr.bf16.mxu0 0
        %1609 = vmatpush1.bf16.msra.mxu0 0
        %1610 = vmatprep.subr.bf16.mxu0 0
        %1611 = vmatpush1.bf16.msra.mxu0 0
        %1612 = vmatprep.subr.bf16.mxu0 0
        %1613 = vmatpush1.bf16.msra.mxu0 0
        %1614 = vmatprep.subr.bf16.mxu0 0
        %1615 = vmatpush1.bf16.msra.mxu0 0
        %1616 = vmatprep.mubr.bf16.mxu0 0
        %1617 = vmatmul.mubr.bf16.gmra.mrb[0].mxu0 %v1426
        %v1618 = vpop.f32.mrb[0].mxu0
        %v1619 = vadd.f32 %v1367, %v1618
        %v1620 = vpop.f32.mrb[0].mxu0
        %v1621 = vpop.f32.mrb[0].mxu0
        %v1622 = vpop.f32.mrb[0].mxu0
        %1623 = vdwg.mxu0
        %v1628 = vunpack.c.l.b16 %v1296
        %v1629 = vunpack.c.l.b16 %v1297
        %v1630 = vunpack.c.l.b16 %v1298
        %v1631 = vunpack.c.l.b16 %v1299
        %v1632 = vpack.c.b16 %v1629, %v1628
        %v1633 = vpack.c.b16 %v1631, %v1630
        %1636 = vmatprep.subr.bf16.mxu0 0
        %1637 = vmatpush1.bf16.msra.mxu0 %v1632
        %1638 = vmatprep.subr.bf16.mxu0 0
        %1639 = vmatpush1.bf16.msra.mxu0 %v1633
        %1640 = vmatprep.subr.bf16.mxu0 0
        %1641 = vmatpush1.bf16.msra.mxu0 0
        %1642 = vmatprep.subr.bf16.mxu0 0
        %1643 = vmatpush1.bf16.msra.mxu0 0
        %1644 = vmatprep.subr.bf16.mxu0 0
        %1645 = vmatpush1.bf16.msra.mxu0 0
        %1646 = vmatprep.subr.bf16.mxu0 0
        %1647 = vmatpush1.bf16.msra.mxu0 0
        %1648 = vmatprep.subr.bf16.mxu0 0
        %1649 = vmatpush1.bf16.msra.mxu0 0
        %1650 = vmatprep.subr.bf16.mxu0 0
        %1651 = vmatpush1.bf16.msra.mxu0 0
        %1652 = vmatprep.subr.bf16.mxu0 0
        %1653 = vmatpush1.bf16.msra.mxu0 0
        %1654 = vmatprep.subr.bf16.mxu0 0
        %1655 = vmatpush1.bf16.msra.mxu0 0
        %1656 = vmatprep.subr.bf16.mxu0 0
        %1657 = vmatpush1.bf16.msra.mxu0 0
        %1658 = vmatprep.subr.bf16.mxu0 0
        %1659 = vmatpush1.bf16.msra.mxu0 0
        %1660 = vmatprep.subr.bf16.mxu0 0
        %1661 = vmatpush1.bf16.msra.mxu0 0
        %1662 = vmatprep.subr.bf16.mxu0 0
        %1663 = vmatpush1.bf16.msra.mxu0 0
        %1664 = vmatprep.subr.bf16.mxu0 0
        %1665 = vmatpush1.bf16.msra.mxu0 0
        %1666 = vmatprep.subr.bf16.mxu0 0
        %1667 = vmatpush1.bf16.msra.mxu0 0
        %1668 = vmatprep.mubr.bf16.mxu0 0
        %1669 = vmatmul.mubr.bf16.gmra.mrb[0].mxu0 %v1426
        %v1670 = vpop.f32.mrb[0].mxu0
        %v1671 = vadd.f32 %v1371, %v1670
        %v1672 = vpop.f32.mrb[0].mxu0
        %v1673 = vpop.f32.mrb[0].mxu0
        %v1674 = vpop.f32.mrb[0].mxu0
        %1675 = vdwg.mxu0
        %v1680 = vunpack.c.l.b16 %v1300
        %v1681 = vunpack.c.l.b16 %v1301
        %v1682 = vunpack.c.l.b16 %v1302
        %v1683 = vunpack.c.l.b16 %v1303
        %v1684 = vpack.c.b16 %v1681, %v1680
        %v1685 = vpack.c.b16 %v1683, %v1682
        %1688 = vmatprep.subr.bf16.mxu0 0
        %1689 = vmatpush1.bf16.msra.mxu0 %v1684
        %1690 = vmatprep.subr.bf16.mxu0 0
        %1691 = vmatpush1.bf16.msra.mxu0 %v1685
        %1692 = vmatprep.subr.bf16.mxu0 0
        %1693 = vmatpush1.bf16.msra.mxu0 0
        %1694 = vmatprep.subr.bf16.mxu0 0
        %1695 = vmatpush1.bf16.msra.mxu0 0
        %1696 = vmatprep.subr.bf16.mxu0 0
        %1697 = vmatpush1.bf16.msra.mxu0 0
        %1698 = vmatprep.subr.bf16.mxu0 0
        %1699 = vmatpush1.bf16.msra.mxu0 0
        %1700 = vmatprep.subr.bf16.mxu0 0
        %1701 = vmatpush1.bf16.msra.mxu0 0
        %1702 = vmatprep.subr.bf16.mxu0 0
        %1703 = vmatpush1.bf16.msra.mxu0 0
        %1704 = vmatprep.subr.bf16.mxu0 0
        %1705 = vmatpush1.bf16.msra.mxu0 0
        %1706 = vmatprep.subr.bf16.mxu0 0
        %1707 = vmatpush1.bf16.msra.mxu0 0
        %1708 = vmatprep.subr.bf16.mxu0 0
        %1709 = vmatpush1.bf16.msra.mxu0 0
        %1710 = vmatprep.subr.bf16.mxu0 0
        %1711 = vmatpush1.bf16.msra.mxu0 0
        %1712 = vmatprep.subr.bf16.mxu0 0
        %1713 = vmatpush1.bf16.msra.mxu0 0
        %1714 = vmatprep.subr.bf16.mxu0 0
        %1715 = vmatpush1.bf16.msra.mxu0 0
        %1716 = vmatprep.subr.bf16.mxu0 0
        %1717 = vmatpush1.bf16.msra.mxu0 0
        %1718 = vmatprep.subr.bf16.mxu0 0
        %1719 = vmatpush1.bf16.msra.mxu0 0
        %1720 = vmatprep.mubr.bf16.mxu0 0
        %1721 = vmatmul.mubr.bf16.gmra.mrb[0].mxu0 %v1426
        %v1722 = vpop.f32.mrb[0].mxu0
        %v1723 = vadd.f32 %v1375, %v1722
        %v1724 = vpop.f32.mrb[0].mxu0
        %v1725 = vpop.f32.mrb[0].mxu0
        %v1726 = vpop.f32.mrb[0].mxu0
        %1727 = vdwg.mxu0
        %v1732 = vunpack.c.l.b16 %v1304
        %v1733 = vunpack.c.l.b16 %v1305
        %v1734 = vunpack.c.l.b16 %v1306
        %v1735 = vunpack.c.l.b16 %v1307
        %v1736 = vpack.c.b16 %v1733, %v1732
        %v1737 = vpack.c.b16 %v1735, %v1734
        %1740 = vmatprep.subr.bf16.mxu0 0
        %1741 = vmatpush1.bf16.msra.mxu0 %v1736
        %1742 = vmatprep.subr.bf16.mxu0 0
        %1743 = vmatpush1.bf16.msra.mxu0 %v1737
        %1744 = vmatprep.subr.bf16.mxu0 0
        %1745 = vmatpush1.bf16.msra.mxu0 0
        %1746 = vmatprep.subr.bf16.mxu0 0
        %1747 = vmatpush1.bf16.msra.mxu0 0
        %1748 = vmatprep.subr.bf16.mxu0 0
        %1749 = vmatpush1.bf16.msra.mxu0 0
        %1750 = vmatprep.subr.bf16.mxu0 0
        %1751 = vmatpush1.bf16.msra.mxu0 0
        %1752 = vmatprep.subr.bf16.mxu0 0
        %1753 = vmatpush1.bf16.msra.mxu0 0
        %1754 = vmatprep.subr.bf16.mxu0 0
        %1755 = vmatpush1.bf16.msra.mxu0 0
        %1756 = vmatprep.subr.bf16.mxu0 0
        %1757 = vmatpush1.bf16.msra.mxu0 0
        %1758 = vmatprep.subr.bf16.mxu0 0
        %1759 = vmatpush1.bf16.msra.mxu0 0
        %1760 = vmatprep.subr.bf16.mxu0 0
        %1761 = vmatpush1.bf16.msra.mxu0 0
        %1762 = vmatprep.subr.bf16.mxu0 0
        %1763 = vmatpush1.bf16.msra.mxu0 0
        %1764 = vmatprep.subr.bf16.mxu0 0
        %1765 = vmatpush1.bf16.msra.mxu0 0
        %1766 = vmatprep.subr.bf16.mxu0 0
        %1767 = vmatpush1.bf16.msra.mxu0 0
        %1768 = vmatprep.subr.bf16.mxu0 0
        %1769 = vmatpush1.bf16.msra.mxu0 0
        %1770 = vmatprep.subr.bf16.mxu0 0
        %1771 = vmatpush1.bf16.msra.mxu0 0
        %1772 = vmatprep.mubr.bf16.mxu0 0
        %1773 = vmatmul.mubr.bf16.gmra.mrb[0].mxu0 %v1426
        %v1774 = vpop.f32.mrb[0].mxu0
        %v1775 = vadd.f32 %v1379, %v1774
        %v1776 = vpop.f32.mrb[0].mxu0
        %v1777 = vpop.f32.mrb[0].mxu0
        %v1778 = vpop.f32.mrb[0].mxu0
        %1779 = vdwg.mxu0
        %v1784 = vunpack.c.l.b16 %v1308
        %v1785 = vunpack.c.l.b16 %v1309
        %v1786 = vunpack.c.l.b16 %v1310
        %v1787 = vunpack.c.l.b16 %v1311
        %v1788 = vpack.c.b16 %v1785, %v1784
        %v1789 = vpack.c.b16 %v1787, %v1786
        %1792 = vmatprep.subr.bf16.mxu0 0
        %1793 = vmatpush1.bf16.msra.mxu0 %v1788
        %1794 = vmatprep.subr.bf16.mxu0 0
        %1795 = vmatpush1.bf16.msra.mxu0 %v1789
        %1796 = vmatprep.subr.bf16.mxu0 0
        %1797 = vmatpush1.bf16.msra.mxu0 0
        %1798 = vmatprep.subr.bf16.mxu0 0
        %1799 = vmatpush1.bf16.msra.mxu0 0
        %1800 = vmatprep.subr.bf16.mxu0 0
        %1801 = vmatpush1.bf16.msra.mxu0 0
        %1802 = vmatprep.subr.bf16.mxu0 0
        %1803 = vmatpush1.bf16.msra.mxu0 0
        %1804 = vmatprep.subr.bf16.mxu0 0
        %1805 = vmatpush1.bf16.msra.mxu0 0
        %1806 = vmatprep.subr.bf16.mxu0 0
        %1807 = vmatpush1.bf16.msra.mxu0 0
        %1808 = vmatprep.subr.bf16.mxu0 0
        %1809 = vmatpush1.bf16.msra.mxu0 0
        %1810 = vmatprep.subr.bf16.mxu0 0
        %1811 = vmatpush1.bf16.msra.mxu0 0
        %1812 = vmatprep.subr.bf16.mxu0 0
        %1813 = vmatpush1.bf16.msra.mxu0 0
        %1814 = vmatprep.subr.bf16.mxu0 0
        %1815 = vmatpush1.bf16.msra.mxu0 0
        %1816 = vmatprep.subr.bf16.mxu0 0
        %1817 = vmatpush1.bf16.msra.mxu0 0
        %1818 = vmatprep.subr.bf16.mxu0 0
        %1819 = vmatpush1.bf16.msra.mxu0 0
        %1820 = vmatprep.subr.bf16.mxu0 0
        %1821 = vmatpush1.bf16.msra.mxu0 0
        %1822 = vmatprep.subr.bf16.mxu0 0
        %1823 = vmatpush1.bf16.msra.mxu0 0
        %1824 = vmatprep.mubr.bf16.mxu0 0
        %1825 = vmatmul.mubr.bf16.gmra.mrb[0].mxu0 %v1426
        %v1826 = vpop.f32.mrb[0].mxu0
        %v1827 = vadd.f32 %v1383, %v1826
        %v1828 = vpop.f32.mrb[0].mxu0
        %v1829 = vpop.f32.mrb[0].mxu0
        %v1830 = vpop.f32.mrb[0].mxu0
        %1831 = vdwg.mxu0
        %v1836 = vunpack.c.l.b16 %v1312
        %v1837 = vunpack.c.l.b16 %v1313
        %v1838 = vunpack.c.l.b16 %v1314
        %v1839 = vunpack.c.l.b16 %v1315
        %v1840 = vpack.c.b16 %v1837, %v1836
        %v1841 = vpack.c.b16 %v1839, %v1838
        %1844 = vmatprep.subr.bf16.mxu0 0
        %1845 = vmatpush1.bf16.msra.mxu0 %v1840
        %1846 = vmatprep.subr.bf16.mxu0 0
        %1847 = vmatpush1.bf16.msra.mxu0 %v1841
        %1848 = vmatprep.subr.bf16.mxu0 0
        %1849 = vmatpush1.bf16.msra.mxu0 0
        %1850 = vmatprep.subr.bf16.mxu0 0
        %1851 = vmatpush1.bf16.msra.mxu0 0
        %1852 = vmatprep.subr.bf16.mxu0 0
        %1853 = vmatpush1.bf16.msra.mxu0 0
        %1854 = vmatprep.subr.bf16.mxu0 0
        %1855 = vmatpush1.bf16.msra.mxu0 0
        %1856 = vmatprep.subr.bf16.mxu0 0
        %1857 = vmatpush1.bf16.msra.mxu0 0
        %1858 = vmatprep.subr.bf16.mxu0 0
        %1859 = vmatpush1.bf16.msra.mxu0 0
        %1860 = vmatprep.subr.bf16.mxu0 0
        %1861 = vmatpush1.bf16.msra.mxu0 0
        %1862 = vmatprep.subr.bf16.mxu0 0
        %1863 = vmatpush1.bf16.msra.mxu0 0
        %1864 = vmatprep.subr.bf16.mxu0 0
        %1865 = vmatpush1.bf16.msra.mxu0 0
        %1866 = vmatprep.subr.bf16.mxu0 0
        %1867 = vmatpush1.bf16.msra.mxu0 0
        %1868 = vmatprep.subr.bf16.mxu0 0
        %1869 = vmatpush1.bf16.msra.mxu0 0
        %1870 = vmatprep.subr.bf16.mxu0 0
        %1871 = vmatpush1.bf16.msra.mxu0 0
        %1872 = vmatprep.subr.bf16.mxu0 0
        %1873 = vmatpush1.bf16.msra.mxu0 0
        %1874 = vmatprep.subr.bf16.mxu0 0
        %1875 = vmatpush1.bf16.msra.mxu0 0
        %1876 = vmatprep.mubr.bf16.mxu0 0
        %1877 = vmatmul.mubr.bf16.gmra.mrb[0].mxu0 %v1426
        %v1878 = vpop.f32.mrb[0].mxu0
        %v1879 = vadd.f32 %v1387, %v1878
        %v1880 = vpop.f32.mrb[0].mxu0
        %v1881 = vpop.f32.mrb[0].mxu0
        %v1882 = vpop.f32.mrb[0].mxu0
        %1883 = vdwg.mxu0
        %v1888 = vunpack.c.l.b16 %v1316
        %v1889 = vunpack.c.l.b16 %v1317
        %v1890 = vunpack.c.l.b16 %v1318
        %v1891 = vunpack.c.l.b16 %v1319
        %v1892 = vpack.c.b16 %v1889, %v1888
        %v1893 = vpack.c.b16 %v1891, %v1890
        %1896 = vmatprep.subr.bf16.mxu0 0
        %1897 = vmatpush1.bf16.msra.mxu0 %v1892
        %1898 = vmatprep.subr.bf16.mxu0 0
        %1899 = vmatpush1.bf16.msra.mxu0 %v1893
        %1900 = vmatprep.subr.bf16.mxu0 0
        %1901 = vmatpush1.bf16.msra.mxu0 0
        %1902 = vmatprep.subr.bf16.mxu0 0
        %1903 = vmatpush1.bf16.msra.mxu0 0
        %1904 = vmatprep.subr.bf16.mxu0 0
        %1905 = vmatpush1.bf16.msra.mxu0 0
        %1906 = vmatprep.subr.bf16.mxu0 0
        %1907 = vmatpush1.bf16.msra.mxu0 0
        %1908 = vmatprep.subr.bf16.mxu0 0
        %1909 = vmatpush1.bf16.msra.mxu0 0
        %1910 = vmatprep.subr.bf16.mxu0 0
        %1911 = vmatpush1.bf16.msra.mxu0 0
        %1912 = vmatprep.subr.bf16.mxu0 0
        %1913 = vmatpush1.bf16.msra.mxu0 0
        %1914 = vmatprep.subr.bf16.mxu0 0
        %1915 = vmatpush1.bf16.msra.mxu0 0
        %1916 = vmatprep.subr.bf16.mxu0 0
        %1917 = vmatpush1.bf16.msra.mxu0 0
        %1918 = vmatprep.subr.bf16.mxu0 0
        %1919 = vmatpush1.bf16.msra.mxu0 0
        %1920 = vmatprep.subr.bf16.mxu0 0
        %1921 = vmatpush1.bf16.msra.mxu0 0
        %1922 = vmatprep.subr.bf16.mxu0 0
        %1923 = vmatpush1.bf16.msra.mxu0 0
        %1924 = vmatprep.subr.bf16.mxu0 0
        %1925 = vmatpush1.bf16.msra.mxu0 0
        %1926 = vmatprep.subr.bf16.mxu0 0
        %1927 = vmatpush1.bf16.msra.mxu0 0
        %1928 = vmatprep.mubr.bf16.mxu0 0
        %1929 = vmatmul.mubr.bf16.gmra.mrb[0].mxu0 %v1426
        %v1930 = vpop.f32.mrb[0].mxu0
        %v1931 = vadd.f32 %v1391, %v1930
        %v1932 = vpop.f32.mrb[0].mxu0
        %v1933 = vpop.f32.mrb[0].mxu0
        %v1934 = vpop.f32.mrb[0].mxu0
        %1935 = vdwg.mxu0
        %v1940 = vunpack.c.l.b16 %v1320
        %v1941 = vunpack.c.l.b16 %v1321
        %v1942 = vunpack.c.l.b16 %v1322
        %v1943 = vunpack.c.l.b16 %v1323
        %v1944 = vpack.c.b16 %v1941, %v1940
        %v1945 = vpack.c.b16 %v1943, %v1942
        %1948 = vmatprep.subr.bf16.mxu0 0
        %1949 = vmatpush1.bf16.msra.mxu0 %v1944
        %1950 = vmatprep.subr.bf16.mxu0 0
        %1951 = vmatpush1.bf16.msra.mxu0 %v1945
        %1952 = vmatprep.subr.bf16.mxu0 0
        %1953 = vmatpush1.bf16.msra.mxu0 0
        %1954 = vmatprep.subr.bf16.mxu0 0
        %1955 = vmatpush1.bf16.msra.mxu0 0
        %1956 = vmatprep.subr.bf16.mxu0 0
        %1957 = vmatpush1.bf16.msra.mxu0 0
        %1958 = vmatprep.subr.bf16.mxu0 0
        %1959 = vmatpush1.bf16.msra.mxu0 0
        %1960 = vmatprep.subr.bf16.mxu0 0
        %1961 = vmatpush1.bf16.msra.mxu0 0
        %1962 = vmatprep.subr.bf16.mxu0 0
        %1963 = vmatpush1.bf16.msra.mxu0 0
        %1964 = vmatprep.subr.bf16.mxu0 0
        %1965 = vmatpush1.bf16.msra.mxu0 0
        %1966 = vmatprep.subr.bf16.mxu0 0
        %1967 = vmatpush1.bf16.msra.mxu0 0
        %1968 = vmatprep.subr.bf16.mxu0 0
        %1969 = vmatpush1.bf16.msra.mxu0 0
        %1970 = vmatprep.subr.bf16.mxu0 0
        %1971 = vmatpush1.bf16.msra.mxu0 0
        %1972 = vmatprep.subr.bf16.mxu0 0
        %1973 = vmatpush1.bf16.msra.mxu0 0
        %1974 = vmatprep.subr.bf16.mxu0 0
        %1975 = vmatpush1.bf16.msra.mxu0 0
        %1976 = vmatprep.subr.bf16.mxu0 0
        %1977 = vmatpush1.bf16.msra.mxu0 0
        %1978 = vmatprep.subr.bf16.mxu0 0
        %1979 = vmatpush1.bf16.msra.mxu0 0
        %1980 = vmatprep.mubr.bf16.mxu0 0
        %1981 = vmatmul.mubr.bf16.gmra.mrb[0].mxu0 %v1426
        %v1982 = vpop.f32.mrb[0].mxu0
        %v1983 = vadd.f32 %v1395, %v1982
        %v1984 = vpop.f32.mrb[0].mxu0
        %v1985 = vpop.f32.mrb[0].mxu0
        %v1986 = vpop.f32.mrb[0].mxu0
        %1987 = vdwg.mxu0
        %v1992 = vunpack.c.l.b16 %v1324
        %v1993 = vunpack.c.l.b16 %v1325
        %v1994 = vunpack.c.l.b16 %v1326
        %v1995 = vunpack.c.l.b16 %v1327
        %v1996 = vpack.c.b16 %v1993, %v1992
        %v1997 = vpack.c.b16 %v1995, %v1994
        %2000 = vmatprep.subr.bf16.mxu0 0
        %2001 = vmatpush1.bf16.msra.mxu0 %v1996
        %2002 = vmatprep.subr.bf16.mxu0 0
        %2003 = vmatpush1.bf16.msra.mxu0 %v1997
        %2004 = vmatprep.subr.bf16.mxu0 0
        %2005 = vmatpush1.bf16.msra.mxu0 0
        %2006 = vmatprep.subr.bf16.mxu0 0
        %2007 = vmatpush1.bf16.msra.mxu0 0
        %2008 = vmatprep.subr.bf16.mxu0 0
        %2009 = vmatpush1.bf16.msra.mxu0 0
        %2010 = vmatprep.subr.bf16.mxu0 0
        %2011 = vmatpush1.bf16.msra.mxu0 0
        %2012 = vmatprep.subr.bf16.mxu0 0
        %2013 = vmatpush1.bf16.msra.mxu0 0
        %2014 = vmatprep.subr.bf16.mxu0 0
        %2015 = vmatpush1.bf16.msra.mxu0 0
        %2016 = vmatprep.subr.bf16.mxu0 0
        %2017 = vmatpush1.bf16.msra.mxu0 0
        %2018 = vmatprep.subr.bf16.mxu0 0
        %2019 = vmatpush1.bf16.msra.mxu0 0
        %2020 = vmatprep.subr.bf16.mxu0 0
        %2021 = vmatpush1.bf16.msra.mxu0 0
        %2022 = vmatprep.subr.bf16.mxu0 0
        %2023 = vmatpush1.bf16.msra.mxu0 0
        %2024 = vmatprep.subr.bf16.mxu0 0
        %2025 = vmatpush1.bf16.msra.mxu0 0
        %2026 = vmatprep.subr.bf16.mxu0 0
        %2027 = vmatpush1.bf16.msra.mxu0 0
        %2028 = vmatprep.subr.bf16.mxu0 0
        %2029 = vmatpush1.bf16.msra.mxu0 0
        %2030 = vmatprep.subr.bf16.mxu0 0
        %2031 = vmatpush1.bf16.msra.mxu0 0
        %2032 = vmatprep.mubr.bf16.mxu0 0
        %2033 = vmatmul.mubr.bf16.gmra.mrb[0].mxu0 %v1426
        %v2034 = vpop.f32.mrb[0].mxu0
        %v2035 = vadd.f32 %v1399, %v2034
        %v2036 = vpop.f32.mrb[0].mxu0
        %v2037 = vpop.f32.mrb[0].mxu0
        %v2038 = vpop.f32.mrb[0].mxu0
        %2039 = vdwg.mxu0
        %v2040 = vpack.c.bf16 %v1463, %v1463
        %v2041 = vpack.c.bf16 %v1515, %v1515
        %v2042 = vpack.c.bf16 %v1567, %v1567
        %v2043 = vpack.c.bf16 %v1619, %v1619
        %v2044 = vpack.c.bf16 %v1671, %v1671
        %v2045 = vpack.c.bf16 %v1723, %v1723
        %v2046 = vpack.c.bf16 %v1775, %v1775
        %v2047 = vpack.c.bf16 %v1827, %v1827
        %vm2048 = vcmask 64512
        %v2050 = vsel %vm2048, %v2040, 0
        %v2053 = vsel %vm2048, %v2044, 0
        %2055 = vmatprep.subr.bf16.mxu0 0
        %2056 = vmatpush1.bf16.xpose.msra.mxu0 %v2053
        %2057 = vmatprep.subr.bf16.mxu0 0
        %2058 = vmatpush1.bf16.xpose.msra.mxu0 0
        %2059 = vmatprep.subr.bf16.mxu0 0
        %2060 = vmatpush1.bf16.xpose.msra.mxu0 0
        %2061 = vmatprep.subr.bf16.mxu0 0
        %2062 = vmatpush1.bf16.xpose.msra.mxu0 0
        %2063 = vmatprep.subr.bf16.mxu0 0
        %2064 = vmatpush1.bf16.xpose.msra.mxu0 0
        %2065 = vmatprep.subr.bf16.mxu0 0
        %2066 = vmatpush1.bf16.xpose.msra.mxu0 0
        %2067 = vmatprep.subr.bf16.mxu0 0
        %2068 = vmatpush1.bf16.xpose.msra.mxu0 0
        %2069 = vmatprep.subr.bf16.mxu0 0
        %2070 = vmatpush1.bf16.xpose.msra.mxu0 0
        %2071 = vmatprep.subr.bf16.mxu0 0
        %2072 = vmatpush1.bf16.xpose.msra.mxu0 0
        %2073 = vmatprep.subr.bf16.mxu0 0
        %2074 = vmatpush1.bf16.xpose.msra.mxu0 0
        %2075 = vmatprep.subr.bf16.mxu0 0
        %2076 = vmatpush1.bf16.xpose.msra.mxu0 0
        %2077 = vmatprep.subr.bf16.mxu0 0
        %2078 = vmatpush1.bf16.xpose.msra.mxu0 0
        %2079 = vmatprep.subr.bf16.mxu0 0
        %2080 = vmatpush1.bf16.xpose.msra.mxu0 0
        %2081 = vmatprep.subr.bf16.mxu0 0
        %2082 = vmatpush1.bf16.xpose.msra.mxu0 0
        %2083 = vmatprep.subr.bf16.mxu0 0
        %2084 = vmatpush1.bf16.xpose.msra.mxu0 0
        %2085 = vmatprep.subr.bf16.mxu0 0
        %2086 = vmatpush1.bf16.xpose.msra.mxu0 0
        %2087 = vmatprep.mubr.bf16.mxu0 0
        %2088 = vmatmul.mubr.bf16.gmra.mrb[0].mxu0 %v2050
        %v2089 = vpop.f32.mrb[0].mxu0
        %v2090 = vadd.f32 %v1279, %v2089
        %v2091 = vpop.f32.mrb[0].mxu0
        %v2092 = vpop.f32.mrb[0].mxu0
        %v2093 = vpop.f32.mrb[0].mxu0
        %2094 = vdwg.mxu0
        %v2096 = vsel %vm2048, %v2041, 0
        %v2099 = vsel %vm2048, %v2045, 0
        %2101 = vmatprep.subr.bf16.mxu0 0
        %2102 = vmatpush1.bf16.xpose.msra.mxu0 %v2099
        %2103 = vmatprep.subr.bf16.mxu0 0
        %2104 = vmatpush1.bf16.xpose.msra.mxu0 0
        %2105 = vmatprep.subr.bf16.mxu0 0
        %2106 = vmatpush1.bf16.xpose.msra.mxu0 0
        %2107 = vmatprep.subr.bf16.mxu0 0
        %2108 = vmatpush1.bf16.xpose.msra.mxu0 0
        %2109 = vmatprep.subr.bf16.mxu0 0
        %2110 = vmatpush1.bf16.xpose.msra.mxu0 0
        %2111 = vmatprep.subr.bf16.mxu0 0
        %2112 = vmatpush1.bf16.xpose.msra.mxu0 0
        %2113 = vmatprep.subr.bf16.mxu0 0
        %2114 = vmatpush1.bf16.xpose.msra.mxu0 0
        %2115 = vmatprep.subr.bf16.mxu0 0
        %2116 = vmatpush1.bf16.xpose.msra.mxu0 0
        %2117 = vmatprep.subr.bf16.mxu0 0
        %2118 = vmatpush1.bf16.xpose.msra.mxu0 0
        %2119 = vmatprep.subr.bf16.mxu0 0
        %2120 = vmatpush1.bf16.xpose.msra.mxu0 0
        %2121 = vmatprep.subr.bf16.mxu0 0
        %2122 = vmatpush1.bf16.xpose.msra.mxu0 0
        %2123 = vmatprep.subr.bf16.mxu0 0
        %2124 = vmatpush1.bf16.xpose.msra.mxu0 0
        %2125 = vmatprep.subr.bf16.mxu0 0
        %2126 = vmatpush1.bf16.xpose.msra.mxu0 0
        %2127 = vmatprep.subr.bf16.mxu0 0
        %2128 = vmatpush1.bf16.xpose.msra.mxu0 0
        %2129 = vmatprep.subr.bf16.mxu0 0
        %2130 = vmatpush1.bf16.xpose.msra.mxu0 0
        %2131 = vmatprep.subr.bf16.mxu0 0
        %2132 = vmatpush1.bf16.xpose.msra.mxu0 0
        %2133 = vmatprep.mubr.bf16.mxu0 0
        %2134 = vmatmul.mubr.bf16.gmra.mrb[0].mxu0 %v2096
        %v2135 = vpop.f32.mrb[0].mxu0
        %v2136 = vadd.f32 %v1279, %v2135
        %v2137 = vpop.f32.mrb[0].mxu0
        %v2138 = vpop.f32.mrb[0].mxu0
        %v2139 = vpop.f32.mrb[0].mxu0
        %2140 = vdwg.mxu0
        %v2142 = vsel %vm2048, %v2042, 0
        %v2145 = vsel %vm2048, %v2046, 0
        %2147 = vmatprep.subr.bf16.mxu0 0
        %2148 = vmatpush1.bf16.xpose.msra.mxu0 %v2145
        %2149 = vmatprep.subr.bf16.mxu0 0
        %2150 = vmatpush1.bf16.xpose.msra.mxu0 0
        %2151 = vmatprep.subr.bf16.mxu0 0
        %2152 = vmatpush1.bf16.xpose.msra.mxu0 0
        %2153 = vmatprep.subr.bf16.mxu0 0
        %2154 = vmatpush1.bf16.xpose.msra.mxu0 0
        %2155 = vmatprep.subr.bf16.mxu0 0
        %2156 = vmatpush1.bf16.xpose.msra.mxu0 0
        %2157 = vmatprep.subr.bf16.mxu0 0
        %2158 = vmatpush1.bf16.xpose.msra.mxu0 0
        %2159 = vmatprep.subr.bf16.mxu0 0
        %2160 = vmatpush1.bf16.xpose.msra.mxu0 0
        %2161 = vmatprep.subr.bf16.mxu0 0
        %2162 = vmatpush1.bf16.xpose.msra.mxu0 0
        %2163 = vmatprep.subr.bf16.mxu0 0
        %2164 = vmatpush1.bf16.xpose.msra.mxu0 0
        %2165 = vmatprep.subr.bf16.mxu0 0
        %2166 = vmatpush1.bf16.xpose.msra.mxu0 0
        %2167 = vmatprep.subr.bf16.mxu0 0
        %2168 = vmatpush1.bf16.xpose.msra.mxu0 0
        %2169 = vmatprep.subr.bf16.mxu0 0
        %2170 = vmatpush1.bf16.xpose.msra.mxu0 0
        %2171 = vmatprep.subr.bf16.mxu0 0
        %2172 = vmatpush1.bf16.xpose.msra.mxu0 0
        %2173 = vmatprep.subr.bf16.mxu0 0
        %2174 = vmatpush1.bf16.xpose.msra.mxu0 0
        %2175 = vmatprep.subr.bf16.mxu0 0
        %2176 = vmatpush1.bf16.xpose.msra.mxu0 0
        %2177 = vmatprep.subr.bf16.mxu0 0
        %2178 = vmatpush1.bf16.xpose.msra.mxu0 0
        %2179 = vmatprep.mubr.bf16.mxu0 0
        %2180 = vmatmul.mubr.bf16.gmra.mrb[0].mxu0 %v2142
        %v2181 = vpop.f32.mrb[0].mxu0
        %v2182 = vadd.f32 %v1279, %v2181
        %v2183 = vpop.f32.mrb[0].mxu0
        %v2184 = vpop.f32.mrb[0].mxu0
        %v2185 = vpop.f32.mrb[0].mxu0
        %2186 = vdwg.mxu0
        %v2188 = vsel %vm2048, %v2043, 0
        %v2191 = vsel %vm2048, %v2047, 0
        %2193 = vmatprep.subr.bf16.mxu0 0
        %2194 = vmatpush1.bf16.xpose.msra.mxu0 %v2191
        %2195 = vmatprep.subr.bf16.mxu0 0
        %2196 = vmatpush1.bf16.xpose.msra.mxu0 0
        %2197 = vmatprep.subr.bf16.mxu0 0
        %2198 = vmatpush1.bf16.xpose.msra.mxu0 0
        %2199 = vmatprep.subr.bf16.mxu0 0
        %2200 = vmatpush1.bf16.xpose.msra.mxu0 0
        %2201 = vmatprep.subr.bf16.mxu0 0
        %2202 = vmatpush1.bf16.xpose.msra.mxu0 0
        %2203 = vmatprep.subr.bf16.mxu0 0
        %2204 = vmatpush1.bf16.xpose.msra.mxu0 0
        %2205 = vmatprep.subr.bf16.mxu0 0
        %2206 = vmatpush1.bf16.xpose.msra.mxu0 0
        %2207 = vmatprep.subr.bf16.mxu0 0
        %2208 = vmatpush1.bf16.xpose.msra.mxu0 0
        %2209 = vmatprep.subr.bf16.mxu0 0
        %2210 = vmatpush1.bf16.xpose.msra.mxu0 0
        %2211 = vmatprep.subr.bf16.mxu0 0
        %2212 = vmatpush1.bf16.xpose.msra.mxu0 0
        %2213 = vmatprep.subr.bf16.mxu0 0
        %2214 = vmatpush1.bf16.xpose.msra.mxu0 0
        %2215 = vmatprep.subr.bf16.mxu0 0
        %2216 = vmatpush1.bf16.xpose.msra.mxu0 0
        %2217 = vmatprep.subr.bf16.mxu0 0
        %2218 = vmatpush1.bf16.xpose.msra.mxu0 0
        %2219 = vmatprep.subr.bf16.mxu0 0
        %2220 = vmatpush1.bf16.xpose.msra.mxu0 0
        %2221 = vmatprep.subr.bf16.mxu0 0
        %2222 = vmatpush1.bf16.xpose.msra.mxu0 0
        %2223 = vmatprep.subr.bf16.mxu0 0
        %2224 = vmatpush1.bf16.xpose.msra.mxu0 0
        %2225 = vmatprep.mubr.bf16.mxu0 0
        %2226 = vmatmul.mubr.bf16.gmra.mrb[0].mxu0 %v2188
        %v2227 = vpop.f32.mrb[0].mxu0
        %v2228 = vadd.f32 %v1279, %v2227
        %v2229 = vpop.f32.mrb[0].mxu0
        %v2230 = vpop.f32.mrb[0].mxu0
        %v2231 = vpop.f32.mrb[0].mxu0
        %2232 = vdwg.mxu0
        %v2233 = vsel %vm2048, %v2090, -inf
        %2234 = vmax.xlane.f32.xlu0 %v2233
        %v2235 = vpop.xlane.xlu0 %2234
        %v2236 = vsel %vm2048, %v2136, -inf
        %2237 = vmax.xlane.f32.xlu0 %v2236
        %v2238 = vpop.xlane.xlu0 %2237
        %v2239 = vsel %vm2048, %v2182, -inf
        %2240 = vmax.xlane.f32.xlu0 %v2239
        %v2241 = vpop.xlane.xlu0 %2240
        %v2242 = vsel %vm2048, %v2228, -inf
        %2243 = vmax.xlane.f32.xlu0 %v2242
        %v2244 = vpop.xlane.xlu0 %2243
        %v2245 = vsub.f32 %v2090, %v2235
        %v2246 = vsub.f32 %v2136, %v2238
        %v2247 = vsub.f32 %v2182, %v2241
        %v2248 = vsub.f32 %v2228, %v2244
        %v2249 = vmul.f32 %v2245, 1.442695
        %v2250 = vpow.pop %v2249
        %v2251 = vmul.f32 %v2246, 1.442695
        %v2252 = vpow.pop %v2251
        %v2253 = vmul.f32 %v2247, 1.442695
        %v2254 = vpow.pop %v2253
        %v2255 = vmul.f32 %v2248, 1.442695
        %v2256 = vpow.pop %v2255
        %v2257 = vsel %vm2048, %v2250, 0.0
        %2258 = vadd.xlane.f32.xlu0 %v2257
        %v2259 = vpop.xlane.xlu0 %2258
        %v2260 = vsel %vm2048, %v2252, 0.0
        %2261 = vadd.xlane.f32.xlu0 %v2260
        %v2262 = vpop.xlane.xlu0 %2261
        %v2263 = vsel %vm2048, %v2254, 0.0
        %2264 = vadd.xlane.f32.xlu0 %v2263
        %v2265 = vpop.xlane.xlu0 %2264
        %v2266 = vsel %vm2048, %v2256, 0.0
        %2267 = vadd.xlane.f32.xlu0 %v2266
        %v2268 = vpop.xlane.xlu0 %2267
        %v2269 = vrcp.pop %v2259
        %v2270 = vmul.f32 %v2250, %v2269
        %v2271 = vrcp.pop %v2262
        %v2272 = vmul.f32 %v2252, %v2271
        %v2273 = vrcp.pop %v2265
        %v2274 = vmul.f32 %v2254, %v2273
        %v2275 = vrcp.pop %v2268
        %v2276 = vmul.f32 %v2256, %v2275
        %v2277 = vpack.c.bf16 %v2270, %v2270
        %v2278 = vpack.c.bf16 %v2272, %v2272
        %v2279 = vpack.c.bf16 %v2274, %v2274
        %v2280 = vpack.c.bf16 %v2276, %v2276
        %v2281 = vpack.c.bf16 %v1879, %v1879
        %v2282 = vpack.c.bf16 %v1931, %v1931
        %v2283 = vpack.c.bf16 %v1983, %v1983
        %v2284 = vpack.c.bf16 %v2035, %v2035
        %v2286 = vsel %vm2048, %v2277, 0
        %vm2288 = vcmask 1043456
        %v2290 = vsel %vm2288, %v2281, 0
        %2292 = vmatprep.subr.bf16.mxu0 0
        %2293 = vmatpush1.bf16.msra.mxu0 %v2290
        %2294 = vmatprep.subr.bf16.mxu0 0
        %2295 = vmatpush1.bf16.msra.mxu0 0
        %2296 = vmatprep.subr.bf16.mxu0 0
        %2297 = vmatpush1.bf16.msra.mxu0 0
        %2298 = vmatprep.subr.bf16.mxu0 0
        %2299 = vmatpush1.bf16.msra.mxu0 0
        %2300 = vmatprep.subr.bf16.mxu0 0
        %2301 = vmatpush1.bf16.msra.mxu0 0
        %2302 = vmatprep.subr.bf16.mxu0 0
        %2303 = vmatpush1.bf16.msra.mxu0 0
        %2304 = vmatprep.subr.bf16.mxu0 0
        %2305 = vmatpush1.bf16.msra.mxu0 0
        %2306 = vmatprep.subr.bf16.mxu0 0
        %2307 = vmatpush1.bf16.msra.mxu0 0
        %2308 = vmatprep.subr.bf16.mxu0 0
        %2309 = vmatpush1.bf16.msra.mxu0 0
        %2310 = vmatprep.subr.bf16.mxu0 0
        %2311 = vmatpush1.bf16.msra.mxu0 0
        %2312 = vmatprep.subr.bf16.mxu0 0
        %2313 = vmatpush1.bf16.msra.mxu0 0
        %2314 = vmatprep.subr.bf16.mxu0 0
        %2315 = vmatpush1.bf16.msra.mxu0 0
        %2316 = vmatprep.subr.bf16.mxu0 0
        %2317 = vmatpush1.bf16.msra.mxu0 0
        %2318 = vmatprep.subr.bf16.mxu0 0
        %2319 = vmatpush1.bf16.msra.mxu0 0
        %2320 = vmatprep.subr.bf16.mxu0 0
        %2321 = vmatpush1.bf16.msra.mxu0 0
        %2322 = vmatprep.subr.bf16.mxu0 0
        %2323 = vmatpush1.bf16.msra.mxu0 0
        %2324 = vmatprep.mubr.bf16.mxu0 0
        %2325 = vmatmul.mubr.bf16.gmra.mrb[0].mxu0 %v2286
        %v2326 = vpop.f32.mrb[0].mxu0
        %v2327 = vadd.f32 0.0, %v2326
        %v2328 = vpop.f32.mrb[0].mxu0
        %v2329 = vpop.f32.mrb[0].mxu0
        %v2330 = vpop.f32.mrb[0].mxu0
        %2331 = vdwg.mxu0
        %v2333 = vsel %vm2048, %v2278, 0
        %v2336 = vsel %vm2288, %v2282, 0
        %2338 = vmatprep.subr.bf16.mxu0 0
        %2339 = vmatpush1.bf16.msra.mxu0 %v2336
        %2340 = vmatprep.subr.bf16.mxu0 0
        %2341 = vmatpush1.bf16.msra.mxu0 0
        %2342 = vmatprep.subr.bf16.mxu0 0
        %2343 = vmatpush1.bf16.msra.mxu0 0
        %2344 = vmatprep.subr.bf16.mxu0 0
        %2345 = vmatpush1.bf16.msra.mxu0 0
        %2346 = vmatprep.subr.bf16.mxu0 0
        %2347 = vmatpush1.bf16.msra.mxu0 0
        %2348 = vmatprep.subr.bf16.mxu0 0
        %2349 = vmatpush1.bf16.msra.mxu0 0
        %2350 = vmatprep.subr.bf16.mxu0 0
        %2351 = vmatpush1.bf16.msra.mxu0 0
        %2352 = vmatprep.subr.bf16.mxu0 0
        %2353 = vmatpush1.bf16.msra.mxu0 0
        %2354 = vmatprep.subr.bf16.mxu0 0
        %2355 = vmatpush1.bf16.msra.mxu0 0
        %2356 = vmatprep.subr.bf16.mxu0 0
        %2357 = vmatpush1.bf16.msra.mxu0 0
        %2358 = vmatprep.subr.bf16.mxu0 0
        %2359 = vmatpush1.bf16.msra.mxu0 0
        %2360 = vmatprep.subr.bf16.mxu0 0
        %2361 = vmatpush1.bf16.msra.mxu0 0
        %2362 = vmatprep.subr.bf16.mxu0 0
        %2363 = vmatpush1.bf16.msra.mxu0 0
        %2364 = vmatprep.subr.bf16.mxu0 0
        %2365 = vmatpush1.bf16.msra.mxu0 0
        %2366 = vmatprep.subr.bf16.mxu0 0
        %2367 = vmatpush1.bf16.msra.mxu0 0
        %2368 = vmatprep.subr.bf16.mxu0 0
        %2369 = vmatpush1.bf16.msra.mxu0 0
        %2370 = vmatprep.mubr.bf16.mxu0 0
        %2371 = vmatmul.mubr.bf16.gmra.mrb[0].mxu0 %v2333
        %v2372 = vpop.f32.mrb[0].mxu0
        %v2373 = vadd.f32 0.0, %v2372
        %v2374 = vpop.f32.mrb[0].mxu0
        %v2375 = vpop.f32.mrb[0].mxu0
        %v2376 = vpop.f32.mrb[0].mxu0
        %2377 = vdwg.mxu0
        %v2379 = vsel %vm2048, %v2279, 0
        %v2382 = vsel %vm2288, %v2283, 0
        %2384 = vmatprep.subr.bf16.mxu0 0
        %2385 = vmatpush1.bf16.msra.mxu0 %v2382
        %2386 = vmatprep.subr.bf16.mxu0 0
        %2387 = vmatpush1.bf16.msra.mxu0 0
        %2388 = vmatprep.subr.bf16.mxu0 0
        %2389 = vmatpush1.bf16.msra.mxu0 0
        %2390 = vmatprep.subr.bf16.mxu0 0
        %2391 = vmatpush1.bf16.msra.mxu0 0
        %2392 = vmatprep.subr.bf16.mxu0 0
        %2393 = vmatpush1.bf16.msra.mxu0 0
        %2394 = vmatprep.subr.bf16.mxu0 0
        %2395 = vmatpush1.bf16.msra.mxu0 0
        %2396 = vmatprep.subr.bf16.mxu0 0
        %2397 = vmatpush1.bf16.msra.mxu0 0
        %2398 = vmatprep.subr.bf16.mxu0 0
        %2399 = vmatpush1.bf16.msra.mxu0 0
        %2400 = vmatprep.subr.bf16.mxu0 0
        %2401 = vmatpush1.bf16.msra.mxu0 0
        %2402 = vmatprep.subr.bf16.mxu0 0
        %2403 = vmatpush1.bf16.msra.mxu0 0
        %2404 = vmatprep.subr.bf16.mxu0 0
        %2405 = vmatpush1.bf16.msra.mxu0 0
        %2406 = vmatprep.subr.bf16.mxu0 0
        %2407 = vmatpush1.bf16.msra.mxu0 0
        %2408 = vmatprep.subr.bf16.mxu0 0
        %2409 = vmatpush1.bf16.msra.mxu0 0
        %2410 = vmatprep.subr.bf16.mxu0 0
        %2411 = vmatpush1.bf16.msra.mxu0 0
        %2412 = vmatprep.subr.bf16.mxu0 0
        %2413 = vmatpush1.bf16.msra.mxu0 0
        %2414 = vmatprep.subr.bf16.mxu0 0
        %2415 = vmatpush1.bf16.msra.mxu0 0
        %2416 = vmatprep.mubr.bf16.mxu0 0
        %2417 = vmatmul.mubr.bf16.gmra.mrb[0].mxu0 %v2379
        %v2418 = vpop.f32.mrb[0].mxu0
        %v2419 = vadd.f32 0.0, %v2418
        %v2420 = vpop.f32.mrb[0].mxu0
        %v2421 = vpop.f32.mrb[0].mxu0
        %v2422 = vpop.f32.mrb[0].mxu0
        %2423 = vdwg.mxu0
        %v2425 = vsel %vm2048, %v2280, 0
        %v2428 = vsel %vm2288, %v2284, 0
        %2430 = vmatprep.subr.bf16.mxu0 0
        %2431 = vmatpush1.bf16.msra.mxu0 %v2428
        %2432 = vmatprep.subr.bf16.mxu0 0
        %2433 = vmatpush1.bf16.msra.mxu0 0
        %2434 = vmatprep.subr.bf16.mxu0 0
        %2435 = vmatpush1.bf16.msra.mxu0 0
        %2436 = vmatprep.subr.bf16.mxu0 0
        %2437 = vmatpush1.bf16.msra.mxu0 0
        %2438 = vmatprep.subr.bf16.mxu0 0
        %2439 = vmatpush1.bf16.msra.mxu0 0
        %2440 = vmatprep.subr.bf16.mxu0 0
        %2441 = vmatpush1.bf16.msra.mxu0 0
        %2442 = vmatprep.subr.bf16.mxu0 0
        %2443 = vmatpush1.bf16.msra.mxu0 0
        %2444 = vmatprep.subr.bf16.mxu0 0
        %2445 = vmatpush1.bf16.msra.mxu0 0
        %2446 = vmatprep.subr.bf16.mxu0 0
        %2447 = vmatpush1.bf16.msra.mxu0 0
        %2448 = vmatprep.subr.bf16.mxu0 0
        %2449 = vmatpush1.bf16.msra.mxu0 0
        %2450 = vmatprep.subr.bf16.mxu0 0
        %2451 = vmatpush1.bf16.msra.mxu0 0
        %2452 = vmatprep.subr.bf16.mxu0 0
        %2453 = vmatpush1.bf16.msra.mxu0 0
        %2454 = vmatprep.subr.bf16.mxu0 0
        %2455 = vmatpush1.bf16.msra.mxu0 0
        %2456 = vmatprep.subr.bf16.mxu0 0
        %2457 = vmatpush1.bf16.msra.mxu0 0
        %2458 = vmatprep.subr.bf16.mxu0 0
        %2459 = vmatpush1.bf16.msra.mxu0 0
        %2460 = vmatprep.subr.bf16.mxu0 0
        %2461 = vmatpush1.bf16.msra.mxu0 0
        %2462 = vmatprep.mubr.bf16.mxu0 0
        %2463 = vmatmul.mubr.bf16.gmra.mrb[0].mxu0 %v2425
        %v2464 = vpop.f32.mrb[0].mxu0
        %v2465 = vadd.f32 0.0, %v2464
        %v2466 = vpop.f32.mrb[0].mxu0
        %v2467 = vpop.f32.mrb[0].mxu0
        %v2468 = vpop.f32.mrb[0].mxu0
        %2469 = vdwg.mxu0
        %v2470 = vld [vmem:[%s1015] sm:$0xf]
        %v2471 = vld [vmem:[%s1015 + $0x4] sm:$0xf]
        %v2472 = vld [vmem:[%s1015 + $0x8] sm:$0xf]
        %v2473 = vld [vmem:[%s1015 + $0xc] sm:$0xf]
        %v2474 = vld [vmem:[%s1211] sm:$0x1]
        %v2475 = vpack.c.bf16 %v2327, %v2327
        %v2476 = vpack.c.bf16 %v2373, %v2373
        %v2477 = vpack.c.bf16 %v2419, %v2419
        %v2478 = vpack.c.bf16 %v2465, %v2465
        %v2480 = vsel %vm2048, %v2475, 0
        %v2483 = vsel %vm2288, %v2470, 0
        %2485 = vmatprep.subr.bf16.mxu0 0
        %2486 = vmatpush1.bf16.msra.mxu0 %v2483
        %2487 = vmatprep.subr.bf16.mxu0 0
        %2488 = vmatpush1.bf16.msra.mxu0 0
        %2489 = vmatprep.subr.bf16.mxu0 0
        %2490 = vmatpush1.bf16.msra.mxu0 0
        %2491 = vmatprep.subr.bf16.mxu0 0
        %2492 = vmatpush1.bf16.msra.mxu0 0
        %2493 = vmatprep.subr.bf16.mxu0 0
        %2494 = vmatpush1.bf16.msra.mxu0 0
        %2495 = vmatprep.subr.bf16.mxu0 0
        %2496 = vmatpush1.bf16.msra.mxu0 0
        %2497 = vmatprep.subr.bf16.mxu0 0
        %2498 = vmatpush1.bf16.msra.mxu0 0
        %2499 = vmatprep.subr.bf16.mxu0 0
        %2500 = vmatpush1.bf16.msra.mxu0 0
        %2501 = vmatprep.subr.bf16.mxu0 0
        %2502 = vmatpush1.bf16.msra.mxu0 0
        %2503 = vmatprep.subr.bf16.mxu0 0
        %2504 = vmatpush1.bf16.msra.mxu0 0
        %2505 = vmatprep.subr.bf16.mxu0 0
        %2506 = vmatpush1.bf16.msra.mxu0 0
        %2507 = vmatprep.subr.bf16.mxu0 0
        %2508 = vmatpush1.bf16.msra.mxu0 0
        %2509 = vmatprep.subr.bf16.mxu0 0
        %2510 = vmatpush1.bf16.msra.mxu0 0
        %2511 = vmatprep.subr.bf16.mxu0 0
        %2512 = vmatpush1.bf16.msra.mxu0 0
        %2513 = vmatprep.subr.bf16.mxu0 0
        %2514 = vmatpush1.bf16.msra.mxu0 0
        %2515 = vmatprep.subr.bf16.mxu0 0
        %2516 = vmatpush1.bf16.msra.mxu0 0
        %2517 = vmatprep.mubr.bf16.mxu0 0
        %2518 = vmatmul.mubr.bf16.gmra.mrb[0].mxu0 %v2480
        %v2519 = vpop.f32.mrb[0].mxu0
        %v2520 = vadd.f32 0.0, %v2519
        %v2521 = vpop.f32.mrb[0].mxu0
        %v2522 = vpop.f32.mrb[0].mxu0
        %v2523 = vpop.f32.mrb[0].mxu0
        %2524 = vdwg.mxu0
        %v2526 = vsel %vm2048, %v2476, 0
        %v2529 = vsel %vm2288, %v2471, 0
        %2531 = vmatprep.subr.bf16.mxu0 0
        %2532 = vmatpush1.bf16.msra.mxu0 %v2529
        %2533 = vmatprep.subr.bf16.mxu0 0
        %2534 = vmatpush1.bf16.msra.mxu0 0
        %2535 = vmatprep.subr.bf16.mxu0 0
        %2536 = vmatpush1.bf16.msra.mxu0 0
        %2537 = vmatprep.subr.bf16.mxu0 0
        %2538 = vmatpush1.bf16.msra.mxu0 0
        %2539 = vmatprep.subr.bf16.mxu0 0
        %2540 = vmatpush1.bf16.msra.mxu0 0
        %2541 = vmatprep.subr.bf16.mxu0 0
        %2542 = vmatpush1.bf16.msra.mxu0 0
        %2543 = vmatprep.subr.bf16.mxu0 0
        %2544 = vmatpush1.bf16.msra.mxu0 0
        %2545 = vmatprep.subr.bf16.mxu0 0
        %2546 = vmatpush1.bf16.msra.mxu0 0
        %2547 = vmatprep.subr.bf16.mxu0 0
        %2548 = vmatpush1.bf16.msra.mxu0 0
        %2549 = vmatprep.subr.bf16.mxu0 0
        %2550 = vmatpush1.bf16.msra.mxu0 0
        %2551 = vmatprep.subr.bf16.mxu0 0
        %2552 = vmatpush1.bf16.msra.mxu0 0
        %2553 = vmatprep.subr.bf16.mxu0 0
        %2554 = vmatpush1.bf16.msra.mxu0 0
        %2555 = vmatprep.subr.bf16.mxu0 0
        %2556 = vmatpush1.bf16.msra.mxu0 0
        %2557 = vmatprep.subr.bf16.mxu0 0
        %2558 = vmatpush1.bf16.msra.mxu0 0
        %2559 = vmatprep.subr.bf16.mxu0 0
        %2560 = vmatpush1.bf16.msra.mxu0 0
        %2561 = vmatprep.subr.bf16.mxu0 0
        %2562 = vmatpush1.bf16.msra.mxu0 0
        %2563 = vmatprep.mubr.bf16.mxu0 0
        %2564 = vmatmul.mubr.bf16.gmra.mrb[0].mxu0 %v2526
        %v2565 = vpop.f32.mrb[0].mxu0
        %v2566 = vadd.f32 0.0, %v2565
        %v2567 = vpop.f32.mrb[0].mxu0
        %v2568 = vpop.f32.mrb[0].mxu0
        %v2569 = vpop.f32.mrb[0].mxu0
        %2570 = vdwg.mxu0
        %v2572 = vsel %vm2048, %v2477, 0
        %v2575 = vsel %vm2288, %v2472, 0
        %2577 = vmatprep.subr.bf16.mxu0 0
        %2578 = vmatpush1.bf16.msra.mxu0 %v2575
        %2579 = vmatprep.subr.bf16.mxu0 0
        %2580 = vmatpush1.bf16.msra.mxu0 0
        %2581 = vmatprep.subr.bf16.mxu0 0
        %2582 = vmatpush1.bf16.msra.mxu0 0
        %2583 = vmatprep.subr.bf16.mxu0 0
        %2584 = vmatpush1.bf16.msra.mxu0 0
        %2585 = vmatprep.subr.bf16.mxu0 0
        %2586 = vmatpush1.bf16.msra.mxu0 0
        %2587 = vmatprep.subr.bf16.mxu0 0
        %2588 = vmatpush1.bf16.msra.mxu0 0
        %2589 = vmatprep.subr.bf16.mxu0 0
        %2590 = vmatpush1.bf16.msra.mxu0 0
        %2591 = vmatprep.subr.bf16.mxu0 0
        %2592 = vmatpush1.bf16.msra.mxu0 0
        %2593 = vmatprep.subr.bf16.mxu0 0
        %2594 = vmatpush1.bf16.msra.mxu0 0
        %2595 = vmatprep.subr.bf16.mxu0 0
        %2596 = vmatpush1.bf16.msra.mxu0 0
        %2597 = vmatprep.subr.bf16.mxu0 0
        %2598 = vmatpush1.bf16.msra.mxu0 0
        %2599 = vmatprep.subr.bf16.mxu0 0
        %2600 = vmatpush1.bf16.msra.mxu0 0
        %2601 = vmatprep.subr.bf16.mxu0 0
        %2602 = vmatpush1.bf16.msra.mxu0 0
        %2603 = vmatprep.subr.bf16.mxu0 0
        %2604 = vmatpush1.bf16.msra.mxu0 0
        %2605 = vmatprep.subr.bf16.mxu0 0
        %2606 = vmatpush1.bf16.msra.mxu0 0
        %2607 = vmatprep.subr.bf16.mxu0 0
        %2608 = vmatpush1.bf16.msra.mxu0 0
        %2609 = vmatprep.mubr.bf16.mxu0 0
        %2610 = vmatmul.mubr.bf16.gmra.mrb[0].mxu0 %v2572
        %v2611 = vpop.f32.mrb[0].mxu0
        %v2612 = vadd.f32 0.0, %v2611
        %v2613 = vpop.f32.mrb[0].mxu0
        %v2614 = vpop.f32.mrb[0].mxu0
        %v2615 = vpop.f32.mrb[0].mxu0
        %2616 = vdwg.mxu0
        %v2618 = vsel %vm2048, %v2478, 0
        %v2621 = vsel %vm2288, %v2473, 0
        %2623 = vmatprep.subr.bf16.mxu0 0
        %2624 = vmatpush1.bf16.msra.mxu0 %v2621
        %2625 = vmatprep.subr.bf16.mxu0 0
        %2626 = vmatpush1.bf16.msra.mxu0 0
        %2627 = vmatprep.subr.bf16.mxu0 0
        %2628 = vmatpush1.bf16.msra.mxu0 0
        %2629 = vmatprep.subr.bf16.mxu0 0
        %2630 = vmatpush1.bf16.msra.mxu0 0
        %2631 = vmatprep.subr.bf16.mxu0 0
        %2632 = vmatpush1.bf16.msra.mxu0 0
        %2633 = vmatprep.subr.bf16.mxu0 0
        %2634 = vmatpush1.bf16.msra.mxu0 0
        %2635 = vmatprep.subr.bf16.mxu0 0
        %2636 = vmatpush1.bf16.msra.mxu0 0
        %2637 = vmatprep.subr.bf16.mxu0 0
        %2638 = vmatpush1.bf16.msra.mxu0 0
        %2639 = vmatprep.subr.bf16.mxu0 0
        %2640 = vmatpush1.bf16.msra.mxu0 0
        %2641 = vmatprep.subr.bf16.mxu0 0
        %2642 = vmatpush1.bf16.msra.mxu0 0
        %2643 = vmatprep.subr.bf16.mxu0 0
        %2644 = vmatpush1.bf16.msra.mxu0 0
        %2645 = vmatprep.subr.bf16.mxu0 0
        %2646 = vmatpush1.bf16.msra.mxu0 0
        %2647 = vmatprep.subr.bf16.mxu0 0
        %2648 = vmatpush1.bf16.msra.mxu0 0
        %2649 = vmatprep.subr.bf16.mxu0 0
        %2650 = vmatpush1.bf16.msra.mxu0 0
        %2651 = vmatprep.subr.bf16.mxu0 0
        %2652 = vmatpush1.bf16.msra.mxu0 0
        %2653 = vmatprep.subr.bf16.mxu0 0
        %2654 = vmatpush1.bf16.msra.mxu0 0
        %2655 = vmatprep.mubr.bf16.mxu0 0
        %2656 = vmatmul.mubr.bf16.gmra.mrb[0].mxu0 %v2618
        %v2657 = vpop.f32.mrb[0].mxu0
        %v2658 = vadd.f32 0.0, %v2657
        %v2659 = vpop.f32.mrb[0].mxu0
        %v2660 = vpop.f32.mrb[0].mxu0
        %v2661 = vpop.f32.mrb[0].mxu0
        %2662 = vdwg.mxu0
        %v2663 = vsel %vm1424, %v2520, 0.0
        %v2664 = vsel %vm1424, %v2566, 0.0
        %v2665 = vadd.f32 %v2663, %v2664
        %v2666 = vsel %vm1424, %v2612, 0.0
        %v2667 = vadd.f32 %v2665, %v2666
        %v2668 = vsel %vm1424, %v2658, 0.0
        %v2669 = vadd.f32 %v2667, %v2668
        %v2671 = vlaneseq
        %v2672 = vshrl.u32 %v2671, 7
        %v2673 = vsub.s32 0, %v2672
        %v2674 = vrot.slane %v2474, %v2673
        %v2676 = vadd.f32 %v2669, %v2674
        %v2677 = vadd.f32 %v1272, %v2676
        %v2678 = vld [vmem:[%s1241] sm:$0x1]
        %v2679 = vld [vmem:[%s1244] sm:$0x1]
        %v2680 = vsel %vm1424, %v2677, 0.0
        %2681 = vadd.xlane.f32.xlu0 %v2680
        %v2682 = vpop.xlane.xlu0 %2681
        %v2683 = vrcp.pop 32.0
        %v2684 = vmul.f32 %v2682, %v2683
        %v2685 = vsub.f32 %v2677, %v2684
        %v2686 = vmul.f32 %v2685, %v2685
        %v2687 = vsel %vm1424, %v2686, 0.0
        %2688 = vadd.xlane.f32.xlu0 %v2687
        %v2689 = vpop.xlane.xlu0 %2688
        %v2690 = vmul.f32 %v2689, %v2683
        %v2691 = vadd.f32 %v2690, 1e-05
        %v2692 = vrsqrt.pop %v2691
        %v2693 = vmul.f32 %v2685, %v2692
        %v2695 = vlaneseq
        %v2696 = vshrl.u32 %v2695, 7
        %v2697 = vsub.s32 0, %v2696
        %v2698 = vrot.slane %v2678, %v2697
        %v2700 = vmul.f32 %v2693, %v2698
        %v2702 = vlaneseq
        %v2703 = vshrl.u32 %v2702, 7
        %v2704 = vsub.s32 0, %v2703
        %v2705 = vrot.slane %v2679, %v2704
        %v2707 = vadd.f32 %v2700, %v2705
        %v2708 = vld [vmem:[%s1199] sm:$0xff]
        %v2709 = vpack.c.bf16 %v2708, %v2708
        %v2710 = vpack.c.bf16 %v2707, %v2707
        %v2711 = vld [vmem:[%s1024] sm:$0xf]
        %v2712 = vld [vmem:[%s1024 + $0x4] sm:$0xf]
        %v2713 = vld [vmem:[%s1024 + $0x8] sm:$0xf]
        %v2714 = vld [vmem:[%s1024 + $0xc] sm:$0xf]
        %v2715 = vld [vmem:[%s1024 + $0x10] sm:$0xf]
        %v2716 = vld [vmem:[%s1024 + $0x14] sm:$0xf]
        %v2717 = vld [vmem:[%s1024 + $0x18] sm:$0xf]
        %v2718 = vld [vmem:[%s1024 + $0x1c] sm:$0xf]
        %v2719 = vld [vmem:[%s1024 + $0x20] sm:$0xf]
        %v2720 = vld [vmem:[%s1024 + $0x24] sm:$0xf]
        %v2721 = vld [vmem:[%s1024 + $0x28] sm:$0xf]
        %v2722 = vld [vmem:[%s1024 + $0x2c] sm:$0xf]
        %v2723 = vld [vmem:[%s1024 + $0x30] sm:$0xf]
        %v2724 = vld [vmem:[%s1024 + $0x34] sm:$0xf]
        %v2725 = vld [vmem:[%s1024 + $0x38] sm:$0xf]
        %v2726 = vld [vmem:[%s1024 + $0x3c] sm:$0xf]
        %v2727 = vld [vmem:[%s1215] sm:$0x1]
        %v2728 = vld [vmem:[%s1215 + $0x1] sm:$0x1]
        %v2729 = vld [vmem:[%s1215 + $0x2] sm:$0x1]
        %v2730 = vld [vmem:[%s1215 + $0x3] sm:$0x1]
        %v2735 = vlaneseq
        %v2736 = vshrl.u32 %v2735, 7
        %v2737 = vsub.s32 0, %v2736
        %v2738 = vrot.slane %v2727, %v2737
        %v2739 = vlaneseq
        %v2740 = vshrl.u32 %v2739, 7
        %v2741 = vsub.s32 0, %v2740
        %v2742 = vrot.slane %v2728, %v2741
        %v2743 = vlaneseq
        %v2744 = vshrl.u32 %v2743, 7
        %v2745 = vsub.s32 0, %v2744
        %v2746 = vrot.slane %v2729, %v2745
        %v2747 = vlaneseq
        %v2748 = vshrl.u32 %v2747, 7
        %v2749 = vsub.s32 0, %v2748
        %v2750 = vrot.slane %v2730, %v2749
        %v2759 = vunpack.c.l.b16 %v2711
        %v2760 = vunpack.c.l.b16 %v2712
        %v2761 = vunpack.c.l.b16 %v2713
        %v2762 = vunpack.c.l.b16 %v2714
        %v2763 = vpack.c.b16 %v2760, %v2759
        %v2764 = vpack.c.b16 %v2762, %v2761
        %v2768 = vsel %vm1424, %v2710, 0
        %2770 = vmatprep.subr.bf16.mxu0 0
        %2771 = vmatpush1.bf16.msra.mxu0 %v2763
        %2772 = vmatprep.subr.bf16.mxu0 0
        %2773 = vmatpush1.bf16.msra.mxu0 %v2764
        %2774 = vmatprep.subr.bf16.mxu0 0
        %2775 = vmatpush1.bf16.msra.mxu0 0
        %2776 = vmatprep.subr.bf16.mxu0 0
        %2777 = vmatpush1.bf16.msra.mxu0 0
        %2778 = vmatprep.subr.bf16.mxu0 0
        %2779 = vmatpush1.bf16.msra.mxu0 0
        %2780 = vmatprep.subr.bf16.mxu0 0
        %2781 = vmatpush1.bf16.msra.mxu0 0
        %2782 = vmatprep.subr.bf16.mxu0 0
        %2783 = vmatpush1.bf16.msra.mxu0 0
        %2784 = vmatprep.subr.bf16.mxu0 0
        %2785 = vmatpush1.bf16.msra.mxu0 0
        %2786 = vmatprep.subr.bf16.mxu0 0
        %2787 = vmatpush1.bf16.msra.mxu0 0
        %2788 = vmatprep.subr.bf16.mxu0 0
        %2789 = vmatpush1.bf16.msra.mxu0 0
        %2790 = vmatprep.subr.bf16.mxu0 0
        %2791 = vmatpush1.bf16.msra.mxu0 0
        %2792 = vmatprep.subr.bf16.mxu0 0
        %2793 = vmatpush1.bf16.msra.mxu0 0
        %2794 = vmatprep.subr.bf16.mxu0 0
        %2795 = vmatpush1.bf16.msra.mxu0 0
        %2796 = vmatprep.subr.bf16.mxu0 0
        %2797 = vmatpush1.bf16.msra.mxu0 0
        %2798 = vmatprep.subr.bf16.mxu0 0
        %2799 = vmatpush1.bf16.msra.mxu0 0
        %2800 = vmatprep.subr.bf16.mxu0 0
        %2801 = vmatpush1.bf16.msra.mxu0 0
        %2802 = vmatprep.mubr.bf16.mxu0 0
        %2803 = vmatmul.mubr.bf16.gmra.mrb[0].mxu0 %v2768
        %v2804 = vpop.f32.mrb[0].mxu0
        %v2805 = vadd.f32 %v2738, %v2804
        %v2806 = vpop.f32.mrb[0].mxu0
        %v2807 = vpop.f32.mrb[0].mxu0
        %v2808 = vpop.f32.mrb[0].mxu0
        %2809 = vdwg.mxu0
        %v2814 = vunpack.c.l.b16 %v2715
        %v2815 = vunpack.c.l.b16 %v2716
        %v2816 = vunpack.c.l.b16 %v2717
        %v2817 = vunpack.c.l.b16 %v2718
        %v2818 = vpack.c.b16 %v2815, %v2814
        %v2819 = vpack.c.b16 %v2817, %v2816
        %2822 = vmatprep.subr.bf16.mxu0 0
        %2823 = vmatpush1.bf16.msra.mxu0 %v2818
        %2824 = vmatprep.subr.bf16.mxu0 0
        %2825 = vmatpush1.bf16.msra.mxu0 %v2819
        %2826 = vmatprep.subr.bf16.mxu0 0
        %2827 = vmatpush1.bf16.msra.mxu0 0
        %2828 = vmatprep.subr.bf16.mxu0 0
        %2829 = vmatpush1.bf16.msra.mxu0 0
        %2830 = vmatprep.subr.bf16.mxu0 0
        %2831 = vmatpush1.bf16.msra.mxu0 0
        %2832 = vmatprep.subr.bf16.mxu0 0
        %2833 = vmatpush1.bf16.msra.mxu0 0
        %2834 = vmatprep.subr.bf16.mxu0 0
        %2835 = vmatpush1.bf16.msra.mxu0 0
        %2836 = vmatprep.subr.bf16.mxu0 0
        %2837 = vmatpush1.bf16.msra.mxu0 0
        %2838 = vmatprep.subr.bf16.mxu0 0
        %2839 = vmatpush1.bf16.msra.mxu0 0
        %2840 = vmatprep.subr.bf16.mxu0 0
        %2841 = vmatpush1.bf16.msra.mxu0 0
        %2842 = vmatprep.subr.bf16.mxu0 0
        %2843 = vmatpush1.bf16.msra.mxu0 0
        %2844 = vmatprep.subr.bf16.mxu0 0
        %2845 = vmatpush1.bf16.msra.mxu0 0
        %2846 = vmatprep.subr.bf16.mxu0 0
        %2847 = vmatpush1.bf16.msra.mxu0 0
        %2848 = vmatprep.subr.bf16.mxu0 0
        %2849 = vmatpush1.bf16.msra.mxu0 0
        %2850 = vmatprep.subr.bf16.mxu0 0
        %2851 = vmatpush1.bf16.msra.mxu0 0
        %2852 = vmatprep.subr.bf16.mxu0 0
        %2853 = vmatpush1.bf16.msra.mxu0 0
        %2854 = vmatprep.mubr.bf16.mxu0 0
        %2855 = vmatmul.mubr.bf16.gmra.mrb[0].mxu0 %v2768
        %v2856 = vpop.f32.mrb[0].mxu0
        %v2857 = vadd.f32 %v2742, %v2856
        %v2858 = vpop.f32.mrb[0].mxu0
        %v2859 = vpop.f32.mrb[0].mxu0
        %v2860 = vpop.f32.mrb[0].mxu0
        %2861 = vdwg.mxu0
        %v2866 = vunpack.c.l.b16 %v2719
        %v2867 = vunpack.c.l.b16 %v2720
        %v2868 = vunpack.c.l.b16 %v2721
        %v2869 = vunpack.c.l.b16 %v2722
        %v2870 = vpack.c.b16 %v2867, %v2866
        %v2871 = vpack.c.b16 %v2869, %v2868
        %2874 = vmatprep.subr.bf16.mxu0 0
        %2875 = vmatpush1.bf16.msra.mxu0 %v2870
        %2876 = vmatprep.subr.bf16.mxu0 0
        %2877 = vmatpush1.bf16.msra.mxu0 %v2871
        %2878 = vmatprep.subr.bf16.mxu0 0
        %2879 = vmatpush1.bf16.msra.mxu0 0
        %2880 = vmatprep.subr.bf16.mxu0 0
        %2881 = vmatpush1.bf16.msra.mxu0 0
        %2882 = vmatprep.subr.bf16.mxu0 0
        %2883 = vmatpush1.bf16.msra.mxu0 0
        %2884 = vmatprep.subr.bf16.mxu0 0
        %2885 = vmatpush1.bf16.msra.mxu0 0
        %2886 = vmatprep.subr.bf16.mxu0 0
        %2887 = vmatpush1.bf16.msra.mxu0 0
        %2888 = vmatprep.subr.bf16.mxu0 0
        %2889 = vmatpush1.bf16.msra.mxu0 0
        %2890 = vmatprep.subr.bf16.mxu0 0
        %2891 = vmatpush1.bf16.msra.mxu0 0
        %2892 = vmatprep.subr.bf16.mxu0 0
        %2893 = vmatpush1.bf16.msra.mxu0 0
        %2894 = vmatprep.subr.bf16.mxu0 0
        %2895 = vmatpush1.bf16.msra.mxu0 0
        %2896 = vmatprep.subr.bf16.mxu0 0
        %2897 = vmatpush1.bf16.msra.mxu0 0
        %2898 = vmatprep.subr.bf16.mxu0 0
        %2899 = vmatpush1.bf16.msra.mxu0 0
        %2900 = vmatprep.subr.bf16.mxu0 0
        %2901 = vmatpush1.bf16.msra.mxu0 0
        %2902 = vmatprep.subr.bf16.mxu0 0
        %2903 = vmatpush1.bf16.msra.mxu0 0
        %2904 = vmatprep.subr.bf16.mxu0 0
        %2905 = vmatpush1.bf16.msra.mxu0 0
        %2906 = vmatprep.mubr.bf16.mxu0 0
        %2907 = vmatmul.mubr.bf16.gmra.mrb[0].mxu0 %v2768
        %v2908 = vpop.f32.mrb[0].mxu0
        %v2909 = vadd.f32 %v2746, %v2908
        %v2910 = vpop.f32.mrb[0].mxu0
        %v2911 = vpop.f32.mrb[0].mxu0
        %v2912 = vpop.f32.mrb[0].mxu0
        %2913 = vdwg.mxu0
        %v2918 = vunpack.c.l.b16 %v2723
        %v2919 = vunpack.c.l.b16 %v2724
        %v2920 = vunpack.c.l.b16 %v2725
        %v2921 = vunpack.c.l.b16 %v2726
        %v2922 = vpack.c.b16 %v2919, %v2918
        %v2923 = vpack.c.b16 %v2921, %v2920
        %2926 = vmatprep.subr.bf16.mxu0 0
        %2927 = vmatpush1.bf16.msra.mxu0 %v2922
        %2928 = vmatprep.subr.bf16.mxu0 0
        %2929 = vmatpush1.bf16.msra.mxu0 %v2923
        %2930 = vmatprep.subr.bf16.mxu0 0
        %2931 = vmatpush1.bf16.msra.mxu0 0
        %2932 = vmatprep.subr.bf16.mxu0 0
        %2933 = vmatpush1.bf16.msra.mxu0 0
        %2934 = vmatprep.subr.bf16.mxu0 0
        %2935 = vmatpush1.bf16.msra.mxu0 0
        %2936 = vmatprep.subr.bf16.mxu0 0
        %2937 = vmatpush1.bf16.msra.mxu0 0
        %2938 = vmatprep.subr.bf16.mxu0 0
        %2939 = vmatpush1.bf16.msra.mxu0 0
        %2940 = vmatprep.subr.bf16.mxu0 0
        %2941 = vmatpush1.bf16.msra.mxu0 0
        %2942 = vmatprep.subr.bf16.mxu0 0
        %2943 = vmatpush1.bf16.msra.mxu0 0
        %2944 = vmatprep.subr.bf16.mxu0 0
        %2945 = vmatpush1.bf16.msra.mxu0 0
        %2946 = vmatprep.subr.bf16.mxu0 0
        %2947 = vmatpush1.bf16.msra.mxu0 0
        %2948 = vmatprep.subr.bf16.mxu0 0
        %2949 = vmatpush1.bf16.msra.mxu0 0
        %2950 = vmatprep.subr.bf16.mxu0 0
        %2951 = vmatpush1.bf16.msra.mxu0 0
        %2952 = vmatprep.subr.bf16.mxu0 0
        %2953 = vmatpush1.bf16.msra.mxu0 0
        %2954 = vmatprep.subr.bf16.mxu0 0
        %2955 = vmatpush1.bf16.msra.mxu0 0
        %2956 = vmatprep.subr.bf16.mxu0 0
        %2957 = vmatpush1.bf16.msra.mxu0 0
        %2958 = vmatprep.mubr.bf16.mxu0 0
        %2959 = vmatmul.mubr.bf16.gmra.mrb[0].mxu0 %v2768
        %v2960 = vpop.f32.mrb[0].mxu0
        %v2961 = vadd.f32 %v2750, %v2960
        %v2962 = vpop.f32.mrb[0].mxu0
        %v2963 = vpop.f32.mrb[0].mxu0
        %v2964 = vpop.f32.mrb[0].mxu0
        %2965 = vdwg.mxu0
        %v2966 = vld [vmem:[%s1220] sm:$0xf]
        %v2967 = vld [vmem:[%s1220 + $0x4] sm:$0xf]
        %v2968 = vld [vmem:[%s1220 + $0x8] sm:$0xf]
        %v2969 = vld [vmem:[%s1220 + $0xc] sm:$0xf]
        %v2970 = vld [vmem:[%s1220 + $0x10] sm:$0xf]
        %v2971 = vld [vmem:[%s1220 + $0x14] sm:$0xf]
        %v2972 = vld [vmem:[%s1220 + $0x18] sm:$0xf]
        %v2973 = vld [vmem:[%s1220 + $0x1c] sm:$0xf]
        %v2974 = vld [vmem:[%s1220 + $0x20] sm:$0xf]
        %v2975 = vld [vmem:[%s1220 + $0x24] sm:$0xf]
        %v2976 = vld [vmem:[%s1220 + $0x28] sm:$0xf]
        %v2977 = vld [vmem:[%s1220 + $0x2c] sm:$0xf]
        %v2978 = vld [vmem:[%s1220 + $0x30] sm:$0xf]
        %v2979 = vld [vmem:[%s1220 + $0x34] sm:$0xf]
        %v2980 = vld [vmem:[%s1220 + $0x38] sm:$0xf]
        %v2981 = vld [vmem:[%s1220 + $0x3c] sm:$0xf]
        %v2982 = vld [vmem:[%s1220 + $0x40] sm:$0xf]
        %v2983 = vld [vmem:[%s1220 + $0x44] sm:$0xf]
        %v2984 = vld [vmem:[%s1220 + $0x48] sm:$0xf]
        %v2985 = vld [vmem:[%s1220 + $0x4c] sm:$0xf]
        %v2986 = vld [vmem:[%s1220 + $0x50] sm:$0xf]
        %v2987 = vld [vmem:[%s1220 + $0x54] sm:$0xf]
        %v2988 = vld [vmem:[%s1220 + $0x58] sm:$0xf]
        %v2989 = vld [vmem:[%s1220 + $0x5c] sm:$0xf]
        %v2990 = vld [vmem:[%s1220 + $0x60] sm:$0xf]
        %v2991 = vld [vmem:[%s1220 + $0x64] sm:$0xf]
        %v2992 = vld [vmem:[%s1220 + $0x68] sm:$0xf]
        %v2993 = vld [vmem:[%s1220 + $0x6c] sm:$0xf]
        %v2994 = vld [vmem:[%s1220 + $0x70] sm:$0xf]
        %v2995 = vld [vmem:[%s1220 + $0x74] sm:$0xf]
        %v2996 = vld [vmem:[%s1220 + $0x78] sm:$0xf]
        %v2997 = vld [vmem:[%s1220 + $0x7c] sm:$0xf]
        %v2998 = vld [vmem:[%s1224] sm:$0x1]
        %v2999 = vld [vmem:[%s1224 + $0x1] sm:$0x1]
        %v3000 = vld [vmem:[%s1224 + $0x2] sm:$0x1]
        %v3001 = vld [vmem:[%s1224 + $0x3] sm:$0x1]
        %v3002 = vld [vmem:[%s1224 + $0x4] sm:$0x1]
        %v3003 = vld [vmem:[%s1224 + $0x5] sm:$0x1]
        %v3004 = vld [vmem:[%s1224 + $0x6] sm:$0x1]
        %v3005 = vld [vmem:[%s1224 + $0x7] sm:$0x1]
        %v3014 = vlaneseq
        %v3015 = vshrl.u32 %v3014, 7
        %v3016 = vsub.s32 0, %v3015
        %v3017 = vrot.slane %v2998, %v3016
        %v3018 = vlaneseq
        %v3019 = vshrl.u32 %v3018, 7
        %v3020 = vsub.s32 0, %v3019
        %v3021 = vrot.slane %v2999, %v3020
        %v3022 = vlaneseq
        %v3023 = vshrl.u32 %v3022, 7
        %v3024 = vsub.s32 0, %v3023
        %v3025 = vrot.slane %v3000, %v3024
        %v3026 = vlaneseq
        %v3027 = vshrl.u32 %v3026, 7
        %v3028 = vsub.s32 0, %v3027
        %v3029 = vrot.slane %v3001, %v3028
        %v3030 = vlaneseq
        %v3031 = vshrl.u32 %v3030, 7
        %v3032 = vsub.s32 0, %v3031
        %v3033 = vrot.slane %v3002, %v3032
        %v3034 = vlaneseq
        %v3035 = vshrl.u32 %v3034, 7
        %v3036 = vsub.s32 0, %v3035
        %v3037 = vrot.slane %v3003, %v3036
        %v3038 = vlaneseq
        %v3039 = vshrl.u32 %v3038, 7
        %v3040 = vsub.s32 0, %v3039
        %v3041 = vrot.slane %v3004, %v3040
        %v3042 = vlaneseq
        %v3043 = vshrl.u32 %v3042, 7
        %v3044 = vsub.s32 0, %v3043
        %v3045 = vrot.slane %v3005, %v3044
        %v3058 = vunpack.c.l.b16 %v2966
        %v3059 = vunpack.c.l.b16 %v2967
        %v3060 = vunpack.c.l.b16 %v2968
        %v3061 = vunpack.c.l.b16 %v2969
        %v3062 = vpack.c.b16 %v3059, %v3058
        %v3063 = vpack.c.b16 %v3061, %v3060
        %v3067 = vsel %vm1424, %v2709, 0
        %3069 = vmatprep.subr.bf16.mxu0 0
        %3070 = vmatpush1.bf16.msra.mxu0 %v3062
        %3071 = vmatprep.subr.bf16.mxu0 0
        %3072 = vmatpush1.bf16.msra.mxu0 %v3063
        %3073 = vmatprep.subr.bf16.mxu0 0
        %3074 = vmatpush1.bf16.msra.mxu0 0
        %3075 = vmatprep.subr.bf16.mxu0 0
        %3076 = vmatpush1.bf16.msra.mxu0 0
        %3077 = vmatprep.subr.bf16.mxu0 0
        %3078 = vmatpush1.bf16.msra.mxu0 0
        %3079 = vmatprep.subr.bf16.mxu0 0
        %3080 = vmatpush1.bf16.msra.mxu0 0
        %3081 = vmatprep.subr.bf16.mxu0 0
        %3082 = vmatpush1.bf16.msra.mxu0 0
        %3083 = vmatprep.subr.bf16.mxu0 0
        %3084 = vmatpush1.bf16.msra.mxu0 0
        %3085 = vmatprep.subr.bf16.mxu0 0
        %3086 = vmatpush1.bf16.msra.mxu0 0
        %3087 = vmatprep.subr.bf16.mxu0 0
        %3088 = vmatpush1.bf16.msra.mxu0 0
        %3089 = vmatprep.subr.bf16.mxu0 0
        %3090 = vmatpush1.bf16.msra.mxu0 0
        %3091 = vmatprep.subr.bf16.mxu0 0
        %3092 = vmatpush1.bf16.msra.mxu0 0
        %3093 = vmatprep.subr.bf16.mxu0 0
        %3094 = vmatpush1.bf16.msra.mxu0 0
        %3095 = vmatprep.subr.bf16.mxu0 0
        %3096 = vmatpush1.bf16.msra.mxu0 0
        %3097 = vmatprep.subr.bf16.mxu0 0
        %3098 = vmatpush1.bf16.msra.mxu0 0
        %3099 = vmatprep.subr.bf16.mxu0 0
        %3100 = vmatpush1.bf16.msra.mxu0 0
        %3101 = vmatprep.mubr.bf16.mxu0 0
        %3102 = vmatmul.mubr.bf16.gmra.mrb[0].mxu0 %v3067
        %v3103 = vpop.f32.mrb[0].mxu0
        %v3104 = vadd.f32 %v3017, %v3103
        %v3105 = vpop.f32.mrb[0].mxu0
        %v3106 = vpop.f32.mrb[0].mxu0
        %v3107 = vpop.f32.mrb[0].mxu0
        %3108 = vdwg.mxu0
        %v3113 = vunpack.c.l.b16 %v2970
        %v3114 = vunpack.c.l.b16 %v2971
        %v3115 = vunpack.c.l.b16 %v2972
        %v3116 = vunpack.c.l.b16 %v2973
        %v3117 = vpack.c.b16 %v3114, %v3113
        %v3118 = vpack.c.b16 %v3116, %v3115
        %3121 = vmatprep.subr.bf16.mxu0 0
        %3122 = vmatpush1.bf16.msra.mxu0 %v3117
        %3123 = vmatprep.subr.bf16.mxu0 0
        %3124 = vmatpush1.bf16.msra.mxu0 %v3118
        %3125 = vmatprep.subr.bf16.mxu0 0
        %3126 = vmatpush1.bf16.msra.mxu0 0
        %3127 = vmatprep.subr.bf16.mxu0 0
        %3128 = vmatpush1.bf16.msra.mxu0 0
        %3129 = vmatprep.subr.bf16.mxu0 0
        %3130 = vmatpush1.bf16.msra.mxu0 0
        %3131 = vmatprep.subr.bf16.mxu0 0
        %3132 = vmatpush1.bf16.msra.mxu0 0
        %3133 = vmatprep.subr.bf16.mxu0 0
        %3134 = vmatpush1.bf16.msra.mxu0 0
        %3135 = vmatprep.subr.bf16.mxu0 0
        %3136 = vmatpush1.bf16.msra.mxu0 0
        %3137 = vmatprep.subr.bf16.mxu0 0
        %3138 = vmatpush1.bf16.msra.mxu0 0
        %3139 = vmatprep.subr.bf16.mxu0 0
        %3140 = vmatpush1.bf16.msra.mxu0 0
        %3141 = vmatprep.subr.bf16.mxu0 0
        %3142 = vmatpush1.bf16.msra.mxu0 0
        %3143 = vmatprep.subr.bf16.mxu0 0
        %3144 = vmatpush1.bf16.msra.mxu0 0
        %3145 = vmatprep.subr.bf16.mxu0 0
        %3146 = vmatpush1.bf16.msra.mxu0 0
        %3147 = vmatprep.subr.bf16.mxu0 0
        %3148 = vmatpush1.bf16.msra.mxu0 0
        %3149 = vmatprep.subr.bf16.mxu0 0
        %3150 = vmatpush1.bf16.msra.mxu0 0
        %3151 = vmatprep.subr.bf16.mxu0 0
        %3152 = vmatpush1.bf16.msra.mxu0 0
        %3153 = vmatprep.mubr.bf16.mxu0 0
        %3154 = vmatmul.mubr.bf16.gmra.mrb[0].mxu0 %v3067
        %v3155 = vpop.f32.mrb[0].mxu0
        %v3156 = vadd.f32 %v3021, %v3155
        %v3157 = vpop.f32.mrb[0].mxu0
        %v3158 = vpop.f32.mrb[0].mxu0
        %v3159 = vpop.f32.mrb[0].mxu0
        %3160 = vdwg.mxu0
        %v3165 = vunpack.c.l.b16 %v2974
        %v3166 = vunpack.c.l.b16 %v2975
        %v3167 = vunpack.c.l.b16 %v2976
        %v3168 = vunpack.c.l.b16 %v2977
        %v3169 = vpack.c.b16 %v3166, %v3165
        %v3170 = vpack.c.b16 %v3168, %v3167
        %3173 = vmatprep.subr.bf16.mxu0 0
        %3174 = vmatpush1.bf16.msra.mxu0 %v3169
        %3175 = vmatprep.subr.bf16.mxu0 0
        %3176 = vmatpush1.bf16.msra.mxu0 %v3170
        %3177 = vmatprep.subr.bf16.mxu0 0
        %3178 = vmatpush1.bf16.msra.mxu0 0
        %3179 = vmatprep.subr.bf16.mxu0 0
        %3180 = vmatpush1.bf16.msra.mxu0 0
        %3181 = vmatprep.subr.bf16.mxu0 0
        %3182 = vmatpush1.bf16.msra.mxu0 0
        %3183 = vmatprep.subr.bf16.mxu0 0
        %3184 = vmatpush1.bf16.msra.mxu0 0
        %3185 = vmatprep.subr.bf16.mxu0 0
        %3186 = vmatpush1.bf16.msra.mxu0 0
        %3187 = vmatprep.subr.bf16.mxu0 0
        %3188 = vmatpush1.bf16.msra.mxu0 0
        %3189 = vmatprep.subr.bf16.mxu0 0
        %3190 = vmatpush1.bf16.msra.mxu0 0
        %3191 = vmatprep.subr.bf16.mxu0 0
        %3192 = vmatpush1.bf16.msra.mxu0 0
        %3193 = vmatprep.subr.bf16.mxu0 0
        %3194 = vmatpush1.bf16.msra.mxu0 0
        %3195 = vmatprep.subr.bf16.mxu0 0
        %3196 = vmatpush1.bf16.msra.mxu0 0
        %3197 = vmatprep.subr.bf16.mxu0 0
        %3198 = vmatpush1.bf16.msra.mxu0 0
        %3199 = vmatprep.subr.bf16.mxu0 0
        %3200 = vmatpush1.bf16.msra.mxu0 0
        %3201 = vmatprep.subr.bf16.mxu0 0
        %3202 = vmatpush1.bf16.msra.mxu0 0
        %3203 = vmatprep.subr.bf16.mxu0 0
        %3204 = vmatpush1.bf16.msra.mxu0 0
        %3205 = vmatprep.mubr.bf16.mxu0 0
        %3206 = vmatmul.mubr.bf16.gmra.mrb[0].mxu0 %v3067
        %v3207 = vpop.f32.mrb[0].mxu0
        %v3208 = vadd.f32 %v3025, %v3207
        %v3209 = vpop.f32.mrb[0].mxu0
        %v3210 = vpop.f32.mrb[0].mxu0
        %v3211 = vpop.f32.mrb[0].mxu0
        %3212 = vdwg.mxu0
        %v3217 = vunpack.c.l.b16 %v2978
        %v3218 = vunpack.c.l.b16 %v2979
        %v3219 = vunpack.c.l.b16 %v2980
        %v3220 = vunpack.c.l.b16 %v2981
        %v3221 = vpack.c.b16 %v3218, %v3217
        %v3222 = vpack.c.b16 %v3220, %v3219
        %3225 = vmatprep.subr.bf16.mxu0 0
        %3226 = vmatpush1.bf16.msra.mxu0 %v3221
        %3227 = vmatprep.subr.bf16.mxu0 0
        %3228 = vmatpush1.bf16.msra.mxu0 %v3222
        %3229 = vmatprep.subr.bf16.mxu0 0
        %3230 = vmatpush1.bf16.msra.mxu0 0
        %3231 = vmatprep.subr.bf16.mxu0 0
        %3232 = vmatpush1.bf16.msra.mxu0 0
        %3233 = vmatprep.subr.bf16.mxu0 0
        %3234 = vmatpush1.bf16.msra.mxu0 0
        %3235 = vmatprep.subr.bf16.mxu0 0
        %3236 = vmatpush1.bf16.msra.mxu0 0
        %3237 = vmatprep.subr.bf16.mxu0 0
        %3238 = vmatpush1.bf16.msra.mxu0 0
        %3239 = vmatprep.subr.bf16.mxu0 0
        %3240 = vmatpush1.bf16.msra.mxu0 0
        %3241 = vmatprep.subr.bf16.mxu0 0
        %3242 = vmatpush1.bf16.msra.mxu0 0
        %3243 = vmatprep.subr.bf16.mxu0 0
        %3244 = vmatpush1.bf16.msra.mxu0 0
        %3245 = vmatprep.subr.bf16.mxu0 0
        %3246 = vmatpush1.bf16.msra.mxu0 0
        %3247 = vmatprep.subr.bf16.mxu0 0
        %3248 = vmatpush1.bf16.msra.mxu0 0
        %3249 = vmatprep.subr.bf16.mxu0 0
        %3250 = vmatpush1.bf16.msra.mxu0 0
        %3251 = vmatprep.subr.bf16.mxu0 0
        %3252 = vmatpush1.bf16.msra.mxu0 0
        %3253 = vmatprep.subr.bf16.mxu0 0
        %3254 = vmatpush1.bf16.msra.mxu0 0
        %3255 = vmatprep.subr.bf16.mxu0 0
        %3256 = vmatpush1.bf16.msra.mxu0 0
        %3257 = vmatprep.mubr.bf16.mxu0 0
        %3258 = vmatmul.mubr.bf16.gmra.mrb[0].mxu0 %v3067
        %v3259 = vpop.f32.mrb[0].mxu0
        %v3260 = vadd.f32 %v3029, %v3259
        %v3261 = vpop.f32.mrb[0].mxu0
        %v3262 = vpop.f32.mrb[0].mxu0
        %v3263 = vpop.f32.mrb[0].mxu0
        %3264 = vdwg.mxu0
        %v3269 = vunpack.c.l.b16 %v2982
        %v3270 = vunpack.c.l.b16 %v2983
        %v3271 = vunpack.c.l.b16 %v2984
        %v3272 = vunpack.c.l.b16 %v2985
        %v3273 = vpack.c.b16 %v3270, %v3269
        %v3274 = vpack.c.b16 %v3272, %v3271
        %3277 = vmatprep.subr.bf16.mxu0 0
        %3278 = vmatpush1.bf16.msra.mxu0 %v3273
        %3279 = vmatprep.subr.bf16.mxu0 0
        %3280 = vmatpush1.bf16.msra.mxu0 %v3274
        %3281 = vmatprep.subr.bf16.mxu0 0
        %3282 = vmatpush1.bf16.msra.mxu0 0
        %3283 = vmatprep.subr.bf16.mxu0 0
        %3284 = vmatpush1.bf16.msra.mxu0 0
        %3285 = vmatprep.subr.bf16.mxu0 0
        %3286 = vmatpush1.bf16.msra.mxu0 0
        %3287 = vmatprep.subr.bf16.mxu0 0
        %3288 = vmatpush1.bf16.msra.mxu0 0
        %3289 = vmatprep.subr.bf16.mxu0 0
        %3290 = vmatpush1.bf16.msra.mxu0 0
        %3291 = vmatprep.subr.bf16.mxu0 0
        %3292 = vmatpush1.bf16.msra.mxu0 0
        %3293 = vmatprep.subr.bf16.mxu0 0
        %3294 = vmatpush1.bf16.msra.mxu0 0
        %3295 = vmatprep.subr.bf16.mxu0 0
        %3296 = vmatpush1.bf16.msra.mxu0 0
        %3297 = vmatprep.subr.bf16.mxu0 0
        %3298 = vmatpush1.bf16.msra.mxu0 0
        %3299 = vmatprep.subr.bf16.mxu0 0
        %3300 = vmatpush1.bf16.msra.mxu0 0
        %3301 = vmatprep.subr.bf16.mxu0 0
        %3302 = vmatpush1.bf16.msra.mxu0 0
        %3303 = vmatprep.subr.bf16.mxu0 0
        %3304 = vmatpush1.bf16.msra.mxu0 0
        %3305 = vmatprep.subr.bf16.mxu0 0
        %3306 = vmatpush1.bf16.msra.mxu0 0
        %3307 = vmatprep.subr.bf16.mxu0 0
        %3308 = vmatpush1.bf16.msra.mxu0 0
        %3309 = vmatprep.mubr.bf16.mxu0 0
        %3310 = vmatmul.mubr.bf16.gmra.mrb[0].mxu0 %v3067
        %v3311 = vpop.f32.mrb[0].mxu0
        %v3312 = vadd.f32 %v3033, %v3311
        %v3313 = vpop.f32.mrb[0].mxu0
        %v3314 = vpop.f32.mrb[0].mxu0
        %v3315 = vpop.f32.mrb[0].mxu0
        %3316 = vdwg.mxu0
        %v3321 = vunpack.c.l.b16 %v2986
        %v3322 = vunpack.c.l.b16 %v2987
        %v3323 = vunpack.c.l.b16 %v2988
        %v3324 = vunpack.c.l.b16 %v2989
        %v3325 = vpack.c.b16 %v3322, %v3321
        %v3326 = vpack.c.b16 %v3324, %v3323
        %3329 = vmatprep.subr.bf16.mxu0 0
        %3330 = vmatpush1.bf16.msra.mxu0 %v3325
        %3331 = vmatprep.subr.bf16.mxu0 0
        %3332 = vmatpush1.bf16.msra.mxu0 %v3326
        %3333 = vmatprep.subr.bf16.mxu0 0
        %3334 = vmatpush1.bf16.msra.mxu0 0
        %3335 = vmatprep.subr.bf16.mxu0 0
        %3336 = vmatpush1.bf16.msra.mxu0 0
        %3337 = vmatprep.subr.bf16.mxu0 0
        %3338 = vmatpush1.bf16.msra.mxu0 0
        %3339 = vmatprep.subr.bf16.mxu0 0
        %3340 = vmatpush1.bf16.msra.mxu0 0
        %3341 = vmatprep.subr.bf16.mxu0 0
        %3342 = vmatpush1.bf16.msra.mxu0 0
        %3343 = vmatprep.subr.bf16.mxu0 0
        %3344 = vmatpush1.bf16.msra.mxu0 0
        %3345 = vmatprep.subr.bf16.mxu0 0
        %3346 = vmatpush1.bf16.msra.mxu0 0
        %3347 = vmatprep.subr.bf16.mxu0 0
        %3348 = vmatpush1.bf16.msra.mxu0 0
        %3349 = vmatprep.subr.bf16.mxu0 0
        %3350 = vmatpush1.bf16.msra.mxu0 0
        %3351 = vmatprep.subr.bf16.mxu0 0
        %3352 = vmatpush1.bf16.msra.mxu0 0
        %3353 = vmatprep.subr.bf16.mxu0 0
        %3354 = vmatpush1.bf16.msra.mxu0 0
        %3355 = vmatprep.subr.bf16.mxu0 0
        %3356 = vmatpush1.bf16.msra.mxu0 0
        %3357 = vmatprep.subr.bf16.mxu0 0
        %3358 = vmatpush1.bf16.msra.mxu0 0
        %3359 = vmatprep.subr.bf16.mxu0 0
        %3360 = vmatpush1.bf16.msra.mxu0 0
        %3361 = vmatprep.mubr.bf16.mxu0 0
        %3362 = vmatmul.mubr.bf16.gmra.mrb[0].mxu0 %v3067
        %v3363 = vpop.f32.mrb[0].mxu0
        %v3364 = vadd.f32 %v3037, %v3363
        %v3365 = vpop.f32.mrb[0].mxu0
        %v3366 = vpop.f32.mrb[0].mxu0
        %v3367 = vpop.f32.mrb[0].mxu0
        %3368 = vdwg.mxu0
        %v3373 = vunpack.c.l.b16 %v2990
        %v3374 = vunpack.c.l.b16 %v2991
        %v3375 = vunpack.c.l.b16 %v2992
        %v3376 = vunpack.c.l.b16 %v2993
        %v3377 = vpack.c.b16 %v3374, %v3373
        %v3378 = vpack.c.b16 %v3376, %v3375
        %3381 = vmatprep.subr.bf16.mxu0 0
        %3382 = vmatpush1.bf16.msra.mxu0 %v3377
        %3383 = vmatprep.subr.bf16.mxu0 0
        %3384 = vmatpush1.bf16.msra.mxu0 %v3378
        %3385 = vmatprep.subr.bf16.mxu0 0
        %3386 = vmatpush1.bf16.msra.mxu0 0
        %3387 = vmatprep.subr.bf16.mxu0 0
        %3388 = vmatpush1.bf16.msra.mxu0 0
        %3389 = vmatprep.subr.bf16.mxu0 0
        %3390 = vmatpush1.bf16.msra.mxu0 0
        %3391 = vmatprep.subr.bf16.mxu0 0
        %3392 = vmatpush1.bf16.msra.mxu0 0
        %3393 = vmatprep.subr.bf16.mxu0 0
        %3394 = vmatpush1.bf16.msra.mxu0 0
        %3395 = vmatprep.subr.bf16.mxu0 0
        %3396 = vmatpush1.bf16.msra.mxu0 0
        %3397 = vmatprep.subr.bf16.mxu0 0
        %3398 = vmatpush1.bf16.msra.mxu0 0
        %3399 = vmatprep.subr.bf16.mxu0 0
        %3400 = vmatpush1.bf16.msra.mxu0 0
        %3401 = vmatprep.subr.bf16.mxu0 0
        %3402 = vmatpush1.bf16.msra.mxu0 0
        %3403 = vmatprep.subr.bf16.mxu0 0
        %3404 = vmatpush1.bf16.msra.mxu0 0
        %3405 = vmatprep.subr.bf16.mxu0 0
        %3406 = vmatpush1.bf16.msra.mxu0 0
        %3407 = vmatprep.subr.bf16.mxu0 0
        %3408 = vmatpush1.bf16.msra.mxu0 0
        %3409 = vmatprep.subr.bf16.mxu0 0
        %3410 = vmatpush1.bf16.msra.mxu0 0
        %3411 = vmatprep.subr.bf16.mxu0 0
        %3412 = vmatpush1.bf16.msra.mxu0 0
        %3413 = vmatprep.mubr.bf16.mxu0 0
        %3414 = vmatmul.mubr.bf16.gmra.mrb[0].mxu0 %v3067
        %v3415 = vpop.f32.mrb[0].mxu0
        %v3416 = vadd.f32 %v3041, %v3415
        %v3417 = vpop.f32.mrb[0].mxu0
        %v3418 = vpop.f32.mrb[0].mxu0
        %v3419 = vpop.f32.mrb[0].mxu0
        %3420 = vdwg.mxu0
        %v3425 = vunpack.c.l.b16 %v2994
        %v3426 = vunpack.c.l.b16 %v2995
        %v3427 = vunpack.c.l.b16 %v2996
        %v3428 = vunpack.c.l.b16 %v2997
        %v3429 = vpack.c.b16 %v3426, %v3425
        %v3430 = vpack.c.b16 %v3428, %v3427
        %3433 = vmatprep.subr.bf16.mxu0 0
        %3434 = vmatpush1.bf16.msra.mxu0 %v3429
        %3435 = vmatprep.subr.bf16.mxu0 0
        %3436 = vmatpush1.bf16.msra.mxu0 %v3430
        %3437 = vmatprep.subr.bf16.mxu0 0
        %3438 = vmatpush1.bf16.msra.mxu0 0
        %3439 = vmatprep.subr.bf16.mxu0 0
        %3440 = vmatpush1.bf16.msra.mxu0 0
        %3441 = vmatprep.subr.bf16.mxu0 0
        %3442 = vmatpush1.bf16.msra.mxu0 0
        %3443 = vmatprep.subr.bf16.mxu0 0
        %3444 = vmatpush1.bf16.msra.mxu0 0
        %3445 = vmatprep.subr.bf16.mxu0 0
        %3446 = vmatpush1.bf16.msra.mxu0 0
        %3447 = vmatprep.subr.bf16.mxu0 0
        %3448 = vmatpush1.bf16.msra.mxu0 0
        %3449 = vmatprep.subr.bf16.mxu0 0
        %3450 = vmatpush1.bf16.msra.mxu0 0
        %3451 = vmatprep.subr.bf16.mxu0 0
        %3452 = vmatpush1.bf16.msra.mxu0 0
        %3453 = vmatprep.subr.bf16.mxu0 0
        %3454 = vmatpush1.bf16.msra.mxu0 0
        %3455 = vmatprep.subr.bf16.mxu0 0
        %3456 = vmatpush1.bf16.msra.mxu0 0
        %3457 = vmatprep.subr.bf16.mxu0 0
        %3458 = vmatpush1.bf16.msra.mxu0 0
        %3459 = vmatprep.subr.bf16.mxu0 0
        %3460 = vmatpush1.bf16.msra.mxu0 0
        %3461 = vmatprep.subr.bf16.mxu0 0
        %3462 = vmatpush1.bf16.msra.mxu0 0
        %3463 = vmatprep.subr.bf16.mxu0 0
        %3464 = vmatpush1.bf16.msra.mxu0 0
        %3465 = vmatprep.mubr.bf16.mxu0 0
        %3466 = vmatmul.mubr.bf16.gmra.mrb[0].mxu0 %v3067
        %v3467 = vpop.f32.mrb[0].mxu0
        %v3468 = vadd.f32 %v3045, %v3467
        %v3469 = vpop.f32.mrb[0].mxu0
        %v3470 = vpop.f32.mrb[0].mxu0
        %v3471 = vpop.f32.mrb[0].mxu0
        %3472 = vdwg.mxu0
        %v3473 = vpack.c.bf16 %v2805, %v2805
        %v3474 = vpack.c.bf16 %v2857, %v2857
        %v3475 = vpack.c.bf16 %v2909, %v2909
        %v3476 = vpack.c.bf16 %v2961, %v2961
        %v3477 = vpack.c.bf16 %v3104, %v3104
        %v3478 = vpack.c.bf16 %v3156, %v3156
        %v3479 = vpack.c.bf16 %v3208, %v3208
        %v3480 = vpack.c.bf16 %v3260, %v3260
        %v3482 = vsel %vm2048, %v3473, 0
        %v3485 = vsel %vm2048, %v3477, 0
        %3487 = vmatprep.subr.bf16.mxu0 0
        %3488 = vmatpush1.bf16.xpose.msra.mxu0 %v3485
        %3489 = vmatprep.subr.bf16.mxu0 0
        %3490 = vmatpush1.bf16.xpose.msra.mxu0 0
        %3491 = vmatprep.subr.bf16.mxu0 0
        %3492 = vmatpush1.bf16.xpose.msra.mxu0 0
        %3493 = vmatprep.subr.bf16.mxu0 0
        %3494 = vmatpush1.bf16.xpose.msra.mxu0 0
        %3495 = vmatprep.subr.bf16.mxu0 0
        %3496 = vmatpush1.bf16.xpose.msra.mxu0 0
        %3497 = vmatprep.subr.bf16.mxu0 0
        %3498 = vmatpush1.bf16.xpose.msra.mxu0 0
        %3499 = vmatprep.subr.bf16.mxu0 0
        %3500 = vmatpush1.bf16.xpose.msra.mxu0 0
        %3501 = vmatprep.subr.bf16.mxu0 0
        %3502 = vmatpush1.bf16.xpose.msra.mxu0 0
        %3503 = vmatprep.subr.bf16.mxu0 0
        %3504 = vmatpush1.bf16.xpose.msra.mxu0 0
        %3505 = vmatprep.subr.bf16.mxu0 0
        %3506 = vmatpush1.bf16.xpose.msra.mxu0 0
        %3507 = vmatprep.subr.bf16.mxu0 0
        %3508 = vmatpush1.bf16.xpose.msra.mxu0 0
        %3509 = vmatprep.subr.bf16.mxu0 0
        %3510 = vmatpush1.bf16.xpose.msra.mxu0 0
        %3511 = vmatprep.subr.bf16.mxu0 0
        %3512 = vmatpush1.bf16.xpose.msra.mxu0 0
        %3513 = vmatprep.subr.bf16.mxu0 0
        %3514 = vmatpush1.bf16.xpose.msra.mxu0 0
        %3515 = vmatprep.subr.bf16.mxu0 0
        %3516 = vmatpush1.bf16.xpose.msra.mxu0 0
        %3517 = vmatprep.subr.bf16.mxu0 0
        %3518 = vmatpush1.bf16.xpose.msra.mxu0 0
        %3519 = vmatprep.mubr.bf16.mxu0 0
        %3520 = vmatmul.mubr.bf16.gmra.mrb[0].mxu0 %v3482
        %v3521 = vpop.f32.mrb[0].mxu0
        %v3522 = vadd.f32 0.0, %v3521
        %v3523 = vpop.f32.mrb[0].mxu0
        %v3524 = vpop.f32.mrb[0].mxu0
        %v3525 = vpop.f32.mrb[0].mxu0
        %3526 = vdwg.mxu0
        %v3528 = vsel %vm2048, %v3474, 0
        %v3531 = vsel %vm2048, %v3478, 0
        %3533 = vmatprep.subr.bf16.mxu0 0
        %3534 = vmatpush1.bf16.xpose.msra.mxu0 %v3531
        %3535 = vmatprep.subr.bf16.mxu0 0
        %3536 = vmatpush1.bf16.xpose.msra.mxu0 0
        %3537 = vmatprep.subr.bf16.mxu0 0
        %3538 = vmatpush1.bf16.xpose.msra.mxu0 0
        %3539 = vmatprep.subr.bf16.mxu0 0
        %3540 = vmatpush1.bf16.xpose.msra.mxu0 0
        %3541 = vmatprep.subr.bf16.mxu0 0
        %3542 = vmatpush1.bf16.xpose.msra.mxu0 0
        %3543 = vmatprep.subr.bf16.mxu0 0
        %3544 = vmatpush1.bf16.xpose.msra.mxu0 0
        %3545 = vmatprep.subr.bf16.mxu0 0
        %3546 = vmatpush1.bf16.xpose.msra.mxu0 0
        %3547 = vmatprep.subr.bf16.mxu0 0
        %3548 = vmatpush1.bf16.xpose.msra.mxu0 0
        %3549 = vmatprep.subr.bf16.mxu0 0
        %3550 = vmatpush1.bf16.xpose.msra.mxu0 0
        %3551 = vmatprep.subr.bf16.mxu0 0
        %3552 = vmatpush1.bf16.xpose.msra.mxu0 0
        %3553 = vmatprep.subr.bf16.mxu0 0
        %3554 = vmatpush1.bf16.xpose.msra.mxu0 0
        %3555 = vmatprep.subr.bf16.mxu0 0
        %3556 = vmatpush1.bf16.xpose.msra.mxu0 0
        %3557 = vmatprep.subr.bf16.mxu0 0
        %3558 = vmatpush1.bf16.xpose.msra.mxu0 0
        %3559 = vmatprep.subr.bf16.mxu0 0
        %3560 = vmatpush1.bf16.xpose.msra.mxu0 0
        %3561 = vmatprep.subr.bf16.mxu0 0
        %3562 = vmatpush1.bf16.xpose.msra.mxu0 0
        %3563 = vmatprep.subr.bf16.mxu0 0
        %3564 = vmatpush1.bf16.xpose.msra.mxu0 0
        %3565 = vmatprep.mubr.bf16.mxu0 0
        %3566 = vmatmul.mubr.bf16.gmra.mrb[0].mxu0 %v3528
        %v3567 = vpop.f32.mrb[0].mxu0
        %v3568 = vadd.f32 0.0, %v3567
        %v3569 = vpop.f32.mrb[0].mxu0
        %v3570 = vpop.f32.mrb[0].mxu0
        %v3571 = vpop.f32.mrb[0].mxu0
        %3572 = vdwg.mxu0
        %v3574 = vsel %vm2048, %v3475, 0
        %v3577 = vsel %vm2048, %v3479, 0
        %3579 = vmatprep.subr.bf16.mxu0 0
        %3580 = vmatpush1.bf16.xpose.msra.mxu0 %v3577
        %3581 = vmatprep.subr.bf16.mxu0 0
        %3582 = vmatpush1.bf16.xpose.msra.mxu0 0
        %3583 = vmatprep.subr.bf16.mxu0 0
        %3584 = vmatpush1.bf16.xpose.msra.mxu0 0
        %3585 = vmatprep.subr.bf16.mxu0 0
        %3586 = vmatpush1.bf16.xpose.msra.mxu0 0
        %3587 = vmatprep.subr.bf16.mxu0 0
        %3588 = vmatpush1.bf16.xpose.msra.mxu0 0
        %3589 = vmatprep.subr.bf16.mxu0 0
        %3590 = vmatpush1.bf16.xpose.msra.mxu0 0
        %3591 = vmatprep.subr.bf16.mxu0 0
        %3592 = vmatpush1.bf16.xpose.msra.mxu0 0
        %3593 = vmatprep.subr.bf16.mxu0 0
        %3594 = vmatpush1.bf16.xpose.msra.mxu0 0
        %3595 = vmatprep.subr.bf16.mxu0 0
        %3596 = vmatpush1.bf16.xpose.msra.mxu0 0
        %3597 = vmatprep.subr.bf16.mxu0 0
        %3598 = vmatpush1.bf16.xpose.msra.mxu0 0
        %3599 = vmatprep.subr.bf16.mxu0 0
        %3600 = vmatpush1.bf16.xpose.msra.mxu0 0
        %3601 = vmatprep.subr.bf16.mxu0 0
        %3602 = vmatpush1.bf16.xpose.msra.mxu0 0
        %3603 = vmatprep.subr.bf16.mxu0 0
        %3604 = vmatpush1.bf16.xpose.msra.mxu0 0
        %3605 = vmatprep.subr.bf16.mxu0 0
        %3606 = vmatpush1.bf16.xpose.msra.mxu0 0
        %3607 = vmatprep.subr.bf16.mxu0 0
        %3608 = vmatpush1.bf16.xpose.msra.mxu0 0
        %3609 = vmatprep.subr.bf16.mxu0 0
        %3610 = vmatpush1.bf16.xpose.msra.mxu0 0
        %3611 = vmatprep.mubr.bf16.mxu0 0
        %3612 = vmatmul.mubr.bf16.gmra.mrb[0].mxu0 %v3574
        %v3613 = vpop.f32.mrb[0].mxu0
        %v3614 = vadd.f32 0.0, %v3613
        %v3615 = vpop.f32.mrb[0].mxu0
        %v3616 = vpop.f32.mrb[0].mxu0
        %v3617 = vpop.f32.mrb[0].mxu0
        %3618 = vdwg.mxu0
        %v3620 = vsel %vm2048, %v3476, 0
        %v3623 = vsel %vm2048, %v3480, 0
        %3625 = vmatprep.subr.bf16.mxu0 0
        %3626 = vmatpush1.bf16.xpose.msra.mxu0 %v3623
        %3627 = vmatprep.subr.bf16.mxu0 0
        %3628 = vmatpush1.bf16.xpose.msra.mxu0 0
        %3629 = vmatprep.subr.bf16.mxu0 0
        %3630 = vmatpush1.bf16.xpose.msra.mxu0 0
        %3631 = vmatprep.subr.bf16.mxu0 0
        %3632 = vmatpush1.bf16.xpose.msra.mxu0 0
        %3633 = vmatprep.subr.bf16.mxu0 0
        %3634 = vmatpush1.bf16.xpose.msra.mxu0 0
        %3635 = vmatprep.subr.bf16.mxu0 0
        %3636 = vmatpush1.bf16.xpose.msra.mxu0 0
        %3637 = vmatprep.subr.bf16.mxu0 0
        %3638 = vmatpush1.bf16.xpose.msra.mxu0 0
        %3639 = vmatprep.subr.bf16.mxu0 0
        %3640 = vmatpush1.bf16.xpose.msra.mxu0 0
        %3641 = vmatprep.subr.bf16.mxu0 0
        %3642 = vmatpush1.bf16.xpose.msra.mxu0 0
        %3643 = vmatprep.subr.bf16.mxu0 0
        %3644 = vmatpush1.bf16.xpose.msra.mxu0 0
        %3645 = vmatprep.subr.bf16.mxu0 0
        %3646 = vmatpush1.bf16.xpose.msra.mxu0 0
        %3647 = vmatprep.subr.bf16.mxu0 0
        %3648 = vmatpush1.bf16.xpose.msra.mxu0 0
        %3649 = vmatprep.subr.bf16.mxu0 0
        %3650 = vmatpush1.bf16.xpose.msra.mxu0 0
        %3651 = vmatprep.subr.bf16.mxu0 0
        %3652 = vmatpush1.bf16.xpose.msra.mxu0 0
        %3653 = vmatprep.subr.bf16.mxu0 0
        %3654 = vmatpush1.bf16.xpose.msra.mxu0 0
        %3655 = vmatprep.subr.bf16.mxu0 0
        %3656 = vmatpush1.bf16.xpose.msra.mxu0 0
        %3657 = vmatprep.mubr.bf16.mxu0 0
        %3658 = vmatmul.mubr.bf16.gmra.mrb[0].mxu0 %v3620
        %v3659 = vpop.f32.mrb[0].mxu0
        %v3660 = vadd.f32 0.0, %v3659
        %v3661 = vpop.f32.mrb[0].mxu0
        %v3662 = vpop.f32.mrb[0].mxu0
        %v3663 = vpop.f32.mrb[0].mxu0
        %3664 = vdwg.mxu0
        %v3665 = vsel %vm2048, %v3522, -inf
        %3666 = vmax.xlane.f32.xlu0 %v3665
        %v3667 = vpop.xlane.xlu0 %3666
        %v3668 = vsel %vm2048, %v3568, -inf
        %3669 = vmax.xlane.f32.xlu0 %v3668
        %v3670 = vpop.xlane.xlu0 %3669
        %v3671 = vsel %vm2048, %v3614, -inf
        %3672 = vmax.xlane.f32.xlu0 %v3671
        %v3673 = vpop.xlane.xlu0 %3672
        %v3674 = vsel %vm2048, %v3660, -inf
        %3675 = vmax.xlane.f32.xlu0 %v3674
        %v3676 = vpop.xlane.xlu0 %3675
        %v3677 = vsub.f32 %v3522, %v3667
        %v3678 = vsub.f32 %v3568, %v3670
        %v3679 = vsub.f32 %v3614, %v3673
        %v3680 = vsub.f32 %v3660, %v3676
        %v3681 = vmul.f32 %v3677, 1.442695
        %v3682 = vpow.pop %v3681
        %v3683 = vmul.f32 %v3678, 1.442695
        %v3684 = vpow.pop %v3683
        %v3685 = vmul.f32 %v3679, 1.442695
        %v3686 = vpow.pop %v3685
        %v3687 = vmul.f32 %v3680, 1.442695
        %v3688 = vpow.pop %v3687
        %v3689 = vsel %vm2048, %v3682, 0.0
        %3690 = vadd.xlane.f32.xlu0 %v3689
        %v3691 = vpop.xlane.xlu0 %3690
        %v3692 = vsel %vm2048, %v3684, 0.0
        %3693 = vadd.xlane.f32.xlu0 %v3692
        %v3694 = vpop.xlane.xlu0 %3693
        %v3695 = vsel %vm2048, %v3686, 0.0
        %3696 = vadd.xlane.f32.xlu0 %v3695
        %v3697 = vpop.xlane.xlu0 %3696
        %v3698 = vsel %vm2048, %v3688, 0.0
        %3699 = vadd.xlane.f32.xlu0 %v3698
        %v3700 = vpop.xlane.xlu0 %3699
        %v3701 = vrcp.pop %v3691
        %v3702 = vmul.f32 %v3682, %v3701
        %v3703 = vrcp.pop %v3694
        %v3704 = vmul.f32 %v3684, %v3703
        %v3705 = vrcp.pop %v3697
        %v3706 = vmul.f32 %v3686, %v3705
        %v3707 = vrcp.pop %v3700
        %v3708 = vmul.f32 %v3688, %v3707
        %v3709 = vpack.c.bf16 %v3702, %v3702
        %v3710 = vpack.c.bf16 %v3704, %v3704
        %v3711 = vpack.c.bf16 %v3706, %v3706
        %v3712 = vpack.c.bf16 %v3708, %v3708
        %v3713 = vpack.c.bf16 %v3312, %v3312
        %v3714 = vpack.c.bf16 %v3364, %v3364
        %v3715 = vpack.c.bf16 %v3416, %v3416
        %v3716 = vpack.c.bf16 %v3468, %v3468
        %v3718 = vsel %vm2048, %v3709, 0
        %v3721 = vsel %vm2288, %v3713, 0
        %3723 = vmatprep.subr.bf16.mxu0 0
        %3724 = vmatpush1.bf16.msra.mxu0 %v3721
        %3725 = vmatprep.subr.bf16.mxu0 0
        %3726 = vmatpush1.bf16.msra.mxu0 0
        %3727 = vmatprep.subr.bf16.mxu0 0
        %3728 = vmatpush1.bf16.msra.mxu0 0
        %3729 = vmatprep.subr.bf16.mxu0 0
        %3730 = vmatpush1.bf16.msra.mxu0 0
        %3731 = vmatprep.subr.bf16.mxu0 0
        %3732 = vmatpush1.bf16.msra.mxu0 0
        %3733 = vmatprep.subr.bf16.mxu0 0
        %3734 = vmatpush1.bf16.msra.mxu0 0
        %3735 = vmatprep.subr.bf16.mxu0 0
        %3736 = vmatpush1.bf16.msra.mxu0 0
        %3737 = vmatprep.subr.bf16.mxu0 0
        %3738 = vmatpush1.bf16.msra.mxu0 0
        %3739 = vmatprep.subr.bf16.mxu0 0
        %3740 = vmatpush1.bf16.msra.mxu0 0
        %3741 = vmatprep.subr.bf16.mxu0 0
        %3742 = vmatpush1.bf16.msra.mxu0 0
        %3743 = vmatprep.subr.bf16.mxu0 0
        %3744 = vmatpush1.bf16.msra.mxu0 0
        %3745 = vmatprep.subr.bf16.mxu0 0
        %3746 = vmatpush1.bf16.msra.mxu0 0
        %3747 = vmatprep.subr.bf16.mxu0 0
        %3748 = vmatpush1.bf16.msra.mxu0 0
        %3749 = vmatprep.subr.bf16.mxu0 0
        %3750 = vmatpush1.bf16.msra.mxu0 0
        %3751 = vmatprep.subr.bf16.mxu0 0
        %3752 = vmatpush1.bf16.msra.mxu0 0
        %3753 = vmatprep.subr.bf16.mxu0 0
        %3754 = vmatpush1.bf16.msra.mxu0 0
        %3755 = vmatprep.mubr.bf16.mxu0 0
        %3756 = vmatmul.mubr.bf16.gmra.mrb[0].mxu0 %v3718
        %v3757 = vpop.f32.mrb[0].mxu0
        %v3758 = vadd.f32 0.0, %v3757
        %v3759 = vpop.f32.mrb[0].mxu0
        %v3760 = vpop.f32.mrb[0].mxu0
        %v3761 = vpop.f32.mrb[0].mxu0
        %3762 = vdwg.mxu0
        %v3764 = vsel %vm2048, %v3710, 0
        %v3767 = vsel %vm2288, %v3714, 0
        %3769 = vmatprep.subr.bf16.mxu0 0
        %3770 = vmatpush1.bf16.msra.mxu0 %v3767
        %3771 = vmatprep.subr.bf16.mxu0 0
        %3772 = vmatpush1.bf16.msra.mxu0 0
        %3773 = vmatprep.subr.bf16.mxu0 0
        %3774 = vmatpush1.bf16.msra.mxu0 0
        %3775 = vmatprep.subr.bf16.mxu0 0
        %3776 = vmatpush1.bf16.msra.mxu0 0
        %3777 = vmatprep.subr.bf16.mxu0 0
        %3778 = vmatpush1.bf16.msra.mxu0 0
        %3779 = vmatprep.subr.bf16.mxu0 0
        %3780 = vmatpush1.bf16.msra.mxu0 0
        %3781 = vmatprep.subr.bf16.mxu0 0
        %3782 = vmatpush1.bf16.msra.mxu0 0
        %3783 = vmatprep.subr.bf16.mxu0 0
        %3784 = vmatpush1.bf16.msra.mxu0 0
        %3785 = vmatprep.subr.bf16.mxu0 0
        %3786 = vmatpush1.bf16.msra.mxu0 0
        %3787 = vmatprep.subr.bf16.mxu0 0
        %3788 = vmatpush1.bf16.msra.mxu0 0
        %3789 = vmatprep.subr.bf16.mxu0 0
        %3790 = vmatpush1.bf16.msra.mxu0 0
        %3791 = vmatprep.subr.bf16.mxu0 0
        %3792 = vmatpush1.bf16.msra.mxu0 0
        %3793 = vmatprep.subr.bf16.mxu0 0
        %3794 = vmatpush1.bf16.msra.mxu0 0
        %3795 = vmatprep.subr.bf16.mxu0 0
        %3796 = vmatpush1.bf16.msra.mxu0 0
        %3797 = vmatprep.subr.bf16.mxu0 0
        %3798 = vmatpush1.bf16.msra.mxu0 0
        %3799 = vmatprep.subr.bf16.mxu0 0
        %3800 = vmatpush1.bf16.msra.mxu0 0
        %3801 = vmatprep.mubr.bf16.mxu0 0
        %3802 = vmatmul.mubr.bf16.gmra.mrb[0].mxu0 %v3764
        %v3803 = vpop.f32.mrb[0].mxu0
        %v3804 = vadd.f32 0.0, %v3803
        %v3805 = vpop.f32.mrb[0].mxu0
        %v3806 = vpop.f32.mrb[0].mxu0
        %v3807 = vpop.f32.mrb[0].mxu0
        %3808 = vdwg.mxu0
        %v3810 = vsel %vm2048, %v3711, 0
        %v3813 = vsel %vm2288, %v3715, 0
        %3815 = vmatprep.subr.bf16.mxu0 0
        %3816 = vmatpush1.bf16.msra.mxu0 %v3813
        %3817 = vmatprep.subr.bf16.mxu0 0
        %3818 = vmatpush1.bf16.msra.mxu0 0
        %3819 = vmatprep.subr.bf16.mxu0 0
        %3820 = vmatpush1.bf16.msra.mxu0 0
        %3821 = vmatprep.subr.bf16.mxu0 0
        %3822 = vmatpush1.bf16.msra.mxu0 0
        %3823 = vmatprep.subr.bf16.mxu0 0
        %3824 = vmatpush1.bf16.msra.mxu0 0
        %3825 = vmatprep.subr.bf16.mxu0 0
        %3826 = vmatpush1.bf16.msra.mxu0 0
        %3827 = vmatprep.subr.bf16.mxu0 0
        %3828 = vmatpush1.bf16.msra.mxu0 0
        %3829 = vmatprep.subr.bf16.mxu0 0
        %3830 = vmatpush1.bf16.msra.mxu0 0
        %3831 = vmatprep.subr.bf16.mxu0 0
        %3832 = vmatpush1.bf16.msra.mxu0 0
        %3833 = vmatprep.subr.bf16.mxu0 0
        %3834 = vmatpush1.bf16.msra.mxu0 0
        %3835 = vmatprep.subr.bf16.mxu0 0
        %3836 = vmatpush1.bf16.msra.mxu0 0
        %3837 = vmatprep.subr.bf16.mxu0 0
        %3838 = vmatpush1.bf16.msra.mxu0 0
        %3839 = vmatprep.subr.bf16.mxu0 0
        %3840 = vmatpush1.bf16.msra.mxu0 0
        %3841 = vmatprep.subr.bf16.mxu0 0
        %3842 = vmatpush1.bf16.msra.mxu0 0
        %3843 = vmatprep.subr.bf16.mxu0 0
        %3844 = vmatpush1.bf16.msra.mxu0 0
        %3845 = vmatprep.subr.bf16.mxu0 0
        %3846 = vmatpush1.bf16.msra.mxu0 0
        %3847 = vmatprep.mubr.bf16.mxu0 0
        %3848 = vmatmul.mubr.bf16.gmra.mrb[0].mxu0 %v3810
        %v3849 = vpop.f32.mrb[0].mxu0
        %v3850 = vadd.f32 0.0, %v3849
        %v3851 = vpop.f32.mrb[0].mxu0
        %v3852 = vpop.f32.mrb[0].mxu0
        %v3853 = vpop.f32.mrb[0].mxu0
        %3854 = vdwg.mxu0
        %v3856 = vsel %vm2048, %v3712, 0
        %v3859 = vsel %vm2288, %v3716, 0
        %3861 = vmatprep.subr.bf16.mxu0 0
        %3862 = vmatpush1.bf16.msra.mxu0 %v3859
        %3863 = vmatprep.subr.bf16.mxu0 0
        %3864 = vmatpush1.bf16.msra.mxu0 0
        %3865 = vmatprep.subr.bf16.mxu0 0
        %3866 = vmatpush1.bf16.msra.mxu0 0
        %3867 = vmatprep.subr.bf16.mxu0 0
        %3868 = vmatpush1.bf16.msra.mxu0 0
        %3869 = vmatprep.subr.bf16.mxu0 0
        %3870 = vmatpush1.bf16.msra.mxu0 0
        %3871 = vmatprep.subr.bf16.mxu0 0
        %3872 = vmatpush1.bf16.msra.mxu0 0
        %3873 = vmatprep.subr.bf16.mxu0 0
        %3874 = vmatpush1.bf16.msra.mxu0 0
        %3875 = vmatprep.subr.bf16.mxu0 0
        %3876 = vmatpush1.bf16.msra.mxu0 0
        %3877 = vmatprep.subr.bf16.mxu0 0
        %3878 = vmatpush1.bf16.msra.mxu0 0
        %3879 = vmatprep.subr.bf16.mxu0 0
        %3880 = vmatpush1.bf16.msra.mxu0 0
        %3881 = vmatprep.subr.bf16.mxu0 0
        %3882 = vmatpush1.bf16.msra.mxu0 0
        %3883 = vmatprep.subr.bf16.mxu0 0
        %3884 = vmatpush1.bf16.msra.mxu0 0
        %3885 = vmatprep.subr.bf16.mxu0 0
        %3886 = vmatpush1.bf16.msra.mxu0 0
        %3887 = vmatprep.subr.bf16.mxu0 0
        %3888 = vmatpush1.bf16.msra.mxu0 0
        %3889 = vmatprep.subr.bf16.mxu0 0
        %3890 = vmatpush1.bf16.msra.mxu0 0
        %3891 = vmatprep.subr.bf16.mxu0 0
        %3892 = vmatpush1.bf16.msra.mxu0 0
        %3893 = vmatprep.mubr.bf16.mxu0 0
        %3894 = vmatmul.mubr.bf16.gmra.mrb[0].mxu0 %v3856
        %v3895 = vpop.f32.mrb[0].mxu0
        %v3896 = vadd.f32 0.0, %v3895
        %v3897 = vpop.f32.mrb[0].mxu0
        %v3898 = vpop.f32.mrb[0].mxu0
        %v3899 = vpop.f32.mrb[0].mxu0
        %3900 = vdwg.mxu0
        %v3901 = vld [vmem:[%s1033] sm:$0xf]
        %v3902 = vld [vmem:[%s1033 + $0x4] sm:$0xf]
        %v3903 = vld [vmem:[%s1033 + $0x8] sm:$0xf]
        %v3904 = vld [vmem:[%s1033 + $0xc] sm:$0xf]
        %v3905 = vld [vmem:[%s1227] sm:$0x1]
        %v3906 = vpack.c.bf16 %v3758, %v3758
        %v3907 = vpack.c.bf16 %v3804, %v3804
        %v3908 = vpack.c.bf16 %v3850, %v3850
        %v3909 = vpack.c.bf16 %v3896, %v3896
        %v3911 = vsel %vm2048, %v3906, 0
        %v3914 = vsel %vm2288, %v3901, 0
        %3916 = vmatprep.subr.bf16.mxu0 0
        %3917 = vmatpush1.bf16.msra.mxu0 %v3914
        %3918 = vmatprep.subr.bf16.mxu0 0
        %3919 = vmatpush1.bf16.msra.mxu0 0
        %3920 = vmatprep.subr.bf16.mxu0 0
        %3921 = vmatpush1.bf16.msra.mxu0 0
        %3922 = vmatprep.subr.bf16.mxu0 0
        %3923 = vmatpush1.bf16.msra.mxu0 0
        %3924 = vmatprep.subr.bf16.mxu0 0
        %3925 = vmatpush1.bf16.msra.mxu0 0
        %3926 = vmatprep.subr.bf16.mxu0 0
        %3927 = vmatpush1.bf16.msra.mxu0 0
        %3928 = vmatprep.subr.bf16.mxu0 0
        %3929 = vmatpush1.bf16.msra.mxu0 0
        %3930 = vmatprep.subr.bf16.mxu0 0
        %3931 = vmatpush1.bf16.msra.mxu0 0
        %3932 = vmatprep.subr.bf16.mxu0 0
        %3933 = vmatpush1.bf16.msra.mxu0 0
        %3934 = vmatprep.subr.bf16.mxu0 0
        %3935 = vmatpush1.bf16.msra.mxu0 0
        %3936 = vmatprep.subr.bf16.mxu0 0
        %3937 = vmatpush1.bf16.msra.mxu0 0
        %3938 = vmatprep.subr.bf16.mxu0 0
        %3939 = vmatpush1.bf16.msra.mxu0 0
        %3940 = vmatprep.subr.bf16.mxu0 0
        %3941 = vmatpush1.bf16.msra.mxu0 0
        %3942 = vmatprep.subr.bf16.mxu0 0
        %3943 = vmatpush1.bf16.msra.mxu0 0
        %3944 = vmatprep.subr.bf16.mxu0 0
        %3945 = vmatpush1.bf16.msra.mxu0 0
        %3946 = vmatprep.subr.bf16.mxu0 0
        %3947 = vmatpush1.bf16.msra.mxu0 0
        %3948 = vmatprep.mubr.bf16.mxu0 0
        %3949 = vmatmul.mubr.bf16.gmra.mrb[0].mxu0 %v3911
        %v3950 = vpop.f32.mrb[0].mxu0
        %v3951 = vadd.f32 0.0, %v3950
        %v3952 = vpop.f32.mrb[0].mxu0
        %v3953 = vpop.f32.mrb[0].mxu0
        %v3954 = vpop.f32.mrb[0].mxu0
        %3955 = vdwg.mxu0
        %v3957 = vsel %vm2048, %v3907, 0
        %v3960 = vsel %vm2288, %v3902, 0
        %3962 = vmatprep.subr.bf16.mxu0 0
        %3963 = vmatpush1.bf16.msra.mxu0 %v3960
        %3964 = vmatprep.subr.bf16.mxu0 0
        %3965 = vmatpush1.bf16.msra.mxu0 0
        %3966 = vmatprep.subr.bf16.mxu0 0
        %3967 = vmatpush1.bf16.msra.mxu0 0
        %3968 = vmatprep.subr.bf16.mxu0 0
        %3969 = vmatpush1.bf16.msra.mxu0 0
        %3970 = vmatprep.subr.bf16.mxu0 0
        %3971 = vmatpush1.bf16.msra.mxu0 0
        %3972 = vmatprep.subr.bf16.mxu0 0
        %3973 = vmatpush1.bf16.msra.mxu0 0
        %3974 = vmatprep.subr.bf16.mxu0 0
        %3975 = vmatpush1.bf16.msra.mxu0 0
        %3976 = vmatprep.subr.bf16.mxu0 0
        %3977 = vmatpush1.bf16.msra.mxu0 0
        %3978 = vmatprep.subr.bf16.mxu0 0
        %3979 = vmatpush1.bf16.msra.mxu0 0
        %3980 = vmatprep.subr.bf16.mxu0 0
        %3981 = vmatpush1.bf16.msra.mxu0 0
        %3982 = vmatprep.subr.bf16.mxu0 0
        %3983 = vmatpush1.bf16.msra.mxu0 0
        %3984 = vmatprep.subr.bf16.mxu0 0
        %3985 = vmatpush1.bf16.msra.mxu0 0
        %3986 = vmatprep.subr.bf16.mxu0 0
        %3987 = vmatpush1.bf16.msra.mxu0 0
        %3988 = vmatprep.subr.bf16.mxu0 0
        %3989 = vmatpush1.bf16.msra.mxu0 0
        %3990 = vmatprep.subr.bf16.mxu0 0
        %3991 = vmatpush1.bf16.msra.mxu0 0
        %3992 = vmatprep.subr.bf16.mxu0 0
        %3993 = vmatpush1.bf16.msra.mxu0 0
        %3994 = vmatprep.mubr.bf16.mxu0 0
        %3995 = vmatmul.mubr.bf16.gmra.mrb[0].mxu0 %v3957
        %v3996 = vpop.f32.mrb[0].mxu0
        %v3997 = vadd.f32 0.0, %v3996
        %v3998 = vpop.f32.mrb[0].mxu0
        %v3999 = vpop.f32.mrb[0].mxu0
        %v4000 = vpop.f32.mrb[0].mxu0
        %4001 = vdwg.mxu0
        %v4003 = vsel %vm2048, %v3908, 0
        %v4006 = vsel %vm2288, %v3903, 0
        %4008 = vmatprep.subr.bf16.mxu0 0
        %4009 = vmatpush1.bf16.msra.mxu0 %v4006
        %4010 = vmatprep.subr.bf16.mxu0 0
        %4011 = vmatpush1.bf16.msra.mxu0 0
        %4012 = vmatprep.subr.bf16.mxu0 0
        %4013 = vmatpush1.bf16.msra.mxu0 0
        %4014 = vmatprep.subr.bf16.mxu0 0
        %4015 = vmatpush1.bf16.msra.mxu0 0
        %4016 = vmatprep.subr.bf16.mxu0 0
        %4017 = vmatpush1.bf16.msra.mxu0 0
        %4018 = vmatprep.subr.bf16.mxu0 0
        %4019 = vmatpush1.bf16.msra.mxu0 0
        %4020 = vmatprep.subr.bf16.mxu0 0
        %4021 = vmatpush1.bf16.msra.mxu0 0
        %4022 = vmatprep.subr.bf16.mxu0 0
        %4023 = vmatpush1.bf16.msra.mxu0 0
        %4024 = vmatprep.subr.bf16.mxu0 0
        %4025 = vmatpush1.bf16.msra.mxu0 0
        %4026 = vmatprep.subr.bf16.mxu0 0
        %4027 = vmatpush1.bf16.msra.mxu0 0
        %4028 = vmatprep.subr.bf16.mxu0 0
        %4029 = vmatpush1.bf16.msra.mxu0 0
        %4030 = vmatprep.subr.bf16.mxu0 0
        %4031 = vmatpush1.bf16.msra.mxu0 0
        %4032 = vmatprep.subr.bf16.mxu0 0
        %4033 = vmatpush1.bf16.msra.mxu0 0
        %4034 = vmatprep.subr.bf16.mxu0 0
        %4035 = vmatpush1.bf16.msra.mxu0 0
        %4036 = vmatprep.subr.bf16.mxu0 0
        %4037 = vmatpush1.bf16.msra.mxu0 0
        %4038 = vmatprep.subr.bf16.mxu0 0
        %4039 = vmatpush1.bf16.msra.mxu0 0
        %4040 = vmatprep.mubr.bf16.mxu0 0
        %4041 = vmatmul.mubr.bf16.gmra.mrb[0].mxu0 %v4003
        %v4042 = vpop.f32.mrb[0].mxu0
        %v4043 = vadd.f32 0.0, %v4042
        %v4044 = vpop.f32.mrb[0].mxu0
        %v4045 = vpop.f32.mrb[0].mxu0
        %v4046 = vpop.f32.mrb[0].mxu0
        %4047 = vdwg.mxu0
        %v4049 = vsel %vm2048, %v3909, 0
        %v4052 = vsel %vm2288, %v3904, 0
        %4054 = vmatprep.subr.bf16.mxu0 0
        %4055 = vmatpush1.bf16.msra.mxu0 %v4052
        %4056 = vmatprep.subr.bf16.mxu0 0
        %4057 = vmatpush1.bf16.msra.mxu0 0
        %4058 = vmatprep.subr.bf16.mxu0 0
        %4059 = vmatpush1.bf16.msra.mxu0 0
        %4060 = vmatprep.subr.bf16.mxu0 0
        %4061 = vmatpush1.bf16.msra.mxu0 0
        %4062 = vmatprep.subr.bf16.mxu0 0
        %4063 = vmatpush1.bf16.msra.mxu0 0
        %4064 = vmatprep.subr.bf16.mxu0 0
        %4065 = vmatpush1.bf16.msra.mxu0 0
        %4066 = vmatprep.subr.bf16.mxu0 0
        %4067 = vmatpush1.bf16.msra.mxu0 0
        %4068 = vmatprep.subr.bf16.mxu0 0
        %4069 = vmatpush1.bf16.msra.mxu0 0
        %4070 = vmatprep.subr.bf16.mxu0 0
        %4071 = vmatpush1.bf16.msra.mxu0 0
        %4072 = vmatprep.subr.bf16.mxu0 0
        %4073 = vmatpush1.bf16.msra.mxu0 0
        %4074 = vmatprep.subr.bf16.mxu0 0
        %4075 = vmatpush1.bf16.msra.mxu0 0
        %4076 = vmatprep.subr.bf16.mxu0 0
        %4077 = vmatpush1.bf16.msra.mxu0 0
        %4078 = vmatprep.subr.bf16.mxu0 0
        %4079 = vmatpush1.bf16.msra.mxu0 0
        %4080 = vmatprep.subr.bf16.mxu0 0
        %4081 = vmatpush1.bf16.msra.mxu0 0
        %4082 = vmatprep.subr.bf16.mxu0 0
        %4083 = vmatpush1.bf16.msra.mxu0 0
        %4084 = vmatprep.subr.bf16.mxu0 0
        %4085 = vmatpush1.bf16.msra.mxu0 0
        %4086 = vmatprep.mubr.bf16.mxu0 0
        %4087 = vmatmul.mubr.bf16.gmra.mrb[0].mxu0 %v4049
        %v4088 = vpop.f32.mrb[0].mxu0
        %v4089 = vadd.f32 0.0, %v4088
        %v4090 = vpop.f32.mrb[0].mxu0
        %v4091 = vpop.f32.mrb[0].mxu0
        %v4092 = vpop.f32.mrb[0].mxu0
        %4093 = vdwg.mxu0
        %v4094 = vsel %vm1424, %v3951, 0.0
        %v4095 = vsel %vm1424, %v3997, 0.0
        %v4096 = vadd.f32 %v4094, %v4095
        %v4097 = vsel %vm1424, %v4043, 0.0
        %v4098 = vadd.f32 %v4096, %v4097
        %v4099 = vsel %vm1424, %v4089, 0.0
        %v4100 = vadd.f32 %v4098, %v4099
        %v4102 = vlaneseq
        %v4103 = vshrl.u32 %v4102, 7
        %v4104 = vsub.s32 0, %v4103
        %v4105 = vrot.slane %v3905, %v4104
        %v4107 = vadd.f32 %v4100, %v4105
        %v4108 = vadd.f32 %v2707, %v4107
        %v4109 = vld [vmem:[%s1247] sm:$0x1]
        %v4110 = vld [vmem:[%s1250] sm:$0x1]
        %v4111 = vsel %vm1424, %v4108, 0.0
        %4112 = vadd.xlane.f32.xlu0 %v4111
        %v4113 = vpop.xlane.xlu0 %4112
        %v4114 = vmul.f32 %v4113, %v2683
        %v4115 = vsub.f32 %v4108, %v4114
        %v4116 = vmul.f32 %v4115, %v4115
        %v4117 = vsel %vm1424, %v4116, 0.0
        %4118 = vadd.xlane.f32.xlu0 %v4117
        %v4119 = vpop.xlane.xlu0 %4118
        %v4120 = vmul.f32 %v4119, %v2683
        %v4121 = vadd.f32 %v4120, 1e-05
        %v4122 = vrsqrt.pop %v4121
        %v4123 = vmul.f32 %v4115, %v4122
        %v4125 = vlaneseq
        %v4126 = vshrl.u32 %v4125, 7
        %v4127 = vsub.s32 0, %v4126
        %v4128 = vrot.slane %v4109, %v4127
        %v4130 = vmul.f32 %v4123, %v4128
        %v4132 = vlaneseq
        %v4133 = vshrl.u32 %v4132, 7
        %v4134 = vsub.s32 0, %v4133
        %v4135 = vrot.slane %v4110, %v4134
        %v4137 = vadd.f32 %v4130, %v4135
        %v4138 = vld [vmem:[%s1042] sm:$0xf]
        %v4139 = vld [vmem:[%s1042 + $0x4] sm:$0xf]
        %v4140 = vld [vmem:[%s1042 + $0x8] sm:$0xf]
        %v4141 = vld [vmem:[%s1042 + $0xc] sm:$0xf]
        %v4142 = vld [vmem:[%s1230] sm:$0x1]
        %v4143 = vld [vmem:[%s1235] sm:$0xf]
        %v4144 = vld [vmem:[%s1235 + $0x4] sm:$0xf]
        %v4145 = vld [vmem:[%s1235 + $0x8] sm:$0xf]
        %v4146 = vld [vmem:[%s1235 + $0xc] sm:$0xf]
        %v4147 = vld [vmem:[%s1235 + $0x10] sm:$0xf]
        %v4148 = vld [vmem:[%s1235 + $0x14] sm:$0xf]
        %v4149 = vld [vmem:[%s1235 + $0x18] sm:$0xf]
        %v4150 = vld [vmem:[%s1235 + $0x1c] sm:$0xf]
        %v4151 = vld [vmem:[%s1238] sm:$0x1]
        %v4152 = vpack.c.bf16 %v4137, %v4137
        %v4154 = vlaneseq
        %v4155 = vshrl.u32 %v4154, 7
        %v4156 = vsub.s32 0, %v4155
        %v4157 = vrot.slane %v4142, %v4156
        %v4163 = vunpack.c.l.b16 %v4138
        %v4164 = vunpack.c.l.b16 %v4139
        %v4165 = vunpack.c.l.b16 %v4140
        %v4166 = vunpack.c.l.b16 %v4141
        %v4167 = vpack.c.b16 %v4164, %v4163
        %v4168 = vpack.c.b16 %v4166, %v4165
        %v4172 = vsel %vm1424, %v4152, 0
        %4174 = vmatprep.subr.bf16.mxu0 0
        %4175 = vmatpush1.bf16.msra.mxu0 %v4167
        %4176 = vmatprep.subr.bf16.mxu0 0
        %4177 = vmatpush1.bf16.msra.mxu0 %v4168
        %4178 = vmatprep.subr.bf16.mxu0 0
        %4179 = vmatpush1.bf16.msra.mxu0 0
        %4180 = vmatprep.subr.bf16.mxu0 0
        %4181 = vmatpush1.bf16.msra.mxu0 0
        %4182 = vmatprep.subr.bf16.mxu0 0
        %4183 = vmatpush1.bf16.msra.mxu0 0
        %4184 = vmatprep.subr.bf16.mxu0 0
        %4185 = vmatpush1.bf16.msra.mxu0 0
        %4186 = vmatprep.subr.bf16.mxu0 0
        %4187 = vmatpush1.bf16.msra.mxu0 0
        %4188 = vmatprep.subr.bf16.mxu0 0
        %4189 = vmatpush1.bf16.msra.mxu0 0
        %4190 = vmatprep.subr.bf16.mxu0 0
        %4191 = vmatpush1.bf16.msra.mxu0 0
        %4192 = vmatprep.subr.bf16.mxu0 0
        %4193 = vmatpush1.bf16.msra.mxu0 0
        %4194 = vmatprep.subr.bf16.mxu0 0
        %4195 = vmatpush1.bf16.msra.mxu0 0
        %4196 = vmatprep.subr.bf16.mxu0 0
        %4197 = vmatpush1.bf16.msra.mxu0 0
        %4198 = vmatprep.subr.bf16.mxu0 0
        %4199 = vmatpush1.bf16.msra.mxu0 0
        %4200 = vmatprep.subr.bf16.mxu0 0
        %4201 = vmatpush1.bf16.msra.mxu0 0
        %4202 = vmatprep.subr.bf16.mxu0 0
        %4203 = vmatpush1.bf16.msra.mxu0 0
        %4204 = vmatprep.subr.bf16.mxu0 0
        %4205 = vmatpush1.bf16.msra.mxu0 0
        %4206 = vmatprep.mubr.bf16.mxu0 0
        %4207 = vmatmul.mubr.bf16.gmra.mrb[0].mxu0 %v4172
        %v4208 = vpop.f32.mrb[0].mxu0
        %v4209 = vadd.f32 %v4157, %v4208
        %v4210 = vpop.f32.mrb[0].mxu0
        %v4211 = vpop.f32.mrb[0].mxu0
        %v4212 = vpop.f32.mrb[0].mxu0
        %4213 = vdwg.mxu0
        %v4214 = vmax.f32 %v4209, 0.0
        %v4215 = vpack.c.bf16 %v4214, %v4214
        %v4217 = vlaneseq
        %v4218 = vshrl.u32 %v4217, 7
        %v4219 = vsub.s32 0, %v4218
        %v4220 = vrot.slane %v4151, %v4219
        %v4230 = vunpack.c.l.b16 %v4143
        %v4231 = vunpack.c.l.b16 %v4144
        %v4232 = vunpack.c.l.b16 %v4145
        %v4233 = vunpack.c.l.b16 %v4146
        %v4234 = vunpack.c.l.b16 %v4147
        %v4235 = vunpack.c.l.b16 %v4148
        %v4236 = vunpack.c.l.b16 %v4149
        %v4237 = vunpack.c.l.b16 %v4150
        %v4238 = vpack.c.b16 %v4231, %v4230
        %v4239 = vpack.c.b16 %v4233, %v4232
        %v4240 = vpack.c.b16 %v4235, %v4234
        %v4241 = vpack.c.b16 %v4237, %v4236
        %vm4246 = vcmask 523264
        %v4248 = vsel %vm4246, %v4215, 0
        %4250 = vmatprep.subr.bf16.mxu0 0
        %4251 = vmatpush1.bf16.msra.mxu0 %v4238
        %4252 = vmatprep.subr.bf16.mxu0 0
        %4253 = vmatpush1.bf16.msra.mxu0 %v4239
        %4254 = vmatprep.subr.bf16.mxu0 0
        %4255 = vmatpush1.bf16.msra.mxu0 %v4240
        %4256 = vmatprep.subr.bf16.mxu0 0
        %4257 = vmatpush1.bf16.msra.mxu0 %v4241
        %4258 = vmatprep.subr.bf16.mxu0 0
        %4259 = vmatpush1.bf16.msra.mxu0 0
        %4260 = vmatprep.subr.bf16.mxu0 0
        %4261 = vmatpush1.bf16.msra.mxu0 0
        %4262 = vmatprep.subr.bf16.mxu0 0
        %4263 = vmatpush1.bf16.msra.mxu0 0
        %4264 = vmatprep.subr.bf16.mxu0 0
        %4265 = vmatpush1.bf16.msra.mxu0 0
        %4266 = vmatprep.subr.bf16.mxu0 0
        %4267 = vmatpush1.bf16.msra.mxu0 0
        %4268 = vmatprep.subr.bf16.mxu0 0
        %4269 = vmatpush1.bf16.msra.mxu0 0
        %4270 = vmatprep.subr.bf16.mxu0 0
        %4271 = vmatpush1.bf16.msra.mxu0 0
        %4272 = vmatprep.subr.bf16.mxu0 0
        %4273 = vmatpush1.bf16.msra.mxu0 0
        %4274 = vmatprep.subr.bf16.mxu0 0
        %4275 = vmatpush1.bf16.msra.mxu0 0
        %4276 = vmatprep.subr.bf16.mxu0 0
        %4277 = vmatpush1.bf16.msra.mxu0 0
        %4278 = vmatprep.subr.bf16.mxu0 0
        %4279 = vmatpush1.bf16.msra.mxu0 0
        %4280 = vmatprep.subr.bf16.mxu0 0
        %4281 = vmatpush1.bf16.msra.mxu0 0
        %4282 = vmatprep.mubr.bf16.mxu0 0
        %4283 = vmatmul.mubr.bf16.gmra.mrb[0].mxu0 %v4248
        %v4284 = vpop.f32.mrb[0].mxu0
        %v4285 = vadd.f32 %v4220, %v4284
        %v4286 = vpop.f32.mrb[0].mxu0
        %v4287 = vpop.f32.mrb[0].mxu0
        %v4288 = vpop.f32.mrb[0].mxu0
        %4289 = vdwg.mxu0
        %v4290 = vadd.f32 %v4137, %v4285
        %v4291 = vld [vmem:[%s1253] sm:$0x1]
        %v4292 = vld [vmem:[%s1256] sm:$0x1]
        %v4293 = vsel %vm1424, %v4290, 0.0
        %4294 = vadd.xlane.f32.xlu0 %v4293
        %v4295 = vpop.xlane.xlu0 %4294
        %v4296 = vmul.f32 %v4295, %v2683
        %v4297 = vsub.f32 %v4290, %v4296
        %v4298 = vmul.f32 %v4297, %v4297
        %v4299 = vsel %vm1424, %v4298, 0.0
        %4300 = vadd.xlane.f32.xlu0 %v4299
        %v4301 = vpop.xlane.xlu0 %4300
        %v4302 = vmul.f32 %v4301, %v2683
        %v4303 = vadd.f32 %v4302, 1e-05
        %v4304 = vrsqrt.pop %v4303
        %v4305 = vmul.f32 %v4297, %v4304
        %v4307 = vlaneseq
        %v4308 = vshrl.u32 %v4307, 7
        %v4309 = vsub.s32 0, %v4308
        %v4310 = vrot.slane %v4291, %v4309
        %v4312 = vmul.f32 %v4305, %v4310
        %v4314 = vlaneseq
        %v4315 = vshrl.u32 %v4314, 7
        %v4316 = vsub.s32 0, %v4315
        %v4317 = vrot.slane %v4292, %v4316
        %v4319 = vadd.f32 %v4312, %v4317
        %4320 = vst.msk [vmem:[#allocation2] sm:$0xff] %vm1424, %v4319
        %p4321 = scmp.eq.s32.totalorder %s50, 1
        // Predicated region
        $region153: #{_lambda_.3} parent=127 // pred_check
          %p4322 = pneg %p4321
        $region154: #{_lambda_.3} parent=127 // pred_check_branch
          %4324 = sbr.rel (%p4322) target = $region156
        $region155: #{_lambda_.3} parent=127 // pred_region
          %v4325 = vld [vmem:[%s23] sm:$0x1]
          %v4326 = vld [vmem:[%s24] sm:$0x1]
          %v4327 = vsel %vm1424, %v4319, 0.0
          %4328 = vadd.xlane.f32.xlu0 %v4327
          %v4329 = vpop.xlane.xlu0 %4328
          %v4330 = vmul.f32 %v4329, %v2683
          %v4331 = vsub.f32 %v4319, %v4330
          %v4332 = vmul.f32 %v4331, %v4331
          %v4333 = vsel %vm1424, %v4332, 0.0
          %4334 = vadd.xlane.f32.xlu0 %v4333
          %v4335 = vpop.xlane.xlu0 %4334
          %v4336 = vmul.f32 %v4335, %v2683
          %v4337 = vadd.f32 %v4336, 1e-05
          %v4338 = vrsqrt.pop %v4337
          %v4339 = vmul.f32 %v4331, %v4338
          %v4341 = vlaneseq
          %v4342 = vshrl.u32 %v4341, 7
          %v4343 = vsub.s32 0, %v4342
          %v4344 = vrot.slane %v4325, %v4343
          %v4346 = vmul.f32 %v4339, %v4344
          %v4348 = vlaneseq
          %v4349 = vshrl.u32 %v4348, 7
          %v4350 = vsub.s32 0, %v4349
          %v4351 = vrot.slane %v4326, %v4350
          %v4353 = vadd.f32 %v4346, %v4351
          %v4354 = vpack.c.bf16 %v4353, %v4353
          %v4355 = vld [vmem:[%s25] sm:$0xf]
          %v4356 = vld [vmem:[%s25 + $0x4] sm:$0xf]
          %v4357 = vld [vmem:[%s25 + $0x8] sm:$0xf]
          %v4358 = vld [vmem:[%s25 + $0xc] sm:$0xf]
          %v4359 = vld [vmem:[%s26] sm:$0x1]
          %v4361 = vlaneseq
          %v4362 = vshrl.u32 %v4361, 7
          %v4363 = vsub.s32 0, %v4362
          %v4364 = vrot.slane %v4359, %v4363
          %v4370 = vunpack.c.l.b16 %v4355
          %v4371 = vunpack.c.l.b16 %v4356
          %v4372 = vunpack.c.l.b16 %v4357
          %v4373 = vunpack.c.l.b16 %v4358
          %v4374 = vpack.c.b16 %v4371, %v4370
          %v4375 = vpack.c.b16 %v4373, %v4372
          %v4379 = vsel %vm1424, %v4354, 0
          %4381 = vmatprep.subr.bf16.mxu0 0
          %4382 = vmatpush1.bf16.msra.mxu0 %v4374
          %4383 = vmatprep.subr.bf16.mxu0 0
          %4384 = vmatpush1.bf16.msra.mxu0 %v4375
          %4385 = vmatprep.subr.bf16.mxu0 0
          %4386 = vmatpush1.bf16.msra.mxu0 0
          %4387 = vmatprep.subr.bf16.mxu0 0
          %4388 = vmatpush1.bf16.msra.mxu0 0
          %4389 = vmatprep.subr.bf16.mxu0 0
          %4390 = vmatpush1.bf16.msra.mxu0 0
          %4391 = vmatprep.subr.bf16.mxu0 0
          %4392 = vmatpush1.bf16.msra.mxu0 0
          %4393 = vmatprep.subr.bf16.mxu0 0
          %4394 = vmatpush1.bf16.msra.mxu0 0
          %4395 = vmatprep.subr.bf16.mxu0 0
          %4396 = vmatpush1.bf16.msra.mxu0 0
          %4397 = vmatprep.subr.bf16.mxu0 0
          %4398 = vmatpush1.bf16.msra.mxu0 0
          %4399 = vmatprep.subr.bf16.mxu0 0
          %4400 = vmatpush1.bf16.msra.mxu0 0
          %4401 = vmatprep.subr.bf16.mxu0 0
          %4402 = vmatpush1.bf16.msra.mxu0 0
          %4403 = vmatprep.subr.bf16.mxu0 0
          %4404 = vmatpush1.bf16.msra.mxu0 0
          %4405 = vmatprep.subr.bf16.mxu0 0
          %4406 = vmatpush1.bf16.msra.mxu0 0
          %4407 = vmatprep.subr.bf16.mxu0 0
          %4408 = vmatpush1.bf16.msra.mxu0 0
          %4409 = vmatprep.subr.bf16.mxu0 0
          %4410 = vmatpush1.bf16.msra.mxu0 0
          %4411 = vmatprep.subr.bf16.mxu0 0
          %4412 = vmatpush1.bf16.msra.mxu0 0
          %4413 = vmatprep.mubr.bf16.mxu0 0
          %4414 = vmatmul.mubr.bf16.gmra.mrb[0].mxu0 %v4379
          %v4415 = vpop.f32.mrb[0].mxu0
          %v4416 = vadd.f32 %v4364, %v4415
          %v4417 = vpop.f32.mrb[0].mxu0
          %v4418 = vpop.f32.mrb[0].mxu0
          %v4419 = vpop.f32.mrb[0].mxu0
          %4420 = vdwg.mxu0
          %4421 = vst [vmem:[%s1260] sm:$0xff] %v4416
        $region156: #{_lambda_.3} parent=127 // pred_fallthru
          _
        %p4422 = scmp.lt.s32.totalorder %s49, 1
        %s4423 = scalar_select %p4422, %s49, 1
        %s4424 = smul.addr %s4423, 8
        %s4425 = scalar_lea.vmem %s27, %s4424
        // Predicated region
        $region157: #{_lambda_.3} parent=127 // pred_check
          %p4426 = pneg %p752
        $region158: #{_lambda_.3} parent=127 // pred_check_branch
          %4428 = sbr.rel (%p4426) target = $region160
        $region159: #{_lambda_.3} parent=127 // pred_region
          _
        $region160: #{_lambda_.3} parent=127 // pred_fallthru
          _
      $region128: #{_lambda_.3} parent=5 // pred_fallthru
        _
      %p4429 = scmp.le.s32.totalorder 2, %s40
      // Predicated region
      $region161: #{_lambda_.3} parent=5 // pred_check
        %p4430 = pneg %p4429
      $region162: #{_lambda_.3} parent=5 // pred_check_branch
        %4432 = sbr.rel (%p4430) target = $region164
      $region163: #{_lambda_.3} parent=5 // pred_region
        %s4433 = ssub.s32 %s40, 2
        // Predicated region
        $region165: #{_lambda_.3} parent=163 // pred_check
          %p4434 = pneg %p758
        $region166: #{_lambda_.3} parent=163 // pred_check_branch
          %4436 = sbr.rel (%p4434) target = $region168
        $region167: #{_lambda_.3} parent=163 // pred_region
          %p4437 = scmp.lt.s32.totalorder %s51, 1
          %s4438 = scalar_select %p4437, %s51, 1
          %s4439 = smul.addr %s4438, 8
          %s4440 = scalar_lea.vmem %s27, %s4439
        $region168: #{_lambda_.3} parent=163 // pred_fallthru
          _
      $region164: #{_lambda_.3} parent=5 // pred_fallthru
        _
    $region6: #{_lambda_.3} parent=1 // loop_footer
      %s44 = sadd.s32 1, %s40
    $region7: #{_lambda_.3} parent=1 // loop_footer_branch
      %39 = sbr.rel target = $region3
    $region8: #{_lambda_.3} parent=1 // loop_exit
      _
    %4441 = vsyncpa [#allocation4], 1
    %s4442 = scalar_lea.sflag [#allocation4], 1
    %4443 = vsyncpa %s4442, 1
    %4444 = vsyncpa [#allocation6], 1
    %s4445 = scalar_lea.sflag [#allocation6], 1
    %4446 = vsyncpa %s4445, 1
    %4447 = vsyncpa [#allocation9], 1
    %s4448 = scalar_lea.sflag [#allocation9], 1
    %4449 = vsyncpa %s4448, 1

</llo_original>
